<compile_context>
chip_gen: v6e
topology: v6e:2x2x1
jax: 0.10.0
libtpu: 0.0.40
codegen_flags: <defaults>
</compile_context>

<pallas_src>
import numpy as np
import jax
import jax.numpy as jnp
from jax.experimental import pallas as pl
from jax.experimental.pallas import tpu as pltpu

_VMEM_LIMIT_BYTES = 32 * 1024 * 1024   # safe on v5e/v6e (128 MiB) and v7x (64 MiB)
_BN_EPS = 1e-5


def _cparams(semantics):
    return pltpu.CompilerParams(dimension_semantics=semantics,
                                vmem_limit_bytes=_VMEM_LIMIT_BYTES)


def _row_tile(m, target=512):
    """Largest multiple-of-8 divisor of m not above `target` (else m itself)."""
    if m <= target:
        return m
    t = (target // 8) * 8
    while t >= 8:
        if m % t == 0:
            return t
        t -= 8
    return m


# ----------------------------- Pallas kernels -------------------------------

def linear_tiled(x, w, b=None):
    """Row-tiled 1x1 conv: y = x @ w (+ b).  x:(M,Cin), w:(Cin,Cout), b:(1,Cout)."""
    M, Cin = x.shape
    Cout = w.shape[1]
    TM = _row_tile(M)
    has_bias = b is not None

    def kernel(*refs):
        if has_bias:
            x_ref, w_ref, b_ref, o_ref = refs
        else:
            x_ref, w_ref, o_ref = refs
        y = jnp.dot(x_ref[...], w_ref[...], preferred_element_type=jnp.float32)
        if has_bias:
            y = y + b_ref[...]
        o_ref[...] = y

    in_specs = [pl.BlockSpec((TM, Cin), lambda i: (i, 0)),
                pl.BlockSpec((Cin, Cout), lambda i: (0, 0))]
    args = [x, w]
    if has_bias:
        in_specs.append(pl.BlockSpec((1, Cout), lambda i: (0, 0)))
        args.append(b)

    return pl.pallas_call(
        kernel,
        out_shape=jax.ShapeDtypeStruct((M, Cout), jnp.float32),
        grid=(M // TM,),
        in_specs=in_specs,
        out_specs=pl.BlockSpec((TM, Cout), lambda i: (i, 0)),
        compiler_params=_cparams(("parallel",)),
    )(*args)


def linear_bn_stats_tiled(x, w, target_rows=256):
    """Row-tiled y = x @ w, with per-channel sum / sum-of-squares accumulated
    across the row-tile grid (output-accumulator pattern) for a fused BN."""
    M, Cin = x.shape
    Cout = w.shape[1]
    TM = _row_tile(M, target_rows)

    def kernel(x_ref, w_ref, y_ref, s_ref):
        y = jnp.dot(x_ref[...], w_ref[...], preferred_element_type=jnp.float32)
        y_ref[...] = y

        @pl.when(pl.program_id(0) == 0)
        def _():
            s_ref[...] = jnp.zeros_like(s_ref)

        s_ref[...] += jnp.concatenate(
            [jnp.sum(y, axis=0, keepdims=True),
             jnp.sum(y * y, axis=0, keepdims=True)], axis=0)

    return pl.pallas_call(
        kernel,
        out_shape=(jax.ShapeDtypeStruct((M, Cout), jnp.float32),
                   jax.ShapeDtypeStruct((2, Cout), jnp.float32)),
        grid=(M // TM,),
        in_specs=[pl.BlockSpec((TM, Cin), lambda i: (i, 0)),
                  pl.BlockSpec((Cin, Cout), lambda i: (0, 0))],
        out_specs=(pl.BlockSpec((TM, Cout), lambda i: (i, 0)),
                   pl.BlockSpec((2, Cout), lambda i: (0, 0))),
        compiler_params=_cparams(("arbitrary",)),   # stats accumulate across grid
    )(x, w)


def em_bases(x_bnc, mu0, stage_num=3):
    """EM iterations producing bases mu (B, C, K) from x in (B, N, C) layout.
    # TODO(synk): the EM module source is not provided; this is the standard
    # EMANet EM step (softmax responsibilities, l1 norm over N, l2 norm over C).
    """
    B, N, C = x_bnc.shape
    K = mu0.shape[1]

    def kernel(x_ref, mu0_ref, o_ref):
        x = x_ref[...]              # (N, C)
        xt = x.T                    # (C, N) — computed once, hoisted out of loop
        mu = mu0_ref[...]           # (C, K)
        for _ in range(stage_num):
            z = jnp.dot(x, mu, preferred_element_type=jnp.float32)      # (N, K)
            z = z - jnp.max(z, axis=-1, keepdims=True)
            z = jnp.exp(z)
            z = z * pl.reciprocal(jnp.sum(z, axis=-1, keepdims=True), approx=True)
            z = z * pl.reciprocal(1e-6 + jnp.sum(z, axis=0, keepdims=True),
                                  approx=True)
            mu_new = jnp.dot(xt, z, preferred_element_type=jnp.float32)  # (C, K)
            mu = mu_new * pl.reciprocal(
                1e-6 + jnp.sqrt(jnp.sum(mu_new * mu_new, axis=0, keepdims=True)),
                approx=True)
        o_ref[...] = mu

    return pl.pallas_call(
        kernel,
        out_shape=jax.ShapeDtypeStruct((B, C, K), jnp.float32),
        grid=(B,),
        in_specs=[pl.BlockSpec((None, N, C), lambda b: (b, 0, 0)),
                  pl.BlockSpec((C, K), lambda b: (0, 0))],
        out_specs=pl.BlockSpec((None, C, K), lambda b: (b, 0, 0)),
        compiler_params=_cparams(("parallel",)),
    )(x_bnc, mu0)


def attn_rebuild(base, wf, rebuild_w):
    """similarity = softmax_k(wf @ base); m_up = similarity @ base^T;
    r = m_up @ rebuild_w (rebuild 1x1 conv fused).  Also accumulates the
    per-channel BN statistics of r across the batch grid."""
    B, C, K = base.shape
    N = wf.shape[1]

    def kernel(base_ref, wf_ref, w_ref, r_ref, s_ref):
        bm = base_ref[...]          # (C, K)
        x = wf_ref[...]             # (N, C)
        z = jnp.dot(x, bm, preferred_element_type=jnp.float32)          # (N, K)
        z = z - jnp.max(z, axis=-1, keepdims=True)
        z = jnp.exp(z)
        sim = z * pl.reciprocal(jnp.sum(z, axis=-1, keepdims=True), approx=True)
        m_up = jnp.dot(sim, bm.T, preferred_element_type=jnp.float32)   # (N, C)
        r = jnp.dot(m_up, w_ref[...], preferred_element_type=jnp.float32)
        r_ref[...] = r

        @pl.when(pl.program_id(0) == 0)
        def _():
            s_ref[...] = jnp.zeros_like(s_ref)

        s_ref[...] += jnp.concatenate(
            [jnp.sum(r, axis=0, keepdims=True),
             jnp.sum(r * r, axis=0, keepdims=True)], axis=0)

    return pl.pallas_call(
        kernel,
        out_shape=(jax.ShapeDtypeStruct((B, N, C), jnp.float32),
                   jax.ShapeDtypeStruct((2, C), jnp.float32)),
        grid=(B,),
        in_specs=[pl.BlockSpec((None, C, K), lambda b: (b, 0, 0)),
                  pl.BlockSpec((None, N, C), lambda b: (b, 0, 0)),
                  pl.BlockSpec((C, C), lambda b: (0, 0))],
        out_specs=(pl.BlockSpec((None, N, C), lambda b: (b, 0, 0)),
                   pl.BlockSpec((2, C), lambda b: (0, 0))),
        compiler_params=_cparams(("arbitrary",)),   # stats accumulate across grid
    )(base, wf, rebuild_w)


def _bn_from_stats(stats, inv_m, eps=_BN_EPS):
    mean = stats[0:1, :] * inv_m
    var = stats[1:2, :] * inv_m - mean * mean
    return mean, jax.lax.rsqrt(var + eps)


def bn_add_relu(a, a_stats, b, b_stats):
    """relu(BN(a) + BN(b)) — two BNs, the add and the ReLU fused in one pass."""
    M, C = a.shape
    TM = _row_tile(M)
    inv_m = 1.0 / M

    def kernel(a_ref, as_ref, b_ref, bs_ref, o_ref):
        a_mean, a_rstd = _bn_from_stats(as_ref[...], inv_m)
        b_mean, b_rstd = _bn_from_stats(bs_ref[...], inv_m)
        an = (a_ref[...] - a_mean) * a_rstd
        bn = (b_ref[...] - b_mean) * b_rstd
        o_ref[...] = jnp.maximum(an + bn, 0.0)

    return pl.pallas_call(
        kernel,
        out_shape=jax.ShapeDtypeStruct((M, C), jnp.float32),
        grid=(M // TM,),
        in_specs=[pl.BlockSpec((TM, C), lambda i: (i, 0)),
                  pl.BlockSpec((2, C), lambda i: (0, 0)),
                  pl.BlockSpec((TM, C), lambda i: (i, 0)),
                  pl.BlockSpec((2, C), lambda i: (0, 0))],
        out_specs=pl.BlockSpec((TM, C), lambda i: (i, 0)),
        compiler_params=_cparams(("parallel",)),
    )(a, a_stats, b, b_stats)


def bn_relu_linear(x, x_stats, w, b):
    """(BN(x) -> ReLU) @ w + b fused: conv_out's BN+ReLU and the final 1x1
    projection (lane-padded output) in one row-tiled pass."""
    M, C = x.shape
    Cout = w.shape[1]
    TM = _row_tile(M)
    inv_m = 1.0 / M

    def kernel(x_ref, xs_ref, w_ref, b_ref, o_ref):
        mean, rstd = _bn_from_stats(xs_ref[...], inv_m)
        y = jnp.maximum((x_ref[...] - mean) * rstd, 0.0)
        o_ref[...] = jnp.dot(y, w_ref[...],
                             preferred_element_type=jnp.float32) + b_ref[...]

    return pl.pallas_call(
        kernel,
        out_shape=jax.ShapeDtypeStruct((M, Cout), jnp.float32),
        grid=(M // TM,),
        in_specs=[pl.BlockSpec((TM, C), lambda i: (i, 0)),
                  pl.BlockSpec((2, C), lambda i: (0, 0)),
                  pl.BlockSpec((C, Cout), lambda i: (0, 0)),
                  pl.BlockSpec((1, Cout), lambda i: (0, 0))],
        out_specs=pl.BlockSpec((TM, Cout), lambda i: (i, 0)),
        compiler_params=_cparams(("parallel",)),
    )(x, x_stats, w, b)


# --------------------- bilinear resize (align_corners=True) -----------------

def _bilinear_matrix(out_size, in_size):
    if out_size == 1:
        coords = np.zeros((1,), np.float64)
    else:
        coords = np.arange(out_size, dtype=np.float64) * (in_size - 1) / (out_size - 1)
    lo = np.clip(np.floor(coords).astype(np.int64), 0, in_size - 1)
    hi = np.minimum(lo + 1, in_size - 1)
    frac = coords - lo
    A = np.zeros((out_size, in_size), np.float64)
    A[np.arange(out_size), lo] += 1.0 - frac
    A[np.arange(out_size), hi] += frac
    return jnp.asarray(A, jnp.float32)


def bilinear_resize_nchw(x, out_h, out_w):
    """F.interpolate(mode='bilinear', align_corners=True) as ONE fused Pallas
    kernel: both axes resized on the VMEM tile, no HBM intermediate."""
    B, C, H, W = x.shape
    if (out_h, out_w) == (H, W):
        return x
    Ah = _bilinear_matrix(out_h, H)   # (out_h, H)
    Aw = _bilinear_matrix(out_w, W)   # (out_w, W)
    BC = B * C

    def kernel(x_ref, ah_ref, aw_ref, o_ref):
        t = jnp.dot(ah_ref[...], x_ref[...],
                    preferred_element_type=jnp.float32)            # (out_h, W)
        o_ref[...] = jnp.dot(t, aw_ref[...].T,
                             preferred_element_type=jnp.float32)   # (out_h, out_w)

    y = pl.pallas_call(
        kernel,
        out_shape=jax.ShapeDtypeStruct((BC, out_h, out_w), jnp.float32),
        grid=(BC,),
        in_specs=[pl.BlockSpec((None, H, W), lambda i: (i, 0, 0)),
                  pl.BlockSpec((out_h, H), lambda i: (0, 0)),
                  pl.BlockSpec((out_w, W), lambda i: (0, 0))],
        out_specs=pl.BlockSpec((None, out_h, out_w), lambda i: (i, 0, 0)),
        compiler_params=_cparams(("parallel",)),
    )(x.reshape(BC, H, W), Ah, Aw)
    return y.reshape(B, C, out_h, out_w)


# ----------------------------- wrapper helpers -------------------------------

def im2col_3x3(x_nhwc):
    """3x3 / stride-1 / pad-1 im2col (layout plumbing): (B,H,W,C)->(B*H*W, 9C)."""
    B, H, W, C = x_nhwc.shape
    xp = jnp.pad(x_nhwc, ((0, 0), (1, 1), (1, 1), (0, 0)))
    cols = [xp[:, dy:dy + H, dx:dx + W, :] for dy in range(3) for dx in range(3)]
    return jnp.concatenate(cols, axis=-1).reshape(B * H * W, 9 * C)


def init_params(key, channel_h, channel_l, n_class, k):
    C = channel_h + channel_l
    ncp = ((n_class + 127) // 128) * 128          # lane-padded n_class
    ks = jax.random.split(key, 10)

    def kaiming(kk, shape, fan_in):
        return jax.random.normal(kk, shape, jnp.float32) * np.sqrt(2.0 / fan_in)

    def bias_init(kk, shape, fan_in):
        b = 1.0 / np.sqrt(fan_in)
        return jax.random.uniform(kk, shape, jnp.float32, -b, b)

    mu = jax.random.normal(ks[1], (C, k), jnp.float32) * np.sqrt(2.0 / k)
    mu = mu / (1e-6 + jnp.linalg.norm(mu, axis=0, keepdims=True))

    w2 = kaiming(ks[8], (C, n_class), C)
    b2 = bias_init(ks[9], (1, n_class), C)
    w2_pad = jnp.zeros((C, ncp), jnp.float32).at[:, :n_class].set(w2)
    b2_pad = jnp.zeros((1, ncp), jnp.float32).at[:, :n_class].set(b2)

    return dict(
        em_conv1_w=kaiming(ks[0], (C, C), C),                 # EM 1x1 conv
        em_conv1_b=bias_init(ks[2], (1, C), C),
        em_mu=mu,                                             # (C, K)
        attn_w=kaiming(ks[3], (C, C), C),                     # conv_trans_attention
        attn_b=bias_init(ks[4], (1, C), C),
        rebuild_w=kaiming(ks[5], (C, C), C),                  # rebuild_conv 1x1
        trans_low_w=kaiming(ks[6], (3, 3, C, C), C * 9).reshape(9 * C, C),
        out_conv1_w=kaiming(ks[7], (3, 3, C, C), C * 9).reshape(9 * C, C),
        out_conv2_w_pad=w2_pad,
        out_conv2_b_pad=b2_pad,
    )


def ema_up_decoder_forward(params, x_h, x_l, n_class):
    B, Ch, Hh, Wh = x_h.shape
    _, Cl, Hl, Wl = x_l.shape
    C = Ch + Cl
    Nd, Nl = Hh * Wh, Hl * Wl

    # cross-scale resampling + channel concat
    x_h_up = bilinear_resize_nchw(x_h, Hl, Wl)
    x_l_down = bilinear_resize_nchw(x_l, Hh, Wh)
    m_deep = jnp.concatenate([x_l_down, x_h], axis=1)          # (B, C, Hh, Wh)
    m_low = jnp.concatenate([x_l, x_h_up], axis=1)             # (B, C, Hl, Wl)
    m_deep_rows = jnp.transpose(m_deep, (0, 2, 3, 1)).reshape(B * Nd, C)
    m_low_nhwc = jnp.transpose(m_low, (0, 2, 3, 1))
    m_low_rows = m_low_nhwc.reshape(B * Nl, C)

    # EM on m_deep -> base (B, C, K)
    xd = linear_tiled(m_deep_rows, params['em_conv1_w'], params['em_conv1_b'])
    base = em_bases(xd.reshape(B, Nd, C), params['em_mu'])

    # attention re-projection onto the m_low grid + rebuild 1x1 (fused)
    wf = linear_tiled(m_low_rows, params['attn_w'], params['attn_b'])
    r, r_stats = attn_rebuild(base, wf.reshape(B, Nl, C), params['rebuild_w'])
    r2d = r.reshape(B * Nl, C)

    # conv_trans_low: 3x3 (no bias, im2col matmul) with fused BN statistics
    low, low_stats = linear_bn_stats_tiled(im2col_3x3(m_low_nhwc),
                                           params['trans_low_w'])

    # relu(BN(m_up) + BN(m_low_cat)) fused
    fused = bn_add_relu(r2d, r_stats, low, low_stats)          # (B*Nl, C)

    # conv_out: 3x3 (no bias) + BN + ReLU + 1x1(+bias) -> n_class
    t, t_stats = linear_bn_stats_tiled(im2col_3x3(fused.reshape(B, Hl, Wl, C)),
                                       params['out_conv1_w'])
    out_pad = bn_relu_linear(t, t_stats,
                             params['out_conv2_w_pad'], params['out_conv2_b_pad'])
    out = out_pad[:, :n_class].reshape(B, Hl, Wl, n_class).transpose(0, 3, 1, 2)

    return {'out': out, 'base': base}


if __name__ == "__main__":
    channel_h, channel_l, n_class, k = 4, 4, 3, 16
    B, Hh, Wh, Hl, Wl = 2, 8, 8, 16, 16

    key = jax.random.PRNGKey(0)
    k_h, k_l, k_p = jax.random.split(key, 3)
    x_h = jax.random.normal(k_h, (B, channel_h, Hh, Wh), jnp.float32)
    x_l = jax.random.normal(k_l, (B, channel_l, Hl, Wl), jnp.float32)
    params = init_params(k_p, channel_h, channel_l, n_class, k)

    fwd = jax.jit(ema_up_decoder_forward, static_argnames=('n_class',))
    result = fwd(params, x_h, x_l, n_class=n_class)
    jax.block_until_ready(result)

    assert result['out'].shape == (B, n_class, Hl, Wl)
    assert result['base'].shape == (B, channel_h + channel_l, k)
    assert bool(jnp.all(jnp.isfinite(result['out'])))
    assert bool(jnp.all(jnp.isfinite(result['base'])))
    print("KERNEL_OK")
</pallas_src>

<mosaic_0001>
module attributes {stable_mosaic.version = 11 : i64} {
  func.func @kernel(%arg0: i32, %arg1: memref<128x8xf32, #tpu.memory_space<vmem>>, %arg2: memref<8x8xf32, #tpu.memory_space<vmem>>, %arg3: memref<1x8xf32, #tpu.memory_space<vmem>>, %arg4: memref<128x8xf32, #tpu.memory_space<vmem>>) attributes {dimension_semantics = [#tpu.dimension_semantics<parallel>], iteration_bounds = array<i64: 1>, scalar_prefetch = 0 : i64, scratch_operands = 0 : i64, tpu.core_type = #tpu.core_type<tc>, window_params = [{transform_indices = @transform_0, window_bounds = array<i64: 128, 8>}, {pipeline_mode = #tpu.pipeline_mode<synchronous>, transform_indices = @transform_1, window_bounds = array<i64: 8, 8>}, {pipeline_mode = #tpu.pipeline_mode<synchronous>, transform_indices = @transform_2, window_bounds = array<i64: 1, 8>}, {transform_indices = @transform_3, window_bounds = array<i64: 128, 8>}]} {
    %c0 = arith.constant 0 : index
    %c0_0 = arith.constant 0 : index
    %0 = vector.load %arg1[%c0, %c0_0] : memref<128x8xf32, #tpu.memory_space<vmem>>, vector<128x8xf32>
    %c0_1 = arith.constant 0 : index
    %c0_2 = arith.constant 0 : index
    %1 = vector.load %arg2[%c0_1, %c0_2] : memref<8x8xf32, #tpu.memory_space<vmem>>, vector<8x8xf32>
    %cst = arith.constant dense<0.000000e+00> : vector<128x8xf32>
    %2 = tpu.matmul %0, %1, %cst {dimension_numbers = #tpu.dot_dimension_numbers<[1], [0], [0], [1], [0, 0, 1, 1], [], []>} : vector<128x8xf32>, vector<8x8xf32>, vector<128x8xf32> -> vector<128x8xf32>
    %c0_3 = arith.constant 0 : index
    %c0_4 = arith.constant 0 : index
    %3 = vector.load %arg3[%c0_3, %c0_4] : memref<1x8xf32, #tpu.memory_space<vmem>>, vector<1x8xf32>
    %4 = vector.broadcast %3 : vector<1x8xf32> to vector<128x8xf32>
    %5 = arith.addf %2, %4 : vector<128x8xf32>
    %c0_5 = arith.constant 0 : index
    %c0_6 = arith.constant 0 : index
    %6 = vector.load %arg4[%c0_5, %c0_6] : memref<128x8xf32, #tpu.memory_space<vmem>>, vector<128x8xf32>
    tpu.vector_store %arg4[%c0_5, %c0_6], %5 {strides = array<i32>} : memref<128x8xf32, #tpu.memory_space<vmem>>, vector<128x8xf32>,
    return
  }
  func.func @transform_0(%arg0: i32) -> (i32, i32) {
    %c0_i32 = arith.constant 0 : i32
    %c0_i32_0 = arith.constant 0 : i32
    return %arg0, %c0_i32 : i32, i32
  }
  func.func @transform_1(%arg0: i32) -> (i32, i32) {
    %c0_i32 = arith.constant 0 : i32
    %c0_i32_0 = arith.constant 0 : i32
    %c0_i32_1 = arith.constant 0 : i32
    return %c0_i32, %c0_i32_0 : i32, i32
  }
  func.func @transform_2(%arg0: i32) -> (i32, i32) {
    %c0_i32 = arith.constant 0 : i32
    %c0_i32_0 = arith.constant 0 : i32
    %c0_i32_1 = arith.constant 0 : i32
    return %c0_i32, %c0_i32_0 : i32, i32
  }
  func.func @transform_3(%arg0: i32) -> (i32, i32) {
    %c0_i32 = arith.constant 0 : i32
    %c0_i32_0 = arith.constant 0 : i32
    return %arg0, %c0_i32 : i32, i32
  }
}

module attributes {stable_mosaic.version = 11 : i64} {
  func.func @kernel(%arg0: i32, %arg1: memref<1x16x16xf32, #tpu.memory_space<vmem>>, %arg2: memref<8x16xf32, #tpu.memory_space<vmem>>, %arg3: memref<8x16xf32, #tpu.memory_space<vmem>>, %arg4: memref<1x8x8xf32, #tpu.memory_space<vmem>>) attributes {dimension_semantics = [#tpu.dimension_semantics<parallel>], iteration_bounds = array<i64: 8>, scalar_prefetch = 0 : i64, scratch_operands = 0 : i64, tpu.core_type = #tpu.core_type<tc>, window_params = [{transform_indices = @transform_0, window_bounds = array<i64: 1, 16, 16>}, {pipeline_mode = #tpu.pipeline_mode<synchronous>, transform_indices = @transform_1, window_bounds = array<i64: 8, 16>}, {pipeline_mode = #tpu.pipeline_mode<synchronous>, transform_indices = @transform_2, window_bounds = array<i64: 8, 16>}, {transform_indices = @transform_3, window_bounds = array<i64: 1, 8, 8>}]} {
    %c0 = arith.constant 0 : index
    %c0_0 = arith.constant 0 : index
    %0 = vector.load %arg2[%c0, %c0_0] : memref<8x16xf32, #tpu.memory_space<vmem>>, vector<8x16xf32>
    %c0_1 = arith.constant 0 : index
    %c0_2 = arith.constant 0 : index
    %c0_3 = arith.constant 0 : index
    %1 = vector.load %arg1[%c0_1, %c0_2, %c0_3] : memref<1x16x16xf32, #tpu.memory_space<vmem>>, vector<1x16x16xf32>
    %2 = vector.shape_cast %1 : vector<1x16x16xf32> to vector<16x16xf32>
    %cst = arith.constant dense<0.000000e+00> : vector<8x16xf32>
    %3 = tpu.matmul %0, %2, %cst {dimension_numbers = #tpu.dot_dimension_numbers<[1], [0], [0], [1], [0, 0, 1, 1], [], []>} : vector<8x16xf32>, vector<16x16xf32>, vector<8x16xf32> -> vector<8x16xf32>
    %c0_4 = arith.constant 0 : index
    %c0_5 = arith.constant 0 : index
    %4 = vector.load %arg3[%c0_4, %c0_5] : memref<8x16xf32, #tpu.memory_space<vmem>>, vector<8x16xf32>
    %5 = tpu.transpose %4, [1, 0] : vector<8x16xf32> -> vector<16x8xf32>
    %cst_6 = arith.constant dense<0.000000e+00> : vector<8x8xf32>
    %6 = tpu.matmul %3, %5, %cst_6 {dimension_numbers = #tpu.dot_dimension_numbers<[1], [0], [0], [1], [0, 0, 1, 1], [], []>} : vector<8x16xf32>, vector<16x8xf32>, vector<8x8xf32> -> vector<8x8xf32>
    %c0_7 = arith.constant 0 : index
    %c0_8 = arith.constant 0 : index
    %c0_9 = arith.constant 0 : index
    %7 = vector.load %arg4[%c0_7, %c0_8, %c0_9] : memref<1x8x8xf32, #tpu.memory_space<vmem>>, vector<1x8x8xf32>
    %8 = vector.shape_cast %7 : vector<1x8x8xf32> to vector<8x8xf32>
    %9 = vector.shape_cast %6 : vector<8x8xf32> to vector<1x8x8xf32>
    tpu.vector_store %arg4[%c0_7, %c0_8, %c0_9], %9 {strides = array<i32>} : memref<1x8x8xf32, #tpu.memory_space<vmem>>, vector<1x8x8xf32>,
    return
  }
  func.func @transform_0(%arg0: i32) -> (i32, i32, i32) {
    %c0_i32 = arith.constant 0 : i32
    %c0_i32_0 = arith.constant 0 : i32
    %c0_i32_1 = arith.constant 0 : i32
    return %arg0, %c0_i32, %c0_i32_0 : i32, i32, i32
  }
  func.func @transform_1(%arg0: i32) -> (i32, i32) {
    %c0_i32 = arith.constant 0 : i32
    %c0_i32_0 = arith.constant 0 : i32
    %c0_i32_1 = arith.constant 0 : i32
    return %c0_i32, %c0_i32_0 : i32, i32
  }
  func.func @transform_2(%arg0: i32) -> (i32, i32) {
    %c0_i32 = arith.constant 0 : i32
    %c0_i32_0 = arith.constant 0 : i32
    %c0_i32_1 = arith.constant 0 : i32
    return %c0_i32, %c0_i32_0 : i32, i32
  }
  func.func @transform_3(%arg0: i32) -> (i32, i32, i32) {
    %c0_i32 = arith.constant 0 : i32
    %c0_i32_0 = arith.constant 0 : i32
    %c0_i32_1 = arith.constant 0 : i32
    return %arg0, %c0_i32, %c0_i32_0 : i32, i32, i32
  }
}

module attributes {stable_mosaic.version = 11 : i64} {
  func.func @kernel(%arg0: i32, %arg1: memref<1x8x8xf32, #tpu.memory_space<vmem>>, %arg2: memref<16x8xf32, #tpu.memory_space<vmem>>, %arg3: memref<16x8xf32, #tpu.memory_space<vmem>>, %arg4: memref<1x16x16xf32, #tpu.memory_space<vmem>>) attributes {dimension_semantics = [#tpu.dimension_semantics<parallel>], iteration_bounds = array<i64: 8>, scalar_prefetch = 0 : i64, scratch_operands = 0 : i64, tpu.core_type = #tpu.core_type<tc>, window_params = [{transform_indices = @transform_0, window_bounds = array<i64: 1, 8, 8>}, {pipeline_mode = #tpu.pipeline_mode<synchronous>, transform_indices = @transform_1, window_bounds = array<i64: 16, 8>}, {pipeline_mode = #tpu.pipeline_mode<synchronous>, transform_indices = @transform_2, window_bounds = array<i64: 16, 8>}, {transform_indices = @transform_3, window_bounds = array<i64: 1, 16, 16>}]} {
    %c0 = arith.constant 0 : index
    %c0_0 = arith.constant 0 : index
    %0 = vector.load %arg2[%c0, %c0_0] : memref<16x8xf32, #tpu.memory_space<vmem>>, vector<16x8xf32>
    %c0_1 = arith.constant 0 : index
    %c0_2 = arith.constant 0 : index
    %c0_3 = arith.constant 0 : index
    %1 = vector.load %arg1[%c0_1, %c0_2, %c0_3] : memref<1x8x8xf32, #tpu.memory_space<vmem>>, vector<1x8x8xf32>
    %2 = vector.shape_cast %1 : vector<1x8x8xf32> to vector<8x8xf32>
    %cst = arith.constant dense<0.000000e+00> : vector<16x8xf32>
    %3 = tpu.matmul %0, %2, %cst {dimension_numbers = #tpu.dot_dimension_numbers<[1], [0], [0], [1], [0, 0, 1, 1], [], []>} : vector<16x8xf32>, vector<8x8xf32>, vector<16x8xf32> -> vector<16x8xf32>
    %c0_4 = arith.constant 0 : index
    %c0_5 = arith.constant 0 : index
    %4 = vector.load %arg3[%c0_4, %c0_5] : memref<16x8xf32, #tpu.memory_space<vmem>>, vector<16x8xf32>
    %5 = tpu.transpose %4, [1, 0] : vector<16x8xf32> -> vector<8x16xf32>
    %cst_6 = arith.constant dense<0.000000e+00> : vector<16x16xf32>
    %6 = tpu.matmul %3, %5, %cst_6 {dimension_numbers = #tpu.dot_dimension_numbers<[1], [0], [0], [1], [0, 0, 1, 1], [], []>} : vector<16x8xf32>, vector<8x16xf32>, vector<16x16xf32> -> vector<16x16xf32>
    %c0_7 = arith.constant 0 : index
    %c0_8 = arith.constant 0 : index
    %c0_9 = arith.constant 0 : index
    %7 = vector.load %arg4[%c0_7, %c0_8, %c0_9] : memref<1x16x16xf32, #tpu.memory_space<vmem>>, vector<1x16x16xf32>
    %8 = vector.shape_cast %7 : vector<1x16x16xf32> to vector<16x16xf32>
    %9 = vector.shape_cast %6 : vector<16x16xf32> to vector<1x16x16xf32>
    tpu.vector_store %arg4[%c0_7, %c0_8, %c0_9], %9 {strides = array<i32>} : memref<1x16x16xf32, #tpu.memory_space<vmem>>, vector<1x16x16xf32>,
    return
  }
  func.func @transform_0(%arg0: i32) -> (i32, i32, i32) {
    %c0_i32 = arith.constant 0 : i32
    %c0_i32_0 = arith.constant 0 : i32
    %c0_i32_1 = arith.constant 0 : i32
    return %arg0, %c0_i32, %c0_i32_0 : i32, i32, i32
  }
  func.func @transform_1(%arg0: i32) -> (i32, i32) {
    %c0_i32 = arith.constant 0 : i32
    %c0_i32_0 = arith.constant 0 : i32
    %c0_i32_1 = arith.constant 0 : i32
    return %c0_i32, %c0_i32_0 : i32, i32
  }
  func.func @transform_2(%arg0: i32) -> (i32, i32) {
    %c0_i32 = arith.constant 0 : i32
    %c0_i32_0 = arith.constant 0 : i32
    %c0_i32_1 = arith.constant 0 : i32
    return %c0_i32, %c0_i32_0 : i32, i32
  }
  func.func @transform_3(%arg0: i32) -> (i32, i32, i32) {
    %c0_i32 = arith.constant 0 : i32
    %c0_i32_0 = arith.constant 0 : i32
    %c0_i32_1 = arith.constant 0 : i32
    return %arg0, %c0_i32, %c0_i32_0 : i32, i32, i32
  }
}

module attributes {stable_mosaic.version = 11 : i64} {
  func.func @kernel(%arg0: i32, %arg1: memref<1x64x8xf32, #tpu.memory_space<vmem>>, %arg2: memref<8x16xf32, #tpu.memory_space<vmem>>, %arg3: memref<1x8x16xf32, #tpu.memory_space<vmem>>) attributes {dimension_semantics = [#tpu.dimension_semantics<parallel>], iteration_bounds = array<i64: 2>, scalar_prefetch = 0 : i64, scratch_operands = 0 : i64, tpu.core_type = #tpu.core_type<tc>, window_params = [{transform_indices = @transform_0, window_bounds = array<i64: 1, 64, 8>}, {pipeline_mode = #tpu.pipeline_mode<synchronous>, transform_indices = @transform_1, window_bounds = array<i64: 8, 16>}, {transform_indices = @transform_2, window_bounds = array<i64: 1, 8, 16>}]} {
    %c0 = arith.constant 0 : index
    %c0_0 = arith.constant 0 : index
    %c0_1 = arith.constant 0 : index
    %0 = vector.load %arg1[%c0, %c0_0, %c0_1] : memref<1x64x8xf32, #tpu.memory_space<vmem>>, vector<1x64x8xf32>
    %1 = vector.shape_cast %0 : vector<1x64x8xf32> to vector<64x8xf32>
    %2 = tpu.transpose %1, [1, 0] : vector<64x8xf32> -> vector<8x64xf32>
    %c0_2 = arith.constant 0 : index
    %c0_3 = arith.constant 0 : index
    %3 = vector.load %arg2[%c0_2, %c0_3] : memref<8x16xf32, #tpu.memory_space<vmem>>, vector<8x16xf32>
    %cst = arith.constant dense<0.000000e+00> : vector<64x16xf32>
    %4 = tpu.matmul %1, %3, %cst {dimension_numbers = #tpu.dot_dimension_numbers<[1], [0], [0], [1], [0, 0, 1, 1], [], []>} : vector<64x8xf32>, vector<8x16xf32>, vector<64x16xf32> -> vector<64x16xf32>
    %cst_4 = arith.constant dense<0xFF800000> : vector<64xf32>
    %5 = vector.multi_reduction <maximumf>, %4, %cst_4 [1] : vector<64x16xf32> to vector<64xf32>
    %6 = vector.shape_cast %5 : vector<64xf32> to vector<64x1xf32>
    %7 = vector.broadcast %6 : vector<64x1xf32> to vector<64x16xf32>
    %8 = arith.subf %4, %7 : vector<64x16xf32>
    %9 = math.exp %8 : vector<64x16xf32>
    %cst_5 = arith.constant dense<0.000000e+00> : vector<64xf32>
    %10 = vector.multi_reduction <add>, %9, %cst_5 [1] : vector<64x16xf32> to vector<64xf32>
    %11 = vector.shape_cast %10 : vector<64xf32> to vector<64x1xf32>
    %12 = tpu.reciprocal %11 {approx = true} : vector<64x1xf32> -> vector<64x1xf32>
    %13 = vector.broadcast %12 : vector<64x1xf32> to vector<64x16xf32>
    %14 = arith.mulf %9, %13 : vector<64x16xf32>
    %cst_6 = arith.constant dense<0.000000e+00> : vector<16xf32>
    %15 = vector.multi_reduction <add>, %14, %cst_6 [0] : vector<64x16xf32> to vector<16xf32>
    %16 = vector.shape_cast %15 : vector<16xf32> to vector<1x16xf32>
    %cst_7 = arith.constant 9.99999997E-7 : f32
    %17 = vector.broadcast %cst_7 : f32 to vector<1x16xf32>
    %18 = arith.addf %17, %16 : vector<1x16xf32>
    %19 = tpu.reciprocal %18 {approx = true} : vector<1x16xf32> -> vector<1x16xf32>
    %20 = vector.broadcast %19 : vector<1x16xf32> to vector<64x16xf32>
    %21 = arith.mulf %14, %20 : vector<64x16xf32>
    %cst_8 = arith.constant dense<0.000000e+00> : vector<8x16xf32>
    %22 = tpu.matmul %2, %21, %cst_8 {dimension_numbers = #tpu.dot_dimension_numbers<[1], [0], [0], [1], [0, 0, 1, 1], [], []>} : vector<8x64xf32>, vector<64x16xf32>, vector<8x16xf32> -> vector<8x16xf32>
    %23 = arith.mulf %22, %22 : vector<8x16xf32>
    %cst_9 = arith.constant dense<0.000000e+00> : vector<16xf32>
    %24 = vector.multi_reduction <add>, %23, %cst_9 [0] : vector<8x16xf32> to vector<16xf32>
    %25 = vector.shape_cast %24 : vector<16xf32> to vector<1x16xf32>
    %26 = math.sqrt %25 : vector<1x16xf32>
    %cst_10 = arith.constant 9.99999997E-7 : f32
    %27 = vector.broadcast %cst_10 : f32 to vector<1x16xf32>
    %28 = arith.addf %27, %26 : vector<1x16xf32>
    %29 = tpu.reciprocal %28 {approx = true} : vector<1x16xf32> -> vector<1x16xf32>
    %30 = vector.broadcast %29 : vector<1x16xf32> to vector<8x16xf32>
    %31 = arith.mulf %22, %30 : vector<8x16xf32>
    %cst_11 = arith.constant dense<0.000000e+00> : vector<64x16xf32>
    %32 = tpu.matmul %1, %31, %cst_11 {dimension_numbers = #tpu.dot_dimension_numbers<[1], [0], [0], [1], [0, 0, 1, 1], [], []>} : vector<64x8xf32>, vector<8x16xf32>, vector<64x16xf32> -> vector<64x16xf32>
    %cst_12 = arith.constant dense<0xFF800000> : vector<64xf32>
    %33 = vector.multi_reduction <maximumf>, %32, %cst_12 [1] : vector<64x16xf32> to vector<64xf32>
    %34 = vector.shape_cast %33 : vector<64xf32> to vector<64x1xf32>
    %35 = vector.broadcast %34 : vector<64x1xf32> to vector<64x16xf32>
    %36 = arith.subf %32, %35 : vector<64x16xf32>
    %37 = math.exp %36 : vector<64x16xf32>
    %cst_13 = arith.constant dense<0.000000e+00> : vector<64xf32>
    %38 = vector.multi_reduction <add>, %37, %cst_13 [1] : vector<64x16xf32> to vector<64xf32>
    %39 = vector.shape_cast %38 : vector<64xf32> to vector<64x1xf32>
    %40 = tpu.reciprocal %39 {approx = true} : vector<64x1xf32> -> vector<64x1xf32>
    %41 = vector.broadcast %40 : vector<64x1xf32> to vector<64x16xf32>
    %42 = arith.mulf %37, %41 : vector<64x16xf32>
    %cst_14 = arith.constant dense<0.000000e+00> : vector<16xf32>
    %43 = vector.multi_reduction <add>, %42, %cst_14 [0] : vector<64x16xf32> to vector<16xf32>
    %44 = vector.shape_cast %43 : vector<16xf32> to vector<1x16xf32>
    %cst_15 = arith.constant 9.99999997E-7 : f32
    %45 = vector.broadcast %cst_15 : f32 to vector<1x16xf32>
    %46 = arith.addf %45, %44 : vector<1x16xf32>
    %47 = tpu.reciprocal %46 {approx = true} : vector<1x16xf32> -> vector<1x16xf32>
    %48 = vector.broadcast %47 : vector<1x16xf32> to vector<64x16xf32>
    %49 = arith.mulf %42, %48 : vector<64x16xf32>
    %cst_16 = arith.constant dense<0.000000e+00> : vector<8x16xf32>
    %50 = tpu.matmul %2, %49, %cst_16 {dimension_numbers = #tpu.dot_dimension_numbers<[1], [0], [0], [1], [0, 0, 1, 1], [], []>} : vector<8x64xf32>, vector<64x16xf32>, vector<8x16xf32> -> vector<8x16xf32>
    %51 = arith.mulf %50, %50 : vector<8x16xf32>
    %cst_17 = arith.constant dense<0.000000e+00> : vector<16xf32>
    %52 = vector.multi_reduction <add>, %51, %cst_17 [0] : vector<8x16xf32> to vector<16xf32>
    %53 = vector.shape_cast %52 : vector<16xf32> to vector<1x16xf32>
    %54 = math.sqrt %53 : vector<1x16xf32>
    %cst_18 = arith.constant 9.99999997E-7 : f32
    %55 = vector.broadcast %cst_18 : f32 to vector<1x16xf32>
    %56 = arith.addf %55, %54 : vector<1x16xf32>
    %57 = tpu.reciprocal %56 {approx = true} : vector<1x16xf32> -> vector<1x16xf32>
    %58 = vector.broadcast %57 : vector<1x16xf32> to vector<8x16xf32>
    %59 = arith.mulf %50, %58 : vector<8x16xf32>
    %cst_19 = arith.constant dense<0.000000e+00> : vector<64x16xf32>
    %60 = tpu.matmul %1, %59, %cst_19 {dimension_numbers = #tpu.dot_dimension_numbers<[1], [0], [0], [1], [0, 0, 1, 1], [], []>} : vector<64x8xf32>, vector<8x16xf32>, vector<64x16xf32> -> vector<64x16xf32>
    %cst_20 = arith.constant dense<0xFF800000> : vector<64xf32>
    %61 = vector.multi_reduction <maximumf>, %60, %cst_20 [1] : vector<64x16xf32> to vector<64xf32>
    %62 = vector.shape_cast %61 : vector<64xf32> to vector<64x1xf32>
    %63 = vector.broadcast %62 : vector<64x1xf32> to vector<64x16xf32>
    %64 = arith.subf %60, %63 : vector<64x16xf32>
    %65 = math.exp %64 : vector<64x16xf32>
    %cst_21 = arith.constant dense<0.000000e+00> : vector<64xf32>
    %66 = vector.multi_reduction <add>, %65, %cst_21 [1] : vector<64x16xf32> to vector<64xf32>
    %67 = vector.shape_cast %66 : vector<64xf32> to vector<64x1xf32>
    %68 = tpu.reciprocal %67 {approx = true} : vector<64x1xf32> -> vector<64x1xf32>
    %69 = vector.broadcast %68 : vector<64x1xf32> to vector<64x16xf32>
    %70 = arith.mulf %65, %69 : vector<64x16xf32>
    %cst_22 = arith.constant dense<0.000000e+00> : vector<16xf32>
    %71 = vector.multi_reduction <add>, %70, %cst_22 [0] : vector<64x16xf32> to vector<16xf32>
    %72 = vector.shape_cast %71 : vector<16xf32> to vector<1x16xf32>
    %cst_23 = arith.constant 9.99999997E-7 : f32
    %73 = vector.broadcast %cst_23 : f32 to vector<1x16xf32>
    %74 = arith.addf %73, %72 : vector<1x16xf32>
    %75 = tpu.reciprocal %74 {approx = true} : vector<1x16xf32> -> vector<1x16xf32>
    %76 = vector.broadcast %75 : vector<1x16xf32> to vector<64x16xf32>
    %77 = arith.mulf %70, %76 : vector<64x16xf32>
    %cst_24 = arith.constant dense<0.000000e+00> : vector<8x16xf32>
    %78 = tpu.matmul %2, %77, %cst_24 {dimension_numbers = #tpu.dot_dimension_numbers<[1], [0], [0], [1], [0, 0, 1, 1], [], []>} : vector<8x64xf32>, vector<64x16xf32>, vector<8x16xf32> -> vector<8x16xf32>
    %79 = arith.mulf %78, %78 : vector<8x16xf32>
    %cst_25 = arith.constant dense<0.000000e+00> : vector<16xf32>
    %80 = vector.multi_reduction <add>, %79, %cst_25 [0] : vector<8x16xf32> to vector<16xf32>
    %81 = vector.shape_cast %80 : vector<16xf32> to vector<1x16xf32>
    %82 = math.sqrt %81 : vector<1x16xf32>
    %cst_26 = arith.constant 9.99999997E-7 : f32
    %83 = vector.broadcast %cst_26 : f32 to vector<1x16xf32>
    %84 = arith.addf %83, %82 : vector<1x16xf32>
    %85 = tpu.reciprocal %84 {approx = true} : vector<1x16xf32> -> vector<1x16xf32>
    %86 = vector.broadcast %85 : vector<1x16xf32> to vector<8x16xf32>
    %87 = arith.mulf %78, %86 : vector<8x16xf32>
    %c0_27 = arith.constant 0 : index
    %c0_28 = arith.constant 0 : index
    %c0_29 = arith.constant 0 : index
    %88 = vector.load %arg3[%c0_27, %c0_28, %c0_29] : memref<1x8x16xf32, #tpu.memory_space<vmem>>, vector<1x8x16xf32>
    %89 = vector.shape_cast %88 : vector<1x8x16xf32> to vector<8x16xf32>
    %90 = vector.shape_cast %87 : vector<8x16xf32> to vector<1x8x16xf32>
    tpu.vector_store %arg3[%c0_27, %c0_28, %c0_29], %90 {strides = array<i32>} : memref<1x8x16xf32, #tpu.memory_space<vmem>>, vector<1x8x16xf32>,
    return
  }
  func.func @transform_0(%arg0: i32) -> (i32, i32, i32) {
    %c0_i32 = arith.constant 0 : i32
    %c0_i32_0 = arith.constant 0 : i32
    %c0_i32_1 = arith.constant 0 : i32
    return %arg0, %c0_i32, %c0_i32_0 : i32, i32, i32
  }
  func.func @transform_1(%arg0: i32) -> (i32, i32) {
    %c0_i32 = arith.constant 0 : i32
    %c0_i32_0 = arith.constant 0 : i32
    %c0_i32_1 = arith.constant 0 : i32
    return %c0_i32, %c0_i32_0 : i32, i32
  }
  func.func @transform_2(%arg0: i32) -> (i32, i32, i32) {
    %c0_i32 = arith.constant 0 : i32
    %c0_i32_0 = arith.constant 0 : i32
    %c0_i32_1 = arith.constant 0 : i32
    return %arg0, %c0_i32, %c0_i32_0 : i32, i32, i32
  }
}

module attributes {stable_mosaic.version = 11 : i64} {
  func.func @kernel(%arg0: i32, %arg1: memref<512x8xf32, #tpu.memory_space<vmem>>, %arg2: memref<8x8xf32, #tpu.memory_space<vmem>>, %arg3: memref<1x8xf32, #tpu.memory_space<vmem>>, %arg4: memref<512x8xf32, #tpu.memory_space<vmem>>) attributes {dimension_semantics = [#tpu.dimension_semantics<parallel>], iteration_bounds = array<i64: 1>, scalar_prefetch = 0 : i64, scratch_operands = 0 : i64, tpu.core_type = #tpu.core_type<tc>, window_params = [{transform_indices = @transform_0, window_bounds = array<i64: 512, 8>}, {pipeline_mode = #tpu.pipeline_mode<synchronous>, transform_indices = @transform_1, window_bounds = array<i64: 8, 8>}, {pipeline_mode = #tpu.pipeline_mode<synchronous>, transform_indices = @transform_2, window_bounds = array<i64: 1, 8>}, {transform_indices = @transform_3, window_bounds = array<i64: 512, 8>}]} {
    %c0 = arith.constant 0 : index
    %c0_0 = arith.constant 0 : index
    %0 = vector.load %arg1[%c0, %c0_0] : memref<512x8xf32, #tpu.memory_space<vmem>>, vector<512x8xf32>
    %c0_1 = arith.constant 0 : index
    %c0_2 = arith.constant 0 : index
    %1 = vector.load %arg2[%c0_1, %c0_2] : memref<8x8xf32, #tpu.memory_space<vmem>>, vector<8x8xf32>
    %cst = arith.constant dense<0.000000e+00> : vector<512x8xf32>
    %2 = tpu.matmul %0, %1, %cst {dimension_numbers = #tpu.dot_dimension_numbers<[1], [0], [0], [1], [0, 0, 1, 1], [], []>} : vector<512x8xf32>, vector<8x8xf32>, vector<512x8xf32> -> vector<512x8xf32>
    %c0_3 = arith.constant 0 : index
    %c0_4 = arith.constant 0 : index
    %3 = vector.load %arg3[%c0_3, %c0_4] : memref<1x8xf32, #tpu.memory_space<vmem>>, vector<1x8xf32>
    %4 = vector.broadcast %3 : vector<1x8xf32> to vector<512x8xf32>
    %5 = arith.addf %2, %4 : vector<512x8xf32>
    %c0_5 = arith.constant 0 : index
    %c0_6 = arith.constant 0 : index
    %6 = vector.load %arg4[%c0_5, %c0_6] : memref<512x8xf32, #tpu.memory_space<vmem>>, vector<512x8xf32>
    tpu.vector_store %arg4[%c0_5, %c0_6], %5 {strides = array<i32>} : memref<512x8xf32, #tpu.memory_space<vmem>>, vector<512x8xf32>,
    return
  }
  func.func @transform_0(%arg0: i32) -> (i32, i32) {
    %c0_i32 = arith.constant 0 : i32
    %c0_i32_0 = arith.constant 0 : i32
    return %arg0, %c0_i32 : i32, i32
  }
  func.func @transform_1(%arg0: i32) -> (i32, i32) {
    %c0_i32 = arith.constant 0 : i32
    %c0_i32_0 = arith.constant 0 : i32
    %c0_i32_1 = arith.constant 0 : i32
    return %c0_i32, %c0_i32_0 : i32, i32
  }
  func.func @transform_2(%arg0: i32) -> (i32, i32) {
    %c0_i32 = arith.constant 0 : i32
    %c0_i32_0 = arith.constant 0 : i32
    %c0_i32_1 = arith.constant 0 : i32
    return %c0_i32, %c0_i32_0 : i32, i32
  }
  func.func @transform_3(%arg0: i32) -> (i32, i32) {
    %c0_i32 = arith.constant 0 : i32
    %c0_i32_0 = arith.constant 0 : i32
    return %arg0, %c0_i32 : i32, i32
  }
}

module attributes {stable_mosaic.version = 11 : i64} {
  func.func @kernel(%arg0: i32, %arg1: memref<1x8x16xf32, #tpu.memory_space<vmem>>, %arg2: memref<1x256x8xf32, #tpu.memory_space<vmem>>, %arg3: memref<8x8xf32, #tpu.memory_space<vmem>>, %arg4: memref<1x256x8xf32, #tpu.memory_space<vmem>>, %arg5: memref<2x8xf32, #tpu.memory_space<vmem>>) attributes {dimension_semantics = [#tpu.dimension_semantics<arbitrary>], iteration_bounds = array<i64: 2>, scalar_prefetch = 0 : i64, scratch_operands = 0 : i64, tpu.core_type = #tpu.core_type<tc>, window_params = [{transform_indices = @transform_0, window_bounds = array<i64: 1, 8, 16>}, {transform_indices = @transform_1, window_bounds = array<i64: 1, 256, 8>}, {pipeline_mode = #tpu.pipeline_mode<synchronous>, transform_indices = @transform_2, window_bounds = array<i64: 8, 8>}, {transform_indices = @transform_3, window_bounds = array<i64: 1, 256, 8>}, {pipeline_mode = #tpu.pipeline_mode<synchronous>, transform_indices = @transform_4, window_bounds = array<i64: 2, 8>}]} {
    %c0 = arith.constant 0 : index
    %c0_0 = arith.constant 0 : index
    %c0_1 = arith.constant 0 : index
    %0 = vector.load %arg1[%c0, %c0_0, %c0_1] : memref<1x8x16xf32, #tpu.memory_space<vmem>>, vector<1x8x16xf32>
    %1 = vector.shape_cast %0 : vector<1x8x16xf32> to vector<8x16xf32>
    %c0_2 = arith.constant 0 : index
    %c0_3 = arith.constant 0 : index
    %c0_4 = arith.constant 0 : index
    %2 = vector.load %arg2[%c0_2, %c0_3, %c0_4] : memref<1x256x8xf32, #tpu.memory_space<vmem>>, vector<1x256x8xf32>
    %3 = vector.shape_cast %2 : vector<1x256x8xf32> to vector<256x8xf32>
    %cst = arith.constant dense<0.000000e+00> : vector<256x16xf32>
    %4 = tpu.matmul %3, %1, %cst {dimension_numbers = #tpu.dot_dimension_numbers<[1], [0], [0], [1], [0, 0, 1, 1], [], []>} : vector<256x8xf32>, vector<8x16xf32>, vector<256x16xf32> -> vector<256x16xf32>
    %cst_5 = arith.constant dense<0xFF800000> : vector<256xf32>
    %5 = vector.multi_reduction <maximumf>, %4, %cst_5 [1] : vector<256x16xf32> to vector<256xf32>
    %6 = vector.shape_cast %5 : vector<256xf32> to vector<256x1xf32>
    %7 = vector.broadcast %6 : vector<256x1xf32> to vector<256x16xf32>
    %8 = arith.subf %4, %7 : vector<256x16xf32>
    %9 = math.exp %8 : vector<256x16xf32>
    %cst_6 = arith.constant dense<0.000000e+00> : vector<256xf32>
    %10 = vector.multi_reduction <add>, %9, %cst_6 [1] : vector<256x16xf32> to vector<256xf32>
    %11 = vector.shape_cast %10 : vector<256xf32> to vector<256x1xf32>
    %12 = tpu.reciprocal %11 {approx = true} : vector<256x1xf32> -> vector<256x1xf32>
    %13 = vector.broadcast %12 : vector<256x1xf32> to vector<256x16xf32>
    %14 = arith.mulf %9, %13 : vector<256x16xf32>
    %15 = tpu.transpose %1, [1, 0] : vector<8x16xf32> -> vector<16x8xf32>
    %cst_7 = arith.constant dense<0.000000e+00> : vector<256x8xf32>
    %16 = tpu.matmul %14, %15, %cst_7 {dimension_numbers = #tpu.dot_dimension_numbers<[1], [0], [0], [1], [0, 0, 1, 1], [], []>} : vector<256x16xf32>, vector<16x8xf32>, vector<256x8xf32> -> vector<256x8xf32>
    %c0_8 = arith.constant 0 : index
    %c0_9 = arith.constant 0 : index
    %17 = vector.load %arg3[%c0_8, %c0_9] : memref<8x8xf32, #tpu.memory_space<vmem>>, vector<8x8xf32>
    %cst_10 = arith.constant dense<0.000000e+00> : vector<256x8xf32>
    %18 = tpu.matmul %16, %17, %cst_10 {dimension_numbers = #tpu.dot_dimension_numbers<[1], [0], [0], [1], [0, 0, 1, 1], [], []>} : vector<256x8xf32>, vector<8x8xf32>, vector<256x8xf32> -> vector<256x8xf32>
    %c0_11 = arith.constant 0 : index
    %c0_12 = arith.constant 0 : index
    %c0_13 = arith.constant 0 : index
    %19 = vector.load %arg4[%c0_11, %c0_12, %c0_13] : memref<1x256x8xf32, #tpu.memory_space<vmem>>, vector<1x256x8xf32>
    %20 = vector.shape_cast %19 : vector<1x256x8xf32> to vector<256x8xf32>
    %21 = vector.shape_cast %18 : vector<256x8xf32> to vector<1x256x8xf32>
    tpu.vector_store %arg4[%c0_11, %c0_12, %c0_13], %21 {strides = array<i32>} : memref<1x256x8xf32, #tpu.memory_space<vmem>>, vector<1x256x8xf32>,
    %c0_i32 = arith.constant 0 : i32
    %22 = arith.cmpi eq, %arg0, %c0_i32 : i32
    %23 = arith.extui %22 : i1 to i32
    %c0_i32_14 = arith.constant 0 : i32
    %24 = arith.cmpi ne, %23, %c0_i32_14 : i32
    scf.if %24 {
      %cst_21 = arith.constant 0.000000e+00 : f32
      %34 = vector.broadcast %cst_21 : f32 to vector<2x8xf32>
      %c0_22 = arith.constant 0 : index
      %c0_23 = arith.constant 0 : index
      %35 = vector.load %arg5[%c0_22, %c0_23] : memref<2x8xf32, #tpu.memory_space<vmem>>, vector<2x8xf32>
      tpu.vector_store %arg5[%c0_22, %c0_23], %34 {strides = array<i32>} : memref<2x8xf32, #tpu.memory_space<vmem>>, vector<2x8xf32>,
    } else {
    }
    %c0_15 = arith.constant 0 : index
    %c0_16 = arith.constant 0 : index
    %25 = vector.load %arg5[%c0_15, %c0_16] : memref<2x8xf32, #tpu.memory_space<vmem>>, vector<2x8xf32>
    %cst_17 = arith.constant dense<0.000000e+00> : vector<8xf32>
    %26 = vector.multi_reduction <add>, %18, %cst_17 [0] : vector<256x8xf32> to vector<8xf32>
    %27 = vector.shape_cast %26 : vector<8xf32> to vector<1x8xf32>
    %28 = arith.mulf %18, %18 : vector<256x8xf32>
    %cst_18 = arith.constant dense<0.000000e+00> : vector<8xf32>
    %29 = vector.multi_reduction <add>, %28, %cst_18 [0] : vector<256x8xf32> to vector<8xf32>
    %30 = vector.shape_cast %29 : vector<8xf32> to vector<1x8xf32>
    %31 = tpu.concatenate %27, %30 in 0 : vector<1x8xf32>, vector<1x8xf32> -> vector<2x8xf32>
    %32 = arith.addf %25, %31 : vector<2x8xf32>
    %c0_19 = arith.constant 0 : index
    %c0_20 = arith.constant 0 : index
    %33 = vector.load %arg5[%c0_19, %c0_20] : memref<2x8xf32, #tpu.memory_space<vmem>>, vector<2x8xf32>
    tpu.vector_store %arg5[%c0_19, %c0_20], %32 {strides = array<i32>} : memref<2x8xf32, #tpu.memory_space<vmem>>, vector<2x8xf32>,
    return
  }
  func.func @transform_0(%arg0: i32) -> (i32, i32, i32) {
    %c0_i32 = arith.constant 0 : i32
    %c0_i32_0 = arith.constant 0 : i32
    %c0_i32_1 = arith.constant 0 : i32
    return %arg0, %c0_i32, %c0_i32_0 : i32, i32, i32
  }
  func.func @transform_1(%arg0: i32) -> (i32, i32, i32) {
    %c0_i32 = arith.constant 0 : i32
    %c0_i32_0 = arith.constant 0 : i32
    %c0_i32_1 = arith.constant 0 : i32
    return %arg0, %c0_i32, %c0_i32_0 : i32, i32, i32
  }
  func.func @transform_2(%arg0: i32) -> (i32, i32) {
    %c0_i32 = arith.constant 0 : i32
    %c0_i32_0 = arith.constant 0 : i32
    %c0_i32_1 = arith.constant 0 : i32
    return %c0_i32, %c0_i32_0 : i32, i32
  }
  func.func @transform_3(%arg0: i32) -> (i32, i32, i32) {
    %c0_i32 = arith.constant 0 : i32
    %c0_i32_0 = arith.constant 0 : i32
    %c0_i32_1 = arith.constant 0 : i32
    return %arg0, %c0_i32, %c0_i32_0 : i32, i32, i32
  }
  func.func @transform_4(%arg0: i32) -> (i32, i32) {
    %c0_i32 = arith.constant 0 : i32
    %c0_i32_0 = arith.constant 0 : i32
    %c0_i32_1 = arith.constant 0 : i32
    return %c0_i32, %c0_i32_0 : i32, i32
  }
}

module attributes {stable_mosaic.version = 11 : i64} {
  func.func @kernel(%arg0: i32, %arg1: memref<256x72xf32, #tpu.memory_space<vmem>>, %arg2: memref<72x8xf32, #tpu.memory_space<vmem>>, %arg3: memref<256x8xf32, #tpu.memory_space<vmem>>, %arg4: memref<2x8xf32, #tpu.memory_space<vmem>>) attributes {dimension_semantics = [#tpu.dimension_semantics<arbitrary>], iteration_bounds = array<i64: 2>, scalar_prefetch = 0 : i64, scratch_operands = 0 : i64, tpu.core_type = #tpu.core_type<tc>, window_params = [{transform_indices = @transform_0, window_bounds = array<i64: 256, 72>}, {pipeline_mode = #tpu.pipeline_mode<synchronous>, transform_indices = @transform_1, window_bounds = array<i64: 72, 8>}, {transform_indices = @transform_2, window_bounds = array<i64: 256, 8>}, {pipeline_mode = #tpu.pipeline_mode<synchronous>, transform_indices = @transform_3, window_bounds = array<i64: 2, 8>}]} {
    %c0 = arith.constant 0 : index
    %c0_0 = arith.constant 0 : index
    %0 = vector.load %arg1[%c0, %c0_0] : memref<256x72xf32, #tpu.memory_space<vmem>>, vector<256x72xf32>
    %c0_1 = arith.constant 0 : index
    %c0_2 = arith.constant 0 : index
    %1 = vector.load %arg2[%c0_1, %c0_2] : memref<72x8xf32, #tpu.memory_space<vmem>>, vector<72x8xf32>
    %cst = arith.constant dense<0.000000e+00> : vector<256x8xf32>
    %2 = tpu.matmul %0, %1, %cst {dimension_numbers = #tpu.dot_dimension_numbers<[1], [0], [0], [1], [0, 0, 1, 1], [], []>} : vector<256x72xf32>, vector<72x8xf32>, vector<256x8xf32> -> vector<256x8xf32>
    %c0_3 = arith.constant 0 : index
    %c0_4 = arith.constant 0 : index
    %3 = vector.load %arg3[%c0_3, %c0_4] : memref<256x8xf32, #tpu.memory_space<vmem>>, vector<256x8xf32>
    tpu.vector_store %arg3[%c0_3, %c0_4], %2 {strides = array<i32>} : memref<256x8xf32, #tpu.memory_space<vmem>>, vector<256x8xf32>,
    %c0_i32 = arith.constant 0 : i32
    %4 = arith.cmpi eq, %arg0, %c0_i32 : i32
    %5 = arith.extui %4 : i1 to i32
    %c0_i32_5 = arith.constant 0 : i32
    %6 = arith.cmpi ne, %5, %c0_i32_5 : i32
    scf.if %6 {
      %cst_12 = arith.constant 0.000000e+00 : f32
      %16 = vector.broadcast %cst_12 : f32 to vector<2x8xf32>
      %c0_13 = arith.constant 0 : index
      %c0_14 = arith.constant 0 : index
      %17 = vector.load %arg4[%c0_13, %c0_14] : memref<2x8xf32, #tpu.memory_space<vmem>>, vector<2x8xf32>
      tpu.vector_store %arg4[%c0_13, %c0_14], %16 {strides = array<i32>} : memref<2x8xf32, #tpu.memory_space<vmem>>, vector<2x8xf32>,
    } else {
    }
    %c0_6 = arith.constant 0 : index
    %c0_7 = arith.constant 0 : index
    %7 = vector.load %arg4[%c0_6, %c0_7] : memref<2x8xf32, #tpu.memory_space<vmem>>, vector<2x8xf32>
    %cst_8 = arith.constant dense<0.000000e+00> : vector<8xf32>
    %8 = vector.multi_reduction <add>, %2, %cst_8 [0] : vector<256x8xf32> to vector<8xf32>
    %9 = vector.shape_cast %8 : vector<8xf32> to vector<1x8xf32>
    %10 = arith.mulf %2, %2 : vector<256x8xf32>
    %cst_9 = arith.constant dense<0.000000e+00> : vector<8xf32>
    %11 = vector.multi_reduction <add>, %10, %cst_9 [0] : vector<256x8xf32> to vector<8xf32>
    %12 = vector.shape_cast %11 : vector<8xf32> to vector<1x8xf32>
    %13 = tpu.concatenate %9, %12 in 0 : vector<1x8xf32>, vector<1x8xf32> -> vector<2x8xf32>
    %14 = arith.addf %7, %13 : vector<2x8xf32>
    %c0_10 = arith.constant 0 : index
    %c0_11 = arith.constant 0 : index
    %15 = vector.load %arg4[%c0_10, %c0_11] : memref<2x8xf32, #tpu.memory_space<vmem>>, vector<2x8xf32>
    tpu.vector_store %arg4[%c0_10, %c0_11], %14 {strides = array<i32>} : memref<2x8xf32, #tpu.memory_space<vmem>>, vector<2x8xf32>,
    return
  }
  func.func @transform_0(%arg0: i32) -> (i32, i32) {
    %c0_i32 = arith.constant 0 : i32
    %c0_i32_0 = arith.constant 0 : i32
    return %arg0, %c0_i32 : i32, i32
  }
  func.func @transform_1(%arg0: i32) -> (i32, i32) {
    %c0_i32 = arith.constant 0 : i32
    %c0_i32_0 = arith.constant 0 : i32
    %c0_i32_1 = arith.constant 0 : i32
    return %c0_i32, %c0_i32_0 : i32, i32
  }
  func.func @transform_2(%arg0: i32) -> (i32, i32) {
    %c0_i32 = arith.constant 0 : i32
    %c0_i32_0 = arith.constant 0 : i32
    return %arg0, %c0_i32 : i32, i32
  }
  func.func @transform_3(%arg0: i32) -> (i32, i32) {
    %c0_i32 = arith.constant 0 : i32
    %c0_i32_0 = arith.constant 0 : i32
    %c0_i32_1 = arith.constant 0 : i32
    return %c0_i32, %c0_i32_0 : i32, i32
  }
}

module attributes {stable_mosaic.version = 11 : i64} {
  func.func @kernel(%arg0: i32, %arg1: memref<512x8xf32, #tpu.memory_space<vmem>>, %arg2: memref<2x8xf32, #tpu.memory_space<vmem>>, %arg3: memref<512x8xf32, #tpu.memory_space<vmem>>, %arg4: memref<2x8xf32, #tpu.memory_space<vmem>>, %arg5: memref<512x8xf32, #tpu.memory_space<vmem>>) attributes {dimension_semantics = [#tpu.dimension_semantics<parallel>], iteration_bounds = array<i64: 1>, scalar_prefetch = 0 : i64, scratch_operands = 0 : i64, tpu.core_type = #tpu.core_type<tc>, window_params = [{transform_indices = @transform_0, window_bounds = array<i64: 512, 8>}, {pipeline_mode = #tpu.pipeline_mode<synchronous>, transform_indices = @transform_1, window_bounds = array<i64: 2, 8>}, {transform_indices = @transform_2, window_bounds = array<i64: 512, 8>}, {pipeline_mode = #tpu.pipeline_mode<synchronous>, transform_indices = @transform_3, window_bounds = array<i64: 2, 8>}, {transform_indices = @transform_4, window_bounds = array<i64: 512, 8>}]} {
    %c0 = arith.constant 0 : index
    %c0_0 = arith.constant 0 : index
    %0 = vector.load %arg2[%c0, %c0_0] : memref<2x8xf32, #tpu.memory_space<vmem>>, vector<2x8xf32>
    %1 = vector.extract_strided_slice %0 {offsets = [0, 0], sizes = [1, 8], strides = [1, 1]} : vector<2x8xf32> to vector<1x8xf32>
    %cst = arith.constant 0.001953125 : f32
    %2 = vector.broadcast %cst : f32 to vector<1x8xf32>
    %3 = arith.mulf %1, %2 : vector<1x8xf32>
    %4 = vector.extract_strided_slice %0 {offsets = [1, 0], sizes = [1, 8], strides = [1, 1]} : vector<2x8xf32> to vector<1x8xf32>
    %cst_1 = arith.constant 0.001953125 : f32
    %5 = vector.broadcast %cst_1 : f32 to vector<1x8xf32>
    %6 = arith.mulf %4, %5 : vector<1x8xf32>
    %7 = arith.mulf %3, %3 : vector<1x8xf32>
    %8 = arith.subf %6, %7 : vector<1x8xf32>
    %cst_2 = arith.constant 9.99999974E-6 : f32
    %9 = vector.broadcast %cst_2 : f32 to vector<1x8xf32>
    %10 = arith.addf %8, %9 : vector<1x8xf32>
    %11 = math.rsqrt %10 : vector<1x8xf32>
    %c0_3 = arith.constant 0 : index
    %c0_4 = arith.constant 0 : index
    %12 = vector.load %arg4[%c0_3, %c0_4] : memref<2x8xf32, #tpu.memory_space<vmem>>, vector<2x8xf32>
    %13 = vector.extract_strided_slice %12 {offsets = [0, 0], sizes = [1, 8], strides = [1, 1]} : vector<2x8xf32> to vector<1x8xf32>
    %cst_5 = arith.constant 0.001953125 : f32
    %14 = vector.broadcast %cst_5 : f32 to vector<1x8xf32>
    %15 = arith.mulf %13, %14 : vector<1x8xf32>
    %16 = vector.extract_strided_slice %12 {offsets = [1, 0], sizes = [1, 8], strides = [1, 1]} : vector<2x8xf32> to vector<1x8xf32>
    %cst_6 = arith.constant 0.001953125 : f32
    %17 = vector.broadcast %cst_6 : f32 to vector<1x8xf32>
    %18 = arith.mulf %16, %17 : vector<1x8xf32>
    %19 = arith.mulf %15, %15 : vector<1x8xf32>
    %20 = arith.subf %18, %19 : vector<1x8xf32>
    %cst_7 = arith.constant 9.99999974E-6 : f32
    %21 = vector.broadcast %cst_7 : f32 to vector<1x8xf32>
    %22 = arith.addf %20, %21 : vector<1x8xf32>
    %23 = math.rsqrt %22 : vector<1x8xf32>
    %c0_8 = arith.constant 0 : index
    %c0_9 = arith.constant 0 : index
    %24 = vector.load %arg1[%c0_8, %c0_9] : memref<512x8xf32, #tpu.memory_space<vmem>>, vector<512x8xf32>
    %25 = vector.broadcast %3 : vector<1x8xf32> to vector<512x8xf32>
    %26 = arith.subf %24, %25 : vector<512x8xf32>
    %27 = vector.broadcast %11 : vector<1x8xf32> to vector<512x8xf32>
    %28 = arith.mulf %26, %27 : vector<512x8xf32>
    %c0_10 = arith.constant 0 : index
    %c0_11 = arith.constant 0 : index
    %29 = vector.load %arg3[%c0_10, %c0_11] : memref<512x8xf32, #tpu.memory_space<vmem>>, vector<512x8xf32>
    %30 = vector.broadcast %15 : vector<1x8xf32> to vector<512x8xf32>
    %31 = arith.subf %29, %30 : vector<512x8xf32>
    %32 = vector.broadcast %23 : vector<1x8xf32> to vector<512x8xf32>
    %33 = arith.mulf %31, %32 : vector<512x8xf32>
    %34 = arith.addf %28, %33 : vector<512x8xf32>
    %cst_12 = arith.constant 0.000000e+00 : f32
    %35 = vector.broadcast %cst_12 : f32 to vector<512x8xf32>
    %36 = arith.maximumf %34, %35 : vector<512x8xf32>
    %c0_13 = arith.constant 0 : index
    %c0_14 = arith.constant 0 : index
    %37 = vector.load %arg5[%c0_13, %c0_14] : memref<512x8xf32, #tpu.memory_space<vmem>>, vector<512x8xf32>
    tpu.vector_store %arg5[%c0_13, %c0_14], %36 {strides = array<i32>} : memref<512x8xf32, #tpu.memory_space<vmem>>, vector<512x8xf32>,
    return
  }
  func.func @transform_0(%arg0: i32) -> (i32, i32) {
    %c0_i32 = arith.constant 0 : i32
    %c0_i32_0 = arith.constant 0 : i32
    return %arg0, %c0_i32 : i32, i32
  }
  func.func @transform_1(%arg0: i32) -> (i32, i32) {
    %c0_i32 = arith.constant 0 : i32
    %c0_i32_0 = arith.constant 0 : i32
    %c0_i32_1 = arith.constant 0 : i32
    return %c0_i32, %c0_i32_0 : i32, i32
  }
  func.func @transform_2(%arg0: i32) -> (i32, i32) {
    %c0_i32 = arith.constant 0 : i32
    %c0_i32_0 = arith.constant 0 : i32
    return %arg0, %c0_i32 : i32, i32
  }
  func.func @transform_3(%arg0: i32) -> (i32, i32) {
    %c0_i32 = arith.constant 0 : i32
    %c0_i32_0 = arith.constant 0 : i32
    %c0_i32_1 = arith.constant 0 : i32
    return %c0_i32, %c0_i32_0 : i32, i32
  }
  func.func @transform_4(%arg0: i32) -> (i32, i32) {
    %c0_i32 = arith.constant 0 : i32
    %c0_i32_0 = arith.constant 0 : i32
    return %arg0, %c0_i32 : i32, i32
  }
}

module attributes {stable_mosaic.version = 11 : i64} {
  func.func @kernel(%arg0: i32, %arg1: memref<512x8xf32, #tpu.memory_space<vmem>>, %arg2: memref<2x8xf32, #tpu.memory_space<vmem>>, %arg3: memref<8x128xf32, #tpu.memory_space<vmem>>, %arg4: memref<1x128xf32, #tpu.memory_space<vmem>>, %arg5: memref<512x128xf32, #tpu.memory_space<vmem>>) attributes {dimension_semantics = [#tpu.dimension_semantics<parallel>], iteration_bounds = array<i64: 1>, scalar_prefetch = 0 : i64, scratch_operands = 0 : i64, tpu.core_type = #tpu.core_type<tc>, window_params = [{transform_indices = @transform_0, window_bounds = array<i64: 512, 8>}, {pipeline_mode = #tpu.pipeline_mode<synchronous>, transform_indices = @transform_1, window_bounds = array<i64: 2, 8>}, {pipeline_mode = #tpu.pipeline_mode<synchronous>, transform_indices = @transform_2, window_bounds = array<i64: 8, 128>}, {pipeline_mode = #tpu.pipeline_mode<synchronous>, transform_indices = @transform_3, window_bounds = array<i64: 1, 128>}, {transform_indices = @transform_4, window_bounds = array<i64: 512, 128>}]} {
    %c0 = arith.constant 0 : index
    %c0_0 = arith.constant 0 : index
    %0 = vector.load %arg2[%c0, %c0_0] : memref<2x8xf32, #tpu.memory_space<vmem>>, vector<2x8xf32>
    %1 = vector.extract_strided_slice %0 {offsets = [0, 0], sizes = [1, 8], strides = [1, 1]} : vector<2x8xf32> to vector<1x8xf32>
    %cst = arith.constant 0.001953125 : f32
    %2 = vector.broadcast %cst : f32 to vector<1x8xf32>
    %3 = arith.mulf %1, %2 : vector<1x8xf32>
    %4 = vector.extract_strided_slice %0 {offsets = [1, 0], sizes = [1, 8], strides = [1, 1]} : vector<2x8xf32> to vector<1x8xf32>
    %cst_1 = arith.constant 0.001953125 : f32
    %5 = vector.broadcast %cst_1 : f32 to vector<1x8xf32>
    %6 = arith.mulf %4, %5 : vector<1x8xf32>
    %7 = arith.mulf %3, %3 : vector<1x8xf32>
    %8 = arith.subf %6, %7 : vector<1x8xf32>
    %cst_2 = arith.constant 9.99999974E-6 : f32
    %9 = vector.broadcast %cst_2 : f32 to vector<1x8xf32>
    %10 = arith.addf %8, %9 : vector<1x8xf32>
    %11 = math.rsqrt %10 : vector<1x8xf32>
    %c0_3 = arith.constant 0 : index
    %c0_4 = arith.constant 0 : index
    %12 = vector.load %arg1[%c0_3, %c0_4] : memref<512x8xf32, #tpu.memory_space<vmem>>, vector<512x8xf32>
    %13 = vector.broadcast %3 : vector<1x8xf32> to vector<512x8xf32>
    %14 = arith.subf %12, %13 : vector<512x8xf32>
    %15 = vector.broadcast %11 : vector<1x8xf32> to vector<512x8xf32>
    %16 = arith.mulf %14, %15 : vector<512x8xf32>
    %cst_5 = arith.constant 0.000000e+00 : f32
    %17 = vector.broadcast %cst_5 : f32 to vector<512x8xf32>
    %18 = arith.maximumf %16, %17 : vector<512x8xf32>
    %c0_6 = arith.constant 0 : index
    %c0_7 = arith.constant 0 : index
    %19 = vector.load %arg3[%c0_6, %c0_7] : memref<8x128xf32, #tpu.memory_space<vmem>>, vector<8x128xf32>
    %cst_8 = arith.constant dense<0.000000e+00> : vector<512x128xf32>
    %20 = tpu.matmul %18, %19, %cst_8 {dimension_numbers = #tpu.dot_dimension_numbers<[1], [0], [0], [1], [0, 0, 1, 1], [], []>} : vector<512x8xf32>, vector<8x128xf32>, vector<512x128xf32> -> vector<512x128xf32>
    %c0_9 = arith.constant 0 : index
    %c0_10 = arith.constant 0 : index
    %21 = vector.load %arg4[%c0_9, %c0_10] : memref<1x128xf32, #tpu.memory_space<vmem>>, vector<1x128xf32>
    %22 = vector.broadcast %21 : vector<1x128xf32> to vector<512x128xf32>
    %23 = arith.addf %20, %22 : vector<512x128xf32>
    %c0_11 = arith.constant 0 : index
    %c0_12 = arith.constant 0 : index
    %24 = vector.load %arg5[%c0_11, %c0_12] : memref<512x128xf32, #tpu.memory_space<vmem>>, vector<512x128xf32>
    tpu.vector_store %arg5[%c0_11, %c0_12], %23 {strides = array<i32>} : memref<512x128xf32, #tpu.memory_space<vmem>>, vector<512x128xf32>,
    return
  }
  func.func @transform_0(%arg0: i32) -> (i32, i32) {
    %c0_i32 = arith.constant 0 : i32
    %c0_i32_0 = arith.constant 0 : i32
    return %arg0, %c0_i32 : i32, i32
  }
  func.func @transform_1(%arg0: i32) -> (i32, i32) {
    %c0_i32 = arith.constant 0 : i32
    %c0_i32_0 = arith.constant 0 : i32
    %c0_i32_1 = arith.constant 0 : i32
    return %c0_i32, %c0_i32_0 : i32, i32
  }
  func.func @transform_2(%arg0: i32) -> (i32, i32) {
    %c0_i32 = arith.constant 0 : i32
    %c0_i32_0 = arith.constant 0 : i32
    %c0_i32_1 = arith.constant 0 : i32
    return %c0_i32, %c0_i32_0 : i32, i32
  }
  func.func @transform_3(%arg0: i32) -> (i32, i32) {
    %c0_i32 = arith.constant 0 : i32
    %c0_i32_0 = arith.constant 0 : i32
    %c0_i32_1 = arith.constant 0 : i32
    return %c0_i32, %c0_i32_0 : i32, i32
  }
  func.func @transform_4(%arg0: i32) -> (i32, i32) {
    %c0_i32 = arith.constant 0 : i32
    %c0_i32_0 = arith.constant 0 : i32
    return %arg0, %c0_i32 : i32, i32
  }
}

</mosaic_0001>

<llo_original>
// kernel: ema_up_decoder_forward.11
$region0: #{ema_up_decoder_forward.11}
  #allocation0 [shape = 'u32[]', space=smem, size = 0x4, offset = 0x4, fixed_abs, tag = 'smem constant byte address 0x4 - core index']
  #allocation1 [shape = 'u32[144,128]{1,0:T(1,128)}', space=vmem, size = 0x12000, scoped, tag = 'internal scratch']
  %s0 = inlined_call_operand.hbm [shape: f32[8,16,16], index: 0, kind: input, shape index: {}]
  %s1 = inlined_call_operand.vmem [shape: f32[8,16], index: 1, kind: input, shape index: {}, may-alias: {1,2}]
  %s2 = inlined_call_operand.vmem [shape: f32[8,16], index: 2, kind: input, shape index: {}, may-alias: {1,2}]
  %s3 = inlined_call_operand.vmem [shape: f32[8,8,8], index: 3, kind: output, shape index: {}]
  %s4 = sld [smem:[#allocation0]]
  $region49: #{ema_up_decoder_forward.11} parent=0
    _
  %s6 = ssub.s32 1, %s4
  %s7 = scalar_select 0, %s6, %s4
  $region1: #{ema_up_decoder_forward.11} parent=0
    #allocation2 [shape = 'u8[16384]{0}', space=vmem, size = 0x4000, scoped, tag = 'input window, operand 0']
    #allocation3 [shape = 's32[2]{0}', space=sflag, size = 0x8, scoped, tag = 'scoped memory for ema_up_decoder_forward.11']
    %8 = vsyncpa [#allocation3], 0
    %s9 = scalar_lea.sflag [#allocation3], 1
    %10 = vsyncpa %s9, 0
    loop: start=0, step=1, limit=10
    $region2: #{ema_up_decoder_forward.11} parent=1 // loop_pre_header
      _
    $region3: #{ema_up_decoder_forward.11} parent=1 // loop_header
      %s12 = sphi 0, %s16
      %p13 = scmp.ge.s32.totalorder %s12, 10
      %s22 = sphi 0, %s24
      %s25 = sphi 0, %s22
      %s26 = sphi 0, %s25
      %s42 = sphi 0, %s26
      %s46 = sphi 0, %s46
      %s48 = sphi 0, %s46
      %s49 = sphi 0, %s48
      %s63 = sphi 0, %s49
      %s67 = sphi 0, %s67
      %s69 = sphi 0, %s67
      %s70 = sphi 0, %s69
      %s84 = sphi 0, %s70
      %s90 = sphi 0, %s92
      %s93 = sphi 0, %s90
      %s94 = sphi 0, %s93
      %s110 = sphi 0, %s94
    $region4: #{ema_up_decoder_forward.11} parent=1 // loop_header_branch
      %15 = sbr.rel (%p13) target = $region8
    $region5: #{ema_up_decoder_forward.11} parent=1 // loop_body
      %s17 = ssub.s32 %s12, 1
      %s18 = ssub.s32 %s12, 2
      %s19 = sadd.s32 %s12, 1
      %s20 = ssub.s32 %s12, %s19
      %p21 = scmp.eq.s32.totalorder %s20, 0
      %s23 = sadd.s32 %s22, 1
      %s24 = scalar_select %p21, %s22, %s23
      %p27 = pneg %p21
      %p28 = scmp.eq.s32.totalorder %s12, 7
      %p29 = por %p27, %p28
      %p30 = scmp.ne.s32.totalorder %s22, %s25
      %p31 = scmp.eq.s32.totalorder %s12, 0
      %p32 = por %p30, %p31
      %p33 = scmp.ne.s32.totalorder %s22, %s25
      %p34 = scmp.eq.s32.totalorder %s17, 7
      %p35 = por %p33, %p34
      %p36 = scmp.ne.s32.totalorder %s25, %s26
      %p37 = scmp.eq.s32.totalorder %s17, 0
      %p38 = por %p36, %p37
      %p39 = scmp.ne.s32.totalorder %s25, %s26
      %p40 = scmp.eq.s32.totalorder %s18, 7
      %p41 = por %p39, %p40
      %p43 = scmp.ne.s32.totalorder %s26, %s42
      %p44 = scmp.eq.s32.totalorder %s18, 0
      %p45 = por %p43, %p44
      %s47 = sadd.s32 %s46, 1
      %p50 = scmp.eq.s32.totalorder %s12, 7
      %p51 = scmp.ne.s32.totalorder %s46, %s48
      %p52 = scmp.eq.s32.totalorder %s12, 0
      %p53 = por %p51, %p52
      %p54 = scmp.ne.s32.totalorder %s46, %s48
      %p55 = scmp.eq.s32.totalorder %s17, 7
      %p56 = por %p54, %p55
      %p57 = scmp.ne.s32.totalorder %s48, %s49
      %p58 = scmp.eq.s32.totalorder %s17, 0
      %p59 = por %p57, %p58
      %p60 = scmp.ne.s32.totalorder %s48, %s49
      %p61 = scmp.eq.s32.totalorder %s18, 7
      %p62 = por %p60, %p61
      %p64 = scmp.ne.s32.totalorder %s49, %s63
      %p65 = scmp.eq.s32.totalorder %s18, 0
      %p66 = por %p64, %p65
      %s68 = sadd.s32 %s67, 1
      %p71 = scmp.eq.s32.totalorder %s12, 7
      %p72 = scmp.ne.s32.totalorder %s67, %s69
      %p73 = scmp.eq.s32.totalorder %s12, 0
      %p74 = por %p72, %p73
      %p75 = scmp.ne.s32.totalorder %s67, %s69
      %p76 = scmp.eq.s32.totalorder %s17, 7
      %p77 = por %p75, %p76
      %p78 = scmp.ne.s32.totalorder %s69, %s70
      %p79 = scmp.eq.s32.totalorder %s17, 0
      %p80 = por %p78, %p79
      %p81 = scmp.ne.s32.totalorder %s69, %s70
      %p82 = scmp.eq.s32.totalorder %s18, 7
      %p83 = por %p81, %p82
      %p85 = scmp.ne.s32.totalorder %s70, %s84
      %p86 = scmp.eq.s32.totalorder %s18, 0
      %p87 = por %p85, %p86
      %s88 = ssub.s32 %s12, %s19
      %p89 = scmp.eq.s32.totalorder %s88, 0
      %s91 = sadd.s32 %s90, 1
      %s92 = scalar_select %p89, %s90, %s91
      %p95 = pneg %p89
      %p96 = scmp.eq.s32.totalorder %s12, 7
      %p97 = por %p95, %p96
      %p98 = scmp.ne.s32.totalorder %s90, %s93
      %p99 = scmp.eq.s32.totalorder %s12, 0
      %p100 = por %p98, %p99
      %p101 = scmp.ne.s32.totalorder %s90, %s93
      %p102 = scmp.eq.s32.totalorder %s17, 7
      %p103 = por %p101, %p102
      %p104 = scmp.ne.s32.totalorder %s93, %s94
      %p105 = scmp.eq.s32.totalorder %s17, 0
      %p106 = por %p104, %p105
      %p107 = scmp.ne.s32.totalorder %s93, %s94
      %p108 = scmp.eq.s32.totalorder %s18, 7
      %p109 = por %p107, %p108
      %p111 = scmp.ne.s32.totalorder %s94, %s110
      %p112 = scmp.eq.s32.totalorder %s18, 0
      %p113 = por %p111, %p112
      %p114 = scmp.le.s32.totalorder 1, %s12
      %p115 = scmp.lt.s32.totalorder %s12, 9
      %p116 = pnand %p114, %p115
      %p117 = pneg %p116
      // Predicated region
      $region9: #{ema_up_decoder_forward.11} parent=5 // pred_check
        _
      $region10: #{ema_up_decoder_forward.11} parent=5 // pred_check_branch
        %119 = sbr.rel (%p116) target = $region12
      $region11: #{ema_up_decoder_forward.11} parent=5 // pred_region
        %s120 = ssub.s32 %s12, 1
        // Predicated region
        $region13: #{ema_up_decoder_forward.11} parent=11 // pred_check
          %p121 = pneg %p59
        $region14: #{ema_up_decoder_forward.11} parent=11 // pred_check_branch
          %123 = sbr.rel (%p121) target = $region16
        $region15: #{ema_up_decoder_forward.11} parent=11 // pred_region
          _
        $region16: #{ema_up_decoder_forward.11} parent=11 // pred_fallthru
          _
        // Predicated region
        $region17: #{ema_up_decoder_forward.11} parent=11 // pred_check
          %p124 = pneg %p80
        $region18: #{ema_up_decoder_forward.11} parent=11 // pred_check_branch
          %126 = sbr.rel (%p124) target = $region20
        $region19: #{ema_up_decoder_forward.11} parent=11 // pred_region
          _
        $region20: #{ema_up_decoder_forward.11} parent=11 // pred_fallthru
          _
      $region12: #{ema_up_decoder_forward.11} parent=5 // pred_fallthru
        _
      %p127 = scmp.lt.s32.totalorder %s12, 8
      // Predicated region
      $region21: #{ema_up_decoder_forward.11} parent=5 // pred_check
        %p128 = pneg %p127
      $region22: #{ema_up_decoder_forward.11} parent=5 // pred_check_branch
        %130 = sbr.rel (%p128) target = $region24
      $region23: #{ema_up_decoder_forward.11} parent=5 // pred_region
        // Predicated region
        $region25: #{ema_up_decoder_forward.11} parent=23 // pred_check
          %p131 = pneg %p32
        $region26: #{ema_up_decoder_forward.11} parent=23 // pred_check_branch
          %133 = sbr.rel (%p131) target = $region28
        $region27: #{ema_up_decoder_forward.11} parent=23 // pred_region
          %s134 = sand.u32 %s22, 1
          %s135 = scalar_lea.sflag [#allocation3], %s134
          %s136 = sand.u32 %s22, 1
          %s137 = smul.addr %s136, 16
          %s138 = scalar_lea.vmem [#allocation2], %s137
          %s140 = ssub.s32 256, 256
          %141 = vsyncadd %s135, %s140
          %s142 = smul.addr %s12, 2
          %s143 = smul.addr %s142, 128
          %s144 = scalar_lea.hbm %s0, %s143
          %s145 = sshll.u32 %s138, 4
          %s146 = int_to_ptr.vmem [resolvable:$true] %s145
          %151 = dma.hbm_to_vmem [thread:$0]  %s144, 256, %s146, %s135, 128, 128, 8
        $region28: #{ema_up_decoder_forward.11} parent=23 // pred_fallthru
          _
      $region24: #{ema_up_decoder_forward.11} parent=5 // pred_fallthru
        _
      %p152 = scmp.le.s32.totalorder 1, %s12
      %p153 = scmp.lt.s32.totalorder %s12, 9
      %p154 = pnand %p152, %p153
      %p155 = pneg %p154
      // Predicated region
      $region29: #{ema_up_decoder_forward.11} parent=5 // pred_check
        _
      $region30: #{ema_up_decoder_forward.11} parent=5 // pred_check_branch
        %157 = sbr.rel (%p154) target = $region32
      $region31: #{ema_up_decoder_forward.11} parent=5 // pred_region
        %s158 = ssub.s32 %s12, 1
        %s159 = sand.u32 %s25, 1
        %s160 = scalar_lea.sflag [#allocation3], %s159
        %s161 = sand.u32 %s25, 1
        %s162 = smul.addr %s161, 16
        %s163 = scalar_lea.vmem [#allocation2], %s162
        // Predicated region
        $region33: #{ema_up_decoder_forward.11} parent=31 // pred_check
          %p164 = pneg %p38
        $region34: #{ema_up_decoder_forward.11} parent=31 // pred_check_branch
          %166 = sbr.rel (%p164) target = $region36
        $region35: #{ema_up_decoder_forward.11} parent=31 // pred_region
          %167 = dma.done %s160, 256
        $region36: #{ema_up_decoder_forward.11} parent=31 // pred_fallthru
          _
        %s168 = sand.u32 %s25, 1
        %s169 = scalar_lea.sflag [#allocation3], %s168
        %s170 = sand.u32 %s25, 1
        %s171 = smul.addr %s170, 16
        %s172 = scalar_lea.vmem [#allocation2], %s171
        %p173 = pneg %p38
        %p174 = pneg %p35
        %p175 = pneg %p59
        %p176 = pneg %p56
        %p177 = pneg %p80
        %p178 = pneg %p77
        %p179 = pneg %p106
        %p180 = pneg %p103
        %p181 = scmp.lt.s32.totalorder %s17, 7
        %s182 = scalar_select %p181, %s17, 7
        %s183 = smul.addr %s182, 8
        %s184 = scalar_lea.vmem %s3, %s183
        %p185 = scmp.lt.s32.totalorder %s17, 7
        %s186 = scalar_select %p185, %s17, 7
        %s187 = smul.addr %s186, 8
        %s188 = scalar_lea.vmem %s3, %s187
        %v189 = vld [vmem:[%s1] sm:$0xff]
        %v190 = vld [vmem:[%s163] sm:$0xff]
        %v191 = vld [vmem:[%s163 + $0x8] sm:$0xff]
        %vm192 = vcmask 130048
        %v194 = vsel %vm192, %v189, 0
        %196 = vmatprep.subr.mxu0 0.0
        %197 = vmatpush1.msra.mxu0 0.0
        %198 = vmatprep.subr.mxu0 0.0
        %199 = vmatpush1.msra.mxu0 0.0
        %200 = vmatprep.subr.mxu0 0.0
        %201 = vmatpush1.msra.mxu0 0.0
        %202 = vmatprep.subr.mxu0 0.0
        %203 = vmatpush1.msra.mxu0 0.0
        %204 = vmatprep.subr.mxu0 0.0
        %205 = vmatpush1.msra.mxu0 0.0
        %206 = vmatprep.subr.mxu0 0.0
        %207 = vmatpush1.msra.mxu0 0.0
        %208 = vmatprep.subr.mxu0 0.0
        %209 = vmatpush1.msra.mxu0 0.0
        %210 = vmatprep.subr.mxu0 0.0
        %211 = vmatpush1.msra.mxu0 0.0
        %212 = vmatprep.subr.mxu0 0.0
        %213 = vmatpush1.msra.mxu0 0.0
        %214 = vmatprep.subr.mxu0 0.0
        %215 = vmatpush1.msra.mxu0 0.0
        %216 = vmatprep.subr.mxu0 0.0
        %217 = vmatpush1.msra.mxu0 0.0
        %218 = vmatprep.subr.mxu0 0.0
        %219 = vmatpush1.msra.mxu0 0.0
        %220 = vmatprep.subr.mxu0 0.0
        %221 = vmatpush1.msra.mxu0 0.0
        %222 = vmatprep.subr.mxu0 0.0
        %223 = vmatpush1.msra.mxu0 0.0
        %224 = vmatprep.subr.mxu0 0.0
        %225 = vmatpush1.msra.mxu0 %v191
        %226 = vmatprep.subr.mxu0 0.0
        %227 = vmatpush1.msra.mxu0 %v190
        %228 = vmatprep.subr.mxu0 0.0
        %229 = vmatpush2.msra.mxu0 0.0
        %230 = vmatprep.subr.mxu0 0.0
        %231 = vmatpush2.msra.mxu0 0.0
        %232 = vmatprep.subr.mxu0 0.0
        %233 = vmatpush2.msra.mxu0 0.0
        %234 = vmatprep.subr.mxu0 0.0
        %235 = vmatpush2.msra.mxu0 0.0
        %236 = vmatprep.subr.mxu0 0.0
        %237 = vmatpush2.msra.mxu0 0.0
        %238 = vmatprep.subr.mxu0 0.0
        %239 = vmatpush2.msra.mxu0 0.0
        %240 = vmatprep.subr.mxu0 0.0
        %241 = vmatpush2.msra.mxu0 0.0
        %242 = vmatprep.subr.mxu0 0.0
        %243 = vmatpush2.msra.mxu0 0.0
        %244 = vmatprep.subr.mxu0 0.0
        %245 = vmatpush2.msra.mxu0 0.0
        %246 = vmatprep.subr.mxu0 0.0
        %247 = vmatpush2.msra.mxu0 0.0
        %248 = vmatprep.subr.mxu0 0.0
        %249 = vmatpush2.msra.mxu0 0.0
        %250 = vmatprep.subr.mxu0 0.0
        %251 = vmatpush2.msra.mxu0 0.0
        %252 = vmatprep.subr.mxu0 0.0
        %253 = vmatpush2.msra.mxu0 0.0
        %254 = vmatprep.subr.mxu0 0.0
        %255 = vmatpush2.msra.mxu0 0.0
        %256 = vmatprep.subr.mxu0 0.0
        %257 = vmatpush2.msra.mxu0 0.0
        %258 = vmatprep.subr.mxu0 0.0
        %259 = vmatpush2.msra.mxu0 0.0
        %260 = vmatprep.mubr.f32.mxu0 0.0
        %261 = vmatmul.mubr.f32.gmra.mxu0 %v194
        %v262 = vpop.f32.mrf.mxu0
        %v263 = vadd.f32 0.0, %v262
        %v264 = vpop.f32.mrf.mxu0
        %265 = vdwg.mxu0
        %v266 = vld [vmem:[%s2] sm:$0xff]
        %v268 = vsel %vm192, %v263, 0
        %v271 = vsel %vm192, %v266, 0
        %273 = vmatprep.subr.mxu0 0.0
        %274 = vmatpush1.xpose.msra.mxu0 0.0
        %275 = vmatprep.subr.mxu0 0.0
        %276 = vmatpush1.xpose.msra.mxu0 0.0
        %277 = vmatprep.subr.mxu0 0.0
        %278 = vmatpush1.xpose.msra.mxu0 0.0
        %279 = vmatprep.subr.mxu0 0.0
        %280 = vmatpush1.xpose.msra.mxu0 0.0
        %281 = vmatprep.subr.mxu0 0.0
        %282 = vmatpush1.xpose.msra.mxu0 0.0
        %283 = vmatprep.subr.mxu0 0.0
        %284 = vmatpush1.xpose.msra.mxu0 0.0
        %285 = vmatprep.subr.mxu0 0.0
        %286 = vmatpush1.xpose.msra.mxu0 0.0
        %287 = vmatprep.subr.mxu0 0.0
        %288 = vmatpush1.xpose.msra.mxu0 0.0
        %289 = vmatprep.subr.mxu0 0.0
        %290 = vmatpush1.xpose.msra.mxu0 0.0
        %291 = vmatprep.subr.mxu0 0.0
        %292 = vmatpush1.xpose.msra.mxu0 0.0
        %293 = vmatprep.subr.mxu0 0.0
        %294 = vmatpush1.xpose.msra.mxu0 0.0
        %295 = vmatprep.subr.mxu0 0.0
        %296 = vmatpush1.xpose.msra.mxu0 0.0
        %297 = vmatprep.subr.mxu0 0.0
        %298 = vmatpush1.xpose.msra.mxu0 0.0
        %299 = vmatprep.subr.mxu0 0.0
        %300 = vmatpush1.xpose.msra.mxu0 0.0
        %301 = vmatprep.subr.mxu0 0.0
        %302 = vmatpush1.xpose.msra.mxu0 0.0
        %303 = vmatprep.subr.mxu0 0.0
        %304 = vmatpush1.xpose.msra.mxu0 %v271
        %305 = vmatprep.subr.mxu0 0.0
        %306 = vmatpush2.xpose.msra.mxu0 0.0
        %307 = vmatprep.subr.mxu0 0.0
        %308 = vmatpush2.xpose.msra.mxu0 0.0
        %309 = vmatprep.subr.mxu0 0.0
        %310 = vmatpush2.xpose.msra.mxu0 0.0
        %311 = vmatprep.subr.mxu0 0.0
        %312 = vmatpush2.xpose.msra.mxu0 0.0
        %313 = vmatprep.subr.mxu0 0.0
        %314 = vmatpush2.xpose.msra.mxu0 0.0
        %315 = vmatprep.subr.mxu0 0.0
        %316 = vmatpush2.xpose.msra.mxu0 0.0
        %317 = vmatprep.subr.mxu0 0.0
        %318 = vmatpush2.xpose.msra.mxu0 0.0
        %319 = vmatprep.subr.mxu0 0.0
        %320 = vmatpush2.xpose.msra.mxu0 0.0
        %321 = vmatprep.subr.mxu0 0.0
        %322 = vmatpush2.xpose.msra.mxu0 0.0
        %323 = vmatprep.subr.mxu0 0.0
        %324 = vmatpush2.xpose.msra.mxu0 0.0
        %325 = vmatprep.subr.mxu0 0.0
        %326 = vmatpush2.xpose.msra.mxu0 0.0
        %327 = vmatprep.subr.mxu0 0.0
        %328 = vmatpush2.xpose.msra.mxu0 0.0
        %329 = vmatprep.subr.mxu0 0.0
        %330 = vmatpush2.xpose.msra.mxu0 0.0
        %331 = vmatprep.subr.mxu0 0.0
        %332 = vmatpush2.xpose.msra.mxu0 0.0
        %333 = vmatprep.subr.mxu0 0.0
        %334 = vmatpush2.xpose.msra.mxu0 0.0
        %335 = vmatprep.subr.mxu0 0.0
        %336 = vmatpush2.xpose.msra.mxu0 0.0
        %337 = vmatprep.mubr.f32.mxu0 0.0
        %338 = vmatmul.mubr.f32.gmra.mxu0 %v268
        %v339 = vpop.f32.mrf.mxu0
        %v340 = vadd.f32 0.0, %v339
        %v341 = vpop.f32.mrf.mxu0
        %342 = vdwg.mxu0
        %vm343 = vcmask 64512
        %344 = vst.msk [vmem:[%s188] sm:$0xff] %vm343, %v340
        %p345 = scmp.lt.s32.totalorder %s17, 7
        %s346 = scalar_select %p345, %s17, 7
        %s347 = smul.addr %s346, 8
        %s348 = scalar_lea.vmem %s3, %s347
        // Predicated region
        $region37: #{ema_up_decoder_forward.11} parent=31 // pred_check
          %p349 = pneg %p103
        $region38: #{ema_up_decoder_forward.11} parent=31 // pred_check_branch
          %351 = sbr.rel (%p349) target = $region40
        $region39: #{ema_up_decoder_forward.11} parent=31 // pred_region
          _
        $region40: #{ema_up_decoder_forward.11} parent=31 // pred_fallthru
          _
      $region32: #{ema_up_decoder_forward.11} parent=5 // pred_fallthru
        _
      %p352 = scmp.le.s32.totalorder 2, %s12
      // Predicated region
      $region41: #{ema_up_decoder_forward.11} parent=5 // pred_check
        %p353 = pneg %p352
      $region42: #{ema_up_decoder_forward.11} parent=5 // pred_check_branch
        %355 = sbr.rel (%p353) target = $region44
      $region43: #{ema_up_decoder_forward.11} parent=5 // pred_region
        %s356 = ssub.s32 %s12, 2
        // Predicated region
        $region45: #{ema_up_decoder_forward.11} parent=43 // pred_check
          %p357 = pneg %p109
        $region46: #{ema_up_decoder_forward.11} parent=43 // pred_check_branch
          %359 = sbr.rel (%p357) target = $region48
        $region47: #{ema_up_decoder_forward.11} parent=43 // pred_region
          %p360 = scmp.lt.s32.totalorder %s18, 7
          %s361 = scalar_select %p360, %s18, 7
          %s362 = smul.addr %s361, 8
          %s363 = scalar_lea.vmem %s3, %s362
        $region48: #{ema_up_decoder_forward.11} parent=43 // pred_fallthru
          _
      $region44: #{ema_up_decoder_forward.11} parent=5 // pred_fallthru
        _
    $region6: #{ema_up_decoder_forward.11} parent=1 // loop_footer
      %s16 = sadd.s32 1, %s12
    $region7: #{ema_up_decoder_forward.11} parent=1 // loop_footer_branch
      %11 = sbr.rel target = $region3
    $region8: #{ema_up_decoder_forward.11} parent=1 // loop_exit
      _
    %364 = vsyncpa [#allocation3], 1
    %s365 = scalar_lea.sflag [#allocation3], 1
    %366 = vsyncpa %s365, 1

// kernel: ema_up_decoder_forward.12
$region0: #{ema_up_decoder_forward.12}
  #allocation0 [shape = 'u32[]', space=smem, size = 0x4, offset = 0x4, fixed_abs, tag = 'smem constant byte address 0x4 - core index']
  #allocation1 [shape = 'u32[144,128]{1,0:T(1,128)}', space=vmem, size = 0x12000, scoped, tag = 'internal scratch']
  %s0 = inlined_call_operand.vmem [shape: f32[128,8], index: 0, kind: input, shape index: {}]
  %s1 = inlined_call_operand.vmem [shape: f32[8,8], index: 1, kind: input, shape index: {}]
  %s2 = inlined_call_operand.vmem [shape: f32[1,8], index: 2, kind: input, shape index: {}]
  %s3 = inlined_call_operand.vmem [shape: f32[128,8], index: 3, kind: output, shape index: {}]
  %s4 = sld [smem:[#allocation0]]
  $region22: #{ema_up_decoder_forward.12} parent=0
    _
  %s6 = ssub.s32 1, %s4
  %s7 = scalar_select 0, %s6, %s4
  // Predicated region
  $region2: #{ema_up_decoder_forward.12} parent=0 // pred_check
    _
  $region3: #{ema_up_decoder_forward.12} parent=0 // pred_check_branch
    %9 = sbr.rel (0) target = $region5
  $region4: #{ema_up_decoder_forward.12} parent=0 // pred_region
    _
  $region5: #{ema_up_decoder_forward.12} parent=0 // pred_fallthru
    _
  // Predicated region
  $region6: #{ema_up_decoder_forward.12} parent=0 // pred_check
    _
  $region7: #{ema_up_decoder_forward.12} parent=0 // pred_check_branch
    %11 = sbr.rel (0) target = $region9
  $region8: #{ema_up_decoder_forward.12} parent=0 // pred_region
    _
  $region9: #{ema_up_decoder_forward.12} parent=0 // pred_fallthru
    _
  // Predicated region
  $region10: #{ema_up_decoder_forward.12} parent=0 // pred_check
    _
  $region11: #{ema_up_decoder_forward.12} parent=0 // pred_check_branch
    %13 = sbr.rel (0) target = $region13
  $region12: #{ema_up_decoder_forward.12} parent=0 // pred_region
    _
  $region13: #{ema_up_decoder_forward.12} parent=0 // pred_fallthru
    _
  %v14 = vld [vmem:[%s0] sm:$0xff]
  %v15 = vld [vmem:[%s0 + $0x8] sm:$0xff]
  %v16 = vld [vmem:[%s0 + $0x10] sm:$0xff]
  %v17 = vld [vmem:[%s0 + $0x18] sm:$0xff]
  %v18 = vld [vmem:[%s0 + $0x20] sm:$0xff]
  %v19 = vld [vmem:[%s0 + $0x28] sm:$0xff]
  %v20 = vld [vmem:[%s0 + $0x30] sm:$0xff]
  %v21 = vld [vmem:[%s0 + $0x38] sm:$0xff]
  %v22 = vld [vmem:[%s0 + $0x40] sm:$0xff]
  %v23 = vld [vmem:[%s0 + $0x48] sm:$0xff]
  %v24 = vld [vmem:[%s0 + $0x50] sm:$0xff]
  %v25 = vld [vmem:[%s0 + $0x58] sm:$0xff]
  %v26 = vld [vmem:[%s0 + $0x60] sm:$0xff]
  %v27 = vld [vmem:[%s0 + $0x68] sm:$0xff]
  %v28 = vld [vmem:[%s0 + $0x70] sm:$0xff]
  %v29 = vld [vmem:[%s0 + $0x78] sm:$0xff]
  %v30 = vld [vmem:[%s1] sm:$0xff]
  %v31 = vld [vmem:[%s2] sm:$0x1]
  %v33 = vlaneseq
  %v34 = vshrl.u32 %v33, 7
  %v35 = vsub.s32 0, %v34
  %v36 = vrot.slane %v31, %v35
  %vm38 = vcmask 64512
  %v40 = vsel %vm38, %v14, 0
  %v43 = vsel %vm38, %v15, 0
  %v46 = vsel %vm38, %v16, 0
  %v49 = vsel %vm38, %v17, 0
  %v52 = vsel %vm38, %v18, 0
  %v55 = vsel %vm38, %v19, 0
  %v58 = vsel %vm38, %v20, 0
  %v61 = vsel %vm38, %v21, 0
  %v64 = vsel %vm38, %v22, 0
  %v67 = vsel %vm38, %v23, 0
  %v70 = vsel %vm38, %v24, 0
  %v73 = vsel %vm38, %v25, 0
  %v76 = vsel %vm38, %v26, 0
  %v79 = vsel %vm38, %v27, 0
  %v82 = vsel %vm38, %v28, 0
  %v85 = vsel %vm38, %v29, 0
  %87 = vmatprep.subr.mxu0 0.0
  %88 = vmatpush1.msra.mxu0 0.0
  %89 = vmatprep.subr.mxu0 0.0
  %90 = vmatpush1.msra.mxu0 0.0
  %91 = vmatprep.subr.mxu0 0.0
  %92 = vmatpush1.msra.mxu0 0.0
  %93 = vmatprep.subr.mxu0 0.0
  %94 = vmatpush1.msra.mxu0 0.0
  %95 = vmatprep.subr.mxu0 0.0
  %96 = vmatpush1.msra.mxu0 0.0
  %97 = vmatprep.subr.mxu0 0.0
  %98 = vmatpush1.msra.mxu0 0.0
  %99 = vmatprep.subr.mxu0 0.0
  %100 = vmatpush1.msra.mxu0 0.0
  %101 = vmatprep.subr.mxu0 0.0
  %102 = vmatpush1.msra.mxu0 0.0
  %103 = vmatprep.subr.mxu0 0.0
  %104 = vmatpush1.msra.mxu0 0.0
  %105 = vmatprep.subr.mxu0 0.0
  %106 = vmatpush1.msra.mxu0 0.0
  %107 = vmatprep.subr.mxu0 0.0
  %108 = vmatpush1.msra.mxu0 0.0
  %109 = vmatprep.subr.mxu0 0.0
  %110 = vmatpush1.msra.mxu0 0.0
  %111 = vmatprep.subr.mxu0 0.0
  %112 = vmatpush1.msra.mxu0 0.0
  %113 = vmatprep.subr.mxu0 0.0
  %114 = vmatpush1.msra.mxu0 0.0
  %115 = vmatprep.subr.mxu0 0.0
  %116 = vmatpush1.msra.mxu0 0.0
  %117 = vmatprep.subr.mxu0 0.0
  %118 = vmatpush1.msra.mxu0 %v30
  %119 = vmatprep.subr.mxu0 0.0
  %120 = vmatpush2.msra.mxu0 0.0
  %121 = vmatprep.subr.mxu0 0.0
  %122 = vmatpush2.msra.mxu0 0.0
  %123 = vmatprep.subr.mxu0 0.0
  %124 = vmatpush2.msra.mxu0 0.0
  %125 = vmatprep.subr.mxu0 0.0
  %126 = vmatpush2.msra.mxu0 0.0
  %127 = vmatprep.subr.mxu0 0.0
  %128 = vmatpush2.msra.mxu0 0.0
  %129 = vmatprep.subr.mxu0 0.0
  %130 = vmatpush2.msra.mxu0 0.0
  %131 = vmatprep.subr.mxu0 0.0
  %132 = vmatpush2.msra.mxu0 0.0
  %133 = vmatprep.subr.mxu0 0.0
  %134 = vmatpush2.msra.mxu0 0.0
  %135 = vmatprep.subr.mxu0 0.0
  %136 = vmatpush2.msra.mxu0 0.0
  %137 = vmatprep.subr.mxu0 0.0
  %138 = vmatpush2.msra.mxu0 0.0
  %139 = vmatprep.subr.mxu0 0.0
  %140 = vmatpush2.msra.mxu0 0.0
  %141 = vmatprep.subr.mxu0 0.0
  %142 = vmatpush2.msra.mxu0 0.0
  %143 = vmatprep.subr.mxu0 0.0
  %144 = vmatpush2.msra.mxu0 0.0
  %145 = vmatprep.subr.mxu0 0.0
  %146 = vmatpush2.msra.mxu0 0.0
  %147 = vmatprep.subr.mxu0 0.0
  %148 = vmatpush2.msra.mxu0 0.0
  %149 = vmatprep.subr.mxu0 0.0
  %150 = vmatpush2.msra.mxu0 0.0
  %151 = vmatprep.mubr.f32.mxu0 0.0
  %152 = vmatmul.mubr.f32.gmra.mxu0 %v40
  %v153 = vpop.f32.mrf.mxu0
  %v154 = vadd.f32 %v36, %v153
  %v155 = vpop.f32.mrf.mxu0
  %156 = vmatprep.mubr.f32.mxu0 0.0
  %157 = vmatmul.mubr.f32.gmra.mxu0 %v43
  %v158 = vpop.f32.mrf.mxu0
  %v159 = vadd.f32 %v36, %v158
  %v160 = vpop.f32.mrf.mxu0
  %161 = vmatprep.mubr.f32.mxu0 0.0
  %162 = vmatmul.mubr.f32.gmra.mxu0 %v46
  %v163 = vpop.f32.mrf.mxu0
  %v164 = vadd.f32 %v36, %v163
  %v165 = vpop.f32.mrf.mxu0
  %166 = vmatprep.mubr.f32.mxu0 0.0
  %167 = vmatmul.mubr.f32.gmra.mxu0 %v49
  %v168 = vpop.f32.mrf.mxu0
  %v169 = vadd.f32 %v36, %v168
  %v170 = vpop.f32.mrf.mxu0
  %171 = vmatprep.mubr.f32.mxu0 0.0
  %172 = vmatmul.mubr.f32.gmra.mxu0 %v52
  %v173 = vpop.f32.mrf.mxu0
  %v174 = vadd.f32 %v36, %v173
  %v175 = vpop.f32.mrf.mxu0
  %176 = vmatprep.mubr.f32.mxu0 0.0
  %177 = vmatmul.mubr.f32.gmra.mxu0 %v55
  %v178 = vpop.f32.mrf.mxu0
  %v179 = vadd.f32 %v36, %v178
  %v180 = vpop.f32.mrf.mxu0
  %181 = vmatprep.mubr.f32.mxu0 0.0
  %182 = vmatmul.mubr.f32.gmra.mxu0 %v58
  %v183 = vpop.f32.mrf.mxu0
  %v184 = vadd.f32 %v36, %v183
  %v185 = vpop.f32.mrf.mxu0
  %186 = vmatprep.mubr.f32.mxu0 0.0
  %187 = vmatmul.mubr.f32.gmra.mxu0 %v61
  %v188 = vpop.f32.mrf.mxu0
  %v189 = vadd.f32 %v36, %v188
  %v190 = vpop.f32.mrf.mxu0
  %191 = vmatprep.mubr.f32.mxu0 0.0
  %192 = vmatmul.mubr.f32.gmra.mxu0 %v64
  %v193 = vpop.f32.mrf.mxu0
  %v194 = vadd.f32 %v36, %v193
  %v195 = vpop.f32.mrf.mxu0
  %196 = vmatprep.mubr.f32.mxu0 0.0
  %197 = vmatmul.mubr.f32.gmra.mxu0 %v67
  %v198 = vpop.f32.mrf.mxu0
  %v199 = vadd.f32 %v36, %v198
  %v200 = vpop.f32.mrf.mxu0
  %201 = vmatprep.mubr.f32.mxu0 0.0
  %202 = vmatmul.mubr.f32.gmra.mxu0 %v70
  %v203 = vpop.f32.mrf.mxu0
  %v204 = vadd.f32 %v36, %v203
  %v205 = vpop.f32.mrf.mxu0
  %206 = vmatprep.mubr.f32.mxu0 0.0
  %207 = vmatmul.mubr.f32.gmra.mxu0 %v73
  %v208 = vpop.f32.mrf.mxu0
  %v209 = vadd.f32 %v36, %v208
  %v210 = vpop.f32.mrf.mxu0
  %211 = vmatprep.mubr.f32.mxu0 0.0
  %212 = vmatmul.mubr.f32.gmra.mxu0 %v76
  %v213 = vpop.f32.mrf.mxu0
  %v214 = vadd.f32 %v36, %v213
  %v215 = vpop.f32.mrf.mxu0
  %216 = vmatprep.mubr.f32.mxu0 0.0
  %217 = vmatmul.mubr.f32.gmra.mxu0 %v79
  %v218 = vpop.f32.mrf.mxu0
  %v219 = vadd.f32 %v36, %v218
  %v220 = vpop.f32.mrf.mxu0
  %221 = vmatprep.mubr.f32.mxu0 0.0
  %222 = vmatmul.mubr.f32.gmra.mxu0 %v82
  %v223 = vpop.f32.mrf.mxu0
  %v224 = vadd.f32 %v36, %v223
  %v225 = vpop.f32.mrf.mxu0
  %226 = vmatprep.mubr.f32.mxu0 0.0
  %227 = vmatmul.mubr.f32.gmra.mxu0 %v85
  %v228 = vpop.f32.mrf.mxu0
  %v229 = vadd.f32 %v36, %v228
  %v230 = vpop.f32.mrf.mxu0
  %231 = vdwg.mxu0
  %232 = vst.msk [vmem:[%s3] sm:$0xff] %vm38, %v154
  %233 = vst.msk [vmem:[%s3 + $0x8] sm:$0xff] %vm38, %v159
  %234 = vst.msk [vmem:[%s3 + $0x10] sm:$0xff] %vm38, %v164
  %235 = vst.msk [vmem:[%s3 + $0x18] sm:$0xff] %vm38, %v169
  %236 = vst.msk [vmem:[%s3 + $0x20] sm:$0xff] %vm38, %v174
  %237 = vst.msk [vmem:[%s3 + $0x28] sm:$0xff] %vm38, %v179
  %238 = vst.msk [vmem:[%s3 + $0x30] sm:$0xff] %vm38, %v184
  %239 = vst.msk [vmem:[%s3 + $0x38] sm:$0xff] %vm38, %v189
  %240 = vst.msk [vmem:[%s3 + $0x40] sm:$0xff] %vm38, %v194
  %241 = vst.msk [vmem:[%s3 + $0x48] sm:$0xff] %vm38, %v199
  %242 = vst.msk [vmem:[%s3 + $0x50] sm:$0xff] %vm38, %v204
  %243 = vst.msk [vmem:[%s3 + $0x58] sm:$0xff] %vm38, %v209
  %244 = vst.msk [vmem:[%s3 + $0x60] sm:$0xff] %vm38, %v214
  %245 = vst.msk [vmem:[%s3 + $0x68] sm:$0xff] %vm38, %v219
  %246 = vst.msk [vmem:[%s3 + $0x70] sm:$0xff] %vm38, %v224
  %247 = vst.msk [vmem:[%s3 + $0x78] sm:$0xff] %vm38, %v229
  // Predicated region
  $region14: #{ema_up_decoder_forward.12} parent=0 // pred_check
    _
  $region15: #{ema_up_decoder_forward.12} parent=0 // pred_check_branch
    %249 = sbr.rel (0) target = $region17
  $region16: #{ema_up_decoder_forward.12} parent=0 // pred_region
    _
  $region17: #{ema_up_decoder_forward.12} parent=0 // pred_fallthru
    _
  // Predicated region
  $region18: #{ema_up_decoder_forward.12} parent=0 // pred_check
    _
  $region19: #{ema_up_decoder_forward.12} parent=0 // pred_check_branch
    %251 = sbr.rel (0) target = $region21
  $region20: #{ema_up_decoder_forward.12} parent=0 // pred_region
    _
  $region21: #{ema_up_decoder_forward.12} parent=0 // pred_fallthru
    _

// kernel: ema_up_decoder_forward.10
$region0: #{ema_up_decoder_forward.10}
  #allocation0 [shape = 'u32[]', space=smem, size = 0x4, offset = 0x4, fixed_abs, tag = 'smem constant byte address 0x4 - core index']
  #allocation1 [shape = 'u32[144,128]{1,0:T(1,128)}', space=vmem, size = 0x12000, scoped, tag = 'internal scratch']
  %s0 = inlined_call_operand.vmem [shape: f32[8,8,8], index: 0, kind: input, shape index: {}]
  %s1 = inlined_call_operand.vmem [shape: f32[16,8], index: 1, kind: input, shape index: {}, may-alias: {1,2}]
  %s2 = inlined_call_operand.vmem [shape: f32[16,8], index: 2, kind: input, shape index: {}, may-alias: {1,2}]
  %s3 = inlined_call_operand.vmem [shape: f32[8,16,16], index: 3, kind: output, shape index: {}]
  %s4 = sld [smem:[#allocation0]]
  $region45: #{ema_up_decoder_forward.10} parent=0
    _
  %s6 = ssub.s32 1, %s4
  %s7 = scalar_select 0, %s6, %s4
  loop: start=0, step=1, limit=10
  $region2: #{ema_up_decoder_forward.10} parent=0 // loop_pre_header
    _
  $region3: #{ema_up_decoder_forward.10} parent=0 // loop_header
    %s9 = sphi 0, %s13
    %p10 = scmp.ge.s32.totalorder %s9, 10
    %s19 = sphi 0, %s21
    %s22 = sphi 0, %s19
    %s23 = sphi 0, %s22
    %s39 = sphi 0, %s23
    %s43 = sphi 0, %s43
    %s45 = sphi 0, %s43
    %s46 = sphi 0, %s45
    %s60 = sphi 0, %s46
    %s64 = sphi 0, %s64
    %s66 = sphi 0, %s64
    %s67 = sphi 0, %s66
    %s81 = sphi 0, %s67
    %s87 = sphi 0, %s89
    %s90 = sphi 0, %s87
    %s91 = sphi 0, %s90
    %s107 = sphi 0, %s91
  $region4: #{ema_up_decoder_forward.10} parent=0 // loop_header_branch
    %12 = sbr.rel (%p10) target = $region8
  $region5: #{ema_up_decoder_forward.10} parent=0 // loop_body
    %s14 = ssub.s32 %s9, 1
    %s15 = ssub.s32 %s9, 2
    %s16 = sadd.s32 %s9, 1
    %s17 = ssub.s32 %s9, %s16
    %p18 = scmp.eq.s32.totalorder %s17, 0
    %s20 = sadd.s32 %s19, 1
    %s21 = scalar_select %p18, %s19, %s20
    %p24 = pneg %p18
    %p25 = scmp.eq.s32.totalorder %s9, 7
    %p26 = por %p24, %p25
    %p27 = scmp.ne.s32.totalorder %s19, %s22
    %p28 = scmp.eq.s32.totalorder %s9, 0
    %p29 = por %p27, %p28
    %p30 = scmp.ne.s32.totalorder %s19, %s22
    %p31 = scmp.eq.s32.totalorder %s14, 7
    %p32 = por %p30, %p31
    %p33 = scmp.ne.s32.totalorder %s22, %s23
    %p34 = scmp.eq.s32.totalorder %s14, 0
    %p35 = por %p33, %p34
    %p36 = scmp.ne.s32.totalorder %s22, %s23
    %p37 = scmp.eq.s32.totalorder %s15, 7
    %p38 = por %p36, %p37
    %p40 = scmp.ne.s32.totalorder %s23, %s39
    %p41 = scmp.eq.s32.totalorder %s15, 0
    %p42 = por %p40, %p41
    %s44 = sadd.s32 %s43, 1
    %p47 = scmp.eq.s32.totalorder %s9, 7
    %p48 = scmp.ne.s32.totalorder %s43, %s45
    %p49 = scmp.eq.s32.totalorder %s9, 0
    %p50 = por %p48, %p49
    %p51 = scmp.ne.s32.totalorder %s43, %s45
    %p52 = scmp.eq.s32.totalorder %s14, 7
    %p53 = por %p51, %p52
    %p54 = scmp.ne.s32.totalorder %s45, %s46
    %p55 = scmp.eq.s32.totalorder %s14, 0
    %p56 = por %p54, %p55
    %p57 = scmp.ne.s32.totalorder %s45, %s46
    %p58 = scmp.eq.s32.totalorder %s15, 7
    %p59 = por %p57, %p58
    %p61 = scmp.ne.s32.totalorder %s46, %s60
    %p62 = scmp.eq.s32.totalorder %s15, 0
    %p63 = por %p61, %p62
    %s65 = sadd.s32 %s64, 1
    %p68 = scmp.eq.s32.totalorder %s9, 7
    %p69 = scmp.ne.s32.totalorder %s64, %s66
    %p70 = scmp.eq.s32.totalorder %s9, 0
    %p71 = por %p69, %p70
    %p72 = scmp.ne.s32.totalorder %s64, %s66
    %p73 = scmp.eq.s32.totalorder %s14, 7
    %p74 = por %p72, %p73
    %p75 = scmp.ne.s32.totalorder %s66, %s67
    %p76 = scmp.eq.s32.totalorder %s14, 0
    %p77 = por %p75, %p76
    %p78 = scmp.ne.s32.totalorder %s66, %s67
    %p79 = scmp.eq.s32.totalorder %s15, 7
    %p80 = por %p78, %p79
    %p82 = scmp.ne.s32.totalorder %s67, %s81
    %p83 = scmp.eq.s32.totalorder %s15, 0
    %p84 = por %p82, %p83
    %s85 = ssub.s32 %s9, %s16
    %p86 = scmp.eq.s32.totalorder %s85, 0
    %s88 = sadd.s32 %s87, 1
    %s89 = scalar_select %p86, %s87, %s88
    %p92 = pneg %p86
    %p93 = scmp.eq.s32.totalorder %s9, 7
    %p94 = por %p92, %p93
    %p95 = scmp.ne.s32.totalorder %s87, %s90
    %p96 = scmp.eq.s32.totalorder %s9, 0
    %p97 = por %p95, %p96
    %p98 = scmp.ne.s32.totalorder %s87, %s90
    %p99 = scmp.eq.s32.totalorder %s14, 7
    %p100 = por %p98, %p99
    %p101 = scmp.ne.s32.totalorder %s90, %s91
    %p102 = scmp.eq.s32.totalorder %s14, 0
    %p103 = por %p101, %p102
    %p104 = scmp.ne.s32.totalorder %s90, %s91
    %p105 = scmp.eq.s32.totalorder %s15, 7
    %p106 = por %p104, %p105
    %p108 = scmp.ne.s32.totalorder %s91, %s107
    %p109 = scmp.eq.s32.totalorder %s15, 0
    %p110 = por %p108, %p109
    %p111 = scmp.le.s32.totalorder 1, %s9
    %p112 = scmp.lt.s32.totalorder %s9, 9
    %p113 = pnand %p111, %p112
    %p114 = pneg %p113
    // Predicated region
    $region9: #{ema_up_decoder_forward.10} parent=5 // pred_check
      _
    $region10: #{ema_up_decoder_forward.10} parent=5 // pred_check_branch
      %116 = sbr.rel (%p113) target = $region12
    $region11: #{ema_up_decoder_forward.10} parent=5 // pred_region
      %s117 = ssub.s32 %s9, 1
      // Predicated region
      $region13: #{ema_up_decoder_forward.10} parent=11 // pred_check
        %p118 = pneg %p56
      $region14: #{ema_up_decoder_forward.10} parent=11 // pred_check_branch
        %120 = sbr.rel (%p118) target = $region16
      $region15: #{ema_up_decoder_forward.10} parent=11 // pred_region
        _
      $region16: #{ema_up_decoder_forward.10} parent=11 // pred_fallthru
        _
      // Predicated region
      $region17: #{ema_up_decoder_forward.10} parent=11 // pred_check
        %p121 = pneg %p77
      $region18: #{ema_up_decoder_forward.10} parent=11 // pred_check_branch
        %123 = sbr.rel (%p121) target = $region20
      $region19: #{ema_up_decoder_forward.10} parent=11 // pred_region
        _
      $region20: #{ema_up_decoder_forward.10} parent=11 // pred_fallthru
        _
    $region12: #{ema_up_decoder_forward.10} parent=5 // pred_fallthru
      _
    %p124 = scmp.lt.s32.totalorder %s9, 8
    // Predicated region
    $region21: #{ema_up_decoder_forward.10} parent=5 // pred_check
      %p125 = pneg %p124
    $region22: #{ema_up_decoder_forward.10} parent=5 // pred_check_branch
      %127 = sbr.rel (%p125) target = $region24
    $region23: #{ema_up_decoder_forward.10} parent=5 // pred_region
      // Predicated region
      $region25: #{ema_up_decoder_forward.10} parent=23 // pred_check
        %p128 = pneg %p29
      $region26: #{ema_up_decoder_forward.10} parent=23 // pred_check_branch
        %130 = sbr.rel (%p128) target = $region28
      $region27: #{ema_up_decoder_forward.10} parent=23 // pred_region
        %p131 = scmp.lt.s32.totalorder %s9, 7
        %s132 = scalar_select %p131, %s9, 7
        %s133 = smul.addr %s132, 8
        %s134 = scalar_lea.vmem %s0, %s133
      $region28: #{ema_up_decoder_forward.10} parent=23 // pred_fallthru
        _
    $region24: #{ema_up_decoder_forward.10} parent=5 // pred_fallthru
      _
    %p135 = scmp.le.s32.totalorder 1, %s9
    %p136 = scmp.lt.s32.totalorder %s9, 9
    %p137 = pnand %p135, %p136
    %p138 = pneg %p137
    // Predicated region
    $region29: #{ema_up_decoder_forward.10} parent=5 // pred_check
      _
    $region30: #{ema_up_decoder_forward.10} parent=5 // pred_check_branch
      %140 = sbr.rel (%p137) target = $region32
    $region31: #{ema_up_decoder_forward.10} parent=5 // pred_region
      %s141 = ssub.s32 %s9, 1
      %p142 = scmp.lt.s32.totalorder %s14, 7
      %s143 = scalar_select %p142, %s14, 7
      %s144 = smul.addr %s143, 8
      %s145 = scalar_lea.vmem %s0, %s144
      %p146 = pneg %p35
      %p147 = pneg %p32
      %p148 = pneg %p56
      %p149 = pneg %p53
      %p150 = pneg %p77
      %p151 = pneg %p74
      %p152 = pneg %p103
      %p153 = pneg %p100
      %p154 = scmp.lt.s32.totalorder %s14, 7
      %s155 = scalar_select %p154, %s14, 7
      %s156 = smul.addr %s155, 2
      %s157 = smul.addr %s156, 8
      %s158 = scalar_lea.vmem %s3, %s157
      %p159 = scmp.lt.s32.totalorder %s14, 7
      %s160 = scalar_select %p159, %s14, 7
      %s161 = smul.addr %s160, 8
      %s162 = scalar_lea.vmem %s0, %s161
      %p163 = scmp.lt.s32.totalorder %s14, 7
      %s164 = scalar_select %p163, %s14, 7
      %s165 = smul.addr %s164, 2
      %s166 = smul.addr %s165, 8
      %s167 = scalar_lea.vmem %s3, %s166
      %v168 = vld [vmem:[%s1] sm:$0xff]
      %v169 = vld [vmem:[%s1 + $0x8] sm:$0xff]
      %v170 = vld [vmem:[%s162] sm:$0xff]
      %vm171 = vcmask 64512
      %v173 = vsel %vm171, %v168, 0
      %v176 = vsel %vm171, %v169, 0
      %178 = vmatprep.subr.mxu0 0.0
      %179 = vmatpush1.msra.mxu0 0.0
      %180 = vmatprep.subr.mxu0 0.0
      %181 = vmatpush1.msra.mxu0 0.0
      %182 = vmatprep.subr.mxu0 0.0
      %183 = vmatpush1.msra.mxu0 0.0
      %184 = vmatprep.subr.mxu0 0.0
      %185 = vmatpush1.msra.mxu0 0.0
      %186 = vmatprep.subr.mxu0 0.0
      %187 = vmatpush1.msra.mxu0 0.0
      %188 = vmatprep.subr.mxu0 0.0
      %189 = vmatpush1.msra.mxu0 0.0
      %190 = vmatprep.subr.mxu0 0.0
      %191 = vmatpush1.msra.mxu0 0.0
      %192 = vmatprep.subr.mxu0 0.0
      %193 = vmatpush1.msra.mxu0 0.0
      %194 = vmatprep.subr.mxu0 0.0
      %195 = vmatpush1.msra.mxu0 0.0
      %196 = vmatprep.subr.mxu0 0.0
      %197 = vmatpush1.msra.mxu0 0.0
      %198 = vmatprep.subr.mxu0 0.0
      %199 = vmatpush1.msra.mxu0 0.0
      %200 = vmatprep.subr.mxu0 0.0
      %201 = vmatpush1.msra.mxu0 0.0
      %202 = vmatprep.subr.mxu0 0.0
      %203 = vmatpush1.msra.mxu0 0.0
      %204 = vmatprep.subr.mxu0 0.0
      %205 = vmatpush1.msra.mxu0 0.0
      %206 = vmatprep.subr.mxu0 0.0
      %207 = vmatpush1.msra.mxu0 0.0
      %208 = vmatprep.subr.mxu0 0.0
      %209 = vmatpush1.msra.mxu0 %v170
      %210 = vmatprep.subr.mxu0 0.0
      %211 = vmatpush2.msra.mxu0 0.0
      %212 = vmatprep.subr.mxu0 0.0
      %213 = vmatpush2.msra.mxu0 0.0
      %214 = vmatprep.subr.mxu0 0.0
      %215 = vmatpush2.msra.mxu0 0.0
      %216 = vmatprep.subr.mxu0 0.0
      %217 = vmatpush2.msra.mxu0 0.0
      %218 = vmatprep.subr.mxu0 0.0
      %219 = vmatpush2.msra.mxu0 0.0
      %220 = vmatprep.subr.mxu0 0.0
      %221 = vmatpush2.msra.mxu0 0.0
      %222 = vmatprep.subr.mxu0 0.0
      %223 = vmatpush2.msra.mxu0 0.0
      %224 = vmatprep.subr.mxu0 0.0
      %225 = vmatpush2.msra.mxu0 0.0
      %226 = vmatprep.subr.mxu0 0.0
      %227 = vmatpush2.msra.mxu0 0.0
      %228 = vmatprep.subr.mxu0 0.0
      %229 = vmatpush2.msra.mxu0 0.0
      %230 = vmatprep.subr.mxu0 0.0
      %231 = vmatpush2.msra.mxu0 0.0
      %232 = vmatprep.subr.mxu0 0.0
      %233 = vmatpush2.msra.mxu0 0.0
      %234 = vmatprep.subr.mxu0 0.0
      %235 = vmatpush2.msra.mxu0 0.0
      %236 = vmatprep.subr.mxu0 0.0
      %237 = vmatpush2.msra.mxu0 0.0
      %238 = vmatprep.subr.mxu0 0.0
      %239 = vmatpush2.msra.mxu0 0.0
      %240 = vmatprep.subr.mxu0 0.0
      %241 = vmatpush2.msra.mxu0 0.0
      %242 = vmatprep.mubr.f32.mxu0 0.0
      %243 = vmatmul.mubr.f32.gmra.mxu0 %v173
      %v244 = vpop.f32.mrf.mxu0
      %v245 = vadd.f32 0.0, %v244
      %v246 = vpop.f32.mrf.mxu0
      %247 = vmatprep.mubr.f32.mxu0 0.0
      %248 = vmatmul.mubr.f32.gmra.mxu0 %v176
      %v249 = vpop.f32.mrf.mxu0
      %v250 = vadd.f32 0.0, %v249
      %v251 = vpop.f32.mrf.mxu0
      %252 = vdwg.mxu0
      %v253 = vld [vmem:[%s2] sm:$0xff]
      %v254 = vld [vmem:[%s2 + $0x8] sm:$0xff]
      %v256 = vsel %vm171, %v245, 0
      %v259 = vsel %vm171, %v250, 0
      %v262 = vsel %vm171, %v253, 0
      %v265 = vsel %vm171, %v254, 0
      %267 = vmatprep.subr.mxu0 0.0
      %268 = vmatpush1.xpose.msra.mxu0 0.0
      %269 = vmatprep.subr.mxu0 0.0
      %270 = vmatpush1.xpose.msra.mxu0 0.0
      %271 = vmatprep.subr.mxu0 0.0
      %272 = vmatpush1.xpose.msra.mxu0 0.0
      %273 = vmatprep.subr.mxu0 0.0
      %274 = vmatpush1.xpose.msra.mxu0 0.0
      %275 = vmatprep.subr.mxu0 0.0
      %276 = vmatpush1.xpose.msra.mxu0 0.0
      %277 = vmatprep.subr.mxu0 0.0
      %278 = vmatpush1.xpose.msra.mxu0 0.0
      %279 = vmatprep.subr.mxu0 0.0
      %280 = vmatpush1.xpose.msra.mxu0 0.0
      %281 = vmatprep.subr.mxu0 0.0
      %282 = vmatpush1.xpose.msra.mxu0 0.0
      %283 = vmatprep.subr.mxu0 0.0
      %284 = vmatpush1.xpose.msra.mxu0 0.0
      %285 = vmatprep.subr.mxu0 0.0
      %286 = vmatpush1.xpose.msra.mxu0 0.0
      %287 = vmatprep.subr.mxu0 0.0
      %288 = vmatpush1.xpose.msra.mxu0 0.0
      %289 = vmatprep.subr.mxu0 0.0
      %290 = vmatpush1.xpose.msra.mxu0 0.0
      %291 = vmatprep.subr.mxu0 0.0
      %292 = vmatpush1.xpose.msra.mxu0 0.0
      %293 = vmatprep.subr.mxu0 0.0
      %294 = vmatpush1.xpose.msra.mxu0 0.0
      %295 = vmatprep.subr.mxu0 0.0
      %296 = vmatpush1.xpose.msra.mxu0 %v265
      %297 = vmatprep.subr.mxu0 0.0
      %298 = vmatpush1.xpose.msra.mxu0 %v262
      %299 = vmatprep.subr.mxu0 0.0
      %300 = vmatpush2.xpose.msra.mxu0 0.0
      %301 = vmatprep.subr.mxu0 0.0
      %302 = vmatpush2.xpose.msra.mxu0 0.0
      %303 = vmatprep.subr.mxu0 0.0
      %304 = vmatpush2.xpose.msra.mxu0 0.0
      %305 = vmatprep.subr.mxu0 0.0
      %306 = vmatpush2.xpose.msra.mxu0 0.0
      %307 = vmatprep.subr.mxu0 0.0
      %308 = vmatpush2.xpose.msra.mxu0 0.0
      %309 = vmatprep.subr.mxu0 0.0
      %310 = vmatpush2.xpose.msra.mxu0 0.0
      %311 = vmatprep.subr.mxu0 0.0
      %312 = vmatpush2.xpose.msra.mxu0 0.0
      %313 = vmatprep.subr.mxu0 0.0
      %314 = vmatpush2.xpose.msra.mxu0 0.0
      %315 = vmatprep.subr.mxu0 0.0
      %316 = vmatpush2.xpose.msra.mxu0 0.0
      %317 = vmatprep.subr.mxu0 0.0
      %318 = vmatpush2.xpose.msra.mxu0 0.0
      %319 = vmatprep.subr.mxu0 0.0
      %320 = vmatpush2.xpose.msra.mxu0 0.0
      %321 = vmatprep.subr.mxu0 0.0
      %322 = vmatpush2.xpose.msra.mxu0 0.0
      %323 = vmatprep.subr.mxu0 0.0
      %324 = vmatpush2.xpose.msra.mxu0 0.0
      %325 = vmatprep.subr.mxu0 0.0
      %326 = vmatpush2.xpose.msra.mxu0 0.0
      %327 = vmatprep.subr.mxu0 0.0
      %328 = vmatpush2.xpose.msra.mxu0 0.0
      %329 = vmatprep.subr.mxu0 0.0
      %330 = vmatpush2.xpose.msra.mxu0 0.0
      %331 = vmatprep.mubr.f32.mxu0 0.0
      %332 = vmatmul.mubr.f32.gmra.mxu0 %v256
      %v333 = vpop.f32.mrf.mxu0
      %v334 = vadd.f32 0.0, %v333
      %v335 = vpop.f32.mrf.mxu0
      %336 = vmatprep.mubr.f32.mxu0 0.0
      %337 = vmatmul.mubr.f32.gmra.mxu0 %v259
      %v338 = vpop.f32.mrf.mxu0
      %v339 = vadd.f32 0.0, %v338
      %v340 = vpop.f32.mrf.mxu0
      %341 = vdwg.mxu0
      %vm342 = vcmask 130048
      %343 = vst.msk [vmem:[%s167] sm:$0xff] %vm342, %v334
      %344 = vst.msk [vmem:[%s167 + $0x8] sm:$0xff] %vm342, %v339
      %p345 = scmp.lt.s32.totalorder %s14, 7
      %s346 = scalar_select %p345, %s14, 7
      %s347 = smul.addr %s346, 2
      %s348 = smul.addr %s347, 8
      %s349 = scalar_lea.vmem %s3, %s348
      // Predicated region
      $region33: #{ema_up_decoder_forward.10} parent=31 // pred_check
        %p350 = pneg %p100
      $region34: #{ema_up_decoder_forward.10} parent=31 // pred_check_branch
        %352 = sbr.rel (%p350) target = $region36
      $region35: #{ema_up_decoder_forward.10} parent=31 // pred_region
        _
      $region36: #{ema_up_decoder_forward.10} parent=31 // pred_fallthru
        _
    $region32: #{ema_up_decoder_forward.10} parent=5 // pred_fallthru
      _
    %p353 = scmp.le.s32.totalorder 2, %s9
    // Predicated region
    $region37: #{ema_up_decoder_forward.10} parent=5 // pred_check
      %p354 = pneg %p353
    $region38: #{ema_up_decoder_forward.10} parent=5 // pred_check_branch
      %356 = sbr.rel (%p354) target = $region40
    $region39: #{ema_up_decoder_forward.10} parent=5 // pred_region
      %s357 = ssub.s32 %s9, 2
      // Predicated region
      $region41: #{ema_up_decoder_forward.10} parent=39 // pred_check
        %p358 = pneg %p106
      $region42: #{ema_up_decoder_forward.10} parent=39 // pred_check_branch
        %360 = sbr.rel (%p358) target = $region44
      $region43: #{ema_up_decoder_forward.10} parent=39 // pred_region
        %p361 = scmp.lt.s32.totalorder %s15, 7
        %s362 = scalar_select %p361, %s15, 7
        %s363 = smul.addr %s362, 2
        %s364 = smul.addr %s363, 8
        %s365 = scalar_lea.vmem %s3, %s364
      $region44: #{ema_up_decoder_forward.10} parent=39 // pred_fallthru
        _
    $region40: #{ema_up_decoder_forward.10} parent=5 // pred_fallthru
      _
  $region6: #{ema_up_decoder_forward.10} parent=0 // loop_footer
    %s13 = sadd.s32 1, %s9
  $region7: #{ema_up_decoder_forward.10} parent=0 // loop_footer_branch
    %8 = sbr.rel target = $region3
  $region8: #{ema_up_decoder_forward.10} parent=0 // loop_exit
    _

// kernel: ema_up_decoder_forward.13
$region0: #{ema_up_decoder_forward.13}
  #allocation0 [shape = 'u32[]', space=smem, size = 0x4, offset = 0x4, fixed_abs, tag = 'smem constant byte address 0x4 - core index']
  #allocation1 [shape = 'u32[144,128]{1,0:T(1,128)}', space=vmem, size = 0x12000, scoped, tag = 'internal scratch']
  %s0 = inlined_call_operand.vmem [shape: f32[2,64,8], index: 0, kind: input, shape index: {}]
  %s1 = inlined_call_operand.vmem [shape: f32[8,16], index: 1, kind: input, shape index: {}]
  %s2 = inlined_call_operand.vmem [shape: f32[2,8,16], index: 2, kind: output, shape index: {}]
  %s3 = sld [smem:[#allocation0]]
  $region41: #{ema_up_decoder_forward.13} parent=0
    _
  %s5 = ssub.s32 1, %s3
  %s6 = scalar_select 0, %s5, %s3
  loop: start=0, step=1, limit=4
  $region2: #{ema_up_decoder_forward.13} parent=0 // loop_pre_header
    _
  $region3: #{ema_up_decoder_forward.13} parent=0 // loop_header
    %s8 = sphi 0, %s12
    %p9 = scmp.ge.s32.totalorder %s8, 4
    %s18 = sphi 0, %s20
    %s21 = sphi 0, %s18
    %s22 = sphi 0, %s21
    %s38 = sphi 0, %s22
    %s42 = sphi 0, %s42
    %s44 = sphi 0, %s42
    %s45 = sphi 0, %s44
    %s59 = sphi 0, %s45
    %s65 = sphi 0, %s67
    %s68 = sphi 0, %s65
    %s69 = sphi 0, %s68
    %s85 = sphi 0, %s69
  $region4: #{ema_up_decoder_forward.13} parent=0 // loop_header_branch
    %11 = sbr.rel (%p9) target = $region8
  $region5: #{ema_up_decoder_forward.13} parent=0 // loop_body
    %s13 = ssub.s32 %s8, 1
    %s14 = ssub.s32 %s8, 2
    %s15 = sadd.s32 %s8, 1
    %s16 = ssub.s32 %s8, %s15
    %p17 = scmp.eq.s32.totalorder %s16, 0
    %s19 = sadd.s32 %s18, 1
    %s20 = scalar_select %p17, %s18, %s19
    %p23 = pneg %p17
    %p24 = scmp.eq.s32.totalorder %s8, 1
    %p25 = por %p23, %p24
    %p26 = scmp.ne.s32.totalorder %s18, %s21
    %p27 = scmp.eq.s32.totalorder %s8, 0
    %p28 = por %p26, %p27
    %p29 = scmp.ne.s32.totalorder %s18, %s21
    %p30 = scmp.eq.s32.totalorder %s13, 1
    %p31 = por %p29, %p30
    %p32 = scmp.ne.s32.totalorder %s21, %s22
    %p33 = scmp.eq.s32.totalorder %s13, 0
    %p34 = por %p32, %p33
    %p35 = scmp.ne.s32.totalorder %s21, %s22
    %p36 = scmp.eq.s32.totalorder %s14, 1
    %p37 = por %p35, %p36
    %p39 = scmp.ne.s32.totalorder %s22, %s38
    %p40 = scmp.eq.s32.totalorder %s14, 0
    %p41 = por %p39, %p40
    %s43 = sadd.s32 %s42, 1
    %p46 = scmp.eq.s32.totalorder %s8, 1
    %p47 = scmp.ne.s32.totalorder %s42, %s44
    %p48 = scmp.eq.s32.totalorder %s8, 0
    %p49 = por %p47, %p48
    %p50 = scmp.ne.s32.totalorder %s42, %s44
    %p51 = scmp.eq.s32.totalorder %s13, 1
    %p52 = por %p50, %p51
    %p53 = scmp.ne.s32.totalorder %s44, %s45
    %p54 = scmp.eq.s32.totalorder %s13, 0
    %p55 = por %p53, %p54
    %p56 = scmp.ne.s32.totalorder %s44, %s45
    %p57 = scmp.eq.s32.totalorder %s14, 1
    %p58 = por %p56, %p57
    %p60 = scmp.ne.s32.totalorder %s45, %s59
    %p61 = scmp.eq.s32.totalorder %s14, 0
    %p62 = por %p60, %p61
    %s63 = ssub.s32 %s8, %s15
    %p64 = scmp.eq.s32.totalorder %s63, 0
    %s66 = sadd.s32 %s65, 1
    %s67 = scalar_select %p64, %s65, %s66
    %p70 = pneg %p64
    %p71 = scmp.eq.s32.totalorder %s8, 1
    %p72 = por %p70, %p71
    %p73 = scmp.ne.s32.totalorder %s65, %s68
    %p74 = scmp.eq.s32.totalorder %s8, 0
    %p75 = por %p73, %p74
    %p76 = scmp.ne.s32.totalorder %s65, %s68
    %p77 = scmp.eq.s32.totalorder %s13, 1
    %p78 = por %p76, %p77
    %p79 = scmp.ne.s32.totalorder %s68, %s69
    %p80 = scmp.eq.s32.totalorder %s13, 0
    %p81 = por %p79, %p80
    %p82 = scmp.ne.s32.totalorder %s68, %s69
    %p83 = scmp.eq.s32.totalorder %s14, 1
    %p84 = por %p82, %p83
    %p86 = scmp.ne.s32.totalorder %s69, %s85
    %p87 = scmp.eq.s32.totalorder %s14, 0
    %p88 = por %p86, %p87
    %p89 = scmp.le.s32.totalorder 1, %s8
    %p90 = scmp.lt.s32.totalorder %s8, 3
    %p91 = pnand %p89, %p90
    %p92 = pneg %p91
    // Predicated region
    $region9: #{ema_up_decoder_forward.13} parent=5 // pred_check
      _
    $region10: #{ema_up_decoder_forward.13} parent=5 // pred_check_branch
      %94 = sbr.rel (%p91) target = $region12
    $region11: #{ema_up_decoder_forward.13} parent=5 // pred_region
      %s95 = ssub.s32 %s8, 1
      // Predicated region
      $region13: #{ema_up_decoder_forward.13} parent=11 // pred_check
        %p96 = pneg %p55
      $region14: #{ema_up_decoder_forward.13} parent=11 // pred_check_branch
        %98 = sbr.rel (%p96) target = $region16
      $region15: #{ema_up_decoder_forward.13} parent=11 // pred_region
        _
      $region16: #{ema_up_decoder_forward.13} parent=11 // pred_fallthru
        _
    $region12: #{ema_up_decoder_forward.13} parent=5 // pred_fallthru
      _
    %p99 = scmp.lt.s32.totalorder %s8, 2
    // Predicated region
    $region17: #{ema_up_decoder_forward.13} parent=5 // pred_check
      %p100 = pneg %p99
    $region18: #{ema_up_decoder_forward.13} parent=5 // pred_check_branch
      %102 = sbr.rel (%p100) target = $region20
    $region19: #{ema_up_decoder_forward.13} parent=5 // pred_region
      // Predicated region
      $region21: #{ema_up_decoder_forward.13} parent=19 // pred_check
        %p103 = pneg %p28
      $region22: #{ema_up_decoder_forward.13} parent=19 // pred_check_branch
        %105 = sbr.rel (%p103) target = $region24
      $region23: #{ema_up_decoder_forward.13} parent=19 // pred_region
        %p106 = scmp.lt.s32.totalorder %s8, 1
        %s107 = scalar_select %p106, %s8, 1
        %s108 = smul.addr %s107, 8
        %s109 = smul.addr %s108, 8
        %s110 = scalar_lea.vmem %s0, %s109
      $region24: #{ema_up_decoder_forward.13} parent=19 // pred_fallthru
        _
    $region20: #{ema_up_decoder_forward.13} parent=5 // pred_fallthru
      _
    %p111 = scmp.le.s32.totalorder 1, %s8
    %p112 = scmp.lt.s32.totalorder %s8, 3
    %p113 = pnand %p111, %p112
    %p114 = pneg %p113
    // Predicated region
    $region25: #{ema_up_decoder_forward.13} parent=5 // pred_check
      _
    $region26: #{ema_up_decoder_forward.13} parent=5 // pred_check_branch
      %116 = sbr.rel (%p113) target = $region28
    $region27: #{ema_up_decoder_forward.13} parent=5 // pred_region
      %s117 = ssub.s32 %s8, 1
      %p118 = scmp.lt.s32.totalorder %s13, 1
      %s119 = scalar_select %p118, %s13, 1
      %s120 = smul.addr %s119, 8
      %s121 = smul.addr %s120, 8
      %s122 = scalar_lea.vmem %s0, %s121
      %p123 = pneg %p34
      %p124 = pneg %p31
      %p125 = pneg %p55
      %p126 = pneg %p52
      %p127 = pneg %p81
      %p128 = pneg %p78
      %p129 = scmp.lt.s32.totalorder %s13, 1
      %s130 = scalar_select %p129, %s13, 1
      %s131 = smul.addr %s130, 8
      %s132 = scalar_lea.vmem %s2, %s131
      %p133 = scmp.lt.s32.totalorder %s13, 1
      %s134 = scalar_select %p133, %s13, 1
      %s135 = smul.addr %s134, 8
      %s136 = smul.addr %s135, 8
      %s137 = scalar_lea.vmem %s0, %s136
      %p138 = scmp.lt.s32.totalorder %s13, 1
      %s139 = scalar_select %p138, %s13, 1
      %s140 = smul.addr %s139, 8
      %s141 = scalar_lea.vmem %s2, %s140
      %v142 = vld [vmem:[%s137] sm:$0xff]
      %v143 = vld [vmem:[%s137 + $0x8] sm:$0xff]
      %v144 = vld [vmem:[%s137 + $0x10] sm:$0xff]
      %v145 = vld [vmem:[%s137 + $0x18] sm:$0xff]
      %v146 = vld [vmem:[%s137 + $0x20] sm:$0xff]
      %v147 = vld [vmem:[%s137 + $0x28] sm:$0xff]
      %v148 = vld [vmem:[%s137 + $0x30] sm:$0xff]
      %v149 = vld [vmem:[%s137 + $0x38] sm:$0xff]
      %150 = vxpose.xlu0.b32.start [1/16] %v142, 128
      %151 = vxpose.xlu0.b32.cont [2/16] %v143, 128
      %152 = vxpose.xlu0.b32.cont [3/16] %v144, 128
      %153 = vxpose.xlu0.b32.cont [4/16] %v145, 128
      %154 = vxpose.xlu0.b32.cont [5/16] %v146, 128
      %155 = vxpose.xlu0.b32.cont [6/16] %v147, 128
      %156 = vxpose.xlu0.b32.cont [7/16] %v148, 128
      %157 = vxpose.xlu0.b32.cont [8/16] %v149, 128
      %158 = vxpose.xlu0.b32.cont [9/16] 0.0, 128
      %159 = vxpose.xlu0.b32.cont [10/16] 0.0, 128
      %160 = vxpose.xlu0.b32.cont [11/16] 0.0, 128
      %161 = vxpose.xlu0.b32.cont [12/16] 0.0, 128
      %162 = vxpose.xlu0.b32.cont [13/16] 0.0, 128
      %163 = vxpose.xlu0.b32.cont [14/16] 0.0, 128
      %164 = vxpose.xlu0.b32.cont [15/16] 0.0, 128
      %165 = vxpose.xlu0.b32.end [16/16] 0.0, 128
      %v166 = vpop.trf.xlu0
      %v167 = vpop.trf.xlu0
      %v168 = vpop.trf.xlu0
      %v169 = vpop.trf.xlu0
      %v170 = vpop.trf.xlu0
      %v171 = vpop.trf.xlu0
      %v172 = vpop.trf.xlu0
      %v173 = vpop.trf.xlu0
      %v174 = vpop.trf.xlu0
      %v175 = vpop.trf.xlu0
      %v176 = vpop.trf.xlu0
      %v177 = vpop.trf.xlu0
      %v178 = vpop.trf.xlu0
      %v179 = vpop.trf.xlu0
      %v180 = vpop.trf.xlu0
      %v181 = vpop.trf.xlu0
      %v182 = vld [vmem:[%s1] sm:$0xff]
      %vm183 = vcmask 64512
      %v185 = vsel %vm183, %v142, 0
      %v188 = vsel %vm183, %v143, 0
      %v191 = vsel %vm183, %v144, 0
      %v194 = vsel %vm183, %v145, 0
      %v197 = vsel %vm183, %v146, 0
      %v200 = vsel %vm183, %v147, 0
      %v203 = vsel %vm183, %v148, 0
      %v206 = vsel %vm183, %v149, 0
      %208 = vmatprep.subr.mxu0 0.0
      %209 = vmatpush1.msra.mxu0 0.0
      %210 = vmatprep.subr.mxu0 0.0
      %211 = vmatpush1.msra.mxu0 0.0
      %212 = vmatprep.subr.mxu0 0.0
      %213 = vmatpush1.msra.mxu0 0.0
      %214 = vmatprep.subr.mxu0 0.0
      %215 = vmatpush1.msra.mxu0 0.0
      %216 = vmatprep.subr.mxu0 0.0
      %217 = vmatpush1.msra.mxu0 0.0
      %218 = vmatprep.subr.mxu0 0.0
      %219 = vmatpush1.msra.mxu0 0.0
      %220 = vmatprep.subr.mxu0 0.0
      %221 = vmatpush1.msra.mxu0 0.0
      %222 = vmatprep.subr.mxu0 0.0
      %223 = vmatpush1.msra.mxu0 0.0
      %224 = vmatprep.subr.mxu0 0.0
      %225 = vmatpush1.msra.mxu0 0.0
      %226 = vmatprep.subr.mxu0 0.0
      %227 = vmatpush1.msra.mxu0 0.0
      %228 = vmatprep.subr.mxu0 0.0
      %229 = vmatpush1.msra.mxu0 0.0
      %230 = vmatprep.subr.mxu0 0.0
      %231 = vmatpush1.msra.mxu0 0.0
      %232 = vmatprep.subr.mxu0 0.0
      %233 = vmatpush1.msra.mxu0 0.0
      %234 = vmatprep.subr.mxu0 0.0
      %235 = vmatpush1.msra.mxu0 0.0
      %236 = vmatprep.subr.mxu0 0.0
      %237 = vmatpush1.msra.mxu0 0.0
      %238 = vmatprep.subr.mxu0 0.0
      %239 = vmatpush1.msra.mxu0 %v182
      %240 = vmatprep.subr.mxu0 0.0
      %241 = vmatpush2.msra.mxu0 0.0
      %242 = vmatprep.subr.mxu0 0.0
      %243 = vmatpush2.msra.mxu0 0.0
      %244 = vmatprep.subr.mxu0 0.0
      %245 = vmatpush2.msra.mxu0 0.0
      %246 = vmatprep.subr.mxu0 0.0
      %247 = vmatpush2.msra.mxu0 0.0
      %248 = vmatprep.subr.mxu0 0.0
      %249 = vmatpush2.msra.mxu0 0.0
      %250 = vmatprep.subr.mxu0 0.0
      %251 = vmatpush2.msra.mxu0 0.0
      %252 = vmatprep.subr.mxu0 0.0
      %253 = vmatpush2.msra.mxu0 0.0
      %254 = vmatprep.subr.mxu0 0.0
      %255 = vmatpush2.msra.mxu0 0.0
      %256 = vmatprep.subr.mxu0 0.0
      %257 = vmatpush2.msra.mxu0 0.0
      %258 = vmatprep.subr.mxu0 0.0
      %259 = vmatpush2.msra.mxu0 0.0
      %260 = vmatprep.subr.mxu0 0.0
      %261 = vmatpush2.msra.mxu0 0.0
      %262 = vmatprep.subr.mxu0 0.0
      %263 = vmatpush2.msra.mxu0 0.0
      %264 = vmatprep.subr.mxu0 0.0
      %265 = vmatpush2.msra.mxu0 0.0
      %266 = vmatprep.subr.mxu0 0.0
      %267 = vmatpush2.msra.mxu0 0.0
      %268 = vmatprep.subr.mxu0 0.0
      %269 = vmatpush2.msra.mxu0 0.0
      %270 = vmatprep.subr.mxu0 0.0
      %271 = vmatpush2.msra.mxu0 0.0
      %272 = vmatprep.mubr.f32.mxu0 0.0
      %273 = vmatmul.mubr.f32.gmra.mxu0 %v185
      %v274 = vpop.f32.mrf.mxu0
      %v275 = vadd.f32 0.0, %v274
      %v276 = vpop.f32.mrf.mxu0
      %277 = vmatprep.mubr.f32.mxu0 0.0
      %278 = vmatmul.mubr.f32.gmra.mxu0 %v188
      %v279 = vpop.f32.mrf.mxu0
      %v280 = vadd.f32 0.0, %v279
      %v281 = vpop.f32.mrf.mxu0
      %282 = vmatprep.mubr.f32.mxu0 0.0
      %283 = vmatmul.mubr.f32.gmra.mxu0 %v191
      %v284 = vpop.f32.mrf.mxu0
      %v285 = vadd.f32 0.0, %v284
      %v286 = vpop.f32.mrf.mxu0
      %287 = vmatprep.mubr.f32.mxu0 0.0
      %288 = vmatmul.mubr.f32.gmra.mxu0 %v194
      %v289 = vpop.f32.mrf.mxu0
      %v290 = vadd.f32 0.0, %v289
      %v291 = vpop.f32.mrf.mxu0
      %292 = vmatprep.mubr.f32.mxu0 0.0
      %293 = vmatmul.mubr.f32.gmra.mxu0 %v197
      %v294 = vpop.f32.mrf.mxu0
      %v295 = vadd.f32 0.0, %v294
      %v296 = vpop.f32.mrf.mxu0
      %297 = vmatprep.mubr.f32.mxu0 0.0
      %298 = vmatmul.mubr.f32.gmra.mxu0 %v200
      %v299 = vpop.f32.mrf.mxu0
      %v300 = vadd.f32 0.0, %v299
      %v301 = vpop.f32.mrf.mxu0
      %302 = vmatprep.mubr.f32.mxu0 0.0
      %303 = vmatmul.mubr.f32.gmra.mxu0 %v203
      %v304 = vpop.f32.mrf.mxu0
      %v305 = vadd.f32 0.0, %v304
      %v306 = vpop.f32.mrf.mxu0
      %307 = vmatprep.mubr.f32.mxu0 0.0
      %308 = vmatmul.mubr.f32.gmra.mxu0 %v206
      %v309 = vpop.f32.mrf.mxu0
      %v310 = vadd.f32 0.0, %v309
      %v311 = vpop.f32.mrf.mxu0
      %312 = vdwg.mxu0
      %vm313 = vcmask 130048
      %v314 = vsel %vm313, %v275, -inf
      %315 = vmax.xlane.f32.xlu0 %v314
      %v316 = vpop.xlane.xlu0 %315
      %v317 = vsel %vm313, %v280, -inf
      %318 = vmax.xlane.f32.xlu0 %v317
      %v319 = vpop.xlane.xlu0 %318
      %v320 = vsel %vm313, %v285, -inf
      %321 = vmax.xlane.f32.xlu0 %v320
      %v322 = vpop.xlane.xlu0 %321
      %v323 = vsel %vm313, %v290, -inf
      %324 = vmax.xlane.f32.xlu0 %v323
      %v325 = vpop.xlane.xlu0 %324
      %v326 = vsel %vm313, %v295, -inf
      %327 = vmax.xlane.f32.xlu0 %v326
      %v328 = vpop.xlane.xlu0 %327
      %v329 = vsel %vm313, %v300, -inf
      %330 = vmax.xlane.f32.xlu0 %v329
      %v331 = vpop.xlane.xlu0 %330
      %v332 = vsel %vm313, %v305, -inf
      %333 = vmax.xlane.f32.xlu0 %v332
      %v334 = vpop.xlane.xlu0 %333
      %v335 = vsel %vm313, %v310, -inf
      %336 = vmax.xlane.f32.xlu0 %v335
      %v337 = vpop.xlane.xlu0 %336
      %v338 = vsub.f32 %v275, %v316
      %v339 = vsub.f32 %v280, %v319
      %v340 = vsub.f32 %v285, %v322
      %v341 = vsub.f32 %v290, %v325
      %v342 = vsub.f32 %v295, %v328
      %v343 = vsub.f32 %v300, %v331
      %v344 = vsub.f32 %v305, %v334
      %v345 = vsub.f32 %v310, %v337
      %v346 = vmul.f32 %v338, 1.442695
      %v347 = vpow.pop %v346
      %v348 = vmul.f32 %v339, 1.442695
      %v349 = vpow.pop %v348
      %v350 = vmul.f32 %v340, 1.442695
      %v351 = vpow.pop %v350
      %v352 = vmul.f32 %v341, 1.442695
      %v353 = vpow.pop %v352
      %v354 = vmul.f32 %v342, 1.442695
      %v355 = vpow.pop %v354
      %v356 = vmul.f32 %v343, 1.442695
      %v357 = vpow.pop %v356
      %v358 = vmul.f32 %v344, 1.442695
      %v359 = vpow.pop %v358
      %v360 = vmul.f32 %v345, 1.442695
      %v361 = vpow.pop %v360
      %v362 = vsel %vm313, %v347, 0.0
      %363 = vadd.xlane.f32.xlu0 %v362
      %v364 = vpop.xlane.xlu0 %363
      %v365 = vsel %vm313, %v349, 0.0
      %366 = vadd.xlane.f32.xlu0 %v365
      %v367 = vpop.xlane.xlu0 %366
      %v368 = vsel %vm313, %v351, 0.0
      %369 = vadd.xlane.f32.xlu0 %v368
      %v370 = vpop.xlane.xlu0 %369
      %v371 = vsel %vm313, %v353, 0.0
      %372 = vadd.xlane.f32.xlu0 %v371
      %v373 = vpop.xlane.xlu0 %372
      %v374 = vsel %vm313, %v355, 0.0
      %375 = vadd.xlane.f32.xlu0 %v374
      %v376 = vpop.xlane.xlu0 %375
      %v377 = vsel %vm313, %v357, 0.0
      %378 = vadd.xlane.f32.xlu0 %v377
      %v379 = vpop.xlane.xlu0 %378
      %v380 = vsel %vm313, %v359, 0.0
      %381 = vadd.xlane.f32.xlu0 %v380
      %v382 = vpop.xlane.xlu0 %381
      %v383 = vsel %vm313, %v361, 0.0
      %384 = vadd.xlane.f32.xlu0 %v383
      %v385 = vpop.xlane.xlu0 %384
      %v386 = vrcp.pop %v364
      %v387 = vrcp.pop %v367
      %v388 = vrcp.pop %v370
      %v389 = vrcp.pop %v373
      %v390 = vrcp.pop %v376
      %v391 = vrcp.pop %v379
      %v392 = vrcp.pop %v382
      %v393 = vrcp.pop %v385
      %v394 = vmul.f32 %v347, %v386
      %v395 = vmul.f32 %v349, %v387
      %v396 = vmul.f32 %v351, %v388
      %v397 = vmul.f32 %v353, %v389
      %v398 = vmul.f32 %v355, %v390
      %v399 = vmul.f32 %v357, %v391
      %v400 = vmul.f32 %v359, %v392
      %v401 = vmul.f32 %v361, %v393
      %v402 = vsel %vm313, %v394, 0.0
      %v403 = vsel %vm313, %v395, 0.0
      %v404 = vadd.f32 %v402, %v403
      %v405 = vsel %vm313, %v396, 0.0
      %v406 = vadd.f32 %v404, %v405
      %v407 = vsel %vm313, %v397, 0.0
      %v408 = vadd.f32 %v406, %v407
      %v409 = vsel %vm313, %v398, 0.0
      %v410 = vadd.f32 %v408, %v409
      %v411 = vsel %vm313, %v399, 0.0
      %v412 = vadd.f32 %v410, %v411
      %v413 = vsel %vm313, %v400, 0.0
      %v414 = vadd.f32 %v412, %v413
      %v415 = vsel %vm313, %v401, 0.0
      %v416 = vadd.f32 %v414, %v415
      %v417 = vrot.slane %v416, 4
      %v418 = vadd.f32 %v416, %v417
      %v419 = vrot.slane %v418, 2
      %v420 = vadd.f32 %v418, %v419
      %v421 = vrot.slane %v420, 1
      %v422 = vadd.f32 %v420, %v421
      %v423 = vadd.f32 %v422, 1e-06
      %v424 = vrcp.pop %v423
      %v425 = vmul.f32 %v394, %v424
      %v426 = vmul.f32 %v395, %v424
      %v427 = vmul.f32 %v396, %v424
      %v428 = vmul.f32 %v397, %v424
      %v429 = vmul.f32 %v398, %v424
      %v430 = vmul.f32 %v399, %v424
      %v431 = vmul.f32 %v400, %v424
      %v432 = vmul.f32 %v401, %v424
      %vm433 = vcmask 523264
      %v435 = vsel %vm433, %v166, 0
      %437 = vmatprep.subr.mxu0 0.0
      %438 = vmatpush1.msra.mxu0 0.0
      %439 = vmatprep.subr.mxu0 0.0
      %440 = vmatpush1.msra.mxu0 0.0
      %441 = vmatprep.subr.mxu0 0.0
      %442 = vmatpush1.msra.mxu0 0.0
      %443 = vmatprep.subr.mxu0 0.0
      %444 = vmatpush1.msra.mxu0 0.0
      %445 = vmatprep.subr.mxu0 0.0
      %446 = vmatpush1.msra.mxu0 0.0
      %447 = vmatprep.subr.mxu0 0.0
      %448 = vmatpush1.msra.mxu0 0.0
      %449 = vmatprep.subr.mxu0 0.0
      %450 = vmatpush1.msra.mxu0 0.0
      %451 = vmatprep.subr.mxu0 0.0
      %452 = vmatpush1.msra.mxu0 0.0
      %453 = vmatprep.subr.mxu0 0.0
      %454 = vmatpush1.msra.mxu0 %v432
      %455 = vmatprep.subr.mxu0 0.0
      %456 = vmatpush1.msra.mxu0 %v431
      %457 = vmatprep.subr.mxu0 0.0
      %458 = vmatpush1.msra.mxu0 %v430
      %459 = vmatprep.subr.mxu0 0.0
      %460 = vmatpush1.msra.mxu0 %v429
      %461 = vmatprep.subr.mxu0 0.0
      %462 = vmatpush1.msra.mxu0 %v428
      %463 = vmatprep.subr.mxu0 0.0
      %464 = vmatpush1.msra.mxu0 %v427
      %465 = vmatprep.subr.mxu0 0.0
      %466 = vmatpush1.msra.mxu0 %v426
      %467 = vmatprep.subr.mxu0 0.0
      %468 = vmatpush1.msra.mxu0 %v425
      %469 = vmatprep.subr.mxu0 0.0
      %470 = vmatpush2.msra.mxu0 0.0
      %471 = vmatprep.subr.mxu0 0.0
      %472 = vmatpush2.msra.mxu0 0.0
      %473 = vmatprep.subr.mxu0 0.0
      %474 = vmatpush2.msra.mxu0 0.0
      %475 = vmatprep.subr.mxu0 0.0
      %476 = vmatpush2.msra.mxu0 0.0
      %477 = vmatprep.subr.mxu0 0.0
      %478 = vmatpush2.msra.mxu0 0.0
      %479 = vmatprep.subr.mxu0 0.0
      %480 = vmatpush2.msra.mxu0 0.0
      %481 = vmatprep.subr.mxu0 0.0
      %482 = vmatpush2.msra.mxu0 0.0
      %483 = vmatprep.subr.mxu0 0.0
      %484 = vmatpush2.msra.mxu0 0.0
      %485 = vmatprep.subr.mxu0 0.0
      %486 = vmatpush2.msra.mxu0 0.0
      %487 = vmatprep.subr.mxu0 0.0
      %488 = vmatpush2.msra.mxu0 0.0
      %489 = vmatprep.subr.mxu0 0.0
      %490 = vmatpush2.msra.mxu0 0.0
      %491 = vmatprep.subr.mxu0 0.0
      %492 = vmatpush2.msra.mxu0 0.0
      %493 = vmatprep.subr.mxu0 0.0
      %494 = vmatpush2.msra.mxu0 0.0
      %495 = vmatprep.subr.mxu0 0.0
      %496 = vmatpush2.msra.mxu0 0.0
      %497 = vmatprep.subr.mxu0 0.0
      %498 = vmatpush2.msra.mxu0 0.0
      %499 = vmatprep.subr.mxu0 0.0
      %500 = vmatpush2.msra.mxu0 0.0
      %501 = vmatprep.mubr.f32.mxu0 0.0
      %502 = vmatmul.mubr.f32.gmra.mxu0 %v435
      %v503 = vpop.f32.mrf.mxu0
      %v504 = vadd.f32 0.0, %v503
      %v505 = vpop.f32.mrf.mxu0
      %506 = vdwg.mxu0
      %v507 = vmul.f32 %v504, %v504
      %v508 = vsel %vm313, %v507, 0.0
      %v509 = vrot.slane %v508, 4
      %v510 = vadd.f32 %v508, %v509
      %v511 = vrot.slane %v510, 2
      %v512 = vadd.f32 %v510, %v511
      %v513 = vrot.slane %v512, 1
      %v514 = vadd.f32 %v512, %v513
      %v515 = vrsqrt.pop %v514
      %v516 = vmul.f32 %v514, %v515
      %vm517 = vcmp.eq.f32.partialorder %v514, inf
      %v518 = vsel %vm517, %v514, %v516
      %vm519 = vcmp.eq.f32.partialorder %v514, 0.0
      %v520 = vand.u32 %v514, 2147483648
      %v521 = vsel %vm519, %v520, %v518
      %v522 = vadd.f32 %v521, 1e-06
      %v523 = vrcp.pop %v522
      %v524 = vmul.f32 %v504, %v523
      %525 = vmatprep.subr.mxu0 0.0
      %526 = vmatpush1.msra.mxu0 0.0
      %527 = vmatprep.subr.mxu0 0.0
      %528 = vmatpush1.msra.mxu0 0.0
      %529 = vmatprep.subr.mxu0 0.0
      %530 = vmatpush1.msra.mxu0 0.0
      %531 = vmatprep.subr.mxu0 0.0
      %532 = vmatpush1.msra.mxu0 0.0
      %533 = vmatprep.subr.mxu0 0.0
      %534 = vmatpush1.msra.mxu0 0.0
      %535 = vmatprep.subr.mxu0 0.0
      %536 = vmatpush1.msra.mxu0 0.0
      %537 = vmatprep.subr.mxu0 0.0
      %538 = vmatpush1.msra.mxu0 0.0
      %539 = vmatprep.subr.mxu0 0.0
      %540 = vmatpush1.msra.mxu0 0.0
      %541 = vmatprep.subr.mxu0 0.0
      %542 = vmatpush1.msra.mxu0 0.0
      %543 = vmatprep.subr.mxu0 0.0
      %544 = vmatpush1.msra.mxu0 0.0
      %545 = vmatprep.subr.mxu0 0.0
      %546 = vmatpush1.msra.mxu0 0.0
      %547 = vmatprep.subr.mxu0 0.0
      %548 = vmatpush1.msra.mxu0 0.0
      %549 = vmatprep.subr.mxu0 0.0
      %550 = vmatpush1.msra.mxu0 0.0
      %551 = vmatprep.subr.mxu0 0.0
      %552 = vmatpush1.msra.mxu0 0.0
      %553 = vmatprep.subr.mxu0 0.0
      %554 = vmatpush1.msra.mxu0 0.0
      %555 = vmatprep.subr.mxu0 0.0
      %556 = vmatpush1.msra.mxu0 %v524
      %557 = vmatprep.subr.mxu0 0.0
      %558 = vmatpush2.msra.mxu0 0.0
      %559 = vmatprep.subr.mxu0 0.0
      %560 = vmatpush2.msra.mxu0 0.0
      %561 = vmatprep.subr.mxu0 0.0
      %562 = vmatpush2.msra.mxu0 0.0
      %563 = vmatprep.subr.mxu0 0.0
      %564 = vmatpush2.msra.mxu0 0.0
      %565 = vmatprep.subr.mxu0 0.0
      %566 = vmatpush2.msra.mxu0 0.0
      %567 = vmatprep.subr.mxu0 0.0
      %568 = vmatpush2.msra.mxu0 0.0
      %569 = vmatprep.subr.mxu0 0.0
      %570 = vmatpush2.msra.mxu0 0.0
      %571 = vmatprep.subr.mxu0 0.0
      %572 = vmatpush2.msra.mxu0 0.0
      %573 = vmatprep.subr.mxu0 0.0
      %574 = vmatpush2.msra.mxu0 0.0
      %575 = vmatprep.subr.mxu0 0.0
      %576 = vmatpush2.msra.mxu0 0.0
      %577 = vmatprep.subr.mxu0 0.0
      %578 = vmatpush2.msra.mxu0 0.0
      %579 = vmatprep.subr.mxu0 0.0
      %580 = vmatpush2.msra.mxu0 0.0
      %581 = vmatprep.subr.mxu0 0.0
      %582 = vmatpush2.msra.mxu0 0.0
      %583 = vmatprep.subr.mxu0 0.0
      %584 = vmatpush2.msra.mxu0 0.0
      %585 = vmatprep.subr.mxu0 0.0
      %586 = vmatpush2.msra.mxu0 0.0
      %587 = vmatprep.subr.mxu0 0.0
      %588 = vmatpush2.msra.mxu0 0.0
      %589 = vmatprep.mubr.f32.mxu0 0.0
      %590 = vmatmul.mubr.f32.gmra.mxu0 %v185
      %v591 = vpop.f32.mrf.mxu0
      %v592 = vadd.f32 0.0, %v591
      %v593 = vpop.f32.mrf.mxu0
      %594 = vmatprep.mubr.f32.mxu0 0.0
      %595 = vmatmul.mubr.f32.gmra.mxu0 %v188
      %v596 = vpop.f32.mrf.mxu0
      %v597 = vadd.f32 0.0, %v596
      %v598 = vpop.f32.mrf.mxu0
      %599 = vmatprep.mubr.f32.mxu0 0.0
      %600 = vmatmul.mubr.f32.gmra.mxu0 %v191
      %v601 = vpop.f32.mrf.mxu0
      %v602 = vadd.f32 0.0, %v601
      %v603 = vpop.f32.mrf.mxu0
      %604 = vmatprep.mubr.f32.mxu0 0.0
      %605 = vmatmul.mubr.f32.gmra.mxu0 %v194
      %v606 = vpop.f32.mrf.mxu0
      %v607 = vadd.f32 0.0, %v606
      %v608 = vpop.f32.mrf.mxu0
      %609 = vmatprep.mubr.f32.mxu0 0.0
      %610 = vmatmul.mubr.f32.gmra.mxu0 %v197
      %v611 = vpop.f32.mrf.mxu0
      %v612 = vadd.f32 0.0, %v611
      %v613 = vpop.f32.mrf.mxu0
      %614 = vmatprep.mubr.f32.mxu0 0.0
      %615 = vmatmul.mubr.f32.gmra.mxu0 %v200
      %v616 = vpop.f32.mrf.mxu0
      %v617 = vadd.f32 0.0, %v616
      %v618 = vpop.f32.mrf.mxu0
      %619 = vmatprep.mubr.f32.mxu0 0.0
      %620 = vmatmul.mubr.f32.gmra.mxu0 %v203
      %v621 = vpop.f32.mrf.mxu0
      %v622 = vadd.f32 0.0, %v621
      %v623 = vpop.f32.mrf.mxu0
      %624 = vmatprep.mubr.f32.mxu0 0.0
      %625 = vmatmul.mubr.f32.gmra.mxu0 %v206
      %v626 = vpop.f32.mrf.mxu0
      %v627 = vadd.f32 0.0, %v626
      %v628 = vpop.f32.mrf.mxu0
      %629 = vdwg.mxu0
      %v630 = vsel %vm313, %v592, -inf
      %631 = vmax.xlane.f32.xlu0 %v630
      %v632 = vpop.xlane.xlu0 %631
      %v633 = vsel %vm313, %v597, -inf
      %634 = vmax.xlane.f32.xlu0 %v633
      %v635 = vpop.xlane.xlu0 %634
      %v636 = vsel %vm313, %v602, -inf
      %637 = vmax.xlane.f32.xlu0 %v636
      %v638 = vpop.xlane.xlu0 %637
      %v639 = vsel %vm313, %v607, -inf
      %640 = vmax.xlane.f32.xlu0 %v639
      %v641 = vpop.xlane.xlu0 %640
      %v642 = vsel %vm313, %v612, -inf
      %643 = vmax.xlane.f32.xlu0 %v642
      %v644 = vpop.xlane.xlu0 %643
      %v645 = vsel %vm313, %v617, -inf
      %646 = vmax.xlane.f32.xlu0 %v645
      %v647 = vpop.xlane.xlu0 %646
      %v648 = vsel %vm313, %v622, -inf
      %649 = vmax.xlane.f32.xlu0 %v648
      %v650 = vpop.xlane.xlu0 %649
      %v651 = vsel %vm313, %v627, -inf
      %652 = vmax.xlane.f32.xlu0 %v651
      %v653 = vpop.xlane.xlu0 %652
      %v654 = vsub.f32 %v592, %v632
      %v655 = vsub.f32 %v597, %v635
      %v656 = vsub.f32 %v602, %v638
      %v657 = vsub.f32 %v607, %v641
      %v658 = vsub.f32 %v612, %v644
      %v659 = vsub.f32 %v617, %v647
      %v660 = vsub.f32 %v622, %v650
      %v661 = vsub.f32 %v627, %v653
      %v662 = vmul.f32 %v654, 1.442695
      %v663 = vpow.pop %v662
      %v664 = vmul.f32 %v655, 1.442695
      %v665 = vpow.pop %v664
      %v666 = vmul.f32 %v656, 1.442695
      %v667 = vpow.pop %v666
      %v668 = vmul.f32 %v657, 1.442695
      %v669 = vpow.pop %v668
      %v670 = vmul.f32 %v658, 1.442695
      %v671 = vpow.pop %v670
      %v672 = vmul.f32 %v659, 1.442695
      %v673 = vpow.pop %v672
      %v674 = vmul.f32 %v660, 1.442695
      %v675 = vpow.pop %v674
      %v676 = vmul.f32 %v661, 1.442695
      %v677 = vpow.pop %v676
      %v678 = vsel %vm313, %v663, 0.0
      %679 = vadd.xlane.f32.xlu0 %v678
      %v680 = vpop.xlane.xlu0 %679
      %v681 = vsel %vm313, %v665, 0.0
      %682 = vadd.xlane.f32.xlu0 %v681
      %v683 = vpop.xlane.xlu0 %682
      %v684 = vsel %vm313, %v667, 0.0
      %685 = vadd.xlane.f32.xlu0 %v684
      %v686 = vpop.xlane.xlu0 %685
      %v687 = vsel %vm313, %v669, 0.0
      %688 = vadd.xlane.f32.xlu0 %v687
      %v689 = vpop.xlane.xlu0 %688
      %v690 = vsel %vm313, %v671, 0.0
      %691 = vadd.xlane.f32.xlu0 %v690
      %v692 = vpop.xlane.xlu0 %691
      %v693 = vsel %vm313, %v673, 0.0
      %694 = vadd.xlane.f32.xlu0 %v693
      %v695 = vpop.xlane.xlu0 %694
      %v696 = vsel %vm313, %v675, 0.0
      %697 = vadd.xlane.f32.xlu0 %v696
      %v698 = vpop.xlane.xlu0 %697
      %v699 = vsel %vm313, %v677, 0.0
      %700 = vadd.xlane.f32.xlu0 %v699
      %v701 = vpop.xlane.xlu0 %700
      %v702 = vrcp.pop %v680
      %v703 = vrcp.pop %v683
      %v704 = vrcp.pop %v686
      %v705 = vrcp.pop %v689
      %v706 = vrcp.pop %v692
      %v707 = vrcp.pop %v695
      %v708 = vrcp.pop %v698
      %v709 = vrcp.pop %v701
      %v710 = vmul.f32 %v663, %v702
      %v711 = vmul.f32 %v665, %v703
      %v712 = vmul.f32 %v667, %v704
      %v713 = vmul.f32 %v669, %v705
      %v714 = vmul.f32 %v671, %v706
      %v715 = vmul.f32 %v673, %v707
      %v716 = vmul.f32 %v675, %v708
      %v717 = vmul.f32 %v677, %v709
      %v718 = vsel %vm313, %v710, 0.0
      %v719 = vsel %vm313, %v711, 0.0
      %v720 = vadd.f32 %v718, %v719
      %v721 = vsel %vm313, %v712, 0.0
      %v722 = vadd.f32 %v720, %v721
      %v723 = vsel %vm313, %v713, 0.0
      %v724 = vadd.f32 %v722, %v723
      %v725 = vsel %vm313, %v714, 0.0
      %v726 = vadd.f32 %v724, %v725
      %v727 = vsel %vm313, %v715, 0.0
      %v728 = vadd.f32 %v726, %v727
      %v729 = vsel %vm313, %v716, 0.0
      %v730 = vadd.f32 %v728, %v729
      %v731 = vsel %vm313, %v717, 0.0
      %v732 = vadd.f32 %v730, %v731
      %v733 = vrot.slane %v732, 4
      %v734 = vadd.f32 %v732, %v733
      %v735 = vrot.slane %v734, 2
      %v736 = vadd.f32 %v734, %v735
      %v737 = vrot.slane %v736, 1
      %v738 = vadd.f32 %v736, %v737
      %v739 = vadd.f32 %v738, 1e-06
      %v740 = vrcp.pop %v739
      %v741 = vmul.f32 %v710, %v740
      %v742 = vmul.f32 %v711, %v740
      %v743 = vmul.f32 %v712, %v740
      %v744 = vmul.f32 %v713, %v740
      %v745 = vmul.f32 %v714, %v740
      %v746 = vmul.f32 %v715, %v740
      %v747 = vmul.f32 %v716, %v740
      %v748 = vmul.f32 %v717, %v740
      %749 = vmatprep.subr.mxu0 0.0
      %750 = vmatpush1.msra.mxu0 0.0
      %751 = vmatprep.subr.mxu0 0.0
      %752 = vmatpush1.msra.mxu0 0.0
      %753 = vmatprep.subr.mxu0 0.0
      %754 = vmatpush1.msra.mxu0 0.0
      %755 = vmatprep.subr.mxu0 0.0
      %756 = vmatpush1.msra.mxu0 0.0
      %757 = vmatprep.subr.mxu0 0.0
      %758 = vmatpush1.msra.mxu0 0.0
      %759 = vmatprep.subr.mxu0 0.0
      %760 = vmatpush1.msra.mxu0 0.0
      %761 = vmatprep.subr.mxu0 0.0
      %762 = vmatpush1.msra.mxu0 0.0
      %763 = vmatprep.subr.mxu0 0.0
      %764 = vmatpush1.msra.mxu0 0.0
      %765 = vmatprep.subr.mxu0 0.0
      %766 = vmatpush1.msra.mxu0 %v748
      %767 = vmatprep.subr.mxu0 0.0
      %768 = vmatpush1.msra.mxu0 %v747
      %769 = vmatprep.subr.mxu0 0.0
      %770 = vmatpush1.msra.mxu0 %v746
      %771 = vmatprep.subr.mxu0 0.0
      %772 = vmatpush1.msra.mxu0 %v745
      %773 = vmatprep.subr.mxu0 0.0
      %774 = vmatpush1.msra.mxu0 %v744
      %775 = vmatprep.subr.mxu0 0.0
      %776 = vmatpush1.msra.mxu0 %v743
      %777 = vmatprep.subr.mxu0 0.0
      %778 = vmatpush1.msra.mxu0 %v742
      %779 = vmatprep.subr.mxu0 0.0
      %780 = vmatpush1.msra.mxu0 %v741
      %781 = vmatprep.subr.mxu0 0.0
      %782 = vmatpush2.msra.mxu0 0.0
      %783 = vmatprep.subr.mxu0 0.0
      %784 = vmatpush2.msra.mxu0 0.0
      %785 = vmatprep.subr.mxu0 0.0
      %786 = vmatpush2.msra.mxu0 0.0
      %787 = vmatprep.subr.mxu0 0.0
      %788 = vmatpush2.msra.mxu0 0.0
      %789 = vmatprep.subr.mxu0 0.0
      %790 = vmatpush2.msra.mxu0 0.0
      %791 = vmatprep.subr.mxu0 0.0
      %792 = vmatpush2.msra.mxu0 0.0
      %793 = vmatprep.subr.mxu0 0.0
      %794 = vmatpush2.msra.mxu0 0.0
      %795 = vmatprep.subr.mxu0 0.0
      %796 = vmatpush2.msra.mxu0 0.0
      %797 = vmatprep.subr.mxu0 0.0
      %798 = vmatpush2.msra.mxu0 0.0
      %799 = vmatprep.subr.mxu0 0.0
      %800 = vmatpush2.msra.mxu0 0.0
      %801 = vmatprep.subr.mxu0 0.0
      %802 = vmatpush2.msra.mxu0 0.0
      %803 = vmatprep.subr.mxu0 0.0
      %804 = vmatpush2.msra.mxu0 0.0
      %805 = vmatprep.subr.mxu0 0.0
      %806 = vmatpush2.msra.mxu0 0.0
      %807 = vmatprep.subr.mxu0 0.0
      %808 = vmatpush2.msra.mxu0 0.0
      %809 = vmatprep.subr.mxu0 0.0
      %810 = vmatpush2.msra.mxu0 0.0
      %811 = vmatprep.subr.mxu0 0.0
      %812 = vmatpush2.msra.mxu0 0.0
      %813 = vmatprep.mubr.f32.mxu0 0.0
      %814 = vmatmul.mubr.f32.gmra.mxu0 %v435
      %v815 = vpop.f32.mrf.mxu0
      %v816 = vadd.f32 0.0, %v815
      %v817 = vpop.f32.mrf.mxu0
      %818 = vdwg.mxu0
      %v819 = vmul.f32 %v816, %v816
      %v820 = vsel %vm313, %v819, 0.0
      %v821 = vrot.slane %v820, 4
      %v822 = vadd.f32 %v820, %v821
      %v823 = vrot.slane %v822, 2
      %v824 = vadd.f32 %v822, %v823
      %v825 = vrot.slane %v824, 1
      %v826 = vadd.f32 %v824, %v825
      %v827 = vrsqrt.pop %v826
      %v828 = vmul.f32 %v826, %v827
      %vm829 = vcmp.eq.f32.partialorder %v826, inf
      %v830 = vsel %vm829, %v826, %v828
      %vm831 = vcmp.eq.f32.partialorder %v826, 0.0
      %v832 = vand.u32 %v826, 2147483648
      %v833 = vsel %vm831, %v832, %v830
      %v834 = vadd.f32 %v833, 1e-06
      %v835 = vrcp.pop %v834
      %v836 = vmul.f32 %v816, %v835
      %837 = vmatprep.subr.mxu0 0.0
      %838 = vmatpush1.msra.mxu0 0.0
      %839 = vmatprep.subr.mxu0 0.0
      %840 = vmatpush1.msra.mxu0 0.0
      %841 = vmatprep.subr.mxu0 0.0
      %842 = vmatpush1.msra.mxu0 0.0
      %843 = vmatprep.subr.mxu0 0.0
      %844 = vmatpush1.msra.mxu0 0.0
      %845 = vmatprep.subr.mxu0 0.0
      %846 = vmatpush1.msra.mxu0 0.0
      %847 = vmatprep.subr.mxu0 0.0
      %848 = vmatpush1.msra.mxu0 0.0
      %849 = vmatprep.subr.mxu0 0.0
      %850 = vmatpush1.msra.mxu0 0.0
      %851 = vmatprep.subr.mxu0 0.0
      %852 = vmatpush1.msra.mxu0 0.0
      %853 = vmatprep.subr.mxu0 0.0
      %854 = vmatpush1.msra.mxu0 0.0
      %855 = vmatprep.subr.mxu0 0.0
      %856 = vmatpush1.msra.mxu0 0.0
      %857 = vmatprep.subr.mxu0 0.0
      %858 = vmatpush1.msra.mxu0 0.0
      %859 = vmatprep.subr.mxu0 0.0
      %860 = vmatpush1.msra.mxu0 0.0
      %861 = vmatprep.subr.mxu0 0.0
      %862 = vmatpush1.msra.mxu0 0.0
      %863 = vmatprep.subr.mxu0 0.0
      %864 = vmatpush1.msra.mxu0 0.0
      %865 = vmatprep.subr.mxu0 0.0
      %866 = vmatpush1.msra.mxu0 0.0
      %867 = vmatprep.subr.mxu0 0.0
      %868 = vmatpush1.msra.mxu0 %v836
      %869 = vmatprep.subr.mxu0 0.0
      %870 = vmatpush2.msra.mxu0 0.0
      %871 = vmatprep.subr.mxu0 0.0
      %872 = vmatpush2.msra.mxu0 0.0
      %873 = vmatprep.subr.mxu0 0.0
      %874 = vmatpush2.msra.mxu0 0.0
      %875 = vmatprep.subr.mxu0 0.0
      %876 = vmatpush2.msra.mxu0 0.0
      %877 = vmatprep.subr.mxu0 0.0
      %878 = vmatpush2.msra.mxu0 0.0
      %879 = vmatprep.subr.mxu0 0.0
      %880 = vmatpush2.msra.mxu0 0.0
      %881 = vmatprep.subr.mxu0 0.0
      %882 = vmatpush2.msra.mxu0 0.0
      %883 = vmatprep.subr.mxu0 0.0
      %884 = vmatpush2.msra.mxu0 0.0
      %885 = vmatprep.subr.mxu0 0.0
      %886 = vmatpush2.msra.mxu0 0.0
      %887 = vmatprep.subr.mxu0 0.0
      %888 = vmatpush2.msra.mxu0 0.0
      %889 = vmatprep.subr.mxu0 0.0
      %890 = vmatpush2.msra.mxu0 0.0
      %891 = vmatprep.subr.mxu0 0.0
      %892 = vmatpush2.msra.mxu0 0.0
      %893 = vmatprep.subr.mxu0 0.0
      %894 = vmatpush2.msra.mxu0 0.0
      %895 = vmatprep.subr.mxu0 0.0
      %896 = vmatpush2.msra.mxu0 0.0
      %897 = vmatprep.subr.mxu0 0.0
      %898 = vmatpush2.msra.mxu0 0.0
      %899 = vmatprep.subr.mxu0 0.0
      %900 = vmatpush2.msra.mxu0 0.0
      %901 = vmatprep.mubr.f32.mxu0 0.0
      %902 = vmatmul.mubr.f32.gmra.mxu0 %v185
      %v903 = vpop.f32.mrf.mxu0
      %v904 = vadd.f32 0.0, %v903
      %v905 = vpop.f32.mrf.mxu0
      %906 = vmatprep.mubr.f32.mxu0 0.0
      %907 = vmatmul.mubr.f32.gmra.mxu0 %v188
      %v908 = vpop.f32.mrf.mxu0
      %v909 = vadd.f32 0.0, %v908
      %v910 = vpop.f32.mrf.mxu0
      %911 = vmatprep.mubr.f32.mxu0 0.0
      %912 = vmatmul.mubr.f32.gmra.mxu0 %v191
      %v913 = vpop.f32.mrf.mxu0
      %v914 = vadd.f32 0.0, %v913
      %v915 = vpop.f32.mrf.mxu0
      %916 = vmatprep.mubr.f32.mxu0 0.0
      %917 = vmatmul.mubr.f32.gmra.mxu0 %v194
      %v918 = vpop.f32.mrf.mxu0
      %v919 = vadd.f32 0.0, %v918
      %v920 = vpop.f32.mrf.mxu0
      %921 = vmatprep.mubr.f32.mxu0 0.0
      %922 = vmatmul.mubr.f32.gmra.mxu0 %v197
      %v923 = vpop.f32.mrf.mxu0
      %v924 = vadd.f32 0.0, %v923
      %v925 = vpop.f32.mrf.mxu0
      %926 = vmatprep.mubr.f32.mxu0 0.0
      %927 = vmatmul.mubr.f32.gmra.mxu0 %v200
      %v928 = vpop.f32.mrf.mxu0
      %v929 = vadd.f32 0.0, %v928
      %v930 = vpop.f32.mrf.mxu0
      %931 = vmatprep.mubr.f32.mxu0 0.0
      %932 = vmatmul.mubr.f32.gmra.mxu0 %v203
      %v933 = vpop.f32.mrf.mxu0
      %v934 = vadd.f32 0.0, %v933
      %v935 = vpop.f32.mrf.mxu0
      %936 = vmatprep.mubr.f32.mxu0 0.0
      %937 = vmatmul.mubr.f32.gmra.mxu0 %v206
      %v938 = vpop.f32.mrf.mxu0
      %v939 = vadd.f32 0.0, %v938
      %v940 = vpop.f32.mrf.mxu0
      %941 = vdwg.mxu0
      %v942 = vsel %vm313, %v904, -inf
      %943 = vmax.xlane.f32.xlu0 %v942
      %v944 = vpop.xlane.xlu0 %943
      %v945 = vsel %vm313, %v909, -inf
      %946 = vmax.xlane.f32.xlu0 %v945
      %v947 = vpop.xlane.xlu0 %946
      %v948 = vsel %vm313, %v914, -inf
      %949 = vmax.xlane.f32.xlu0 %v948
      %v950 = vpop.xlane.xlu0 %949
      %v951 = vsel %vm313, %v919, -inf
      %952 = vmax.xlane.f32.xlu0 %v951
      %v953 = vpop.xlane.xlu0 %952
      %v954 = vsel %vm313, %v924, -inf
      %955 = vmax.xlane.f32.xlu0 %v954
      %v956 = vpop.xlane.xlu0 %955
      %v957 = vsel %vm313, %v929, -inf
      %958 = vmax.xlane.f32.xlu0 %v957
      %v959 = vpop.xlane.xlu0 %958
      %v960 = vsel %vm313, %v934, -inf
      %961 = vmax.xlane.f32.xlu0 %v960
      %v962 = vpop.xlane.xlu0 %961
      %v963 = vsel %vm313, %v939, -inf
      %964 = vmax.xlane.f32.xlu0 %v963
      %v965 = vpop.xlane.xlu0 %964
      %v966 = vsub.f32 %v904, %v944
      %v967 = vsub.f32 %v909, %v947
      %v968 = vsub.f32 %v914, %v950
      %v969 = vsub.f32 %v919, %v953
      %v970 = vsub.f32 %v924, %v956
      %v971 = vsub.f32 %v929, %v959
      %v972 = vsub.f32 %v934, %v962
      %v973 = vsub.f32 %v939, %v965
      %v974 = vmul.f32 %v966, 1.442695
      %v975 = vpow.pop %v974
      %v976 = vmul.f32 %v967, 1.442695
      %v977 = vpow.pop %v976
      %v978 = vmul.f32 %v968, 1.442695
      %v979 = vpow.pop %v978
      %v980 = vmul.f32 %v969, 1.442695
      %v981 = vpow.pop %v980
      %v982 = vmul.f32 %v970, 1.442695
      %v983 = vpow.pop %v982
      %v984 = vmul.f32 %v971, 1.442695
      %v985 = vpow.pop %v984
      %v986 = vmul.f32 %v972, 1.442695
      %v987 = vpow.pop %v986
      %v988 = vmul.f32 %v973, 1.442695
      %v989 = vpow.pop %v988
      %v990 = vsel %vm313, %v975, 0.0
      %991 = vadd.xlane.f32.xlu0 %v990
      %v992 = vpop.xlane.xlu0 %991
      %v993 = vsel %vm313, %v977, 0.0
      %994 = vadd.xlane.f32.xlu0 %v993
      %v995 = vpop.xlane.xlu0 %994
      %v996 = vsel %vm313, %v979, 0.0
      %997 = vadd.xlane.f32.xlu0 %v996
      %v998 = vpop.xlane.xlu0 %997
      %v999 = vsel %vm313, %v981, 0.0
      %1000 = vadd.xlane.f32.xlu0 %v999
      %v1001 = vpop.xlane.xlu0 %1000
      %v1002 = vsel %vm313, %v983, 0.0
      %1003 = vadd.xlane.f32.xlu0 %v1002
      %v1004 = vpop.xlane.xlu0 %1003
      %v1005 = vsel %vm313, %v985, 0.0
      %1006 = vadd.xlane.f32.xlu0 %v1005
      %v1007 = vpop.xlane.xlu0 %1006
      %v1008 = vsel %vm313, %v987, 0.0
      %1009 = vadd.xlane.f32.xlu0 %v1008
      %v1010 = vpop.xlane.xlu0 %1009
      %v1011 = vsel %vm313, %v989, 0.0
      %1012 = vadd.xlane.f32.xlu0 %v1011
      %v1013 = vpop.xlane.xlu0 %1012
      %v1014 = vrcp.pop %v992
      %v1015 = vrcp.pop %v995
      %v1016 = vrcp.pop %v998
      %v1017 = vrcp.pop %v1001
      %v1018 = vrcp.pop %v1004
      %v1019 = vrcp.pop %v1007
      %v1020 = vrcp.pop %v1010
      %v1021 = vrcp.pop %v1013
      %v1022 = vmul.f32 %v975, %v1014
      %v1023 = vmul.f32 %v977, %v1015
      %v1024 = vmul.f32 %v979, %v1016
      %v1025 = vmul.f32 %v981, %v1017
      %v1026 = vmul.f32 %v983, %v1018
      %v1027 = vmul.f32 %v985, %v1019
      %v1028 = vmul.f32 %v987, %v1020
      %v1029 = vmul.f32 %v989, %v1021
      %v1030 = vsel %vm313, %v1022, 0.0
      %v1031 = vsel %vm313, %v1023, 0.0
      %v1032 = vadd.f32 %v1030, %v1031
      %v1033 = vsel %vm313, %v1024, 0.0
      %v1034 = vadd.f32 %v1032, %v1033
      %v1035 = vsel %vm313, %v1025, 0.0
      %v1036 = vadd.f32 %v1034, %v1035
      %v1037 = vsel %vm313, %v1026, 0.0
      %v1038 = vadd.f32 %v1036, %v1037
      %v1039 = vsel %vm313, %v1027, 0.0
      %v1040 = vadd.f32 %v1038, %v1039
      %v1041 = vsel %vm313, %v1028, 0.0
      %v1042 = vadd.f32 %v1040, %v1041
      %v1043 = vsel %vm313, %v1029, 0.0
      %v1044 = vadd.f32 %v1042, %v1043
      %v1045 = vrot.slane %v1044, 4
      %v1046 = vadd.f32 %v1044, %v1045
      %v1047 = vrot.slane %v1046, 2
      %v1048 = vadd.f32 %v1046, %v1047
      %v1049 = vrot.slane %v1048, 1
      %v1050 = vadd.f32 %v1048, %v1049
      %v1051 = vadd.f32 %v1050, 1e-06
      %v1052 = vrcp.pop %v1051
      %v1053 = vmul.f32 %v1022, %v1052
      %v1054 = vmul.f32 %v1023, %v1052
      %v1055 = vmul.f32 %v1024, %v1052
      %v1056 = vmul.f32 %v1025, %v1052
      %v1057 = vmul.f32 %v1026, %v1052
      %v1058 = vmul.f32 %v1027, %v1052
      %v1059 = vmul.f32 %v1028, %v1052
      %v1060 = vmul.f32 %v1029, %v1052
      %1061 = vmatprep.subr.mxu0 0.0
      %1062 = vmatpush1.msra.mxu0 0.0
      %1063 = vmatprep.subr.mxu0 0.0
      %1064 = vmatpush1.msra.mxu0 0.0
      %1065 = vmatprep.subr.mxu0 0.0
      %1066 = vmatpush1.msra.mxu0 0.0
      %1067 = vmatprep.subr.mxu0 0.0
      %1068 = vmatpush1.msra.mxu0 0.0
      %1069 = vmatprep.subr.mxu0 0.0
      %1070 = vmatpush1.msra.mxu0 0.0
      %1071 = vmatprep.subr.mxu0 0.0
      %1072 = vmatpush1.msra.mxu0 0.0
      %1073 = vmatprep.subr.mxu0 0.0
      %1074 = vmatpush1.msra.mxu0 0.0
      %1075 = vmatprep.subr.mxu0 0.0
      %1076 = vmatpush1.msra.mxu0 0.0
      %1077 = vmatprep.subr.mxu0 0.0
      %1078 = vmatpush1.msra.mxu0 %v1060
      %1079 = vmatprep.subr.mxu0 0.0
      %1080 = vmatpush1.msra.mxu0 %v1059
      %1081 = vmatprep.subr.mxu0 0.0
      %1082 = vmatpush1.msra.mxu0 %v1058
      %1083 = vmatprep.subr.mxu0 0.0
      %1084 = vmatpush1.msra.mxu0 %v1057
      %1085 = vmatprep.subr.mxu0 0.0
      %1086 = vmatpush1.msra.mxu0 %v1056
      %1087 = vmatprep.subr.mxu0 0.0
      %1088 = vmatpush1.msra.mxu0 %v1055
      %1089 = vmatprep.subr.mxu0 0.0
      %1090 = vmatpush1.msra.mxu0 %v1054
      %1091 = vmatprep.subr.mxu0 0.0
      %1092 = vmatpush1.msra.mxu0 %v1053
      %1093 = vmatprep.subr.mxu0 0.0
      %1094 = vmatpush2.msra.mxu0 0.0
      %1095 = vmatprep.subr.mxu0 0.0
      %1096 = vmatpush2.msra.mxu0 0.0
      %1097 = vmatprep.subr.mxu0 0.0
      %1098 = vmatpush2.msra.mxu0 0.0
      %1099 = vmatprep.subr.mxu0 0.0
      %1100 = vmatpush2.msra.mxu0 0.0
      %1101 = vmatprep.subr.mxu0 0.0
      %1102 = vmatpush2.msra.mxu0 0.0
      %1103 = vmatprep.subr.mxu0 0.0
      %1104 = vmatpush2.msra.mxu0 0.0
      %1105 = vmatprep.subr.mxu0 0.0
      %1106 = vmatpush2.msra.mxu0 0.0
      %1107 = vmatprep.subr.mxu0 0.0
      %1108 = vmatpush2.msra.mxu0 0.0
      %1109 = vmatprep.subr.mxu0 0.0
      %1110 = vmatpush2.msra.mxu0 0.0
      %1111 = vmatprep.subr.mxu0 0.0
      %1112 = vmatpush2.msra.mxu0 0.0
      %1113 = vmatprep.subr.mxu0 0.0
      %1114 = vmatpush2.msra.mxu0 0.0
      %1115 = vmatprep.subr.mxu0 0.0
      %1116 = vmatpush2.msra.mxu0 0.0
      %1117 = vmatprep.subr.mxu0 0.0
      %1118 = vmatpush2.msra.mxu0 0.0
      %1119 = vmatprep.subr.mxu0 0.0
      %1120 = vmatpush2.msra.mxu0 0.0
      %1121 = vmatprep.subr.mxu0 0.0
      %1122 = vmatpush2.msra.mxu0 0.0
      %1123 = vmatprep.subr.mxu0 0.0
      %1124 = vmatpush2.msra.mxu0 0.0
      %1125 = vmatprep.mubr.f32.mxu0 0.0
      %1126 = vmatmul.mubr.f32.gmra.mxu0 %v435
      %v1127 = vpop.f32.mrf.mxu0
      %v1128 = vadd.f32 0.0, %v1127
      %v1129 = vpop.f32.mrf.mxu0
      %1130 = vdwg.mxu0
      %v1131 = vmul.f32 %v1128, %v1128
      %v1132 = vsel %vm313, %v1131, 0.0
      %v1133 = vrot.slane %v1132, 4
      %v1134 = vadd.f32 %v1132, %v1133
      %v1135 = vrot.slane %v1134, 2
      %v1136 = vadd.f32 %v1134, %v1135
      %v1137 = vrot.slane %v1136, 1
      %v1138 = vadd.f32 %v1136, %v1137
      %v1139 = vrsqrt.pop %v1138
      %v1140 = vmul.f32 %v1138, %v1139
      %vm1141 = vcmp.eq.f32.partialorder %v1138, inf
      %v1142 = vsel %vm1141, %v1138, %v1140
      %vm1143 = vcmp.eq.f32.partialorder %v1138, 0.0
      %v1144 = vand.u32 %v1138, 2147483648
      %v1145 = vsel %vm1143, %v1144, %v1142
      %v1146 = vadd.f32 %v1145, 1e-06
      %v1147 = vrcp.pop %v1146
      %v1148 = vmul.f32 %v1128, %v1147
      %1149 = vst.msk [vmem:[%s141] sm:$0xff] %vm313, %v1148
      %p1150 = scmp.lt.s32.totalorder %s13, 1
      %s1151 = scalar_select %p1150, %s13, 1
      %s1152 = smul.addr %s1151, 8
      %s1153 = scalar_lea.vmem %s2, %s1152
      // Predicated region
      $region29: #{ema_up_decoder_forward.13} parent=27 // pred_check
        %p1154 = pneg %p78
      $region30: #{ema_up_decoder_forward.13} parent=27 // pred_check_branch
        %1156 = sbr.rel (%p1154) target = $region32
      $region31: #{ema_up_decoder_forward.13} parent=27 // pred_region
        _
      $region32: #{ema_up_decoder_forward.13} parent=27 // pred_fallthru
        _
    $region28: #{ema_up_decoder_forward.13} parent=5 // pred_fallthru
      _
    %p1157 = scmp.le.s32.totalorder 2, %s8
    // Predicated region
    $region33: #{ema_up_decoder_forward.13} parent=5 // pred_check
      %p1158 = pneg %p1157
    $region34: #{ema_up_decoder_forward.13} parent=5 // pred_check_branch
      %1160 = sbr.rel (%p1158) target = $region36
    $region35: #{ema_up_decoder_forward.13} parent=5 // pred_region
      %s1161 = ssub.s32 %s8, 2
      // Predicated region
      $region37: #{ema_up_decoder_forward.13} parent=35 // pred_check
        %p1162 = pneg %p84
      $region38: #{ema_up_decoder_forward.13} parent=35 // pred_check_branch
        %1164 = sbr.rel (%p1162) target = $region40
      $region39: #{ema_up_decoder_forward.13} parent=35 // pred_region
        %p1165 = scmp.lt.s32.totalorder %s14, 1
        %s1166 = scalar_select %p1165, %s14, 1
        %s1167 = smul.addr %s1166, 8
        %s1168 = scalar_lea.vmem %s2, %s1167
      $region40: #{ema_up_decoder_forward.13} parent=35 // pred_fallthru
        _
    $region36: #{ema_up_decoder_forward.13} parent=5 // pred_fallthru
      _
  $region6: #{ema_up_decoder_forward.13} parent=0 // loop_footer
    %s12 = sadd.s32 1, %s8
  $region7: #{ema_up_decoder_forward.13} parent=0 // loop_footer_branch
    %7 = sbr.rel target = $region3
  $region8: #{ema_up_decoder_forward.13} parent=0 // loop_exit
    _

// kernel: ema_up_decoder_forward.14
$region0: #{ema_up_decoder_forward.14}
  #allocation0 [shape = 'u32[]', space=smem, size = 0x4, offset = 0x4, fixed_abs, tag = 'smem constant byte address 0x4 - core index']
  #allocation1 [shape = 'u32[144,128]{1,0:T(1,128)}', space=vmem, size = 0x12000, scoped, tag = 'internal scratch']
  %s0 = inlined_call_operand.vmem [shape: f32[512,8], index: 0, kind: input, shape index: {}]
  %s1 = inlined_call_operand.vmem [shape: f32[8,8], index: 1, kind: input, shape index: {}]
  %s2 = inlined_call_operand.vmem [shape: f32[1,8], index: 2, kind: input, shape index: {}]
  %s3 = inlined_call_operand.vmem [shape: f32[512,8], index: 3, kind: output, shape index: {}]
  %s4 = sld [smem:[#allocation0]]
  $region22: #{ema_up_decoder_forward.14} parent=0
    _
  %s6 = ssub.s32 1, %s4
  %s7 = scalar_select 0, %s6, %s4
  // Predicated region
  $region2: #{ema_up_decoder_forward.14} parent=0 // pred_check
    _
  $region3: #{ema_up_decoder_forward.14} parent=0 // pred_check_branch
    %9 = sbr.rel (0) target = $region5
  $region4: #{ema_up_decoder_forward.14} parent=0 // pred_region
    _
  $region5: #{ema_up_decoder_forward.14} parent=0 // pred_fallthru
    _
  // Predicated region
  $region6: #{ema_up_decoder_forward.14} parent=0 // pred_check
    _
  $region7: #{ema_up_decoder_forward.14} parent=0 // pred_check_branch
    %11 = sbr.rel (0) target = $region9
  $region8: #{ema_up_decoder_forward.14} parent=0 // pred_region
    _
  $region9: #{ema_up_decoder_forward.14} parent=0 // pred_fallthru
    _
  // Predicated region
  $region10: #{ema_up_decoder_forward.14} parent=0 // pred_check
    _
  $region11: #{ema_up_decoder_forward.14} parent=0 // pred_check_branch
    %13 = sbr.rel (0) target = $region13
  $region12: #{ema_up_decoder_forward.14} parent=0 // pred_region
    _
  $region13: #{ema_up_decoder_forward.14} parent=0 // pred_fallthru
    _
  %v14 = vld [vmem:[%s0] sm:$0xff]
  %v15 = vld [vmem:[%s0 + $0x8] sm:$0xff]
  %v16 = vld [vmem:[%s0 + $0x10] sm:$0xff]
  %v17 = vld [vmem:[%s0 + $0x18] sm:$0xff]
  %v18 = vld [vmem:[%s0 + $0x20] sm:$0xff]
  %v19 = vld [vmem:[%s0 + $0x28] sm:$0xff]
  %v20 = vld [vmem:[%s0 + $0x30] sm:$0xff]
  %v21 = vld [vmem:[%s0 + $0x38] sm:$0xff]
  %v22 = vld [vmem:[%s0 + $0x40] sm:$0xff]
  %v23 = vld [vmem:[%s0 + $0x48] sm:$0xff]
  %v24 = vld [vmem:[%s0 + $0x50] sm:$0xff]
  %v25 = vld [vmem:[%s0 + $0x58] sm:$0xff]
  %v26 = vld [vmem:[%s0 + $0x60] sm:$0xff]
  %v27 = vld [vmem:[%s0 + $0x68] sm:$0xff]
  %v28 = vld [vmem:[%s0 + $0x70] sm:$0xff]
  %v29 = vld [vmem:[%s0 + $0x78] sm:$0xff]
  %v30 = vld [vmem:[%s0 + $0x80] sm:$0xff]
  %v31 = vld [vmem:[%s0 + $0x88] sm:$0xff]
  %v32 = vld [vmem:[%s0 + $0x90] sm:$0xff]
  %v33 = vld [vmem:[%s0 + $0x98] sm:$0xff]
  %v34 = vld [vmem:[%s0 + $0xa0] sm:$0xff]
  %v35 = vld [vmem:[%s0 + $0xa8] sm:$0xff]
  %v36 = vld [vmem:[%s0 + $0xb0] sm:$0xff]
  %v37 = vld [vmem:[%s0 + $0xb8] sm:$0xff]
  %v38 = vld [vmem:[%s0 + $0xc0] sm:$0xff]
  %v39 = vld [vmem:[%s0 + $0xc8] sm:$0xff]
  %v40 = vld [vmem:[%s0 + $0xd0] sm:$0xff]
  %v41 = vld [vmem:[%s0 + $0xd8] sm:$0xff]
  %v42 = vld [vmem:[%s0 + $0xe0] sm:$0xff]
  %v43 = vld [vmem:[%s0 + $0xe8] sm:$0xff]
  %v44 = vld [vmem:[%s0 + $0xf0] sm:$0xff]
  %v45 = vld [vmem:[%s0 + $0xf8] sm:$0xff]
  %v46 = vld [vmem:[%s0 + $0x100] sm:$0xff]
  %v47 = vld [vmem:[%s0 + $0x108] sm:$0xff]
  %v48 = vld [vmem:[%s0 + $0x110] sm:$0xff]
  %v49 = vld [vmem:[%s0 + $0x118] sm:$0xff]
  %v50 = vld [vmem:[%s0 + $0x120] sm:$0xff]
  %v51 = vld [vmem:[%s0 + $0x128] sm:$0xff]
  %v52 = vld [vmem:[%s0 + $0x130] sm:$0xff]
  %v53 = vld [vmem:[%s0 + $0x138] sm:$0xff]
  %v54 = vld [vmem:[%s0 + $0x140] sm:$0xff]
  %v55 = vld [vmem:[%s0 + $0x148] sm:$0xff]
  %v56 = vld [vmem:[%s0 + $0x150] sm:$0xff]
  %v57 = vld [vmem:[%s0 + $0x158] sm:$0xff]
  %v58 = vld [vmem:[%s0 + $0x160] sm:$0xff]
  %v59 = vld [vmem:[%s0 + $0x168] sm:$0xff]
  %v60 = vld [vmem:[%s0 + $0x170] sm:$0xff]
  %v61 = vld [vmem:[%s0 + $0x178] sm:$0xff]
  %v62 = vld [vmem:[%s0 + $0x180] sm:$0xff]
  %v63 = vld [vmem:[%s0 + $0x188] sm:$0xff]
  %v64 = vld [vmem:[%s0 + $0x190] sm:$0xff]
  %v65 = vld [vmem:[%s0 + $0x198] sm:$0xff]
  %v66 = vld [vmem:[%s0 + $0x1a0] sm:$0xff]
  %v67 = vld [vmem:[%s0 + $0x1a8] sm:$0xff]
  %v68 = vld [vmem:[%s0 + $0x1b0] sm:$0xff]
  %v69 = vld [vmem:[%s0 + $0x1b8] sm:$0xff]
  %v70 = vld [vmem:[%s0 + $0x1c0] sm:$0xff]
  %v71 = vld [vmem:[%s0 + $0x1c8] sm:$0xff]
  %v72 = vld [vmem:[%s0 + $0x1d0] sm:$0xff]
  %v73 = vld [vmem:[%s0 + $0x1d8] sm:$0xff]
  %v74 = vld [vmem:[%s0 + $0x1e0] sm:$0xff]
  %v75 = vld [vmem:[%s0 + $0x1e8] sm:$0xff]
  %v76 = vld [vmem:[%s0 + $0x1f0] sm:$0xff]
  %v77 = vld [vmem:[%s0 + $0x1f8] sm:$0xff]
  %v78 = vld [vmem:[%s1] sm:$0xff]
  %v79 = vld [vmem:[%s2] sm:$0x1]
  %v81 = vlaneseq
  %v82 = vshrl.u32 %v81, 7
  %v83 = vsub.s32 0, %v82
  %v84 = vrot.slane %v79, %v83
  %vm86 = vcmask 64512
  %v88 = vsel %vm86, %v14, 0
  %v91 = vsel %vm86, %v15, 0
  %v94 = vsel %vm86, %v16, 0
  %v97 = vsel %vm86, %v17, 0
  %v100 = vsel %vm86, %v18, 0
  %v103 = vsel %vm86, %v19, 0
  %v106 = vsel %vm86, %v20, 0
  %v109 = vsel %vm86, %v21, 0
  %v112 = vsel %vm86, %v22, 0
  %v115 = vsel %vm86, %v23, 0
  %v118 = vsel %vm86, %v24, 0
  %v121 = vsel %vm86, %v25, 0
  %v124 = vsel %vm86, %v26, 0
  %v127 = vsel %vm86, %v27, 0
  %v130 = vsel %vm86, %v28, 0
  %v133 = vsel %vm86, %v29, 0
  %v136 = vsel %vm86, %v30, 0
  %v139 = vsel %vm86, %v31, 0
  %v142 = vsel %vm86, %v32, 0
  %v145 = vsel %vm86, %v33, 0
  %v148 = vsel %vm86, %v34, 0
  %v151 = vsel %vm86, %v35, 0
  %v154 = vsel %vm86, %v36, 0
  %v157 = vsel %vm86, %v37, 0
  %v160 = vsel %vm86, %v38, 0
  %v163 = vsel %vm86, %v39, 0
  %v166 = vsel %vm86, %v40, 0
  %v169 = vsel %vm86, %v41, 0
  %v172 = vsel %vm86, %v42, 0
  %v175 = vsel %vm86, %v43, 0
  %v178 = vsel %vm86, %v44, 0
  %v181 = vsel %vm86, %v45, 0
  %v184 = vsel %vm86, %v46, 0
  %v187 = vsel %vm86, %v47, 0
  %v190 = vsel %vm86, %v48, 0
  %v193 = vsel %vm86, %v49, 0
  %v196 = vsel %vm86, %v50, 0
  %v199 = vsel %vm86, %v51, 0
  %v202 = vsel %vm86, %v52, 0
  %v205 = vsel %vm86, %v53, 0
  %v208 = vsel %vm86, %v54, 0
  %v211 = vsel %vm86, %v55, 0
  %v214 = vsel %vm86, %v56, 0
  %v217 = vsel %vm86, %v57, 0
  %v220 = vsel %vm86, %v58, 0
  %v223 = vsel %vm86, %v59, 0
  %v226 = vsel %vm86, %v60, 0
  %v229 = vsel %vm86, %v61, 0
  %v232 = vsel %vm86, %v62, 0
  %v235 = vsel %vm86, %v63, 0
  %v238 = vsel %vm86, %v64, 0
  %v241 = vsel %vm86, %v65, 0
  %v244 = vsel %vm86, %v66, 0
  %v247 = vsel %vm86, %v67, 0
  %v250 = vsel %vm86, %v68, 0
  %v253 = vsel %vm86, %v69, 0
  %v256 = vsel %vm86, %v70, 0
  %v259 = vsel %vm86, %v71, 0
  %v262 = vsel %vm86, %v72, 0
  %v265 = vsel %vm86, %v73, 0
  %v268 = vsel %vm86, %v74, 0
  %v271 = vsel %vm86, %v75, 0
  %v274 = vsel %vm86, %v76, 0
  %v277 = vsel %vm86, %v77, 0
  %279 = vmatprep.subr.mxu0 0.0
  %280 = vmatpush1.msra.mxu0 0.0
  %281 = vmatprep.subr.mxu0 0.0
  %282 = vmatpush1.msra.mxu0 0.0
  %283 = vmatprep.subr.mxu0 0.0
  %284 = vmatpush1.msra.mxu0 0.0
  %285 = vmatprep.subr.mxu0 0.0
  %286 = vmatpush1.msra.mxu0 0.0
  %287 = vmatprep.subr.mxu0 0.0
  %288 = vmatpush1.msra.mxu0 0.0
  %289 = vmatprep.subr.mxu0 0.0
  %290 = vmatpush1.msra.mxu0 0.0
  %291 = vmatprep.subr.mxu0 0.0
  %292 = vmatpush1.msra.mxu0 0.0
  %293 = vmatprep.subr.mxu0 0.0
  %294 = vmatpush1.msra.mxu0 0.0
  %295 = vmatprep.subr.mxu0 0.0
  %296 = vmatpush1.msra.mxu0 0.0
  %297 = vmatprep.subr.mxu0 0.0
  %298 = vmatpush1.msra.mxu0 0.0
  %299 = vmatprep.subr.mxu0 0.0
  %300 = vmatpush1.msra.mxu0 0.0
  %301 = vmatprep.subr.mxu0 0.0
  %302 = vmatpush1.msra.mxu0 0.0
  %303 = vmatprep.subr.mxu0 0.0
  %304 = vmatpush1.msra.mxu0 0.0
  %305 = vmatprep.subr.mxu0 0.0
  %306 = vmatpush1.msra.mxu0 0.0
  %307 = vmatprep.subr.mxu0 0.0
  %308 = vmatpush1.msra.mxu0 0.0
  %309 = vmatprep.subr.mxu0 0.0
  %310 = vmatpush1.msra.mxu0 %v78
  %311 = vmatprep.subr.mxu0 0.0
  %312 = vmatpush2.msra.mxu0 0.0
  %313 = vmatprep.subr.mxu0 0.0
  %314 = vmatpush2.msra.mxu0 0.0
  %315 = vmatprep.subr.mxu0 0.0
  %316 = vmatpush2.msra.mxu0 0.0
  %317 = vmatprep.subr.mxu0 0.0
  %318 = vmatpush2.msra.mxu0 0.0
  %319 = vmatprep.subr.mxu0 0.0
  %320 = vmatpush2.msra.mxu0 0.0
  %321 = vmatprep.subr.mxu0 0.0
  %322 = vmatpush2.msra.mxu0 0.0
  %323 = vmatprep.subr.mxu0 0.0
  %324 = vmatpush2.msra.mxu0 0.0
  %325 = vmatprep.subr.mxu0 0.0
  %326 = vmatpush2.msra.mxu0 0.0
  %327 = vmatprep.subr.mxu0 0.0
  %328 = vmatpush2.msra.mxu0 0.0
  %329 = vmatprep.subr.mxu0 0.0
  %330 = vmatpush2.msra.mxu0 0.0
  %331 = vmatprep.subr.mxu0 0.0
  %332 = vmatpush2.msra.mxu0 0.0
  %333 = vmatprep.subr.mxu0 0.0
  %334 = vmatpush2.msra.mxu0 0.0
  %335 = vmatprep.subr.mxu0 0.0
  %336 = vmatpush2.msra.mxu0 0.0
  %337 = vmatprep.subr.mxu0 0.0
  %338 = vmatpush2.msra.mxu0 0.0
  %339 = vmatprep.subr.mxu0 0.0
  %340 = vmatpush2.msra.mxu0 0.0
  %341 = vmatprep.subr.mxu0 0.0
  %342 = vmatpush2.msra.mxu0 0.0
  %343 = vmatprep.mubr.f32.mxu0 0.0
  %344 = vmatmul.mubr.f32.gmra.mxu0 %v88
  %v345 = vpop.f32.mrf.mxu0
  %v346 = vadd.f32 %v84, %v345
  %v347 = vpop.f32.mrf.mxu0
  %348 = vmatprep.mubr.f32.mxu0 0.0
  %349 = vmatmul.mubr.f32.gmra.mxu0 %v91
  %v350 = vpop.f32.mrf.mxu0
  %v351 = vadd.f32 %v84, %v350
  %v352 = vpop.f32.mrf.mxu0
  %353 = vmatprep.mubr.f32.mxu0 0.0
  %354 = vmatmul.mubr.f32.gmra.mxu0 %v94
  %v355 = vpop.f32.mrf.mxu0
  %v356 = vadd.f32 %v84, %v355
  %v357 = vpop.f32.mrf.mxu0
  %358 = vmatprep.mubr.f32.mxu0 0.0
  %359 = vmatmul.mubr.f32.gmra.mxu0 %v97
  %v360 = vpop.f32.mrf.mxu0
  %v361 = vadd.f32 %v84, %v360
  %v362 = vpop.f32.mrf.mxu0
  %363 = vmatprep.mubr.f32.mxu0 0.0
  %364 = vmatmul.mubr.f32.gmra.mxu0 %v100
  %v365 = vpop.f32.mrf.mxu0
  %v366 = vadd.f32 %v84, %v365
  %v367 = vpop.f32.mrf.mxu0
  %368 = vmatprep.mubr.f32.mxu0 0.0
  %369 = vmatmul.mubr.f32.gmra.mxu0 %v103
  %v370 = vpop.f32.mrf.mxu0
  %v371 = vadd.f32 %v84, %v370
  %v372 = vpop.f32.mrf.mxu0
  %373 = vmatprep.mubr.f32.mxu0 0.0
  %374 = vmatmul.mubr.f32.gmra.mxu0 %v106
  %v375 = vpop.f32.mrf.mxu0
  %v376 = vadd.f32 %v84, %v375
  %v377 = vpop.f32.mrf.mxu0
  %378 = vmatprep.mubr.f32.mxu0 0.0
  %379 = vmatmul.mubr.f32.gmra.mxu0 %v109
  %v380 = vpop.f32.mrf.mxu0
  %v381 = vadd.f32 %v84, %v380
  %v382 = vpop.f32.mrf.mxu0
  %383 = vmatprep.mubr.f32.mxu0 0.0
  %384 = vmatmul.mubr.f32.gmra.mxu0 %v112
  %v385 = vpop.f32.mrf.mxu0
  %v386 = vadd.f32 %v84, %v385
  %v387 = vpop.f32.mrf.mxu0
  %388 = vmatprep.mubr.f32.mxu0 0.0
  %389 = vmatmul.mubr.f32.gmra.mxu0 %v115
  %v390 = vpop.f32.mrf.mxu0
  %v391 = vadd.f32 %v84, %v390
  %v392 = vpop.f32.mrf.mxu0
  %393 = vmatprep.mubr.f32.mxu0 0.0
  %394 = vmatmul.mubr.f32.gmra.mxu0 %v118
  %v395 = vpop.f32.mrf.mxu0
  %v396 = vadd.f32 %v84, %v395
  %v397 = vpop.f32.mrf.mxu0
  %398 = vmatprep.mubr.f32.mxu0 0.0
  %399 = vmatmul.mubr.f32.gmra.mxu0 %v121
  %v400 = vpop.f32.mrf.mxu0
  %v401 = vadd.f32 %v84, %v400
  %v402 = vpop.f32.mrf.mxu0
  %403 = vmatprep.mubr.f32.mxu0 0.0
  %404 = vmatmul.mubr.f32.gmra.mxu0 %v124
  %v405 = vpop.f32.mrf.mxu0
  %v406 = vadd.f32 %v84, %v405
  %v407 = vpop.f32.mrf.mxu0
  %408 = vmatprep.mubr.f32.mxu0 0.0
  %409 = vmatmul.mubr.f32.gmra.mxu0 %v127
  %v410 = vpop.f32.mrf.mxu0
  %v411 = vadd.f32 %v84, %v410
  %v412 = vpop.f32.mrf.mxu0
  %413 = vmatprep.mubr.f32.mxu0 0.0
  %414 = vmatmul.mubr.f32.gmra.mxu0 %v130
  %v415 = vpop.f32.mrf.mxu0
  %v416 = vadd.f32 %v84, %v415
  %v417 = vpop.f32.mrf.mxu0
  %418 = vmatprep.mubr.f32.mxu0 0.0
  %419 = vmatmul.mubr.f32.gmra.mxu0 %v133
  %v420 = vpop.f32.mrf.mxu0
  %v421 = vadd.f32 %v84, %v420
  %v422 = vpop.f32.mrf.mxu0
  %423 = vmatprep.mubr.f32.mxu0 0.0
  %424 = vmatmul.mubr.f32.gmra.mxu0 %v136
  %v425 = vpop.f32.mrf.mxu0
  %v426 = vadd.f32 %v84, %v425
  %v427 = vpop.f32.mrf.mxu0
  %428 = vmatprep.mubr.f32.mxu0 0.0
  %429 = vmatmul.mubr.f32.gmra.mxu0 %v139
  %v430 = vpop.f32.mrf.mxu0
  %v431 = vadd.f32 %v84, %v430
  %v432 = vpop.f32.mrf.mxu0
  %433 = vmatprep.mubr.f32.mxu0 0.0
  %434 = vmatmul.mubr.f32.gmra.mxu0 %v142
  %v435 = vpop.f32.mrf.mxu0
  %v436 = vadd.f32 %v84, %v435
  %v437 = vpop.f32.mrf.mxu0
  %438 = vmatprep.mubr.f32.mxu0 0.0
  %439 = vmatmul.mubr.f32.gmra.mxu0 %v145
  %v440 = vpop.f32.mrf.mxu0
  %v441 = vadd.f32 %v84, %v440
  %v442 = vpop.f32.mrf.mxu0
  %443 = vmatprep.mubr.f32.mxu0 0.0
  %444 = vmatmul.mubr.f32.gmra.mxu0 %v148
  %v445 = vpop.f32.mrf.mxu0
  %v446 = vadd.f32 %v84, %v445
  %v447 = vpop.f32.mrf.mxu0
  %448 = vmatprep.mubr.f32.mxu0 0.0
  %449 = vmatmul.mubr.f32.gmra.mxu0 %v151
  %v450 = vpop.f32.mrf.mxu0
  %v451 = vadd.f32 %v84, %v450
  %v452 = vpop.f32.mrf.mxu0
  %453 = vmatprep.mubr.f32.mxu0 0.0
  %454 = vmatmul.mubr.f32.gmra.mxu0 %v154
  %v455 = vpop.f32.mrf.mxu0
  %v456 = vadd.f32 %v84, %v455
  %v457 = vpop.f32.mrf.mxu0
  %458 = vmatprep.mubr.f32.mxu0 0.0
  %459 = vmatmul.mubr.f32.gmra.mxu0 %v157
  %v460 = vpop.f32.mrf.mxu0
  %v461 = vadd.f32 %v84, %v460
  %v462 = vpop.f32.mrf.mxu0
  %463 = vmatprep.mubr.f32.mxu0 0.0
  %464 = vmatmul.mubr.f32.gmra.mxu0 %v160
  %v465 = vpop.f32.mrf.mxu0
  %v466 = vadd.f32 %v84, %v465
  %v467 = vpop.f32.mrf.mxu0
  %468 = vmatprep.mubr.f32.mxu0 0.0
  %469 = vmatmul.mubr.f32.gmra.mxu0 %v163
  %v470 = vpop.f32.mrf.mxu0
  %v471 = vadd.f32 %v84, %v470
  %v472 = vpop.f32.mrf.mxu0
  %473 = vmatprep.mubr.f32.mxu0 0.0
  %474 = vmatmul.mubr.f32.gmra.mxu0 %v166
  %v475 = vpop.f32.mrf.mxu0
  %v476 = vadd.f32 %v84, %v475
  %v477 = vpop.f32.mrf.mxu0
  %478 = vmatprep.mubr.f32.mxu0 0.0
  %479 = vmatmul.mubr.f32.gmra.mxu0 %v169
  %v480 = vpop.f32.mrf.mxu0
  %v481 = vadd.f32 %v84, %v480
  %v482 = vpop.f32.mrf.mxu0
  %483 = vmatprep.mubr.f32.mxu0 0.0
  %484 = vmatmul.mubr.f32.gmra.mxu0 %v172
  %v485 = vpop.f32.mrf.mxu0
  %v486 = vadd.f32 %v84, %v485
  %v487 = vpop.f32.mrf.mxu0
  %488 = vmatprep.mubr.f32.mxu0 0.0
  %489 = vmatmul.mubr.f32.gmra.mxu0 %v175
  %v490 = vpop.f32.mrf.mxu0
  %v491 = vadd.f32 %v84, %v490
  %v492 = vpop.f32.mrf.mxu0
  %493 = vmatprep.mubr.f32.mxu0 0.0
  %494 = vmatmul.mubr.f32.gmra.mxu0 %v178
  %v495 = vpop.f32.mrf.mxu0
  %v496 = vadd.f32 %v84, %v495
  %v497 = vpop.f32.mrf.mxu0
  %498 = vmatprep.mubr.f32.mxu0 0.0
  %499 = vmatmul.mubr.f32.gmra.mxu0 %v181
  %v500 = vpop.f32.mrf.mxu0
  %v501 = vadd.f32 %v84, %v500
  %v502 = vpop.f32.mrf.mxu0
  %503 = vmatprep.mubr.f32.mxu0 0.0
  %504 = vmatmul.mubr.f32.gmra.mxu0 %v184
  %v505 = vpop.f32.mrf.mxu0
  %v506 = vadd.f32 %v84, %v505
  %v507 = vpop.f32.mrf.mxu0
  %508 = vmatprep.mubr.f32.mxu0 0.0
  %509 = vmatmul.mubr.f32.gmra.mxu0 %v187
  %v510 = vpop.f32.mrf.mxu0
  %v511 = vadd.f32 %v84, %v510
  %v512 = vpop.f32.mrf.mxu0
  %513 = vmatprep.mubr.f32.mxu0 0.0
  %514 = vmatmul.mubr.f32.gmra.mxu0 %v190
  %v515 = vpop.f32.mrf.mxu0
  %v516 = vadd.f32 %v84, %v515
  %v517 = vpop.f32.mrf.mxu0
  %518 = vmatprep.mubr.f32.mxu0 0.0
  %519 = vmatmul.mubr.f32.gmra.mxu0 %v193
  %v520 = vpop.f32.mrf.mxu0
  %v521 = vadd.f32 %v84, %v520
  %v522 = vpop.f32.mrf.mxu0
  %523 = vmatprep.mubr.f32.mxu0 0.0
  %524 = vmatmul.mubr.f32.gmra.mxu0 %v196
  %v525 = vpop.f32.mrf.mxu0
  %v526 = vadd.f32 %v84, %v525
  %v527 = vpop.f32.mrf.mxu0
  %528 = vmatprep.mubr.f32.mxu0 0.0
  %529 = vmatmul.mubr.f32.gmra.mxu0 %v199
  %v530 = vpop.f32.mrf.mxu0
  %v531 = vadd.f32 %v84, %v530
  %v532 = vpop.f32.mrf.mxu0
  %533 = vmatprep.mubr.f32.mxu0 0.0
  %534 = vmatmul.mubr.f32.gmra.mxu0 %v202
  %v535 = vpop.f32.mrf.mxu0
  %v536 = vadd.f32 %v84, %v535
  %v537 = vpop.f32.mrf.mxu0
  %538 = vmatprep.mubr.f32.mxu0 0.0
  %539 = vmatmul.mubr.f32.gmra.mxu0 %v205
  %v540 = vpop.f32.mrf.mxu0
  %v541 = vadd.f32 %v84, %v540
  %v542 = vpop.f32.mrf.mxu0
  %543 = vmatprep.mubr.f32.mxu0 0.0
  %544 = vmatmul.mubr.f32.gmra.mxu0 %v208
  %v545 = vpop.f32.mrf.mxu0
  %v546 = vadd.f32 %v84, %v545
  %v547 = vpop.f32.mrf.mxu0
  %548 = vmatprep.mubr.f32.mxu0 0.0
  %549 = vmatmul.mubr.f32.gmra.mxu0 %v211
  %v550 = vpop.f32.mrf.mxu0
  %v551 = vadd.f32 %v84, %v550
  %v552 = vpop.f32.mrf.mxu0
  %553 = vmatprep.mubr.f32.mxu0 0.0
  %554 = vmatmul.mubr.f32.gmra.mxu0 %v214
  %v555 = vpop.f32.mrf.mxu0
  %v556 = vadd.f32 %v84, %v555
  %v557 = vpop.f32.mrf.mxu0
  %558 = vmatprep.mubr.f32.mxu0 0.0
  %559 = vmatmul.mubr.f32.gmra.mxu0 %v217
  %v560 = vpop.f32.mrf.mxu0
  %v561 = vadd.f32 %v84, %v560
  %v562 = vpop.f32.mrf.mxu0
  %563 = vmatprep.mubr.f32.mxu0 0.0
  %564 = vmatmul.mubr.f32.gmra.mxu0 %v220
  %v565 = vpop.f32.mrf.mxu0
  %v566 = vadd.f32 %v84, %v565
  %v567 = vpop.f32.mrf.mxu0
  %568 = vmatprep.mubr.f32.mxu0 0.0
  %569 = vmatmul.mubr.f32.gmra.mxu0 %v223
  %v570 = vpop.f32.mrf.mxu0
  %v571 = vadd.f32 %v84, %v570
  %v572 = vpop.f32.mrf.mxu0
  %573 = vmatprep.mubr.f32.mxu0 0.0
  %574 = vmatmul.mubr.f32.gmra.mxu0 %v226
  %v575 = vpop.f32.mrf.mxu0
  %v576 = vadd.f32 %v84, %v575
  %v577 = vpop.f32.mrf.mxu0
  %578 = vmatprep.mubr.f32.mxu0 0.0
  %579 = vmatmul.mubr.f32.gmra.mxu0 %v229
  %v580 = vpop.f32.mrf.mxu0
  %v581 = vadd.f32 %v84, %v580
  %v582 = vpop.f32.mrf.mxu0
  %583 = vmatprep.mubr.f32.mxu0 0.0
  %584 = vmatmul.mubr.f32.gmra.mxu0 %v232
  %v585 = vpop.f32.mrf.mxu0
  %v586 = vadd.f32 %v84, %v585
  %v587 = vpop.f32.mrf.mxu0
  %588 = vmatprep.mubr.f32.mxu0 0.0
  %589 = vmatmul.mubr.f32.gmra.mxu0 %v235
  %v590 = vpop.f32.mrf.mxu0
  %v591 = vadd.f32 %v84, %v590
  %v592 = vpop.f32.mrf.mxu0
  %593 = vmatprep.mubr.f32.mxu0 0.0
  %594 = vmatmul.mubr.f32.gmra.mxu0 %v238
  %v595 = vpop.f32.mrf.mxu0
  %v596 = vadd.f32 %v84, %v595
  %v597 = vpop.f32.mrf.mxu0
  %598 = vmatprep.mubr.f32.mxu0 0.0
  %599 = vmatmul.mubr.f32.gmra.mxu0 %v241
  %v600 = vpop.f32.mrf.mxu0
  %v601 = vadd.f32 %v84, %v600
  %v602 = vpop.f32.mrf.mxu0
  %603 = vmatprep.mubr.f32.mxu0 0.0
  %604 = vmatmul.mubr.f32.gmra.mxu0 %v244
  %v605 = vpop.f32.mrf.mxu0
  %v606 = vadd.f32 %v84, %v605
  %v607 = vpop.f32.mrf.mxu0
  %608 = vmatprep.mubr.f32.mxu0 0.0
  %609 = vmatmul.mubr.f32.gmra.mxu0 %v247
  %v610 = vpop.f32.mrf.mxu0
  %v611 = vadd.f32 %v84, %v610
  %v612 = vpop.f32.mrf.mxu0
  %613 = vmatprep.mubr.f32.mxu0 0.0
  %614 = vmatmul.mubr.f32.gmra.mxu0 %v250
  %v615 = vpop.f32.mrf.mxu0
  %v616 = vadd.f32 %v84, %v615
  %v617 = vpop.f32.mrf.mxu0
  %618 = vmatprep.mubr.f32.mxu0 0.0
  %619 = vmatmul.mubr.f32.gmra.mxu0 %v253
  %v620 = vpop.f32.mrf.mxu0
  %v621 = vadd.f32 %v84, %v620
  %v622 = vpop.f32.mrf.mxu0
  %623 = vmatprep.mubr.f32.mxu0 0.0
  %624 = vmatmul.mubr.f32.gmra.mxu0 %v256
  %v625 = vpop.f32.mrf.mxu0
  %v626 = vadd.f32 %v84, %v625
  %v627 = vpop.f32.mrf.mxu0
  %628 = vmatprep.mubr.f32.mxu0 0.0
  %629 = vmatmul.mubr.f32.gmra.mxu0 %v259
  %v630 = vpop.f32.mrf.mxu0
  %v631 = vadd.f32 %v84, %v630
  %v632 = vpop.f32.mrf.mxu0
  %633 = vmatprep.mubr.f32.mxu0 0.0
  %634 = vmatmul.mubr.f32.gmra.mxu0 %v262
  %v635 = vpop.f32.mrf.mxu0
  %v636 = vadd.f32 %v84, %v635
  %v637 = vpop.f32.mrf.mxu0
  %638 = vmatprep.mubr.f32.mxu0 0.0
  %639 = vmatmul.mubr.f32.gmra.mxu0 %v265
  %v640 = vpop.f32.mrf.mxu0
  %v641 = vadd.f32 %v84, %v640
  %v642 = vpop.f32.mrf.mxu0
  %643 = vmatprep.mubr.f32.mxu0 0.0
  %644 = vmatmul.mubr.f32.gmra.mxu0 %v268
  %v645 = vpop.f32.mrf.mxu0
  %v646 = vadd.f32 %v84, %v645
  %v647 = vpop.f32.mrf.mxu0
  %648 = vmatprep.mubr.f32.mxu0 0.0
  %649 = vmatmul.mubr.f32.gmra.mxu0 %v271
  %v650 = vpop.f32.mrf.mxu0
  %v651 = vadd.f32 %v84, %v650
  %v652 = vpop.f32.mrf.mxu0
  %653 = vmatprep.mubr.f32.mxu0 0.0
  %654 = vmatmul.mubr.f32.gmra.mxu0 %v274
  %v655 = vpop.f32.mrf.mxu0
  %v656 = vadd.f32 %v84, %v655
  %v657 = vpop.f32.mrf.mxu0
  %658 = vmatprep.mubr.f32.mxu0 0.0
  %659 = vmatmul.mubr.f32.gmra.mxu0 %v277
  %v660 = vpop.f32.mrf.mxu0
  %v661 = vadd.f32 %v84, %v660
  %v662 = vpop.f32.mrf.mxu0
  %663 = vdwg.mxu0
  %664 = vst.msk [vmem:[%s3] sm:$0xff] %vm86, %v346
  %665 = vst.msk [vmem:[%s3 + $0x8] sm:$0xff] %vm86, %v351
  %666 = vst.msk [vmem:[%s3 + $0x10] sm:$0xff] %vm86, %v356
  %667 = vst.msk [vmem:[%s3 + $0x18] sm:$0xff] %vm86, %v361
  %668 = vst.msk [vmem:[%s3 + $0x20] sm:$0xff] %vm86, %v366
  %669 = vst.msk [vmem:[%s3 + $0x28] sm:$0xff] %vm86, %v371
  %670 = vst.msk [vmem:[%s3 + $0x30] sm:$0xff] %vm86, %v376
  %671 = vst.msk [vmem:[%s3 + $0x38] sm:$0xff] %vm86, %v381
  %672 = vst.msk [vmem:[%s3 + $0x40] sm:$0xff] %vm86, %v386
  %673 = vst.msk [vmem:[%s3 + $0x48] sm:$0xff] %vm86, %v391
  %674 = vst.msk [vmem:[%s3 + $0x50] sm:$0xff] %vm86, %v396
  %675 = vst.msk [vmem:[%s3 + $0x58] sm:$0xff] %vm86, %v401
  %676 = vst.msk [vmem:[%s3 + $0x60] sm:$0xff] %vm86, %v406
  %677 = vst.msk [vmem:[%s3 + $0x68] sm:$0xff] %vm86, %v411
  %678 = vst.msk [vmem:[%s3 + $0x70] sm:$0xff] %vm86, %v416
  %679 = vst.msk [vmem:[%s3 + $0x78] sm:$0xff] %vm86, %v421
  %680 = vst.msk [vmem:[%s3 + $0x80] sm:$0xff] %vm86, %v426
  %681 = vst.msk [vmem:[%s3 + $0x88] sm:$0xff] %vm86, %v431
  %682 = vst.msk [vmem:[%s3 + $0x90] sm:$0xff] %vm86, %v436
  %683 = vst.msk [vmem:[%s3 + $0x98] sm:$0xff] %vm86, %v441
  %684 = vst.msk [vmem:[%s3 + $0xa0] sm:$0xff] %vm86, %v446
  %685 = vst.msk [vmem:[%s3 + $0xa8] sm:$0xff] %vm86, %v451
  %686 = vst.msk [vmem:[%s3 + $0xb0] sm:$0xff] %vm86, %v456
  %687 = vst.msk [vmem:[%s3 + $0xb8] sm:$0xff] %vm86, %v461
  %688 = vst.msk [vmem:[%s3 + $0xc0] sm:$0xff] %vm86, %v466
  %689 = vst.msk [vmem:[%s3 + $0xc8] sm:$0xff] %vm86, %v471
  %690 = vst.msk [vmem:[%s3 + $0xd0] sm:$0xff] %vm86, %v476
  %691 = vst.msk [vmem:[%s3 + $0xd8] sm:$0xff] %vm86, %v481
  %692 = vst.msk [vmem:[%s3 + $0xe0] sm:$0xff] %vm86, %v486
  %693 = vst.msk [vmem:[%s3 + $0xe8] sm:$0xff] %vm86, %v491
  %694 = vst.msk [vmem:[%s3 + $0xf0] sm:$0xff] %vm86, %v496
  %695 = vst.msk [vmem:[%s3 + $0xf8] sm:$0xff] %vm86, %v501
  %696 = vst.msk [vmem:[%s3 + $0x100] sm:$0xff] %vm86, %v506
  %697 = vst.msk [vmem:[%s3 + $0x108] sm:$0xff] %vm86, %v511
  %698 = vst.msk [vmem:[%s3 + $0x110] sm:$0xff] %vm86, %v516
  %699 = vst.msk [vmem:[%s3 + $0x118] sm:$0xff] %vm86, %v521
  %700 = vst.msk [vmem:[%s3 + $0x120] sm:$0xff] %vm86, %v526
  %701 = vst.msk [vmem:[%s3 + $0x128] sm:$0xff] %vm86, %v531
  %702 = vst.msk [vmem:[%s3 + $0x130] sm:$0xff] %vm86, %v536
  %703 = vst.msk [vmem:[%s3 + $0x138] sm:$0xff] %vm86, %v541
  %704 = vst.msk [vmem:[%s3 + $0x140] sm:$0xff] %vm86, %v546
  %705 = vst.msk [vmem:[%s3 + $0x148] sm:$0xff] %vm86, %v551
  %706 = vst.msk [vmem:[%s3 + $0x150] sm:$0xff] %vm86, %v556
  %707 = vst.msk [vmem:[%s3 + $0x158] sm:$0xff] %vm86, %v561
  %708 = vst.msk [vmem:[%s3 + $0x160] sm:$0xff] %vm86, %v566
  %709 = vst.msk [vmem:[%s3 + $0x168] sm:$0xff] %vm86, %v571
  %710 = vst.msk [vmem:[%s3 + $0x170] sm:$0xff] %vm86, %v576
  %711 = vst.msk [vmem:[%s3 + $0x178] sm:$0xff] %vm86, %v581
  %712 = vst.msk [vmem:[%s3 + $0x180] sm:$0xff] %vm86, %v586
  %713 = vst.msk [vmem:[%s3 + $0x188] sm:$0xff] %vm86, %v591
  %714 = vst.msk [vmem:[%s3 + $0x190] sm:$0xff] %vm86, %v596
  %715 = vst.msk [vmem:[%s3 + $0x198] sm:$0xff] %vm86, %v601
  %716 = vst.msk [vmem:[%s3 + $0x1a0] sm:$0xff] %vm86, %v606
  %717 = vst.msk [vmem:[%s3 + $0x1a8] sm:$0xff] %vm86, %v611
  %718 = vst.msk [vmem:[%s3 + $0x1b0] sm:$0xff] %vm86, %v616
  %719 = vst.msk [vmem:[%s3 + $0x1b8] sm:$0xff] %vm86, %v621
  %720 = vst.msk [vmem:[%s3 + $0x1c0] sm:$0xff] %vm86, %v626
  %721 = vst.msk [vmem:[%s3 + $0x1c8] sm:$0xff] %vm86, %v631
  %722 = vst.msk [vmem:[%s3 + $0x1d0] sm:$0xff] %vm86, %v636
  %723 = vst.msk [vmem:[%s3 + $0x1d8] sm:$0xff] %vm86, %v641
  %724 = vst.msk [vmem:[%s3 + $0x1e0] sm:$0xff] %vm86, %v646
  %725 = vst.msk [vmem:[%s3 + $0x1e8] sm:$0xff] %vm86, %v651
  %726 = vst.msk [vmem:[%s3 + $0x1f0] sm:$0xff] %vm86, %v656
  %727 = vst.msk [vmem:[%s3 + $0x1f8] sm:$0xff] %vm86, %v661
  // Predicated region
  $region14: #{ema_up_decoder_forward.14} parent=0 // pred_check
    _
  $region15: #{ema_up_decoder_forward.14} parent=0 // pred_check_branch
    %729 = sbr.rel (0) target = $region17
  $region16: #{ema_up_decoder_forward.14} parent=0 // pred_region
    _
  $region17: #{ema_up_decoder_forward.14} parent=0 // pred_fallthru
    _
  // Predicated region
  $region18: #{ema_up_decoder_forward.14} parent=0 // pred_check
    _
  $region19: #{ema_up_decoder_forward.14} parent=0 // pred_check_branch
    %731 = sbr.rel (0) target = $region21
  $region20: #{ema_up_decoder_forward.14} parent=0 // pred_region
    _
  $region21: #{ema_up_decoder_forward.14} parent=0 // pred_fallthru
    _

// kernel: ema_up_decoder_forward.15
$region0: #{ema_up_decoder_forward.15}
  #allocation0 [shape = 'u32[]', space=smem, size = 0x4, offset = 0x4, fixed_abs, tag = 'smem constant byte address 0x4 - core index']
  #allocation1 [shape = 'u32[144,128]{1,0:T(1,128)}', space=vmem, size = 0x12000, scoped, tag = 'internal scratch']
  %s0 = inlined_call_operand.vmem [shape: f32[2,8,16], index: 0, kind: input, shape index: {}]
  %s1 = inlined_call_operand.vmem [shape: f32[2,256,8], index: 1, kind: input, shape index: {}]
  %s2 = inlined_call_operand.vmem [shape: f32[8,8], index: 2, kind: input, shape index: {}]
  %s3 = inlined_call_operand.vmem [shape: f32[2,256,8], index: 3, kind: output, shape index: {0}]
  %s4 = inlined_call_operand.vmem [shape: f32[2,8], index: 4, kind: output, shape index: {1}]
  %5 = xla_tuple %s3, %s4
  %s6 = sld [smem:[#allocation0]]
  $region57: #{ema_up_decoder_forward.15} parent=0
    _
  %s8 = ssub.s32 1, %s6
  %s9 = scalar_select 0, %s8, %s6
  loop: start=0, step=1, limit=4
  $region2: #{ema_up_decoder_forward.15} parent=0 // loop_pre_header
    _
  $region3: #{ema_up_decoder_forward.15} parent=0 // loop_header
    %s11 = sphi 0, %s15
    %p12 = scmp.ge.s32.totalorder %s11, 4
    %s21 = sphi 0, %s23
    %s24 = sphi 0, %s21
    %s25 = sphi 0, %s24
    %s41 = sphi 0, %s25
    %s47 = sphi 0, %s49
    %s50 = sphi 0, %s47
    %s51 = sphi 0, %s50
    %s67 = sphi 0, %s51
    %s71 = sphi 0, %s71
    %s73 = sphi 0, %s71
    %s74 = sphi 0, %s73
    %s88 = sphi 0, %s74
    %s94 = sphi 0, %s96
    %s97 = sphi 0, %s94
    %s98 = sphi 0, %s97
    %s114 = sphi 0, %s98
    %s118 = sphi 0, %s118
    %s120 = sphi 0, %s118
    %s121 = sphi 0, %s120
    %s135 = sphi 0, %s121
  $region4: #{ema_up_decoder_forward.15} parent=0 // loop_header_branch
    %14 = sbr.rel (%p12) target = $region8
  $region5: #{ema_up_decoder_forward.15} parent=0 // loop_body
    %s16 = ssub.s32 %s11, 1
    %s17 = ssub.s32 %s11, 2
    %s18 = sadd.s32 %s11, 1
    %s19 = ssub.s32 %s11, %s18
    %p20 = scmp.eq.s32.totalorder %s19, 0
    %s22 = sadd.s32 %s21, 1
    %s23 = scalar_select %p20, %s21, %s22
    %p26 = pneg %p20
    %p27 = scmp.eq.s32.totalorder %s11, 1
    %p28 = por %p26, %p27
    %p29 = scmp.ne.s32.totalorder %s21, %s24
    %p30 = scmp.eq.s32.totalorder %s11, 0
    %p31 = por %p29, %p30
    %p32 = scmp.ne.s32.totalorder %s21, %s24
    %p33 = scmp.eq.s32.totalorder %s16, 1
    %p34 = por %p32, %p33
    %p35 = scmp.ne.s32.totalorder %s24, %s25
    %p36 = scmp.eq.s32.totalorder %s16, 0
    %p37 = por %p35, %p36
    %p38 = scmp.ne.s32.totalorder %s24, %s25
    %p39 = scmp.eq.s32.totalorder %s17, 1
    %p40 = por %p38, %p39
    %p42 = scmp.ne.s32.totalorder %s25, %s41
    %p43 = scmp.eq.s32.totalorder %s17, 0
    %p44 = por %p42, %p43
    %s45 = ssub.s32 %s11, %s18
    %p46 = scmp.eq.s32.totalorder %s45, 0
    %s48 = sadd.s32 %s47, 1
    %s49 = scalar_select %p46, %s47, %s48
    %p52 = pneg %p46
    %p53 = scmp.eq.s32.totalorder %s11, 1
    %p54 = por %p52, %p53
    %p55 = scmp.ne.s32.totalorder %s47, %s50
    %p56 = scmp.eq.s32.totalorder %s11, 0
    %p57 = por %p55, %p56
    %p58 = scmp.ne.s32.totalorder %s47, %s50
    %p59 = scmp.eq.s32.totalorder %s16, 1
    %p60 = por %p58, %p59
    %p61 = scmp.ne.s32.totalorder %s50, %s51
    %p62 = scmp.eq.s32.totalorder %s16, 0
    %p63 = por %p61, %p62
    %p64 = scmp.ne.s32.totalorder %s50, %s51
    %p65 = scmp.eq.s32.totalorder %s17, 1
    %p66 = por %p64, %p65
    %p68 = scmp.ne.s32.totalorder %s51, %s67
    %p69 = scmp.eq.s32.totalorder %s17, 0
    %p70 = por %p68, %p69
    %s72 = sadd.s32 %s71, 1
    %p75 = scmp.eq.s32.totalorder %s11, 1
    %p76 = scmp.ne.s32.totalorder %s71, %s73
    %p77 = scmp.eq.s32.totalorder %s11, 0
    %p78 = por %p76, %p77
    %p79 = scmp.ne.s32.totalorder %s71, %s73
    %p80 = scmp.eq.s32.totalorder %s16, 1
    %p81 = por %p79, %p80
    %p82 = scmp.ne.s32.totalorder %s73, %s74
    %p83 = scmp.eq.s32.totalorder %s16, 0
    %p84 = por %p82, %p83
    %p85 = scmp.ne.s32.totalorder %s73, %s74
    %p86 = scmp.eq.s32.totalorder %s17, 1
    %p87 = por %p85, %p86
    %p89 = scmp.ne.s32.totalorder %s74, %s88
    %p90 = scmp.eq.s32.totalorder %s17, 0
    %p91 = por %p89, %p90
    %s92 = ssub.s32 %s11, %s18
    %p93 = scmp.eq.s32.totalorder %s92, 0
    %s95 = sadd.s32 %s94, 1
    %s96 = scalar_select %p93, %s94, %s95
    %p99 = pneg %p93
    %p100 = scmp.eq.s32.totalorder %s11, 1
    %p101 = por %p99, %p100
    %p102 = scmp.ne.s32.totalorder %s94, %s97
    %p103 = scmp.eq.s32.totalorder %s11, 0
    %p104 = por %p102, %p103
    %p105 = scmp.ne.s32.totalorder %s94, %s97
    %p106 = scmp.eq.s32.totalorder %s16, 1
    %p107 = por %p105, %p106
    %p108 = scmp.ne.s32.totalorder %s97, %s98
    %p109 = scmp.eq.s32.totalorder %s16, 0
    %p110 = por %p108, %p109
    %p111 = scmp.ne.s32.totalorder %s97, %s98
    %p112 = scmp.eq.s32.totalorder %s17, 1
    %p113 = por %p111, %p112
    %p115 = scmp.ne.s32.totalorder %s98, %s114
    %p116 = scmp.eq.s32.totalorder %s17, 0
    %p117 = por %p115, %p116
    %s119 = sadd.s32 %s118, 1
    %p122 = scmp.eq.s32.totalorder %s11, 1
    %p123 = scmp.ne.s32.totalorder %s118, %s120
    %p124 = scmp.eq.s32.totalorder %s11, 0
    %p125 = por %p123, %p124
    %p126 = scmp.ne.s32.totalorder %s118, %s120
    %p127 = scmp.eq.s32.totalorder %s16, 1
    %p128 = por %p126, %p127
    %p129 = scmp.ne.s32.totalorder %s120, %s121
    %p130 = scmp.eq.s32.totalorder %s16, 0
    %p131 = por %p129, %p130
    %p132 = scmp.ne.s32.totalorder %s120, %s121
    %p133 = scmp.eq.s32.totalorder %s17, 1
    %p134 = por %p132, %p133
    %p136 = scmp.ne.s32.totalorder %s121, %s135
    %p137 = scmp.eq.s32.totalorder %s17, 0
    %p138 = por %p136, %p137
    %p139 = scmp.le.s32.totalorder 1, %s11
    %p140 = scmp.lt.s32.totalorder %s11, 3
    %p141 = pnand %p139, %p140
    %p142 = pneg %p141
    // Predicated region
    $region9: #{ema_up_decoder_forward.15} parent=5 // pred_check
      _
    $region10: #{ema_up_decoder_forward.15} parent=5 // pred_check_branch
      %144 = sbr.rel (%p141) target = $region12
    $region11: #{ema_up_decoder_forward.15} parent=5 // pred_region
      %s145 = ssub.s32 %s11, 1
      // Predicated region
      $region13: #{ema_up_decoder_forward.15} parent=11 // pred_check
        %p146 = pneg %p84
      $region14: #{ema_up_decoder_forward.15} parent=11 // pred_check_branch
        %148 = sbr.rel (%p146) target = $region16
      $region15: #{ema_up_decoder_forward.15} parent=11 // pred_region
        _
      $region16: #{ema_up_decoder_forward.15} parent=11 // pred_fallthru
        _
    $region12: #{ema_up_decoder_forward.15} parent=5 // pred_fallthru
      _
    %p149 = scmp.lt.s32.totalorder %s11, 2
    // Predicated region
    $region17: #{ema_up_decoder_forward.15} parent=5 // pred_check
      %p150 = pneg %p149
    $region18: #{ema_up_decoder_forward.15} parent=5 // pred_check_branch
      %152 = sbr.rel (%p150) target = $region20
    $region19: #{ema_up_decoder_forward.15} parent=5 // pred_region
      // Predicated region
      $region21: #{ema_up_decoder_forward.15} parent=19 // pred_check
        %p153 = pneg %p31
      $region22: #{ema_up_decoder_forward.15} parent=19 // pred_check_branch
        %155 = sbr.rel (%p153) target = $region24
      $region23: #{ema_up_decoder_forward.15} parent=19 // pred_region
        %p156 = scmp.lt.s32.totalorder %s11, 1
        %s157 = scalar_select %p156, %s11, 1
        %s158 = smul.addr %s157, 8
        %s159 = scalar_lea.vmem %s0, %s158
      $region24: #{ema_up_decoder_forward.15} parent=19 // pred_fallthru
        _
      // Predicated region
      $region25: #{ema_up_decoder_forward.15} parent=19 // pred_check
        %p160 = pneg %p57
      $region26: #{ema_up_decoder_forward.15} parent=19 // pred_check_branch
        %162 = sbr.rel (%p160) target = $region28
      $region27: #{ema_up_decoder_forward.15} parent=19 // pred_region
        %p163 = scmp.lt.s32.totalorder %s11, 1
        %s164 = scalar_select %p163, %s11, 1
        %s165 = smul.addr %s164, 32
        %s166 = smul.addr %s165, 8
        %s167 = scalar_lea.vmem %s1, %s166
      $region28: #{ema_up_decoder_forward.15} parent=19 // pred_fallthru
        _
    $region20: #{ema_up_decoder_forward.15} parent=5 // pred_fallthru
      _
    %p168 = scmp.le.s32.totalorder 1, %s11
    %p169 = scmp.lt.s32.totalorder %s11, 3
    %p170 = pnand %p168, %p169
    %p171 = pneg %p170
    // Predicated region
    $region29: #{ema_up_decoder_forward.15} parent=5 // pred_check
      _
    $region30: #{ema_up_decoder_forward.15} parent=5 // pred_check_branch
      %173 = sbr.rel (%p170) target = $region32
    $region31: #{ema_up_decoder_forward.15} parent=5 // pred_region
      %s174 = ssub.s32 %s11, 1
      %p175 = scmp.lt.s32.totalorder %s16, 1
      %s176 = scalar_select %p175, %s16, 1
      %s177 = smul.addr %s176, 8
      %s178 = scalar_lea.vmem %s0, %s177
      %p179 = pneg %p37
      %p180 = pneg %p34
      %p181 = scmp.lt.s32.totalorder %s16, 1
      %s182 = scalar_select %p181, %s16, 1
      %s183 = smul.addr %s182, 32
      %s184 = smul.addr %s183, 8
      %s185 = scalar_lea.vmem %s1, %s184
      %p186 = pneg %p63
      %p187 = pneg %p60
      %p188 = pneg %p84
      %p189 = pneg %p81
      %p190 = pneg %p110
      %p191 = pneg %p107
      %p192 = scmp.lt.s32.totalorder %s16, 1
      %s193 = scalar_select %p192, %s16, 1
      %s194 = smul.addr %s193, 32
      %s195 = smul.addr %s194, 8
      %s196 = scalar_lea.vmem %s3, %s195
      %p197 = pneg %p131
      %p198 = pneg %p128
      %p199 = scmp.lt.s32.totalorder %s16, 1
      %s200 = scalar_select %p199, %s16, 1
      %s201 = smul.addr %s200, 8
      %s202 = scalar_lea.vmem %s0, %s201
      %p203 = scmp.lt.s32.totalorder %s16, 1
      %s204 = scalar_select %p203, %s16, 1
      %s205 = smul.addr %s204, 32
      %s206 = smul.addr %s205, 8
      %s207 = scalar_lea.vmem %s1, %s206
      %p208 = scmp.lt.s32.totalorder %s16, 1
      %s209 = scalar_select %p208, %s16, 1
      %s210 = smul.addr %s209, 32
      %s211 = smul.addr %s210, 8
      %s212 = scalar_lea.vmem %s3, %s211
      %v213 = vld [vmem:[%s202] sm:$0xff]
      %v214 = vld [vmem:[%s207] sm:$0xff]
      %v215 = vld [vmem:[%s207 + $0x8] sm:$0xff]
      %v216 = vld [vmem:[%s207 + $0x10] sm:$0xff]
      %v217 = vld [vmem:[%s207 + $0x18] sm:$0xff]
      %v218 = vld [vmem:[%s207 + $0x20] sm:$0xff]
      %v219 = vld [vmem:[%s207 + $0x28] sm:$0xff]
      %v220 = vld [vmem:[%s207 + $0x30] sm:$0xff]
      %v221 = vld [vmem:[%s207 + $0x38] sm:$0xff]
      %v222 = vld [vmem:[%s207 + $0x40] sm:$0xff]
      %v223 = vld [vmem:[%s207 + $0x48] sm:$0xff]
      %v224 = vld [vmem:[%s207 + $0x50] sm:$0xff]
      %v225 = vld [vmem:[%s207 + $0x58] sm:$0xff]
      %v226 = vld [vmem:[%s207 + $0x60] sm:$0xff]
      %v227 = vld [vmem:[%s207 + $0x68] sm:$0xff]
      %v228 = vld [vmem:[%s207 + $0x70] sm:$0xff]
      %v229 = vld [vmem:[%s207 + $0x78] sm:$0xff]
      %v230 = vld [vmem:[%s207 + $0x80] sm:$0xff]
      %v231 = vld [vmem:[%s207 + $0x88] sm:$0xff]
      %v232 = vld [vmem:[%s207 + $0x90] sm:$0xff]
      %v233 = vld [vmem:[%s207 + $0x98] sm:$0xff]
      %v234 = vld [vmem:[%s207 + $0xa0] sm:$0xff]
      %v235 = vld [vmem:[%s207 + $0xa8] sm:$0xff]
      %v236 = vld [vmem:[%s207 + $0xb0] sm:$0xff]
      %v237 = vld [vmem:[%s207 + $0xb8] sm:$0xff]
      %v238 = vld [vmem:[%s207 + $0xc0] sm:$0xff]
      %v239 = vld [vmem:[%s207 + $0xc8] sm:$0xff]
      %v240 = vld [vmem:[%s207 + $0xd0] sm:$0xff]
      %v241 = vld [vmem:[%s207 + $0xd8] sm:$0xff]
      %v242 = vld [vmem:[%s207 + $0xe0] sm:$0xff]
      %v243 = vld [vmem:[%s207 + $0xe8] sm:$0xff]
      %v244 = vld [vmem:[%s207 + $0xf0] sm:$0xff]
      %v245 = vld [vmem:[%s207 + $0xf8] sm:$0xff]
      %vm246 = vcmask 64512
      %v248 = vsel %vm246, %v214, 0
      %v251 = vsel %vm246, %v215, 0
      %v254 = vsel %vm246, %v216, 0
      %v257 = vsel %vm246, %v217, 0
      %v260 = vsel %vm246, %v218, 0
      %v263 = vsel %vm246, %v219, 0
      %v266 = vsel %vm246, %v220, 0
      %v269 = vsel %vm246, %v221, 0
      %v272 = vsel %vm246, %v222, 0
      %v275 = vsel %vm246, %v223, 0
      %v278 = vsel %vm246, %v224, 0
      %v281 = vsel %vm246, %v225, 0
      %v284 = vsel %vm246, %v226, 0
      %v287 = vsel %vm246, %v227, 0
      %v290 = vsel %vm246, %v228, 0
      %v293 = vsel %vm246, %v229, 0
      %v296 = vsel %vm246, %v230, 0
      %v299 = vsel %vm246, %v231, 0
      %v302 = vsel %vm246, %v232, 0
      %v305 = vsel %vm246, %v233, 0
      %v308 = vsel %vm246, %v234, 0
      %v311 = vsel %vm246, %v235, 0
      %v314 = vsel %vm246, %v236, 0
      %v317 = vsel %vm246, %v237, 0
      %v320 = vsel %vm246, %v238, 0
      %v323 = vsel %vm246, %v239, 0
      %v326 = vsel %vm246, %v240, 0
      %v329 = vsel %vm246, %v241, 0
      %v332 = vsel %vm246, %v242, 0
      %v335 = vsel %vm246, %v243, 0
      %v338 = vsel %vm246, %v244, 0
      %v341 = vsel %vm246, %v245, 0
      %343 = vmatprep.subr.mxu0 0.0
      %344 = vmatpush1.msra.mxu0 0.0
      %345 = vmatprep.subr.mxu0 0.0
      %346 = vmatpush1.msra.mxu0 0.0
      %347 = vmatprep.subr.mxu0 0.0
      %348 = vmatpush1.msra.mxu0 0.0
      %349 = vmatprep.subr.mxu0 0.0
      %350 = vmatpush1.msra.mxu0 0.0
      %351 = vmatprep.subr.mxu0 0.0
      %352 = vmatpush1.msra.mxu0 0.0
      %353 = vmatprep.subr.mxu0 0.0
      %354 = vmatpush1.msra.mxu0 0.0
      %355 = vmatprep.subr.mxu0 0.0
      %356 = vmatpush1.msra.mxu0 0.0
      %357 = vmatprep.subr.mxu0 0.0
      %358 = vmatpush1.msra.mxu0 0.0
      %359 = vmatprep.subr.mxu0 0.0
      %360 = vmatpush1.msra.mxu0 0.0
      %361 = vmatprep.subr.mxu0 0.0
      %362 = vmatpush1.msra.mxu0 0.0
      %363 = vmatprep.subr.mxu0 0.0
      %364 = vmatpush1.msra.mxu0 0.0
      %365 = vmatprep.subr.mxu0 0.0
      %366 = vmatpush1.msra.mxu0 0.0
      %367 = vmatprep.subr.mxu0 0.0
      %368 = vmatpush1.msra.mxu0 0.0
      %369 = vmatprep.subr.mxu0 0.0
      %370 = vmatpush1.msra.mxu0 0.0
      %371 = vmatprep.subr.mxu0 0.0
      %372 = vmatpush1.msra.mxu0 0.0
      %373 = vmatprep.subr.mxu0 0.0
      %374 = vmatpush1.msra.mxu0 %v213
      %375 = vmatprep.subr.mxu0 0.0
      %376 = vmatpush2.msra.mxu0 0.0
      %377 = vmatprep.subr.mxu0 0.0
      %378 = vmatpush2.msra.mxu0 0.0
      %379 = vmatprep.subr.mxu0 0.0
      %380 = vmatpush2.msra.mxu0 0.0
      %381 = vmatprep.subr.mxu0 0.0
      %382 = vmatpush2.msra.mxu0 0.0
      %383 = vmatprep.subr.mxu0 0.0
      %384 = vmatpush2.msra.mxu0 0.0
      %385 = vmatprep.subr.mxu0 0.0
      %386 = vmatpush2.msra.mxu0 0.0
      %387 = vmatprep.subr.mxu0 0.0
      %388 = vmatpush2.msra.mxu0 0.0
      %389 = vmatprep.subr.mxu0 0.0
      %390 = vmatpush2.msra.mxu0 0.0
      %391 = vmatprep.subr.mxu0 0.0
      %392 = vmatpush2.msra.mxu0 0.0
      %393 = vmatprep.subr.mxu0 0.0
      %394 = vmatpush2.msra.mxu0 0.0
      %395 = vmatprep.subr.mxu0 0.0
      %396 = vmatpush2.msra.mxu0 0.0
      %397 = vmatprep.subr.mxu0 0.0
      %398 = vmatpush2.msra.mxu0 0.0
      %399 = vmatprep.subr.mxu0 0.0
      %400 = vmatpush2.msra.mxu0 0.0
      %401 = vmatprep.subr.mxu0 0.0
      %402 = vmatpush2.msra.mxu0 0.0
      %403 = vmatprep.subr.mxu0 0.0
      %404 = vmatpush2.msra.mxu0 0.0
      %405 = vmatprep.subr.mxu0 0.0
      %406 = vmatpush2.msra.mxu0 0.0
      %407 = vmatprep.mubr.f32.mxu0 0.0
      %408 = vmatmul.mubr.f32.gmra.mxu0 %v248
      %v409 = vpop.f32.mrf.mxu0
      %v410 = vadd.f32 0.0, %v409
      %v411 = vpop.f32.mrf.mxu0
      %412 = vmatprep.mubr.f32.mxu0 0.0
      %413 = vmatmul.mubr.f32.gmra.mxu0 %v251
      %v414 = vpop.f32.mrf.mxu0
      %v415 = vadd.f32 0.0, %v414
      %v416 = vpop.f32.mrf.mxu0
      %417 = vmatprep.mubr.f32.mxu0 0.0
      %418 = vmatmul.mubr.f32.gmra.mxu0 %v254
      %v419 = vpop.f32.mrf.mxu0
      %v420 = vadd.f32 0.0, %v419
      %v421 = vpop.f32.mrf.mxu0
      %422 = vmatprep.mubr.f32.mxu0 0.0
      %423 = vmatmul.mubr.f32.gmra.mxu0 %v257
      %v424 = vpop.f32.mrf.mxu0
      %v425 = vadd.f32 0.0, %v424
      %v426 = vpop.f32.mrf.mxu0
      %427 = vmatprep.mubr.f32.mxu0 0.0
      %428 = vmatmul.mubr.f32.gmra.mxu0 %v260
      %v429 = vpop.f32.mrf.mxu0
      %v430 = vadd.f32 0.0, %v429
      %v431 = vpop.f32.mrf.mxu0
      %432 = vmatprep.mubr.f32.mxu0 0.0
      %433 = vmatmul.mubr.f32.gmra.mxu0 %v263
      %v434 = vpop.f32.mrf.mxu0
      %v435 = vadd.f32 0.0, %v434
      %v436 = vpop.f32.mrf.mxu0
      %437 = vmatprep.mubr.f32.mxu0 0.0
      %438 = vmatmul.mubr.f32.gmra.mxu0 %v266
      %v439 = vpop.f32.mrf.mxu0
      %v440 = vadd.f32 0.0, %v439
      %v441 = vpop.f32.mrf.mxu0
      %442 = vmatprep.mubr.f32.mxu0 0.0
      %443 = vmatmul.mubr.f32.gmra.mxu0 %v269
      %v444 = vpop.f32.mrf.mxu0
      %v445 = vadd.f32 0.0, %v444
      %v446 = vpop.f32.mrf.mxu0
      %447 = vmatprep.mubr.f32.mxu0 0.0
      %448 = vmatmul.mubr.f32.gmra.mxu0 %v272
      %v449 = vpop.f32.mrf.mxu0
      %v450 = vadd.f32 0.0, %v449
      %v451 = vpop.f32.mrf.mxu0
      %452 = vmatprep.mubr.f32.mxu0 0.0
      %453 = vmatmul.mubr.f32.gmra.mxu0 %v275
      %v454 = vpop.f32.mrf.mxu0
      %v455 = vadd.f32 0.0, %v454
      %v456 = vpop.f32.mrf.mxu0
      %457 = vmatprep.mubr.f32.mxu0 0.0
      %458 = vmatmul.mubr.f32.gmra.mxu0 %v278
      %v459 = vpop.f32.mrf.mxu0
      %v460 = vadd.f32 0.0, %v459
      %v461 = vpop.f32.mrf.mxu0
      %462 = vmatprep.mubr.f32.mxu0 0.0
      %463 = vmatmul.mubr.f32.gmra.mxu0 %v281
      %v464 = vpop.f32.mrf.mxu0
      %v465 = vadd.f32 0.0, %v464
      %v466 = vpop.f32.mrf.mxu0
      %467 = vmatprep.mubr.f32.mxu0 0.0
      %468 = vmatmul.mubr.f32.gmra.mxu0 %v284
      %v469 = vpop.f32.mrf.mxu0
      %v470 = vadd.f32 0.0, %v469
      %v471 = vpop.f32.mrf.mxu0
      %472 = vmatprep.mubr.f32.mxu0 0.0
      %473 = vmatmul.mubr.f32.gmra.mxu0 %v287
      %v474 = vpop.f32.mrf.mxu0
      %v475 = vadd.f32 0.0, %v474
      %v476 = vpop.f32.mrf.mxu0
      %477 = vmatprep.mubr.f32.mxu0 0.0
      %478 = vmatmul.mubr.f32.gmra.mxu0 %v290
      %v479 = vpop.f32.mrf.mxu0
      %v480 = vadd.f32 0.0, %v479
      %v481 = vpop.f32.mrf.mxu0
      %482 = vmatprep.mubr.f32.mxu0 0.0
      %483 = vmatmul.mubr.f32.gmra.mxu0 %v293
      %v484 = vpop.f32.mrf.mxu0
      %v485 = vadd.f32 0.0, %v484
      %v486 = vpop.f32.mrf.mxu0
      %487 = vmatprep.mubr.f32.mxu0 0.0
      %488 = vmatmul.mubr.f32.gmra.mxu0 %v296
      %v489 = vpop.f32.mrf.mxu0
      %v490 = vadd.f32 0.0, %v489
      %v491 = vpop.f32.mrf.mxu0
      %492 = vmatprep.mubr.f32.mxu0 0.0
      %493 = vmatmul.mubr.f32.gmra.mxu0 %v299
      %v494 = vpop.f32.mrf.mxu0
      %v495 = vadd.f32 0.0, %v494
      %v496 = vpop.f32.mrf.mxu0
      %497 = vmatprep.mubr.f32.mxu0 0.0
      %498 = vmatmul.mubr.f32.gmra.mxu0 %v302
      %v499 = vpop.f32.mrf.mxu0
      %v500 = vadd.f32 0.0, %v499
      %v501 = vpop.f32.mrf.mxu0
      %502 = vmatprep.mubr.f32.mxu0 0.0
      %503 = vmatmul.mubr.f32.gmra.mxu0 %v305
      %v504 = vpop.f32.mrf.mxu0
      %v505 = vadd.f32 0.0, %v504
      %v506 = vpop.f32.mrf.mxu0
      %507 = vmatprep.mubr.f32.mxu0 0.0
      %508 = vmatmul.mubr.f32.gmra.mxu0 %v308
      %v509 = vpop.f32.mrf.mxu0
      %v510 = vadd.f32 0.0, %v509
      %v511 = vpop.f32.mrf.mxu0
      %512 = vmatprep.mubr.f32.mxu0 0.0
      %513 = vmatmul.mubr.f32.gmra.mxu0 %v311
      %v514 = vpop.f32.mrf.mxu0
      %v515 = vadd.f32 0.0, %v514
      %v516 = vpop.f32.mrf.mxu0
      %517 = vmatprep.mubr.f32.mxu0 0.0
      %518 = vmatmul.mubr.f32.gmra.mxu0 %v314
      %v519 = vpop.f32.mrf.mxu0
      %v520 = vadd.f32 0.0, %v519
      %v521 = vpop.f32.mrf.mxu0
      %522 = vmatprep.mubr.f32.mxu0 0.0
      %523 = vmatmul.mubr.f32.gmra.mxu0 %v317
      %v524 = vpop.f32.mrf.mxu0
      %v525 = vadd.f32 0.0, %v524
      %v526 = vpop.f32.mrf.mxu0
      %527 = vmatprep.mubr.f32.mxu0 0.0
      %528 = vmatmul.mubr.f32.gmra.mxu0 %v320
      %v529 = vpop.f32.mrf.mxu0
      %v530 = vadd.f32 0.0, %v529
      %v531 = vpop.f32.mrf.mxu0
      %532 = vmatprep.mubr.f32.mxu0 0.0
      %533 = vmatmul.mubr.f32.gmra.mxu0 %v323
      %v534 = vpop.f32.mrf.mxu0
      %v535 = vadd.f32 0.0, %v534
      %v536 = vpop.f32.mrf.mxu0
      %537 = vmatprep.mubr.f32.mxu0 0.0
      %538 = vmatmul.mubr.f32.gmra.mxu0 %v326
      %v539 = vpop.f32.mrf.mxu0
      %v540 = vadd.f32 0.0, %v539
      %v541 = vpop.f32.mrf.mxu0
      %542 = vmatprep.mubr.f32.mxu0 0.0
      %543 = vmatmul.mubr.f32.gmra.mxu0 %v329
      %v544 = vpop.f32.mrf.mxu0
      %v545 = vadd.f32 0.0, %v544
      %v546 = vpop.f32.mrf.mxu0
      %547 = vmatprep.mubr.f32.mxu0 0.0
      %548 = vmatmul.mubr.f32.gmra.mxu0 %v332
      %v549 = vpop.f32.mrf.mxu0
      %v550 = vadd.f32 0.0, %v549
      %v551 = vpop.f32.mrf.mxu0
      %552 = vmatprep.mubr.f32.mxu0 0.0
      %553 = vmatmul.mubr.f32.gmra.mxu0 %v335
      %v554 = vpop.f32.mrf.mxu0
      %v555 = vadd.f32 0.0, %v554
      %v556 = vpop.f32.mrf.mxu0
      %557 = vmatprep.mubr.f32.mxu0 0.0
      %558 = vmatmul.mubr.f32.gmra.mxu0 %v338
      %v559 = vpop.f32.mrf.mxu0
      %v560 = vadd.f32 0.0, %v559
      %v561 = vpop.f32.mrf.mxu0
      %562 = vmatprep.mubr.f32.mxu0 0.0
      %563 = vmatmul.mubr.f32.gmra.mxu0 %v341
      %v564 = vpop.f32.mrf.mxu0
      %v565 = vadd.f32 0.0, %v564
      %v566 = vpop.f32.mrf.mxu0
      %567 = vdwg.mxu0
      %vm568 = vcmask 130048
      %v569 = vsel %vm568, %v410, -inf
      %570 = vmax.xlane.f32.xlu0 %v569
      %v571 = vpop.xlane.xlu0 %570
      %v572 = vsel %vm568, %v415, -inf
      %573 = vmax.xlane.f32.xlu0 %v572
      %v574 = vpop.xlane.xlu0 %573
      %v575 = vsel %vm568, %v420, -inf
      %576 = vmax.xlane.f32.xlu0 %v575
      %v577 = vpop.xlane.xlu0 %576
      %v578 = vsel %vm568, %v425, -inf
      %579 = vmax.xlane.f32.xlu0 %v578
      %v580 = vpop.xlane.xlu0 %579
      %v581 = vsel %vm568, %v430, -inf
      %582 = vmax.xlane.f32.xlu0 %v581
      %v583 = vpop.xlane.xlu0 %582
      %v584 = vsel %vm568, %v435, -inf
      %585 = vmax.xlane.f32.xlu0 %v584
      %v586 = vpop.xlane.xlu0 %585
      %v587 = vsel %vm568, %v440, -inf
      %588 = vmax.xlane.f32.xlu0 %v587
      %v589 = vpop.xlane.xlu0 %588
      %v590 = vsel %vm568, %v445, -inf
      %591 = vmax.xlane.f32.xlu0 %v590
      %v592 = vpop.xlane.xlu0 %591
      %v593 = vsel %vm568, %v450, -inf
      %594 = vmax.xlane.f32.xlu0 %v593
      %v595 = vpop.xlane.xlu0 %594
      %v596 = vsel %vm568, %v455, -inf
      %597 = vmax.xlane.f32.xlu0 %v596
      %v598 = vpop.xlane.xlu0 %597
      %v599 = vsel %vm568, %v460, -inf
      %600 = vmax.xlane.f32.xlu0 %v599
      %v601 = vpop.xlane.xlu0 %600
      %v602 = vsel %vm568, %v465, -inf
      %603 = vmax.xlane.f32.xlu0 %v602
      %v604 = vpop.xlane.xlu0 %603
      %v605 = vsel %vm568, %v470, -inf
      %606 = vmax.xlane.f32.xlu0 %v605
      %v607 = vpop.xlane.xlu0 %606
      %v608 = vsel %vm568, %v475, -inf
      %609 = vmax.xlane.f32.xlu0 %v608
      %v610 = vpop.xlane.xlu0 %609
      %v611 = vsel %vm568, %v480, -inf
      %612 = vmax.xlane.f32.xlu0 %v611
      %v613 = vpop.xlane.xlu0 %612
      %v614 = vsel %vm568, %v485, -inf
      %615 = vmax.xlane.f32.xlu0 %v614
      %v616 = vpop.xlane.xlu0 %615
      %v617 = vsel %vm568, %v490, -inf
      %618 = vmax.xlane.f32.xlu0 %v617
      %v619 = vpop.xlane.xlu0 %618
      %v620 = vsel %vm568, %v495, -inf
      %621 = vmax.xlane.f32.xlu0 %v620
      %v622 = vpop.xlane.xlu0 %621
      %v623 = vsel %vm568, %v500, -inf
      %624 = vmax.xlane.f32.xlu0 %v623
      %v625 = vpop.xlane.xlu0 %624
      %v626 = vsel %vm568, %v505, -inf
      %627 = vmax.xlane.f32.xlu0 %v626
      %v628 = vpop.xlane.xlu0 %627
      %v629 = vsel %vm568, %v510, -inf
      %630 = vmax.xlane.f32.xlu0 %v629
      %v631 = vpop.xlane.xlu0 %630
      %v632 = vsel %vm568, %v515, -inf
      %633 = vmax.xlane.f32.xlu0 %v632
      %v634 = vpop.xlane.xlu0 %633
      %v635 = vsel %vm568, %v520, -inf
      %636 = vmax.xlane.f32.xlu0 %v635
      %v637 = vpop.xlane.xlu0 %636
      %v638 = vsel %vm568, %v525, -inf
      %639 = vmax.xlane.f32.xlu0 %v638
      %v640 = vpop.xlane.xlu0 %639
      %v641 = vsel %vm568, %v530, -inf
      %642 = vmax.xlane.f32.xlu0 %v641
      %v643 = vpop.xlane.xlu0 %642
      %v644 = vsel %vm568, %v535, -inf
      %645 = vmax.xlane.f32.xlu0 %v644
      %v646 = vpop.xlane.xlu0 %645
      %v647 = vsel %vm568, %v540, -inf
      %648 = vmax.xlane.f32.xlu0 %v647
      %v649 = vpop.xlane.xlu0 %648
      %v650 = vsel %vm568, %v545, -inf
      %651 = vmax.xlane.f32.xlu0 %v650
      %v652 = vpop.xlane.xlu0 %651
      %v653 = vsel %vm568, %v550, -inf
      %654 = vmax.xlane.f32.xlu0 %v653
      %v655 = vpop.xlane.xlu0 %654
      %v656 = vsel %vm568, %v555, -inf
      %657 = vmax.xlane.f32.xlu0 %v656
      %v658 = vpop.xlane.xlu0 %657
      %v659 = vsel %vm568, %v560, -inf
      %660 = vmax.xlane.f32.xlu0 %v659
      %v661 = vpop.xlane.xlu0 %660
      %v662 = vsel %vm568, %v565, -inf
      %663 = vmax.xlane.f32.xlu0 %v662
      %v664 = vpop.xlane.xlu0 %663
      %v665 = vsub.f32 %v410, %v571
      %v666 = vsub.f32 %v415, %v574
      %v667 = vsub.f32 %v420, %v577
      %v668 = vsub.f32 %v425, %v580
      %v669 = vsub.f32 %v430, %v583
      %v670 = vsub.f32 %v435, %v586
      %v671 = vsub.f32 %v440, %v589
      %v672 = vsub.f32 %v445, %v592
      %v673 = vsub.f32 %v450, %v595
      %v674 = vsub.f32 %v455, %v598
      %v675 = vsub.f32 %v460, %v601
      %v676 = vsub.f32 %v465, %v604
      %v677 = vsub.f32 %v470, %v607
      %v678 = vsub.f32 %v475, %v610
      %v679 = vsub.f32 %v480, %v613
      %v680 = vsub.f32 %v485, %v616
      %v681 = vsub.f32 %v490, %v619
      %v682 = vsub.f32 %v495, %v622
      %v683 = vsub.f32 %v500, %v625
      %v684 = vsub.f32 %v505, %v628
      %v685 = vsub.f32 %v510, %v631
      %v686 = vsub.f32 %v515, %v634
      %v687 = vsub.f32 %v520, %v637
      %v688 = vsub.f32 %v525, %v640
      %v689 = vsub.f32 %v530, %v643
      %v690 = vsub.f32 %v535, %v646
      %v691 = vsub.f32 %v540, %v649
      %v692 = vsub.f32 %v545, %v652
      %v693 = vsub.f32 %v550, %v655
      %v694 = vsub.f32 %v555, %v658
      %v695 = vsub.f32 %v560, %v661
      %v696 = vsub.f32 %v565, %v664
      %v697 = vmul.f32 %v665, 1.442695
      %v698 = vpow.pop %v697
      %v699 = vmul.f32 %v666, 1.442695
      %v700 = vpow.pop %v699
      %v701 = vmul.f32 %v667, 1.442695
      %v702 = vpow.pop %v701
      %v703 = vmul.f32 %v668, 1.442695
      %v704 = vpow.pop %v703
      %v705 = vmul.f32 %v669, 1.442695
      %v706 = vpow.pop %v705
      %v707 = vmul.f32 %v670, 1.442695
      %v708 = vpow.pop %v707
      %v709 = vmul.f32 %v671, 1.442695
      %v710 = vpow.pop %v709
      %v711 = vmul.f32 %v672, 1.442695
      %v712 = vpow.pop %v711
      %v713 = vmul.f32 %v673, 1.442695
      %v714 = vpow.pop %v713
      %v715 = vmul.f32 %v674, 1.442695
      %v716 = vpow.pop %v715
      %v717 = vmul.f32 %v675, 1.442695
      %v718 = vpow.pop %v717
      %v719 = vmul.f32 %v676, 1.442695
      %v720 = vpow.pop %v719
      %v721 = vmul.f32 %v677, 1.442695
      %v722 = vpow.pop %v721
      %v723 = vmul.f32 %v678, 1.442695
      %v724 = vpow.pop %v723
      %v725 = vmul.f32 %v679, 1.442695
      %v726 = vpow.pop %v725
      %v727 = vmul.f32 %v680, 1.442695
      %v728 = vpow.pop %v727
      %v729 = vmul.f32 %v681, 1.442695
      %v730 = vpow.pop %v729
      %v731 = vmul.f32 %v682, 1.442695
      %v732 = vpow.pop %v731
      %v733 = vmul.f32 %v683, 1.442695
      %v734 = vpow.pop %v733
      %v735 = vmul.f32 %v684, 1.442695
      %v736 = vpow.pop %v735
      %v737 = vmul.f32 %v685, 1.442695
      %v738 = vpow.pop %v737
      %v739 = vmul.f32 %v686, 1.442695
      %v740 = vpow.pop %v739
      %v741 = vmul.f32 %v687, 1.442695
      %v742 = vpow.pop %v741
      %v743 = vmul.f32 %v688, 1.442695
      %v744 = vpow.pop %v743
      %v745 = vmul.f32 %v689, 1.442695
      %v746 = vpow.pop %v745
      %v747 = vmul.f32 %v690, 1.442695
      %v748 = vpow.pop %v747
      %v749 = vmul.f32 %v691, 1.442695
      %v750 = vpow.pop %v749
      %v751 = vmul.f32 %v692, 1.442695
      %v752 = vpow.pop %v751
      %v753 = vmul.f32 %v693, 1.442695
      %v754 = vpow.pop %v753
      %v755 = vmul.f32 %v694, 1.442695
      %v756 = vpow.pop %v755
      %v757 = vmul.f32 %v695, 1.442695
      %v758 = vpow.pop %v757
      %v759 = vmul.f32 %v696, 1.442695
      %v760 = vpow.pop %v759
      %v761 = vsel %vm568, %v698, 0.0
      %762 = vadd.xlane.f32.xlu0 %v761
      %v763 = vpop.xlane.xlu0 %762
      %v764 = vsel %vm568, %v700, 0.0
      %765 = vadd.xlane.f32.xlu0 %v764
      %v766 = vpop.xlane.xlu0 %765
      %v767 = vsel %vm568, %v702, 0.0
      %768 = vadd.xlane.f32.xlu0 %v767
      %v769 = vpop.xlane.xlu0 %768
      %v770 = vsel %vm568, %v704, 0.0
      %771 = vadd.xlane.f32.xlu0 %v770
      %v772 = vpop.xlane.xlu0 %771
      %v773 = vsel %vm568, %v706, 0.0
      %774 = vadd.xlane.f32.xlu0 %v773
      %v775 = vpop.xlane.xlu0 %774
      %v776 = vsel %vm568, %v708, 0.0
      %777 = vadd.xlane.f32.xlu0 %v776
      %v778 = vpop.xlane.xlu0 %777
      %v779 = vsel %vm568, %v710, 0.0
      %780 = vadd.xlane.f32.xlu0 %v779
      %v781 = vpop.xlane.xlu0 %780
      %v782 = vsel %vm568, %v712, 0.0
      %783 = vadd.xlane.f32.xlu0 %v782
      %v784 = vpop.xlane.xlu0 %783
      %v785 = vsel %vm568, %v714, 0.0
      %786 = vadd.xlane.f32.xlu0 %v785
      %v787 = vpop.xlane.xlu0 %786
      %v788 = vsel %vm568, %v716, 0.0
      %789 = vadd.xlane.f32.xlu0 %v788
      %v790 = vpop.xlane.xlu0 %789
      %v791 = vsel %vm568, %v718, 0.0
      %792 = vadd.xlane.f32.xlu0 %v791
      %v793 = vpop.xlane.xlu0 %792
      %v794 = vsel %vm568, %v720, 0.0
      %795 = vadd.xlane.f32.xlu0 %v794
      %v796 = vpop.xlane.xlu0 %795
      %v797 = vsel %vm568, %v722, 0.0
      %798 = vadd.xlane.f32.xlu0 %v797
      %v799 = vpop.xlane.xlu0 %798
      %v800 = vsel %vm568, %v724, 0.0
      %801 = vadd.xlane.f32.xlu0 %v800
      %v802 = vpop.xlane.xlu0 %801
      %v803 = vsel %vm568, %v726, 0.0
      %804 = vadd.xlane.f32.xlu0 %v803
      %v805 = vpop.xlane.xlu0 %804
      %v806 = vsel %vm568, %v728, 0.0
      %807 = vadd.xlane.f32.xlu0 %v806
      %v808 = vpop.xlane.xlu0 %807
      %v809 = vsel %vm568, %v730, 0.0
      %810 = vadd.xlane.f32.xlu0 %v809
      %v811 = vpop.xlane.xlu0 %810
      %v812 = vsel %vm568, %v732, 0.0
      %813 = vadd.xlane.f32.xlu0 %v812
      %v814 = vpop.xlane.xlu0 %813
      %v815 = vsel %vm568, %v734, 0.0
      %816 = vadd.xlane.f32.xlu0 %v815
      %v817 = vpop.xlane.xlu0 %816
      %v818 = vsel %vm568, %v736, 0.0
      %819 = vadd.xlane.f32.xlu0 %v818
      %v820 = vpop.xlane.xlu0 %819
      %v821 = vsel %vm568, %v738, 0.0
      %822 = vadd.xlane.f32.xlu0 %v821
      %v823 = vpop.xlane.xlu0 %822
      %v824 = vsel %vm568, %v740, 0.0
      %825 = vadd.xlane.f32.xlu0 %v824
      %v826 = vpop.xlane.xlu0 %825
      %v827 = vsel %vm568, %v742, 0.0
      %828 = vadd.xlane.f32.xlu0 %v827
      %v829 = vpop.xlane.xlu0 %828
      %v830 = vsel %vm568, %v744, 0.0
      %831 = vadd.xlane.f32.xlu0 %v830
      %v832 = vpop.xlane.xlu0 %831
      %v833 = vsel %vm568, %v746, 0.0
      %834 = vadd.xlane.f32.xlu0 %v833
      %v835 = vpop.xlane.xlu0 %834
      %v836 = vsel %vm568, %v748, 0.0
      %837 = vadd.xlane.f32.xlu0 %v836
      %v838 = vpop.xlane.xlu0 %837
      %v839 = vsel %vm568, %v750, 0.0
      %840 = vadd.xlane.f32.xlu0 %v839
      %v841 = vpop.xlane.xlu0 %840
      %v842 = vsel %vm568, %v752, 0.0
      %843 = vadd.xlane.f32.xlu0 %v842
      %v844 = vpop.xlane.xlu0 %843
      %v845 = vsel %vm568, %v754, 0.0
      %846 = vadd.xlane.f32.xlu0 %v845
      %v847 = vpop.xlane.xlu0 %846
      %v848 = vsel %vm568, %v756, 0.0
      %849 = vadd.xlane.f32.xlu0 %v848
      %v850 = vpop.xlane.xlu0 %849
      %v851 = vsel %vm568, %v758, 0.0
      %852 = vadd.xlane.f32.xlu0 %v851
      %v853 = vpop.xlane.xlu0 %852
      %v854 = vsel %vm568, %v760, 0.0
      %855 = vadd.xlane.f32.xlu0 %v854
      %v856 = vpop.xlane.xlu0 %855
      %v857 = vrcp.pop %v763
      %v858 = vrcp.pop %v766
      %v859 = vrcp.pop %v769
      %v860 = vrcp.pop %v772
      %v861 = vrcp.pop %v775
      %v862 = vrcp.pop %v778
      %v863 = vrcp.pop %v781
      %v864 = vrcp.pop %v784
      %v865 = vrcp.pop %v787
      %v866 = vrcp.pop %v790
      %v867 = vrcp.pop %v793
      %v868 = vrcp.pop %v796
      %v869 = vrcp.pop %v799
      %v870 = vrcp.pop %v802
      %v871 = vrcp.pop %v805
      %v872 = vrcp.pop %v808
      %v873 = vrcp.pop %v811
      %v874 = vrcp.pop %v814
      %v875 = vrcp.pop %v817
      %v876 = vrcp.pop %v820
      %v877 = vrcp.pop %v823
      %v878 = vrcp.pop %v826
      %v879 = vrcp.pop %v829
      %v880 = vrcp.pop %v832
      %v881 = vrcp.pop %v835
      %v882 = vrcp.pop %v838
      %v883 = vrcp.pop %v841
      %v884 = vrcp.pop %v844
      %v885 = vrcp.pop %v847
      %v886 = vrcp.pop %v850
      %v887 = vrcp.pop %v853
      %v888 = vrcp.pop %v856
      %v889 = vmul.f32 %v698, %v857
      %v890 = vmul.f32 %v700, %v858
      %v891 = vmul.f32 %v702, %v859
      %v892 = vmul.f32 %v704, %v860
      %v893 = vmul.f32 %v706, %v861
      %v894 = vmul.f32 %v708, %v862
      %v895 = vmul.f32 %v710, %v863
      %v896 = vmul.f32 %v712, %v864
      %v897 = vmul.f32 %v714, %v865
      %v898 = vmul.f32 %v716, %v866
      %v899 = vmul.f32 %v718, %v867
      %v900 = vmul.f32 %v720, %v868
      %v901 = vmul.f32 %v722, %v869
      %v902 = vmul.f32 %v724, %v870
      %v903 = vmul.f32 %v726, %v871
      %v904 = vmul.f32 %v728, %v872
      %v905 = vmul.f32 %v730, %v873
      %v906 = vmul.f32 %v732, %v874
      %v907 = vmul.f32 %v734, %v875
      %v908 = vmul.f32 %v736, %v876
      %v909 = vmul.f32 %v738, %v877
      %v910 = vmul.f32 %v740, %v878
      %v911 = vmul.f32 %v742, %v879
      %v912 = vmul.f32 %v744, %v880
      %v913 = vmul.f32 %v746, %v881
      %v914 = vmul.f32 %v748, %v882
      %v915 = vmul.f32 %v750, %v883
      %v916 = vmul.f32 %v752, %v884
      %v917 = vmul.f32 %v754, %v885
      %v918 = vmul.f32 %v756, %v886
      %v919 = vmul.f32 %v758, %v887
      %v920 = vmul.f32 %v760, %v888
      %v922 = vsel %vm568, %v889, 0
      %v925 = vsel %vm568, %v890, 0
      %v928 = vsel %vm568, %v891, 0
      %v931 = vsel %vm568, %v892, 0
      %v934 = vsel %vm568, %v893, 0
      %v937 = vsel %vm568, %v894, 0
      %v940 = vsel %vm568, %v895, 0
      %v943 = vsel %vm568, %v896, 0
      %v946 = vsel %vm568, %v897, 0
      %v949 = vsel %vm568, %v898, 0
      %v952 = vsel %vm568, %v899, 0
      %v955 = vsel %vm568, %v900, 0
      %v958 = vsel %vm568, %v901, 0
      %v961 = vsel %vm568, %v902, 0
      %v964 = vsel %vm568, %v903, 0
      %v967 = vsel %vm568, %v904, 0
      %v970 = vsel %vm568, %v905, 0
      %v973 = vsel %vm568, %v906, 0
      %v976 = vsel %vm568, %v907, 0
      %v979 = vsel %vm568, %v908, 0
      %v982 = vsel %vm568, %v909, 0
      %v985 = vsel %vm568, %v910, 0
      %v988 = vsel %vm568, %v911, 0
      %v991 = vsel %vm568, %v912, 0
      %v994 = vsel %vm568, %v913, 0
      %v997 = vsel %vm568, %v914, 0
      %v1000 = vsel %vm568, %v915, 0
      %v1003 = vsel %vm568, %v916, 0
      %v1006 = vsel %vm568, %v917, 0
      %v1009 = vsel %vm568, %v918, 0
      %v1012 = vsel %vm568, %v919, 0
      %v1015 = vsel %vm568, %v920, 0
      %v1018 = vsel %vm568, %v213, 0
      %1020 = vmatprep.subr.mxu0 0.0
      %1021 = vmatpush1.xpose.msra.mxu0 0.0
      %1022 = vmatprep.subr.mxu0 0.0
      %1023 = vmatpush1.xpose.msra.mxu0 0.0
      %1024 = vmatprep.subr.mxu0 0.0
      %1025 = vmatpush1.xpose.msra.mxu0 0.0
      %1026 = vmatprep.subr.mxu0 0.0
      %1027 = vmatpush1.xpose.msra.mxu0 0.0
      %1028 = vmatprep.subr.mxu0 0.0
      %1029 = vmatpush1.xpose.msra.mxu0 0.0
      %1030 = vmatprep.subr.mxu0 0.0
      %1031 = vmatpush1.xpose.msra.mxu0 0.0
      %1032 = vmatprep.subr.mxu0 0.0
      %1033 = vmatpush1.xpose.msra.mxu0 0.0
      %1034 = vmatprep.subr.mxu0 0.0
      %1035 = vmatpush1.xpose.msra.mxu0 0.0
      %1036 = vmatprep.subr.mxu0 0.0
      %1037 = vmatpush1.xpose.msra.mxu0 0.0
      %1038 = vmatprep.subr.mxu0 0.0
      %1039 = vmatpush1.xpose.msra.mxu0 0.0
      %1040 = vmatprep.subr.mxu0 0.0
      %1041 = vmatpush1.xpose.msra.mxu0 0.0
      %1042 = vmatprep.subr.mxu0 0.0
      %1043 = vmatpush1.xpose.msra.mxu0 0.0
      %1044 = vmatprep.subr.mxu0 0.0
      %1045 = vmatpush1.xpose.msra.mxu0 0.0
      %1046 = vmatprep.subr.mxu0 0.0
      %1047 = vmatpush1.xpose.msra.mxu0 0.0
      %1048 = vmatprep.subr.mxu0 0.0
      %1049 = vmatpush1.xpose.msra.mxu0 0.0
      %1050 = vmatprep.subr.mxu0 0.0
      %1051 = vmatpush1.xpose.msra.mxu0 %v1018
      %1052 = vmatprep.subr.mxu0 0.0
      %1053 = vmatpush2.xpose.msra.mxu0 0.0
      %1054 = vmatprep.subr.mxu0 0.0
      %1055 = vmatpush2.xpose.msra.mxu0 0.0
      %1056 = vmatprep.subr.mxu0 0.0
      %1057 = vmatpush2.xpose.msra.mxu0 0.0
      %1058 = vmatprep.subr.mxu0 0.0
      %1059 = vmatpush2.xpose.msra.mxu0 0.0
      %1060 = vmatprep.subr.mxu0 0.0
      %1061 = vmatpush2.xpose.msra.mxu0 0.0
      %1062 = vmatprep.subr.mxu0 0.0
      %1063 = vmatpush2.xpose.msra.mxu0 0.0
      %1064 = vmatprep.subr.mxu0 0.0
      %1065 = vmatpush2.xpose.msra.mxu0 0.0
      %1066 = vmatprep.subr.mxu0 0.0
      %1067 = vmatpush2.xpose.msra.mxu0 0.0
      %1068 = vmatprep.subr.mxu0 0.0
      %1069 = vmatpush2.xpose.msra.mxu0 0.0
      %1070 = vmatprep.subr.mxu0 0.0
      %1071 = vmatpush2.xpose.msra.mxu0 0.0
      %1072 = vmatprep.subr.mxu0 0.0
      %1073 = vmatpush2.xpose.msra.mxu0 0.0
      %1074 = vmatprep.subr.mxu0 0.0
      %1075 = vmatpush2.xpose.msra.mxu0 0.0
      %1076 = vmatprep.subr.mxu0 0.0
      %1077 = vmatpush2.xpose.msra.mxu0 0.0
      %1078 = vmatprep.subr.mxu0 0.0
      %1079 = vmatpush2.xpose.msra.mxu0 0.0
      %1080 = vmatprep.subr.mxu0 0.0
      %1081 = vmatpush2.xpose.msra.mxu0 0.0
      %1082 = vmatprep.subr.mxu0 0.0
      %1083 = vmatpush2.xpose.msra.mxu0 0.0
      %1084 = vmatprep.mubr.f32.mxu0 0.0
      %1085 = vmatmul.mubr.f32.gmra.mxu0 %v922
      %v1086 = vpop.f32.mrf.mxu0
      %v1087 = vadd.f32 0.0, %v1086
      %v1088 = vpop.f32.mrf.mxu0
      %1089 = vmatprep.mubr.f32.mxu0 0.0
      %1090 = vmatmul.mubr.f32.gmra.mxu0 %v925
      %v1091 = vpop.f32.mrf.mxu0
      %v1092 = vadd.f32 0.0, %v1091
      %v1093 = vpop.f32.mrf.mxu0
      %1094 = vmatprep.mubr.f32.mxu0 0.0
      %1095 = vmatmul.mubr.f32.gmra.mxu0 %v928
      %v1096 = vpop.f32.mrf.mxu0
      %v1097 = vadd.f32 0.0, %v1096
      %v1098 = vpop.f32.mrf.mxu0
      %1099 = vmatprep.mubr.f32.mxu0 0.0
      %1100 = vmatmul.mubr.f32.gmra.mxu0 %v931
      %v1101 = vpop.f32.mrf.mxu0
      %v1102 = vadd.f32 0.0, %v1101
      %v1103 = vpop.f32.mrf.mxu0
      %1104 = vmatprep.mubr.f32.mxu0 0.0
      %1105 = vmatmul.mubr.f32.gmra.mxu0 %v934
      %v1106 = vpop.f32.mrf.mxu0
      %v1107 = vadd.f32 0.0, %v1106
      %v1108 = vpop.f32.mrf.mxu0
      %1109 = vmatprep.mubr.f32.mxu0 0.0
      %1110 = vmatmul.mubr.f32.gmra.mxu0 %v937
      %v1111 = vpop.f32.mrf.mxu0
      %v1112 = vadd.f32 0.0, %v1111
      %v1113 = vpop.f32.mrf.mxu0
      %1114 = vmatprep.mubr.f32.mxu0 0.0
      %1115 = vmatmul.mubr.f32.gmra.mxu0 %v940
      %v1116 = vpop.f32.mrf.mxu0
      %v1117 = vadd.f32 0.0, %v1116
      %v1118 = vpop.f32.mrf.mxu0
      %1119 = vmatprep.mubr.f32.mxu0 0.0
      %1120 = vmatmul.mubr.f32.gmra.mxu0 %v943
      %v1121 = vpop.f32.mrf.mxu0
      %v1122 = vadd.f32 0.0, %v1121
      %v1123 = vpop.f32.mrf.mxu0
      %1124 = vmatprep.mubr.f32.mxu0 0.0
      %1125 = vmatmul.mubr.f32.gmra.mxu0 %v946
      %v1126 = vpop.f32.mrf.mxu0
      %v1127 = vadd.f32 0.0, %v1126
      %v1128 = vpop.f32.mrf.mxu0
      %1129 = vmatprep.mubr.f32.mxu0 0.0
      %1130 = vmatmul.mubr.f32.gmra.mxu0 %v949
      %v1131 = vpop.f32.mrf.mxu0
      %v1132 = vadd.f32 0.0, %v1131
      %v1133 = vpop.f32.mrf.mxu0
      %1134 = vmatprep.mubr.f32.mxu0 0.0
      %1135 = vmatmul.mubr.f32.gmra.mxu0 %v952
      %v1136 = vpop.f32.mrf.mxu0
      %v1137 = vadd.f32 0.0, %v1136
      %v1138 = vpop.f32.mrf.mxu0
      %1139 = vmatprep.mubr.f32.mxu0 0.0
      %1140 = vmatmul.mubr.f32.gmra.mxu0 %v955
      %v1141 = vpop.f32.mrf.mxu0
      %v1142 = vadd.f32 0.0, %v1141
      %v1143 = vpop.f32.mrf.mxu0
      %1144 = vmatprep.mubr.f32.mxu0 0.0
      %1145 = vmatmul.mubr.f32.gmra.mxu0 %v958
      %v1146 = vpop.f32.mrf.mxu0
      %v1147 = vadd.f32 0.0, %v1146
      %v1148 = vpop.f32.mrf.mxu0
      %1149 = vmatprep.mubr.f32.mxu0 0.0
      %1150 = vmatmul.mubr.f32.gmra.mxu0 %v961
      %v1151 = vpop.f32.mrf.mxu0
      %v1152 = vadd.f32 0.0, %v1151
      %v1153 = vpop.f32.mrf.mxu0
      %1154 = vmatprep.mubr.f32.mxu0 0.0
      %1155 = vmatmul.mubr.f32.gmra.mxu0 %v964
      %v1156 = vpop.f32.mrf.mxu0
      %v1157 = vadd.f32 0.0, %v1156
      %v1158 = vpop.f32.mrf.mxu0
      %1159 = vmatprep.mubr.f32.mxu0 0.0
      %1160 = vmatmul.mubr.f32.gmra.mxu0 %v967
      %v1161 = vpop.f32.mrf.mxu0
      %v1162 = vadd.f32 0.0, %v1161
      %v1163 = vpop.f32.mrf.mxu0
      %1164 = vmatprep.mubr.f32.mxu0 0.0
      %1165 = vmatmul.mubr.f32.gmra.mxu0 %v970
      %v1166 = vpop.f32.mrf.mxu0
      %v1167 = vadd.f32 0.0, %v1166
      %v1168 = vpop.f32.mrf.mxu0
      %1169 = vmatprep.mubr.f32.mxu0 0.0
      %1170 = vmatmul.mubr.f32.gmra.mxu0 %v973
      %v1171 = vpop.f32.mrf.mxu0
      %v1172 = vadd.f32 0.0, %v1171
      %v1173 = vpop.f32.mrf.mxu0
      %1174 = vmatprep.mubr.f32.mxu0 0.0
      %1175 = vmatmul.mubr.f32.gmra.mxu0 %v976
      %v1176 = vpop.f32.mrf.mxu0
      %v1177 = vadd.f32 0.0, %v1176
      %v1178 = vpop.f32.mrf.mxu0
      %1179 = vmatprep.mubr.f32.mxu0 0.0
      %1180 = vmatmul.mubr.f32.gmra.mxu0 %v979
      %v1181 = vpop.f32.mrf.mxu0
      %v1182 = vadd.f32 0.0, %v1181
      %v1183 = vpop.f32.mrf.mxu0
      %1184 = vmatprep.mubr.f32.mxu0 0.0
      %1185 = vmatmul.mubr.f32.gmra.mxu0 %v982
      %v1186 = vpop.f32.mrf.mxu0
      %v1187 = vadd.f32 0.0, %v1186
      %v1188 = vpop.f32.mrf.mxu0
      %1189 = vmatprep.mubr.f32.mxu0 0.0
      %1190 = vmatmul.mubr.f32.gmra.mxu0 %v985
      %v1191 = vpop.f32.mrf.mxu0
      %v1192 = vadd.f32 0.0, %v1191
      %v1193 = vpop.f32.mrf.mxu0
      %1194 = vmatprep.mubr.f32.mxu0 0.0
      %1195 = vmatmul.mubr.f32.gmra.mxu0 %v988
      %v1196 = vpop.f32.mrf.mxu0
      %v1197 = vadd.f32 0.0, %v1196
      %v1198 = vpop.f32.mrf.mxu0
      %1199 = vmatprep.mubr.f32.mxu0 0.0
      %1200 = vmatmul.mubr.f32.gmra.mxu0 %v991
      %v1201 = vpop.f32.mrf.mxu0
      %v1202 = vadd.f32 0.0, %v1201
      %v1203 = vpop.f32.mrf.mxu0
      %1204 = vmatprep.mubr.f32.mxu0 0.0
      %1205 = vmatmul.mubr.f32.gmra.mxu0 %v994
      %v1206 = vpop.f32.mrf.mxu0
      %v1207 = vadd.f32 0.0, %v1206
      %v1208 = vpop.f32.mrf.mxu0
      %1209 = vmatprep.mubr.f32.mxu0 0.0
      %1210 = vmatmul.mubr.f32.gmra.mxu0 %v997
      %v1211 = vpop.f32.mrf.mxu0
      %v1212 = vadd.f32 0.0, %v1211
      %v1213 = vpop.f32.mrf.mxu0
      %1214 = vmatprep.mubr.f32.mxu0 0.0
      %1215 = vmatmul.mubr.f32.gmra.mxu0 %v1000
      %v1216 = vpop.f32.mrf.mxu0
      %v1217 = vadd.f32 0.0, %v1216
      %v1218 = vpop.f32.mrf.mxu0
      %1219 = vmatprep.mubr.f32.mxu0 0.0
      %1220 = vmatmul.mubr.f32.gmra.mxu0 %v1003
      %v1221 = vpop.f32.mrf.mxu0
      %v1222 = vadd.f32 0.0, %v1221
      %v1223 = vpop.f32.mrf.mxu0
      %1224 = vmatprep.mubr.f32.mxu0 0.0
      %1225 = vmatmul.mubr.f32.gmra.mxu0 %v1006
      %v1226 = vpop.f32.mrf.mxu0
      %v1227 = vadd.f32 0.0, %v1226
      %v1228 = vpop.f32.mrf.mxu0
      %1229 = vmatprep.mubr.f32.mxu0 0.0
      %1230 = vmatmul.mubr.f32.gmra.mxu0 %v1009
      %v1231 = vpop.f32.mrf.mxu0
      %v1232 = vadd.f32 0.0, %v1231
      %v1233 = vpop.f32.mrf.mxu0
      %1234 = vmatprep.mubr.f32.mxu0 0.0
      %1235 = vmatmul.mubr.f32.gmra.mxu0 %v1012
      %v1236 = vpop.f32.mrf.mxu0
      %v1237 = vadd.f32 0.0, %v1236
      %v1238 = vpop.f32.mrf.mxu0
      %1239 = vmatprep.mubr.f32.mxu0 0.0
      %1240 = vmatmul.mubr.f32.gmra.mxu0 %v1015
      %v1241 = vpop.f32.mrf.mxu0
      %v1242 = vadd.f32 0.0, %v1241
      %v1243 = vpop.f32.mrf.mxu0
      %1244 = vdwg.mxu0
      %v1245 = vld [vmem:[%s2] sm:$0xff]
      %v1247 = vsel %vm246, %v1087, 0
      %v1250 = vsel %vm246, %v1092, 0
      %v1253 = vsel %vm246, %v1097, 0
      %v1256 = vsel %vm246, %v1102, 0
      %v1259 = vsel %vm246, %v1107, 0
      %v1262 = vsel %vm246, %v1112, 0
      %v1265 = vsel %vm246, %v1117, 0
      %v1268 = vsel %vm246, %v1122, 0
      %v1271 = vsel %vm246, %v1127, 0
      %v1274 = vsel %vm246, %v1132, 0
      %v1277 = vsel %vm246, %v1137, 0
      %v1280 = vsel %vm246, %v1142, 0
      %v1283 = vsel %vm246, %v1147, 0
      %v1286 = vsel %vm246, %v1152, 0
      %v1289 = vsel %vm246, %v1157, 0
      %v1292 = vsel %vm246, %v1162, 0
      %v1295 = vsel %vm246, %v1167, 0
      %v1298 = vsel %vm246, %v1172, 0
      %v1301 = vsel %vm246, %v1177, 0
      %v1304 = vsel %vm246, %v1182, 0
      %v1307 = vsel %vm246, %v1187, 0
      %v1310 = vsel %vm246, %v1192, 0
      %v1313 = vsel %vm246, %v1197, 0
      %v1316 = vsel %vm246, %v1202, 0
      %v1319 = vsel %vm246, %v1207, 0
      %v1322 = vsel %vm246, %v1212, 0
      %v1325 = vsel %vm246, %v1217, 0
      %v1328 = vsel %vm246, %v1222, 0
      %v1331 = vsel %vm246, %v1227, 0
      %v1334 = vsel %vm246, %v1232, 0
      %v1337 = vsel %vm246, %v1237, 0
      %v1340 = vsel %vm246, %v1242, 0
      %1342 = vmatprep.subr.mxu0 0.0
      %1343 = vmatpush1.msra.mxu0 0.0
      %1344 = vmatprep.subr.mxu0 0.0
      %1345 = vmatpush1.msra.mxu0 0.0
      %1346 = vmatprep.subr.mxu0 0.0
      %1347 = vmatpush1.msra.mxu0 0.0
      %1348 = vmatprep.subr.mxu0 0.0
      %1349 = vmatpush1.msra.mxu0 0.0
      %1350 = vmatprep.subr.mxu0 0.0
      %1351 = vmatpush1.msra.mxu0 0.0
      %1352 = vmatprep.subr.mxu0 0.0
      %1353 = vmatpush1.msra.mxu0 0.0
      %1354 = vmatprep.subr.mxu0 0.0
      %1355 = vmatpush1.msra.mxu0 0.0
      %1356 = vmatprep.subr.mxu0 0.0
      %1357 = vmatpush1.msra.mxu0 0.0
      %1358 = vmatprep.subr.mxu0 0.0
      %1359 = vmatpush1.msra.mxu0 0.0
      %1360 = vmatprep.subr.mxu0 0.0
      %1361 = vmatpush1.msra.mxu0 0.0
      %1362 = vmatprep.subr.mxu0 0.0
      %1363 = vmatpush1.msra.mxu0 0.0
      %1364 = vmatprep.subr.mxu0 0.0
      %1365 = vmatpush1.msra.mxu0 0.0
      %1366 = vmatprep.subr.mxu0 0.0
      %1367 = vmatpush1.msra.mxu0 0.0
      %1368 = vmatprep.subr.mxu0 0.0
      %1369 = vmatpush1.msra.mxu0 0.0
      %1370 = vmatprep.subr.mxu0 0.0
      %1371 = vmatpush1.msra.mxu0 0.0
      %1372 = vmatprep.subr.mxu0 0.0
      %1373 = vmatpush1.msra.mxu0 %v1245
      %1374 = vmatprep.subr.mxu0 0.0
      %1375 = vmatpush2.msra.mxu0 0.0
      %1376 = vmatprep.subr.mxu0 0.0
      %1377 = vmatpush2.msra.mxu0 0.0
      %1378 = vmatprep.subr.mxu0 0.0
      %1379 = vmatpush2.msra.mxu0 0.0
      %1380 = vmatprep.subr.mxu0 0.0
      %1381 = vmatpush2.msra.mxu0 0.0
      %1382 = vmatprep.subr.mxu0 0.0
      %1383 = vmatpush2.msra.mxu0 0.0
      %1384 = vmatprep.subr.mxu0 0.0
      %1385 = vmatpush2.msra.mxu0 0.0
      %1386 = vmatprep.subr.mxu0 0.0
      %1387 = vmatpush2.msra.mxu0 0.0
      %1388 = vmatprep.subr.mxu0 0.0
      %1389 = vmatpush2.msra.mxu0 0.0
      %1390 = vmatprep.subr.mxu0 0.0
      %1391 = vmatpush2.msra.mxu0 0.0
      %1392 = vmatprep.subr.mxu0 0.0
      %1393 = vmatpush2.msra.mxu0 0.0
      %1394 = vmatprep.subr.mxu0 0.0
      %1395 = vmatpush2.msra.mxu0 0.0
      %1396 = vmatprep.subr.mxu0 0.0
      %1397 = vmatpush2.msra.mxu0 0.0
      %1398 = vmatprep.subr.mxu0 0.0
      %1399 = vmatpush2.msra.mxu0 0.0
      %1400 = vmatprep.subr.mxu0 0.0
      %1401 = vmatpush2.msra.mxu0 0.0
      %1402 = vmatprep.subr.mxu0 0.0
      %1403 = vmatpush2.msra.mxu0 0.0
      %1404 = vmatprep.subr.mxu0 0.0
      %1405 = vmatpush2.msra.mxu0 0.0
      %1406 = vmatprep.mubr.f32.mxu0 0.0
      %1407 = vmatmul.mubr.f32.gmra.mxu0 %v1247
      %v1408 = vpop.f32.mrf.mxu0
      %v1409 = vadd.f32 0.0, %v1408
      %v1410 = vpop.f32.mrf.mxu0
      %1411 = vmatprep.mubr.f32.mxu0 0.0
      %1412 = vmatmul.mubr.f32.gmra.mxu0 %v1250
      %v1413 = vpop.f32.mrf.mxu0
      %v1414 = vadd.f32 0.0, %v1413
      %v1415 = vpop.f32.mrf.mxu0
      %1416 = vmatprep.mubr.f32.mxu0 0.0
      %1417 = vmatmul.mubr.f32.gmra.mxu0 %v1253
      %v1418 = vpop.f32.mrf.mxu0
      %v1419 = vadd.f32 0.0, %v1418
      %v1420 = vpop.f32.mrf.mxu0
      %1421 = vmatprep.mubr.f32.mxu0 0.0
      %1422 = vmatmul.mubr.f32.gmra.mxu0 %v1256
      %v1423 = vpop.f32.mrf.mxu0
      %v1424 = vadd.f32 0.0, %v1423
      %v1425 = vpop.f32.mrf.mxu0
      %1426 = vmatprep.mubr.f32.mxu0 0.0
      %1427 = vmatmul.mubr.f32.gmra.mxu0 %v1259
      %v1428 = vpop.f32.mrf.mxu0
      %v1429 = vadd.f32 0.0, %v1428
      %v1430 = vpop.f32.mrf.mxu0
      %1431 = vmatprep.mubr.f32.mxu0 0.0
      %1432 = vmatmul.mubr.f32.gmra.mxu0 %v1262
      %v1433 = vpop.f32.mrf.mxu0
      %v1434 = vadd.f32 0.0, %v1433
      %v1435 = vpop.f32.mrf.mxu0
      %1436 = vmatprep.mubr.f32.mxu0 0.0
      %1437 = vmatmul.mubr.f32.gmra.mxu0 %v1265
      %v1438 = vpop.f32.mrf.mxu0
      %v1439 = vadd.f32 0.0, %v1438
      %v1440 = vpop.f32.mrf.mxu0
      %1441 = vmatprep.mubr.f32.mxu0 0.0
      %1442 = vmatmul.mubr.f32.gmra.mxu0 %v1268
      %v1443 = vpop.f32.mrf.mxu0
      %v1444 = vadd.f32 0.0, %v1443
      %v1445 = vpop.f32.mrf.mxu0
      %1446 = vmatprep.mubr.f32.mxu0 0.0
      %1447 = vmatmul.mubr.f32.gmra.mxu0 %v1271
      %v1448 = vpop.f32.mrf.mxu0
      %v1449 = vadd.f32 0.0, %v1448
      %v1450 = vpop.f32.mrf.mxu0
      %1451 = vmatprep.mubr.f32.mxu0 0.0
      %1452 = vmatmul.mubr.f32.gmra.mxu0 %v1274
      %v1453 = vpop.f32.mrf.mxu0
      %v1454 = vadd.f32 0.0, %v1453
      %v1455 = vpop.f32.mrf.mxu0
      %1456 = vmatprep.mubr.f32.mxu0 0.0
      %1457 = vmatmul.mubr.f32.gmra.mxu0 %v1277
      %v1458 = vpop.f32.mrf.mxu0
      %v1459 = vadd.f32 0.0, %v1458
      %v1460 = vpop.f32.mrf.mxu0
      %1461 = vmatprep.mubr.f32.mxu0 0.0
      %1462 = vmatmul.mubr.f32.gmra.mxu0 %v1280
      %v1463 = vpop.f32.mrf.mxu0
      %v1464 = vadd.f32 0.0, %v1463
      %v1465 = vpop.f32.mrf.mxu0
      %1466 = vmatprep.mubr.f32.mxu0 0.0
      %1467 = vmatmul.mubr.f32.gmra.mxu0 %v1283
      %v1468 = vpop.f32.mrf.mxu0
      %v1469 = vadd.f32 0.0, %v1468
      %v1470 = vpop.f32.mrf.mxu0
      %1471 = vmatprep.mubr.f32.mxu0 0.0
      %1472 = vmatmul.mubr.f32.gmra.mxu0 %v1286
      %v1473 = vpop.f32.mrf.mxu0
      %v1474 = vadd.f32 0.0, %v1473
      %v1475 = vpop.f32.mrf.mxu0
      %1476 = vmatprep.mubr.f32.mxu0 0.0
      %1477 = vmatmul.mubr.f32.gmra.mxu0 %v1289
      %v1478 = vpop.f32.mrf.mxu0
      %v1479 = vadd.f32 0.0, %v1478
      %v1480 = vpop.f32.mrf.mxu0
      %1481 = vmatprep.mubr.f32.mxu0 0.0
      %1482 = vmatmul.mubr.f32.gmra.mxu0 %v1292
      %v1483 = vpop.f32.mrf.mxu0
      %v1484 = vadd.f32 0.0, %v1483
      %v1485 = vpop.f32.mrf.mxu0
      %1486 = vmatprep.mubr.f32.mxu0 0.0
      %1487 = vmatmul.mubr.f32.gmra.mxu0 %v1295
      %v1488 = vpop.f32.mrf.mxu0
      %v1489 = vadd.f32 0.0, %v1488
      %v1490 = vpop.f32.mrf.mxu0
      %1491 = vmatprep.mubr.f32.mxu0 0.0
      %1492 = vmatmul.mubr.f32.gmra.mxu0 %v1298
      %v1493 = vpop.f32.mrf.mxu0
      %v1494 = vadd.f32 0.0, %v1493
      %v1495 = vpop.f32.mrf.mxu0
      %1496 = vmatprep.mubr.f32.mxu0 0.0
      %1497 = vmatmul.mubr.f32.gmra.mxu0 %v1301
      %v1498 = vpop.f32.mrf.mxu0
      %v1499 = vadd.f32 0.0, %v1498
      %v1500 = vpop.f32.mrf.mxu0
      %1501 = vmatprep.mubr.f32.mxu0 0.0
      %1502 = vmatmul.mubr.f32.gmra.mxu0 %v1304
      %v1503 = vpop.f32.mrf.mxu0
      %v1504 = vadd.f32 0.0, %v1503
      %v1505 = vpop.f32.mrf.mxu0
      %1506 = vmatprep.mubr.f32.mxu0 0.0
      %1507 = vmatmul.mubr.f32.gmra.mxu0 %v1307
      %v1508 = vpop.f32.mrf.mxu0
      %v1509 = vadd.f32 0.0, %v1508
      %v1510 = vpop.f32.mrf.mxu0
      %1511 = vmatprep.mubr.f32.mxu0 0.0
      %1512 = vmatmul.mubr.f32.gmra.mxu0 %v1310
      %v1513 = vpop.f32.mrf.mxu0
      %v1514 = vadd.f32 0.0, %v1513
      %v1515 = vpop.f32.mrf.mxu0
      %1516 = vmatprep.mubr.f32.mxu0 0.0
      %1517 = vmatmul.mubr.f32.gmra.mxu0 %v1313
      %v1518 = vpop.f32.mrf.mxu0
      %v1519 = vadd.f32 0.0, %v1518
      %v1520 = vpop.f32.mrf.mxu0
      %1521 = vmatprep.mubr.f32.mxu0 0.0
      %1522 = vmatmul.mubr.f32.gmra.mxu0 %v1316
      %v1523 = vpop.f32.mrf.mxu0
      %v1524 = vadd.f32 0.0, %v1523
      %v1525 = vpop.f32.mrf.mxu0
      %1526 = vmatprep.mubr.f32.mxu0 0.0
      %1527 = vmatmul.mubr.f32.gmra.mxu0 %v1319
      %v1528 = vpop.f32.mrf.mxu0
      %v1529 = vadd.f32 0.0, %v1528
      %v1530 = vpop.f32.mrf.mxu0
      %1531 = vmatprep.mubr.f32.mxu0 0.0
      %1532 = vmatmul.mubr.f32.gmra.mxu0 %v1322
      %v1533 = vpop.f32.mrf.mxu0
      %v1534 = vadd.f32 0.0, %v1533
      %v1535 = vpop.f32.mrf.mxu0
      %1536 = vmatprep.mubr.f32.mxu0 0.0
      %1537 = vmatmul.mubr.f32.gmra.mxu0 %v1325
      %v1538 = vpop.f32.mrf.mxu0
      %v1539 = vadd.f32 0.0, %v1538
      %v1540 = vpop.f32.mrf.mxu0
      %1541 = vmatprep.mubr.f32.mxu0 0.0
      %1542 = vmatmul.mubr.f32.gmra.mxu0 %v1328
      %v1543 = vpop.f32.mrf.mxu0
      %v1544 = vadd.f32 0.0, %v1543
      %v1545 = vpop.f32.mrf.mxu0
      %1546 = vmatprep.mubr.f32.mxu0 0.0
      %1547 = vmatmul.mubr.f32.gmra.mxu0 %v1331
      %v1548 = vpop.f32.mrf.mxu0
      %v1549 = vadd.f32 0.0, %v1548
      %v1550 = vpop.f32.mrf.mxu0
      %1551 = vmatprep.mubr.f32.mxu0 0.0
      %1552 = vmatmul.mubr.f32.gmra.mxu0 %v1334
      %v1553 = vpop.f32.mrf.mxu0
      %v1554 = vadd.f32 0.0, %v1553
      %v1555 = vpop.f32.mrf.mxu0
      %1556 = vmatprep.mubr.f32.mxu0 0.0
      %1557 = vmatmul.mubr.f32.gmra.mxu0 %v1337
      %v1558 = vpop.f32.mrf.mxu0
      %v1559 = vadd.f32 0.0, %v1558
      %v1560 = vpop.f32.mrf.mxu0
      %1561 = vmatprep.mubr.f32.mxu0 0.0
      %1562 = vmatmul.mubr.f32.gmra.mxu0 %v1340
      %v1563 = vpop.f32.mrf.mxu0
      %v1564 = vadd.f32 0.0, %v1563
      %v1565 = vpop.f32.mrf.mxu0
      %1566 = vdwg.mxu0
      %1567 = vst.msk [vmem:[%s212] sm:$0xff] %vm246, %v1409
      %1568 = vst.msk [vmem:[%s212 + $0x8] sm:$0xff] %vm246, %v1414
      %1569 = vst.msk [vmem:[%s212 + $0x10] sm:$0xff] %vm246, %v1419
      %1570 = vst.msk [vmem:[%s212 + $0x18] sm:$0xff] %vm246, %v1424
      %1571 = vst.msk [vmem:[%s212 + $0x20] sm:$0xff] %vm246, %v1429
      %1572 = vst.msk [vmem:[%s212 + $0x28] sm:$0xff] %vm246, %v1434
      %1573 = vst.msk [vmem:[%s212 + $0x30] sm:$0xff] %vm246, %v1439
      %1574 = vst.msk [vmem:[%s212 + $0x38] sm:$0xff] %vm246, %v1444
      %1575 = vst.msk [vmem:[%s212 + $0x40] sm:$0xff] %vm246, %v1449
      %1576 = vst.msk [vmem:[%s212 + $0x48] sm:$0xff] %vm246, %v1454
      %1577 = vst.msk [vmem:[%s212 + $0x50] sm:$0xff] %vm246, %v1459
      %1578 = vst.msk [vmem:[%s212 + $0x58] sm:$0xff] %vm246, %v1464
      %1579 = vst.msk [vmem:[%s212 + $0x60] sm:$0xff] %vm246, %v1469
      %1580 = vst.msk [vmem:[%s212 + $0x68] sm:$0xff] %vm246, %v1474
      %1581 = vst.msk [vmem:[%s212 + $0x70] sm:$0xff] %vm246, %v1479
      %1582 = vst.msk [vmem:[%s212 + $0x78] sm:$0xff] %vm246, %v1484
      %1583 = vst.msk [vmem:[%s212 + $0x80] sm:$0xff] %vm246, %v1489
      %1584 = vst.msk [vmem:[%s212 + $0x88] sm:$0xff] %vm246, %v1494
      %1585 = vst.msk [vmem:[%s212 + $0x90] sm:$0xff] %vm246, %v1499
      %1586 = vst.msk [vmem:[%s212 + $0x98] sm:$0xff] %vm246, %v1504
      %1587 = vst.msk [vmem:[%s212 + $0xa0] sm:$0xff] %vm246, %v1509
      %1588 = vst.msk [vmem:[%s212 + $0xa8] sm:$0xff] %vm246, %v1514
      %1589 = vst.msk [vmem:[%s212 + $0xb0] sm:$0xff] %vm246, %v1519
      %1590 = vst.msk [vmem:[%s212 + $0xb8] sm:$0xff] %vm246, %v1524
      %1591 = vst.msk [vmem:[%s212 + $0xc0] sm:$0xff] %vm246, %v1529
      %1592 = vst.msk [vmem:[%s212 + $0xc8] sm:$0xff] %vm246, %v1534
      %1593 = vst.msk [vmem:[%s212 + $0xd0] sm:$0xff] %vm246, %v1539
      %1594 = vst.msk [vmem:[%s212 + $0xd8] sm:$0xff] %vm246, %v1544
      %1595 = vst.msk [vmem:[%s212 + $0xe0] sm:$0xff] %vm246, %v1549
      %1596 = vst.msk [vmem:[%s212 + $0xe8] sm:$0xff] %vm246, %v1554
      %1597 = vst.msk [vmem:[%s212 + $0xf0] sm:$0xff] %vm246, %v1559
      %1598 = vst.msk [vmem:[%s212 + $0xf8] sm:$0xff] %vm246, %v1564
      %p1599 = scmp.eq.s32.totalorder %s16, 0
      // Predicated region
      $region33: #{ema_up_decoder_forward.15} parent=31 // pred_check
        %p1600 = pneg %p1599
      $region34: #{ema_up_decoder_forward.15} parent=31 // pred_check_branch
        %1602 = sbr.rel (%p1600) target = $region36
      $region35: #{ema_up_decoder_forward.15} parent=31 // pred_region
        %vm1603 = vcmask 58368
        %1604 = vst.msk [vmem:[%s4] sm:$0x3] %vm1603, 0.0
      $region36: #{ema_up_decoder_forward.15} parent=31 // pred_fallthru
        _
      %v1605 = vld [vmem:[%s4] sm:$0x3]
      %v1606 = vsel %vm246, %v1409, 0.0
      %v1607 = vsel %vm246, %v1414, 0.0
      %v1608 = vadd.f32 %v1606, %v1607
      %v1609 = vsel %vm246, %v1419, 0.0
      %v1610 = vadd.f32 %v1608, %v1609
      %v1611 = vsel %vm246, %v1424, 0.0
      %v1612 = vadd.f32 %v1610, %v1611
      %v1613 = vsel %vm246, %v1429, 0.0
      %v1614 = vadd.f32 %v1612, %v1613
      %v1615 = vsel %vm246, %v1434, 0.0
      %v1616 = vadd.f32 %v1614, %v1615
      %v1617 = vsel %vm246, %v1439, 0.0
      %v1618 = vadd.f32 %v1616, %v1617
      %v1619 = vsel %vm246, %v1444, 0.0
      %v1620 = vadd.f32 %v1618, %v1619
      %v1621 = vsel %vm246, %v1449, 0.0
      %v1622 = vadd.f32 %v1620, %v1621
      %v1623 = vsel %vm246, %v1454, 0.0
      %v1624 = vadd.f32 %v1622, %v1623
      %v1625 = vsel %vm246, %v1459, 0.0
      %v1626 = vadd.f32 %v1624, %v1625
      %v1627 = vsel %vm246, %v1464, 0.0
      %v1628 = vadd.f32 %v1626, %v1627
      %v1629 = vsel %vm246, %v1469, 0.0
      %v1630 = vadd.f32 %v1628, %v1629
      %v1631 = vsel %vm246, %v1474, 0.0
      %v1632 = vadd.f32 %v1630, %v1631
      %v1633 = vsel %vm246, %v1479, 0.0
      %v1634 = vadd.f32 %v1632, %v1633
      %v1635 = vsel %vm246, %v1484, 0.0
      %v1636 = vadd.f32 %v1634, %v1635
      %v1637 = vsel %vm246, %v1489, 0.0
      %v1638 = vadd.f32 %v1636, %v1637
      %v1639 = vsel %vm246, %v1494, 0.0
      %v1640 = vadd.f32 %v1638, %v1639
      %v1641 = vsel %vm246, %v1499, 0.0
      %v1642 = vadd.f32 %v1640, %v1641
      %v1643 = vsel %vm246, %v1504, 0.0
      %v1644 = vadd.f32 %v1642, %v1643
      %v1645 = vsel %vm246, %v1509, 0.0
      %v1646 = vadd.f32 %v1644, %v1645
      %v1647 = vsel %vm246, %v1514, 0.0
      %v1648 = vadd.f32 %v1646, %v1647
      %v1649 = vsel %vm246, %v1519, 0.0
      %v1650 = vadd.f32 %v1648, %v1649
      %v1651 = vsel %vm246, %v1524, 0.0
      %v1652 = vadd.f32 %v1650, %v1651
      %v1653 = vsel %vm246, %v1529, 0.0
      %v1654 = vadd.f32 %v1652, %v1653
      %v1655 = vsel %vm246, %v1534, 0.0
      %v1656 = vadd.f32 %v1654, %v1655
      %v1657 = vsel %vm246, %v1539, 0.0
      %v1658 = vadd.f32 %v1656, %v1657
      %v1659 = vsel %vm246, %v1544, 0.0
      %v1660 = vadd.f32 %v1658, %v1659
      %v1661 = vsel %vm246, %v1549, 0.0
      %v1662 = vadd.f32 %v1660, %v1661
      %v1663 = vsel %vm246, %v1554, 0.0
      %v1664 = vadd.f32 %v1662, %v1663
      %v1665 = vsel %vm246, %v1559, 0.0
      %v1666 = vadd.f32 %v1664, %v1665
      %v1667 = vsel %vm246, %v1564, 0.0
      %v1668 = vadd.f32 %v1666, %v1667
      %v1669 = vrot.slane %v1668, 4
      %v1670 = vadd.f32 %v1668, %v1669
      %v1671 = vrot.slane %v1670, 2
      %v1672 = vadd.f32 %v1670, %v1671
      %v1673 = vrot.slane %v1672, 1
      %v1674 = vadd.f32 %v1672, %v1673
      %v1675 = vmul.f32 %v1409, %v1409
      %v1676 = vmul.f32 %v1414, %v1414
      %v1677 = vmul.f32 %v1419, %v1419
      %v1678 = vmul.f32 %v1424, %v1424
      %v1679 = vmul.f32 %v1429, %v1429
      %v1680 = vmul.f32 %v1434, %v1434
      %v1681 = vmul.f32 %v1439, %v1439
      %v1682 = vmul.f32 %v1444, %v1444
      %v1683 = vmul.f32 %v1449, %v1449
      %v1684 = vmul.f32 %v1454, %v1454
      %v1685 = vmul.f32 %v1459, %v1459
      %v1686 = vmul.f32 %v1464, %v1464
      %v1687 = vmul.f32 %v1469, %v1469
      %v1688 = vmul.f32 %v1474, %v1474
      %v1689 = vmul.f32 %v1479, %v1479
      %v1690 = vmul.f32 %v1484, %v1484
      %v1691 = vmul.f32 %v1489, %v1489
      %v1692 = vmul.f32 %v1494, %v1494
      %v1693 = vmul.f32 %v1499, %v1499
      %v1694 = vmul.f32 %v1504, %v1504
      %v1695 = vmul.f32 %v1509, %v1509
      %v1696 = vmul.f32 %v1514, %v1514
      %v1697 = vmul.f32 %v1519, %v1519
      %v1698 = vmul.f32 %v1524, %v1524
      %v1699 = vmul.f32 %v1529, %v1529
      %v1700 = vmul.f32 %v1534, %v1534
      %v1701 = vmul.f32 %v1539, %v1539
      %v1702 = vmul.f32 %v1544, %v1544
      %v1703 = vmul.f32 %v1549, %v1549
      %v1704 = vmul.f32 %v1554, %v1554
      %v1705 = vmul.f32 %v1559, %v1559
      %v1706 = vmul.f32 %v1564, %v1564
      %v1707 = vsel %vm246, %v1675, 0.0
      %v1708 = vsel %vm246, %v1676, 0.0
      %v1709 = vadd.f32 %v1707, %v1708
      %v1710 = vsel %vm246, %v1677, 0.0
      %v1711 = vadd.f32 %v1709, %v1710
      %v1712 = vsel %vm246, %v1678, 0.0
      %v1713 = vadd.f32 %v1711, %v1712
      %v1714 = vsel %vm246, %v1679, 0.0
      %v1715 = vadd.f32 %v1713, %v1714
      %v1716 = vsel %vm246, %v1680, 0.0
      %v1717 = vadd.f32 %v1715, %v1716
      %v1718 = vsel %vm246, %v1681, 0.0
      %v1719 = vadd.f32 %v1717, %v1718
      %v1720 = vsel %vm246, %v1682, 0.0
      %v1721 = vadd.f32 %v1719, %v1720
      %v1722 = vsel %vm246, %v1683, 0.0
      %v1723 = vadd.f32 %v1721, %v1722
      %v1724 = vsel %vm246, %v1684, 0.0
      %v1725 = vadd.f32 %v1723, %v1724
      %v1726 = vsel %vm246, %v1685, 0.0
      %v1727 = vadd.f32 %v1725, %v1726
      %v1728 = vsel %vm246, %v1686, 0.0
      %v1729 = vadd.f32 %v1727, %v1728
      %v1730 = vsel %vm246, %v1687, 0.0
      %v1731 = vadd.f32 %v1729, %v1730
      %v1732 = vsel %vm246, %v1688, 0.0
      %v1733 = vadd.f32 %v1731, %v1732
      %v1734 = vsel %vm246, %v1689, 0.0
      %v1735 = vadd.f32 %v1733, %v1734
      %v1736 = vsel %vm246, %v1690, 0.0
      %v1737 = vadd.f32 %v1735, %v1736
      %v1738 = vsel %vm246, %v1691, 0.0
      %v1739 = vadd.f32 %v1737, %v1738
      %v1740 = vsel %vm246, %v1692, 0.0
      %v1741 = vadd.f32 %v1739, %v1740
      %v1742 = vsel %vm246, %v1693, 0.0
      %v1743 = vadd.f32 %v1741, %v1742
      %v1744 = vsel %vm246, %v1694, 0.0
      %v1745 = vadd.f32 %v1743, %v1744
      %v1746 = vsel %vm246, %v1695, 0.0
      %v1747 = vadd.f32 %v1745, %v1746
      %v1748 = vsel %vm246, %v1696, 0.0
      %v1749 = vadd.f32 %v1747, %v1748
      %v1750 = vsel %vm246, %v1697, 0.0
      %v1751 = vadd.f32 %v1749, %v1750
      %v1752 = vsel %vm246, %v1698, 0.0
      %v1753 = vadd.f32 %v1751, %v1752
      %v1754 = vsel %vm246, %v1699, 0.0
      %v1755 = vadd.f32 %v1753, %v1754
      %v1756 = vsel %vm246, %v1700, 0.0
      %v1757 = vadd.f32 %v1755, %v1756
      %v1758 = vsel %vm246, %v1701, 0.0
      %v1759 = vadd.f32 %v1757, %v1758
      %v1760 = vsel %vm246, %v1702, 0.0
      %v1761 = vadd.f32 %v1759, %v1760
      %v1762 = vsel %vm246, %v1703, 0.0
      %v1763 = vadd.f32 %v1761, %v1762
      %v1764 = vsel %vm246, %v1704, 0.0
      %v1765 = vadd.f32 %v1763, %v1764
      %v1766 = vsel %vm246, %v1705, 0.0
      %v1767 = vadd.f32 %v1765, %v1766
      %v1768 = vsel %vm246, %v1706, 0.0
      %v1769 = vadd.f32 %v1767, %v1768
      %v1770 = vrot.slane %v1769, 4
      %v1771 = vadd.f32 %v1769, %v1770
      %v1772 = vrot.slane %v1771, 2
      %v1773 = vadd.f32 %v1771, %v1772
      %v1774 = vrot.slane %v1773, 1
      %v1775 = vadd.f32 %v1773, %v1774
      %vm1776 = vcmask 1040384
      %v1777 = vsel %vm1776, %v1674, %v1775
      %v1778 = vadd.f32 %v1605, %v1777
      %vm1779 = vcmask 58368
      %1780 = vst.msk [vmem:[%s4] sm:$0x3] %vm1779, %v1778
      %p1781 = scmp.lt.s32.totalorder %s16, 1
      %s1782 = scalar_select %p1781, %s16, 1
      %s1783 = smul.addr %s1782, 32
      %s1784 = smul.addr %s1783, 8
      %s1785 = scalar_lea.vmem %s3, %s1784
      // Predicated region
      $region37: #{ema_up_decoder_forward.15} parent=31 // pred_check
        %p1786 = pneg %p107
      $region38: #{ema_up_decoder_forward.15} parent=31 // pred_check_branch
        %1788 = sbr.rel (%p1786) target = $region40
      $region39: #{ema_up_decoder_forward.15} parent=31 // pred_region
        _
      $region40: #{ema_up_decoder_forward.15} parent=31 // pred_fallthru
        _
      // Predicated region
      $region41: #{ema_up_decoder_forward.15} parent=31 // pred_check
        %p1789 = pneg %p128
      $region42: #{ema_up_decoder_forward.15} parent=31 // pred_check_branch
        %1791 = sbr.rel (%p1789) target = $region44
      $region43: #{ema_up_decoder_forward.15} parent=31 // pred_region
        _
      $region44: #{ema_up_decoder_forward.15} parent=31 // pred_fallthru
        _
      // Predicated region
      $region45: #{ema_up_decoder_forward.15} parent=31 // pred_check
        %p1792 = pneg %p128
      $region46: #{ema_up_decoder_forward.15} parent=31 // pred_check_branch
        %1794 = sbr.rel (%p1792) target = $region48
      $region47: #{ema_up_decoder_forward.15} parent=31 // pred_region
        _
      $region48: #{ema_up_decoder_forward.15} parent=31 // pred_fallthru
        _
    $region32: #{ema_up_decoder_forward.15} parent=5 // pred_fallthru
      _
    %p1795 = scmp.le.s32.totalorder 2, %s11
    // Predicated region
    $region49: #{ema_up_decoder_forward.15} parent=5 // pred_check
      %p1796 = pneg %p1795
    $region50: #{ema_up_decoder_forward.15} parent=5 // pred_check_branch
      %1798 = sbr.rel (%p1796) target = $region52
    $region51: #{ema_up_decoder_forward.15} parent=5 // pred_region
      %s1799 = ssub.s32 %s11, 2
      // Predicated region
      $region53: #{ema_up_decoder_forward.15} parent=51 // pred_check
        %p1800 = pneg %p113
      $region54: #{ema_up_decoder_forward.15} parent=51 // pred_check_branch
        %1802 = sbr.rel (%p1800) target = $region56
      $region55: #{ema_up_decoder_forward.15} parent=51 // pred_region
        %p1803 = scmp.lt.s32.totalorder %s17, 1
        %s1804 = scalar_select %p1803, %s17, 1
        %s1805 = smul.addr %s1804, 32
        %s1806 = smul.addr %s1805, 8
        %s1807 = scalar_lea.vmem %s3, %s1806
      $region56: #{ema_up_decoder_forward.15} parent=51 // pred_fallthru
        _
    $region52: #{ema_up_decoder_forward.15} parent=5 // pred_fallthru
      _
  $region6: #{ema_up_decoder_forward.15} parent=0 // loop_footer
    %s15 = sadd.s32 1, %s11
  $region7: #{ema_up_decoder_forward.15} parent=0 // loop_footer_branch
    %10 = sbr.rel target = $region3
  $region8: #{ema_up_decoder_forward.15} parent=0 // loop_exit
    _

// kernel: ema_up_decoder_forward.16
$region0: #{ema_up_decoder_forward.16}
  #allocation0 [shape = 'u32[]', space=smem, size = 0x4, offset = 0x4, fixed_abs, tag = 'smem constant byte address 0x4 - core index']
  #allocation1 [shape = 'u32[144,128]{1,0:T(1,128)}', space=vmem, size = 0x12000, scoped, tag = 'internal scratch']
  %s0 = inlined_call_operand.vmem [shape: f32[512,72], index: 0, kind: input, shape index: {}]
  %s1 = inlined_call_operand.vmem [shape: f32[72,8], index: 1, kind: input, shape index: {}]
  %s2 = inlined_call_operand.vmem [shape: f32[512,8], index: 2, kind: output, shape index: {0}]
  %s3 = inlined_call_operand.vmem [shape: f32[2,8], index: 3, kind: output, shape index: {1}]
  %4 = xla_tuple %s2, %s3
  %s5 = sld [smem:[#allocation0]]
  $region53: #{ema_up_decoder_forward.16} parent=0
    _
  %s7 = ssub.s32 1, %s5
  %s8 = scalar_select 0, %s7, %s5
  loop: start=0, step=1, limit=4
  $region2: #{ema_up_decoder_forward.16} parent=0 // loop_pre_header
    _
  $region3: #{ema_up_decoder_forward.16} parent=0 // loop_header
    %s10 = sphi 0, %s14
    %p11 = scmp.ge.s32.totalorder %s10, 4
    %s20 = sphi 0, %s22
    %s23 = sphi 0, %s20
    %s24 = sphi 0, %s23
    %s40 = sphi 0, %s24
    %s44 = sphi 0, %s44
    %s46 = sphi 0, %s44
    %s47 = sphi 0, %s46
    %s61 = sphi 0, %s47
    %s67 = sphi 0, %s69
    %s70 = sphi 0, %s67
    %s71 = sphi 0, %s70
    %s87 = sphi 0, %s71
    %s91 = sphi 0, %s91
    %s93 = sphi 0, %s91
    %s94 = sphi 0, %s93
    %s108 = sphi 0, %s94
  $region4: #{ema_up_decoder_forward.16} parent=0 // loop_header_branch
    %13 = sbr.rel (%p11) target = $region8
  $region5: #{ema_up_decoder_forward.16} parent=0 // loop_body
    %s15 = ssub.s32 %s10, 1
    %s16 = ssub.s32 %s10, 2
    %s17 = sadd.s32 %s10, 1
    %s18 = ssub.s32 %s10, %s17
    %p19 = scmp.eq.s32.totalorder %s18, 0
    %s21 = sadd.s32 %s20, 1
    %s22 = scalar_select %p19, %s20, %s21
    %p25 = pneg %p19
    %p26 = scmp.eq.s32.totalorder %s10, 1
    %p27 = por %p25, %p26
    %p28 = scmp.ne.s32.totalorder %s20, %s23
    %p29 = scmp.eq.s32.totalorder %s10, 0
    %p30 = por %p28, %p29
    %p31 = scmp.ne.s32.totalorder %s20, %s23
    %p32 = scmp.eq.s32.totalorder %s15, 1
    %p33 = por %p31, %p32
    %p34 = scmp.ne.s32.totalorder %s23, %s24
    %p35 = scmp.eq.s32.totalorder %s15, 0
    %p36 = por %p34, %p35
    %p37 = scmp.ne.s32.totalorder %s23, %s24
    %p38 = scmp.eq.s32.totalorder %s16, 1
    %p39 = por %p37, %p38
    %p41 = scmp.ne.s32.totalorder %s24, %s40
    %p42 = scmp.eq.s32.totalorder %s16, 0
    %p43 = por %p41, %p42
    %s45 = sadd.s32 %s44, 1
    %p48 = scmp.eq.s32.totalorder %s10, 1
    %p49 = scmp.ne.s32.totalorder %s44, %s46
    %p50 = scmp.eq.s32.totalorder %s10, 0
    %p51 = por %p49, %p50
    %p52 = scmp.ne.s32.totalorder %s44, %s46
    %p53 = scmp.eq.s32.totalorder %s15, 1
    %p54 = por %p52, %p53
    %p55 = scmp.ne.s32.totalorder %s46, %s47
    %p56 = scmp.eq.s32.totalorder %s15, 0
    %p57 = por %p55, %p56
    %p58 = scmp.ne.s32.totalorder %s46, %s47
    %p59 = scmp.eq.s32.totalorder %s16, 1
    %p60 = por %p58, %p59
    %p62 = scmp.ne.s32.totalorder %s47, %s61
    %p63 = scmp.eq.s32.totalorder %s16, 0
    %p64 = por %p62, %p63
    %s65 = ssub.s32 %s10, %s17
    %p66 = scmp.eq.s32.totalorder %s65, 0
    %s68 = sadd.s32 %s67, 1
    %s69 = scalar_select %p66, %s67, %s68
    %p72 = pneg %p66
    %p73 = scmp.eq.s32.totalorder %s10, 1
    %p74 = por %p72, %p73
    %p75 = scmp.ne.s32.totalorder %s67, %s70
    %p76 = scmp.eq.s32.totalorder %s10, 0
    %p77 = por %p75, %p76
    %p78 = scmp.ne.s32.totalorder %s67, %s70
    %p79 = scmp.eq.s32.totalorder %s15, 1
    %p80 = por %p78, %p79
    %p81 = scmp.ne.s32.totalorder %s70, %s71
    %p82 = scmp.eq.s32.totalorder %s15, 0
    %p83 = por %p81, %p82
    %p84 = scmp.ne.s32.totalorder %s70, %s71
    %p85 = scmp.eq.s32.totalorder %s16, 1
    %p86 = por %p84, %p85
    %p88 = scmp.ne.s32.totalorder %s71, %s87
    %p89 = scmp.eq.s32.totalorder %s16, 0
    %p90 = por %p88, %p89
    %s92 = sadd.s32 %s91, 1
    %p95 = scmp.eq.s32.totalorder %s10, 1
    %p96 = scmp.ne.s32.totalorder %s91, %s93
    %p97 = scmp.eq.s32.totalorder %s10, 0
    %p98 = por %p96, %p97
    %p99 = scmp.ne.s32.totalorder %s91, %s93
    %p100 = scmp.eq.s32.totalorder %s15, 1
    %p101 = por %p99, %p100
    %p102 = scmp.ne.s32.totalorder %s93, %s94
    %p103 = scmp.eq.s32.totalorder %s15, 0
    %p104 = por %p102, %p103
    %p105 = scmp.ne.s32.totalorder %s93, %s94
    %p106 = scmp.eq.s32.totalorder %s16, 1
    %p107 = por %p105, %p106
    %p109 = scmp.ne.s32.totalorder %s94, %s108
    %p110 = scmp.eq.s32.totalorder %s16, 0
    %p111 = por %p109, %p110
    %p112 = scmp.le.s32.totalorder 1, %s10
    %p113 = scmp.lt.s32.totalorder %s10, 3
    %p114 = pnand %p112, %p113
    %p115 = pneg %p114
    // Predicated region
    $region9: #{ema_up_decoder_forward.16} parent=5 // pred_check
      _
    $region10: #{ema_up_decoder_forward.16} parent=5 // pred_check_branch
      %117 = sbr.rel (%p114) target = $region12
    $region11: #{ema_up_decoder_forward.16} parent=5 // pred_region
      %s118 = ssub.s32 %s10, 1
      // Predicated region
      $region13: #{ema_up_decoder_forward.16} parent=11 // pred_check
        %p119 = pneg %p57
      $region14: #{ema_up_decoder_forward.16} parent=11 // pred_check_branch
        %121 = sbr.rel (%p119) target = $region16
      $region15: #{ema_up_decoder_forward.16} parent=11 // pred_region
        _
      $region16: #{ema_up_decoder_forward.16} parent=11 // pred_fallthru
        _
    $region12: #{ema_up_decoder_forward.16} parent=5 // pred_fallthru
      _
    %p122 = scmp.lt.s32.totalorder %s10, 2
    // Predicated region
    $region17: #{ema_up_decoder_forward.16} parent=5 // pred_check
      %p123 = pneg %p122
    $region18: #{ema_up_decoder_forward.16} parent=5 // pred_check_branch
      %125 = sbr.rel (%p123) target = $region20
    $region19: #{ema_up_decoder_forward.16} parent=5 // pred_region
      // Predicated region
      $region21: #{ema_up_decoder_forward.16} parent=19 // pred_check
        %p126 = pneg %p30
      $region22: #{ema_up_decoder_forward.16} parent=19 // pred_check_branch
        %128 = sbr.rel (%p126) target = $region24
      $region23: #{ema_up_decoder_forward.16} parent=19 // pred_region
        %s129 = smul.u32 32, %s10
        %p130 = scmp.lt.s32.totalorder %s129, 63
        %s131 = scalar_select %p130, %s129, 63
        %s132 = smul.addr %s131, 8
        %s133 = scalar_lea.vmem %s0, %s132
        %s134 = smul.u32 32, %s10
      $region24: #{ema_up_decoder_forward.16} parent=19 // pred_fallthru
        _
    $region20: #{ema_up_decoder_forward.16} parent=5 // pred_fallthru
      _
    %p135 = scmp.le.s32.totalorder 1, %s10
    %p136 = scmp.lt.s32.totalorder %s10, 3
    %p137 = pnand %p135, %p136
    %p138 = pneg %p137
    // Predicated region
    $region25: #{ema_up_decoder_forward.16} parent=5 // pred_check
      _
    $region26: #{ema_up_decoder_forward.16} parent=5 // pred_check_branch
      %140 = sbr.rel (%p137) target = $region28
    $region27: #{ema_up_decoder_forward.16} parent=5 // pred_region
      %s141 = ssub.s32 %s10, 1
      %s142 = smul.u32 32, %s15
      %p143 = scmp.lt.s32.totalorder %s142, 63
      %s144 = scalar_select %p143, %s142, 63
      %s145 = smul.addr %s144, 8
      %s146 = scalar_lea.vmem %s0, %s145
      %p147 = pneg %p36
      %p148 = pneg %p33
      %p149 = pneg %p57
      %p150 = pneg %p54
      %p151 = pneg %p83
      %p152 = pneg %p80
      %s153 = smul.u32 32, %s15
      %p154 = scmp.lt.s32.totalorder %s153, 63
      %s155 = scalar_select %p154, %s153, 63
      %s156 = smul.addr %s155, 8
      %s157 = scalar_lea.vmem %s2, %s156
      %p158 = pneg %p104
      %p159 = pneg %p101
      %s160 = smul.u32 32, %s15
      %p161 = scmp.lt.s32.totalorder %s160, 63
      %s162 = scalar_select %p161, %s160, 63
      %s163 = smul.addr %s162, 8
      %s164 = scalar_lea.vmem %s0, %s163
      %s165 = smul.u32 32, %s15
      %s166 = smul.u32 32, %s15
      %p167 = scmp.lt.s32.totalorder %s166, 63
      %s168 = scalar_select %p167, %s166, 63
      %s169 = smul.addr %s168, 8
      %s170 = scalar_lea.vmem %s2, %s169
      %s171 = smul.u32 32, %s15
      %v172 = vld [vmem:[%s164] sm:$0xff]
      %v173 = vld [vmem:[%s164 + $0x8] sm:$0xff]
      %v174 = vld [vmem:[%s164 + $0x10] sm:$0xff]
      %v175 = vld [vmem:[%s164 + $0x18] sm:$0xff]
      %v176 = vld [vmem:[%s164 + $0x20] sm:$0xff]
      %v177 = vld [vmem:[%s164 + $0x28] sm:$0xff]
      %v178 = vld [vmem:[%s164 + $0x30] sm:$0xff]
      %v179 = vld [vmem:[%s164 + $0x38] sm:$0xff]
      %v180 = vld [vmem:[%s164 + $0x40] sm:$0xff]
      %v181 = vld [vmem:[%s164 + $0x48] sm:$0xff]
      %v182 = vld [vmem:[%s164 + $0x50] sm:$0xff]
      %v183 = vld [vmem:[%s164 + $0x58] sm:$0xff]
      %v184 = vld [vmem:[%s164 + $0x60] sm:$0xff]
      %v185 = vld [vmem:[%s164 + $0x68] sm:$0xff]
      %v186 = vld [vmem:[%s164 + $0x70] sm:$0xff]
      %v187 = vld [vmem:[%s164 + $0x78] sm:$0xff]
      %v188 = vld [vmem:[%s164 + $0x80] sm:$0xff]
      %v189 = vld [vmem:[%s164 + $0x88] sm:$0xff]
      %v190 = vld [vmem:[%s164 + $0x90] sm:$0xff]
      %v191 = vld [vmem:[%s164 + $0x98] sm:$0xff]
      %v192 = vld [vmem:[%s164 + $0xa0] sm:$0xff]
      %v193 = vld [vmem:[%s164 + $0xa8] sm:$0xff]
      %v194 = vld [vmem:[%s164 + $0xb0] sm:$0xff]
      %v195 = vld [vmem:[%s164 + $0xb8] sm:$0xff]
      %v196 = vld [vmem:[%s164 + $0xc0] sm:$0xff]
      %v197 = vld [vmem:[%s164 + $0xc8] sm:$0xff]
      %v198 = vld [vmem:[%s164 + $0xd0] sm:$0xff]
      %v199 = vld [vmem:[%s164 + $0xd8] sm:$0xff]
      %v200 = vld [vmem:[%s164 + $0xe0] sm:$0xff]
      %v201 = vld [vmem:[%s164 + $0xe8] sm:$0xff]
      %v202 = vld [vmem:[%s164 + $0xf0] sm:$0xff]
      %v203 = vld [vmem:[%s164 + $0xf8] sm:$0xff]
      %v204 = vld [vmem:[%s1] sm:$0xff]
      %v205 = vld [vmem:[%s1 + $0x8] sm:$0xff]
      %v206 = vld [vmem:[%s1 + $0x10] sm:$0xff]
      %v207 = vld [vmem:[%s1 + $0x18] sm:$0xff]
      %v208 = vld [vmem:[%s1 + $0x20] sm:$0xff]
      %v209 = vld [vmem:[%s1 + $0x28] sm:$0xff]
      %v210 = vld [vmem:[%s1 + $0x30] sm:$0xff]
      %v211 = vld [vmem:[%s1 + $0x38] sm:$0xff]
      %v212 = vld [vmem:[%s1 + $0x40] sm:$0xff]
      %vm213 = vcmask 588800
      %v215 = vsel %vm213, %v172, 0
      %v218 = vsel %vm213, %v173, 0
      %v221 = vsel %vm213, %v174, 0
      %v224 = vsel %vm213, %v175, 0
      %v227 = vsel %vm213, %v176, 0
      %v230 = vsel %vm213, %v177, 0
      %v233 = vsel %vm213, %v178, 0
      %v236 = vsel %vm213, %v179, 0
      %v239 = vsel %vm213, %v180, 0
      %v242 = vsel %vm213, %v181, 0
      %v245 = vsel %vm213, %v182, 0
      %v248 = vsel %vm213, %v183, 0
      %v251 = vsel %vm213, %v184, 0
      %v254 = vsel %vm213, %v185, 0
      %v257 = vsel %vm213, %v186, 0
      %v260 = vsel %vm213, %v187, 0
      %v263 = vsel %vm213, %v188, 0
      %v266 = vsel %vm213, %v189, 0
      %v269 = vsel %vm213, %v190, 0
      %v272 = vsel %vm213, %v191, 0
      %v275 = vsel %vm213, %v192, 0
      %v278 = vsel %vm213, %v193, 0
      %v281 = vsel %vm213, %v194, 0
      %v284 = vsel %vm213, %v195, 0
      %v287 = vsel %vm213, %v196, 0
      %v290 = vsel %vm213, %v197, 0
      %v293 = vsel %vm213, %v198, 0
      %v296 = vsel %vm213, %v199, 0
      %v299 = vsel %vm213, %v200, 0
      %v302 = vsel %vm213, %v201, 0
      %v305 = vsel %vm213, %v202, 0
      %v308 = vsel %vm213, %v203, 0
      %310 = vmatprep.subr.mxu0 0.0
      %311 = vmatpush1.msra.mxu0 0.0
      %312 = vmatprep.subr.mxu0 0.0
      %313 = vmatpush1.msra.mxu0 0.0
      %314 = vmatprep.subr.mxu0 0.0
      %315 = vmatpush1.msra.mxu0 0.0
      %316 = vmatprep.subr.mxu0 0.0
      %317 = vmatpush1.msra.mxu0 0.0
      %318 = vmatprep.subr.mxu0 0.0
      %319 = vmatpush1.msra.mxu0 0.0
      %320 = vmatprep.subr.mxu0 0.0
      %321 = vmatpush1.msra.mxu0 0.0
      %322 = vmatprep.subr.mxu0 0.0
      %323 = vmatpush1.msra.mxu0 0.0
      %324 = vmatprep.subr.mxu0 0.0
      %325 = vmatpush1.msra.mxu0 %v212
      %326 = vmatprep.subr.mxu0 0.0
      %327 = vmatpush1.msra.mxu0 %v211
      %328 = vmatprep.subr.mxu0 0.0
      %329 = vmatpush1.msra.mxu0 %v210
      %330 = vmatprep.subr.mxu0 0.0
      %331 = vmatpush1.msra.mxu0 %v209
      %332 = vmatprep.subr.mxu0 0.0
      %333 = vmatpush1.msra.mxu0 %v208
      %334 = vmatprep.subr.mxu0 0.0
      %335 = vmatpush1.msra.mxu0 %v207
      %336 = vmatprep.subr.mxu0 0.0
      %337 = vmatpush1.msra.mxu0 %v206
      %338 = vmatprep.subr.mxu0 0.0
      %339 = vmatpush1.msra.mxu0 %v205
      %340 = vmatprep.subr.mxu0 0.0
      %341 = vmatpush1.msra.mxu0 %v204
      %342 = vmatprep.subr.mxu0 0.0
      %343 = vmatpush2.msra.mxu0 0.0
      %344 = vmatprep.subr.mxu0 0.0
      %345 = vmatpush2.msra.mxu0 0.0
      %346 = vmatprep.subr.mxu0 0.0
      %347 = vmatpush2.msra.mxu0 0.0
      %348 = vmatprep.subr.mxu0 0.0
      %349 = vmatpush2.msra.mxu0 0.0
      %350 = vmatprep.subr.mxu0 0.0
      %351 = vmatpush2.msra.mxu0 0.0
      %352 = vmatprep.subr.mxu0 0.0
      %353 = vmatpush2.msra.mxu0 0.0
      %354 = vmatprep.subr.mxu0 0.0
      %355 = vmatpush2.msra.mxu0 0.0
      %356 = vmatprep.subr.mxu0 0.0
      %357 = vmatpush2.msra.mxu0 0.0
      %358 = vmatprep.subr.mxu0 0.0
      %359 = vmatpush2.msra.mxu0 0.0
      %360 = vmatprep.subr.mxu0 0.0
      %361 = vmatpush2.msra.mxu0 0.0
      %362 = vmatprep.subr.mxu0 0.0
      %363 = vmatpush2.msra.mxu0 0.0
      %364 = vmatprep.subr.mxu0 0.0
      %365 = vmatpush2.msra.mxu0 0.0
      %366 = vmatprep.subr.mxu0 0.0
      %367 = vmatpush2.msra.mxu0 0.0
      %368 = vmatprep.subr.mxu0 0.0
      %369 = vmatpush2.msra.mxu0 0.0
      %370 = vmatprep.subr.mxu0 0.0
      %371 = vmatpush2.msra.mxu0 0.0
      %372 = vmatprep.subr.mxu0 0.0
      %373 = vmatpush2.msra.mxu0 0.0
      %374 = vmatprep.mubr.f32.mxu0 0.0
      %375 = vmatmul.mubr.f32.gmra.mxu0 %v215
      %v376 = vpop.f32.mrf.mxu0
      %v377 = vadd.f32 0.0, %v376
      %v378 = vpop.f32.mrf.mxu0
      %379 = vmatprep.mubr.f32.mxu0 0.0
      %380 = vmatmul.mubr.f32.gmra.mxu0 %v218
      %v381 = vpop.f32.mrf.mxu0
      %v382 = vadd.f32 0.0, %v381
      %v383 = vpop.f32.mrf.mxu0
      %384 = vmatprep.mubr.f32.mxu0 0.0
      %385 = vmatmul.mubr.f32.gmra.mxu0 %v221
      %v386 = vpop.f32.mrf.mxu0
      %v387 = vadd.f32 0.0, %v386
      %v388 = vpop.f32.mrf.mxu0
      %389 = vmatprep.mubr.f32.mxu0 0.0
      %390 = vmatmul.mubr.f32.gmra.mxu0 %v224
      %v391 = vpop.f32.mrf.mxu0
      %v392 = vadd.f32 0.0, %v391
      %v393 = vpop.f32.mrf.mxu0
      %394 = vmatprep.mubr.f32.mxu0 0.0
      %395 = vmatmul.mubr.f32.gmra.mxu0 %v227
      %v396 = vpop.f32.mrf.mxu0
      %v397 = vadd.f32 0.0, %v396
      %v398 = vpop.f32.mrf.mxu0
      %399 = vmatprep.mubr.f32.mxu0 0.0
      %400 = vmatmul.mubr.f32.gmra.mxu0 %v230
      %v401 = vpop.f32.mrf.mxu0
      %v402 = vadd.f32 0.0, %v401
      %v403 = vpop.f32.mrf.mxu0
      %404 = vmatprep.mubr.f32.mxu0 0.0
      %405 = vmatmul.mubr.f32.gmra.mxu0 %v233
      %v406 = vpop.f32.mrf.mxu0
      %v407 = vadd.f32 0.0, %v406
      %v408 = vpop.f32.mrf.mxu0
      %409 = vmatprep.mubr.f32.mxu0 0.0
      %410 = vmatmul.mubr.f32.gmra.mxu0 %v236
      %v411 = vpop.f32.mrf.mxu0
      %v412 = vadd.f32 0.0, %v411
      %v413 = vpop.f32.mrf.mxu0
      %414 = vmatprep.mubr.f32.mxu0 0.0
      %415 = vmatmul.mubr.f32.gmra.mxu0 %v239
      %v416 = vpop.f32.mrf.mxu0
      %v417 = vadd.f32 0.0, %v416
      %v418 = vpop.f32.mrf.mxu0
      %419 = vmatprep.mubr.f32.mxu0 0.0
      %420 = vmatmul.mubr.f32.gmra.mxu0 %v242
      %v421 = vpop.f32.mrf.mxu0
      %v422 = vadd.f32 0.0, %v421
      %v423 = vpop.f32.mrf.mxu0
      %424 = vmatprep.mubr.f32.mxu0 0.0
      %425 = vmatmul.mubr.f32.gmra.mxu0 %v245
      %v426 = vpop.f32.mrf.mxu0
      %v427 = vadd.f32 0.0, %v426
      %v428 = vpop.f32.mrf.mxu0
      %429 = vmatprep.mubr.f32.mxu0 0.0
      %430 = vmatmul.mubr.f32.gmra.mxu0 %v248
      %v431 = vpop.f32.mrf.mxu0
      %v432 = vadd.f32 0.0, %v431
      %v433 = vpop.f32.mrf.mxu0
      %434 = vmatprep.mubr.f32.mxu0 0.0
      %435 = vmatmul.mubr.f32.gmra.mxu0 %v251
      %v436 = vpop.f32.mrf.mxu0
      %v437 = vadd.f32 0.0, %v436
      %v438 = vpop.f32.mrf.mxu0
      %439 = vmatprep.mubr.f32.mxu0 0.0
      %440 = vmatmul.mubr.f32.gmra.mxu0 %v254
      %v441 = vpop.f32.mrf.mxu0
      %v442 = vadd.f32 0.0, %v441
      %v443 = vpop.f32.mrf.mxu0
      %444 = vmatprep.mubr.f32.mxu0 0.0
      %445 = vmatmul.mubr.f32.gmra.mxu0 %v257
      %v446 = vpop.f32.mrf.mxu0
      %v447 = vadd.f32 0.0, %v446
      %v448 = vpop.f32.mrf.mxu0
      %449 = vmatprep.mubr.f32.mxu0 0.0
      %450 = vmatmul.mubr.f32.gmra.mxu0 %v260
      %v451 = vpop.f32.mrf.mxu0
      %v452 = vadd.f32 0.0, %v451
      %v453 = vpop.f32.mrf.mxu0
      %454 = vmatprep.mubr.f32.mxu0 0.0
      %455 = vmatmul.mubr.f32.gmra.mxu0 %v263
      %v456 = vpop.f32.mrf.mxu0
      %v457 = vadd.f32 0.0, %v456
      %v458 = vpop.f32.mrf.mxu0
      %459 = vmatprep.mubr.f32.mxu0 0.0
      %460 = vmatmul.mubr.f32.gmra.mxu0 %v266
      %v461 = vpop.f32.mrf.mxu0
      %v462 = vadd.f32 0.0, %v461
      %v463 = vpop.f32.mrf.mxu0
      %464 = vmatprep.mubr.f32.mxu0 0.0
      %465 = vmatmul.mubr.f32.gmra.mxu0 %v269
      %v466 = vpop.f32.mrf.mxu0
      %v467 = vadd.f32 0.0, %v466
      %v468 = vpop.f32.mrf.mxu0
      %469 = vmatprep.mubr.f32.mxu0 0.0
      %470 = vmatmul.mubr.f32.gmra.mxu0 %v272
      %v471 = vpop.f32.mrf.mxu0
      %v472 = vadd.f32 0.0, %v471
      %v473 = vpop.f32.mrf.mxu0
      %474 = vmatprep.mubr.f32.mxu0 0.0
      %475 = vmatmul.mubr.f32.gmra.mxu0 %v275
      %v476 = vpop.f32.mrf.mxu0
      %v477 = vadd.f32 0.0, %v476
      %v478 = vpop.f32.mrf.mxu0
      %479 = vmatprep.mubr.f32.mxu0 0.0
      %480 = vmatmul.mubr.f32.gmra.mxu0 %v278
      %v481 = vpop.f32.mrf.mxu0
      %v482 = vadd.f32 0.0, %v481
      %v483 = vpop.f32.mrf.mxu0
      %484 = vmatprep.mubr.f32.mxu0 0.0
      %485 = vmatmul.mubr.f32.gmra.mxu0 %v281
      %v486 = vpop.f32.mrf.mxu0
      %v487 = vadd.f32 0.0, %v486
      %v488 = vpop.f32.mrf.mxu0
      %489 = vmatprep.mubr.f32.mxu0 0.0
      %490 = vmatmul.mubr.f32.gmra.mxu0 %v284
      %v491 = vpop.f32.mrf.mxu0
      %v492 = vadd.f32 0.0, %v491
      %v493 = vpop.f32.mrf.mxu0
      %494 = vmatprep.mubr.f32.mxu0 0.0
      %495 = vmatmul.mubr.f32.gmra.mxu0 %v287
      %v496 = vpop.f32.mrf.mxu0
      %v497 = vadd.f32 0.0, %v496
      %v498 = vpop.f32.mrf.mxu0
      %499 = vmatprep.mubr.f32.mxu0 0.0
      %500 = vmatmul.mubr.f32.gmra.mxu0 %v290
      %v501 = vpop.f32.mrf.mxu0
      %v502 = vadd.f32 0.0, %v501
      %v503 = vpop.f32.mrf.mxu0
      %504 = vmatprep.mubr.f32.mxu0 0.0
      %505 = vmatmul.mubr.f32.gmra.mxu0 %v293
      %v506 = vpop.f32.mrf.mxu0
      %v507 = vadd.f32 0.0, %v506
      %v508 = vpop.f32.mrf.mxu0
      %509 = vmatprep.mubr.f32.mxu0 0.0
      %510 = vmatmul.mubr.f32.gmra.mxu0 %v296
      %v511 = vpop.f32.mrf.mxu0
      %v512 = vadd.f32 0.0, %v511
      %v513 = vpop.f32.mrf.mxu0
      %514 = vmatprep.mubr.f32.mxu0 0.0
      %515 = vmatmul.mubr.f32.gmra.mxu0 %v299
      %v516 = vpop.f32.mrf.mxu0
      %v517 = vadd.f32 0.0, %v516
      %v518 = vpop.f32.mrf.mxu0
      %519 = vmatprep.mubr.f32.mxu0 0.0
      %520 = vmatmul.mubr.f32.gmra.mxu0 %v302
      %v521 = vpop.f32.mrf.mxu0
      %v522 = vadd.f32 0.0, %v521
      %v523 = vpop.f32.mrf.mxu0
      %524 = vmatprep.mubr.f32.mxu0 0.0
      %525 = vmatmul.mubr.f32.gmra.mxu0 %v305
      %v526 = vpop.f32.mrf.mxu0
      %v527 = vadd.f32 0.0, %v526
      %v528 = vpop.f32.mrf.mxu0
      %529 = vmatprep.mubr.f32.mxu0 0.0
      %530 = vmatmul.mubr.f32.gmra.mxu0 %v308
      %v531 = vpop.f32.mrf.mxu0
      %v532 = vadd.f32 0.0, %v531
      %v533 = vpop.f32.mrf.mxu0
      %534 = vdwg.mxu0
      %vm535 = vcmask 64512
      %536 = vst.msk [vmem:[%s170] sm:$0xff] %vm535, %v377
      %537 = vst.msk [vmem:[%s170 + $0x8] sm:$0xff] %vm535, %v382
      %538 = vst.msk [vmem:[%s170 + $0x10] sm:$0xff] %vm535, %v387
      %539 = vst.msk [vmem:[%s170 + $0x18] sm:$0xff] %vm535, %v392
      %540 = vst.msk [vmem:[%s170 + $0x20] sm:$0xff] %vm535, %v397
      %541 = vst.msk [vmem:[%s170 + $0x28] sm:$0xff] %vm535, %v402
      %542 = vst.msk [vmem:[%s170 + $0x30] sm:$0xff] %vm535, %v407
      %543 = vst.msk [vmem:[%s170 + $0x38] sm:$0xff] %vm535, %v412
      %544 = vst.msk [vmem:[%s170 + $0x40] sm:$0xff] %vm535, %v417
      %545 = vst.msk [vmem:[%s170 + $0x48] sm:$0xff] %vm535, %v422
      %546 = vst.msk [vmem:[%s170 + $0x50] sm:$0xff] %vm535, %v427
      %547 = vst.msk [vmem:[%s170 + $0x58] sm:$0xff] %vm535, %v432
      %548 = vst.msk [vmem:[%s170 + $0x60] sm:$0xff] %vm535, %v437
      %549 = vst.msk [vmem:[%s170 + $0x68] sm:$0xff] %vm535, %v442
      %550 = vst.msk [vmem:[%s170 + $0x70] sm:$0xff] %vm535, %v447
      %551 = vst.msk [vmem:[%s170 + $0x78] sm:$0xff] %vm535, %v452
      %552 = vst.msk [vmem:[%s170 + $0x80] sm:$0xff] %vm535, %v457
      %553 = vst.msk [vmem:[%s170 + $0x88] sm:$0xff] %vm535, %v462
      %554 = vst.msk [vmem:[%s170 + $0x90] sm:$0xff] %vm535, %v467
      %555 = vst.msk [vmem:[%s170 + $0x98] sm:$0xff] %vm535, %v472
      %556 = vst.msk [vmem:[%s170 + $0xa0] sm:$0xff] %vm535, %v477
      %557 = vst.msk [vmem:[%s170 + $0xa8] sm:$0xff] %vm535, %v482
      %558 = vst.msk [vmem:[%s170 + $0xb0] sm:$0xff] %vm535, %v487
      %559 = vst.msk [vmem:[%s170 + $0xb8] sm:$0xff] %vm535, %v492
      %560 = vst.msk [vmem:[%s170 + $0xc0] sm:$0xff] %vm535, %v497
      %561 = vst.msk [vmem:[%s170 + $0xc8] sm:$0xff] %vm535, %v502
      %562 = vst.msk [vmem:[%s170 + $0xd0] sm:$0xff] %vm535, %v507
      %563 = vst.msk [vmem:[%s170 + $0xd8] sm:$0xff] %vm535, %v512
      %564 = vst.msk [vmem:[%s170 + $0xe0] sm:$0xff] %vm535, %v517
      %565 = vst.msk [vmem:[%s170 + $0xe8] sm:$0xff] %vm535, %v522
      %566 = vst.msk [vmem:[%s170 + $0xf0] sm:$0xff] %vm535, %v527
      %567 = vst.msk [vmem:[%s170 + $0xf8] sm:$0xff] %vm535, %v532
      %p568 = scmp.eq.s32.totalorder %s15, 0
      // Predicated region
      $region29: #{ema_up_decoder_forward.16} parent=27 // pred_check
        %p569 = pneg %p568
      $region30: #{ema_up_decoder_forward.16} parent=27 // pred_check_branch
        %571 = sbr.rel (%p569) target = $region32
      $region31: #{ema_up_decoder_forward.16} parent=27 // pred_region
        %vm572 = vcmask 58368
        %573 = vst.msk [vmem:[%s3] sm:$0x3] %vm572, 0.0
      $region32: #{ema_up_decoder_forward.16} parent=27 // pred_fallthru
        _
      %v574 = vld [vmem:[%s3] sm:$0x3]
      %v575 = vsel %vm535, %v377, 0.0
      %v576 = vsel %vm535, %v382, 0.0
      %v577 = vadd.f32 %v575, %v576
      %v578 = vsel %vm535, %v387, 0.0
      %v579 = vadd.f32 %v577, %v578
      %v580 = vsel %vm535, %v392, 0.0
      %v581 = vadd.f32 %v579, %v580
      %v582 = vsel %vm535, %v397, 0.0
      %v583 = vadd.f32 %v581, %v582
      %v584 = vsel %vm535, %v402, 0.0
      %v585 = vadd.f32 %v583, %v584
      %v586 = vsel %vm535, %v407, 0.0
      %v587 = vadd.f32 %v585, %v586
      %v588 = vsel %vm535, %v412, 0.0
      %v589 = vadd.f32 %v587, %v588
      %v590 = vsel %vm535, %v417, 0.0
      %v591 = vadd.f32 %v589, %v590
      %v592 = vsel %vm535, %v422, 0.0
      %v593 = vadd.f32 %v591, %v592
      %v594 = vsel %vm535, %v427, 0.0
      %v595 = vadd.f32 %v593, %v594
      %v596 = vsel %vm535, %v432, 0.0
      %v597 = vadd.f32 %v595, %v596
      %v598 = vsel %vm535, %v437, 0.0
      %v599 = vadd.f32 %v597, %v598
      %v600 = vsel %vm535, %v442, 0.0
      %v601 = vadd.f32 %v599, %v600
      %v602 = vsel %vm535, %v447, 0.0
      %v603 = vadd.f32 %v601, %v602
      %v604 = vsel %vm535, %v452, 0.0
      %v605 = vadd.f32 %v603, %v604
      %v606 = vsel %vm535, %v457, 0.0
      %v607 = vadd.f32 %v605, %v606
      %v608 = vsel %vm535, %v462, 0.0
      %v609 = vadd.f32 %v607, %v608
      %v610 = vsel %vm535, %v467, 0.0
      %v611 = vadd.f32 %v609, %v610
      %v612 = vsel %vm535, %v472, 0.0
      %v613 = vadd.f32 %v611, %v612
      %v614 = vsel %vm535, %v477, 0.0
      %v615 = vadd.f32 %v613, %v614
      %v616 = vsel %vm535, %v482, 0.0
      %v617 = vadd.f32 %v615, %v616
      %v618 = vsel %vm535, %v487, 0.0
      %v619 = vadd.f32 %v617, %v618
      %v620 = vsel %vm535, %v492, 0.0
      %v621 = vadd.f32 %v619, %v620
      %v622 = vsel %vm535, %v497, 0.0
      %v623 = vadd.f32 %v621, %v622
      %v624 = vsel %vm535, %v502, 0.0
      %v625 = vadd.f32 %v623, %v624
      %v626 = vsel %vm535, %v507, 0.0
      %v627 = vadd.f32 %v625, %v626
      %v628 = vsel %vm535, %v512, 0.0
      %v629 = vadd.f32 %v627, %v628
      %v630 = vsel %vm535, %v517, 0.0
      %v631 = vadd.f32 %v629, %v630
      %v632 = vsel %vm535, %v522, 0.0
      %v633 = vadd.f32 %v631, %v632
      %v634 = vsel %vm535, %v527, 0.0
      %v635 = vadd.f32 %v633, %v634
      %v636 = vsel %vm535, %v532, 0.0
      %v637 = vadd.f32 %v635, %v636
      %v638 = vrot.slane %v637, 4
      %v639 = vadd.f32 %v637, %v638
      %v640 = vrot.slane %v639, 2
      %v641 = vadd.f32 %v639, %v640
      %v642 = vrot.slane %v641, 1
      %v643 = vadd.f32 %v641, %v642
      %v644 = vmul.f32 %v377, %v377
      %v645 = vmul.f32 %v382, %v382
      %v646 = vmul.f32 %v387, %v387
      %v647 = vmul.f32 %v392, %v392
      %v648 = vmul.f32 %v397, %v397
      %v649 = vmul.f32 %v402, %v402
      %v650 = vmul.f32 %v407, %v407
      %v651 = vmul.f32 %v412, %v412
      %v652 = vmul.f32 %v417, %v417
      %v653 = vmul.f32 %v422, %v422
      %v654 = vmul.f32 %v427, %v427
      %v655 = vmul.f32 %v432, %v432
      %v656 = vmul.f32 %v437, %v437
      %v657 = vmul.f32 %v442, %v442
      %v658 = vmul.f32 %v447, %v447
      %v659 = vmul.f32 %v452, %v452
      %v660 = vmul.f32 %v457, %v457
      %v661 = vmul.f32 %v462, %v462
      %v662 = vmul.f32 %v467, %v467
      %v663 = vmul.f32 %v472, %v472
      %v664 = vmul.f32 %v477, %v477
      %v665 = vmul.f32 %v482, %v482
      %v666 = vmul.f32 %v487, %v487
      %v667 = vmul.f32 %v492, %v492
      %v668 = vmul.f32 %v497, %v497
      %v669 = vmul.f32 %v502, %v502
      %v670 = vmul.f32 %v507, %v507
      %v671 = vmul.f32 %v512, %v512
      %v672 = vmul.f32 %v517, %v517
      %v673 = vmul.f32 %v522, %v522
      %v674 = vmul.f32 %v527, %v527
      %v675 = vmul.f32 %v532, %v532
      %v676 = vsel %vm535, %v644, 0.0
      %v677 = vsel %vm535, %v645, 0.0
      %v678 = vadd.f32 %v676, %v677
      %v679 = vsel %vm535, %v646, 0.0
      %v680 = vadd.f32 %v678, %v679
      %v681 = vsel %vm535, %v647, 0.0
      %v682 = vadd.f32 %v680, %v681
      %v683 = vsel %vm535, %v648, 0.0
      %v684 = vadd.f32 %v682, %v683
      %v685 = vsel %vm535, %v649, 0.0
      %v686 = vadd.f32 %v684, %v685
      %v687 = vsel %vm535, %v650, 0.0
      %v688 = vadd.f32 %v686, %v687
      %v689 = vsel %vm535, %v651, 0.0
      %v690 = vadd.f32 %v688, %v689
      %v691 = vsel %vm535, %v652, 0.0
      %v692 = vadd.f32 %v690, %v691
      %v693 = vsel %vm535, %v653, 0.0
      %v694 = vadd.f32 %v692, %v693
      %v695 = vsel %vm535, %v654, 0.0
      %v696 = vadd.f32 %v694, %v695
      %v697 = vsel %vm535, %v655, 0.0
      %v698 = vadd.f32 %v696, %v697
      %v699 = vsel %vm535, %v656, 0.0
      %v700 = vadd.f32 %v698, %v699
      %v701 = vsel %vm535, %v657, 0.0
      %v702 = vadd.f32 %v700, %v701
      %v703 = vsel %vm535, %v658, 0.0
      %v704 = vadd.f32 %v702, %v703
      %v705 = vsel %vm535, %v659, 0.0
      %v706 = vadd.f32 %v704, %v705
      %v707 = vsel %vm535, %v660, 0.0
      %v708 = vadd.f32 %v706, %v707
      %v709 = vsel %vm535, %v661, 0.0
      %v710 = vadd.f32 %v708, %v709
      %v711 = vsel %vm535, %v662, 0.0
      %v712 = vadd.f32 %v710, %v711
      %v713 = vsel %vm535, %v663, 0.0
      %v714 = vadd.f32 %v712, %v713
      %v715 = vsel %vm535, %v664, 0.0
      %v716 = vadd.f32 %v714, %v715
      %v717 = vsel %vm535, %v665, 0.0
      %v718 = vadd.f32 %v716, %v717
      %v719 = vsel %vm535, %v666, 0.0
      %v720 = vadd.f32 %v718, %v719
      %v721 = vsel %vm535, %v667, 0.0
      %v722 = vadd.f32 %v720, %v721
      %v723 = vsel %vm535, %v668, 0.0
      %v724 = vadd.f32 %v722, %v723
      %v725 = vsel %vm535, %v669, 0.0
      %v726 = vadd.f32 %v724, %v725
      %v727 = vsel %vm535, %v670, 0.0
      %v728 = vadd.f32 %v726, %v727
      %v729 = vsel %vm535, %v671, 0.0
      %v730 = vadd.f32 %v728, %v729
      %v731 = vsel %vm535, %v672, 0.0
      %v732 = vadd.f32 %v730, %v731
      %v733 = vsel %vm535, %v673, 0.0
      %v734 = vadd.f32 %v732, %v733
      %v735 = vsel %vm535, %v674, 0.0
      %v736 = vadd.f32 %v734, %v735
      %v737 = vsel %vm535, %v675, 0.0
      %v738 = vadd.f32 %v736, %v737
      %v739 = vrot.slane %v738, 4
      %v740 = vadd.f32 %v738, %v739
      %v741 = vrot.slane %v740, 2
      %v742 = vadd.f32 %v740, %v741
      %v743 = vrot.slane %v742, 1
      %v744 = vadd.f32 %v742, %v743
      %vm745 = vcmask 1040384
      %v746 = vsel %vm745, %v643, %v744
      %v747 = vadd.f32 %v574, %v746
      %vm748 = vcmask 58368
      %749 = vst.msk [vmem:[%s3] sm:$0x3] %vm748, %v747
      %s750 = smul.u32 32, %s15
      %p751 = scmp.lt.s32.totalorder %s750, 63
      %s752 = scalar_select %p751, %s750, 63
      %s753 = smul.addr %s752, 8
      %s754 = scalar_lea.vmem %s2, %s753
      // Predicated region
      $region33: #{ema_up_decoder_forward.16} parent=27 // pred_check
        %p755 = pneg %p80
      $region34: #{ema_up_decoder_forward.16} parent=27 // pred_check_branch
        %757 = sbr.rel (%p755) target = $region36
      $region35: #{ema_up_decoder_forward.16} parent=27 // pred_region
        %s758 = smul.u32 32, %s15
      $region36: #{ema_up_decoder_forward.16} parent=27 // pred_fallthru
        _
      // Predicated region
      $region37: #{ema_up_decoder_forward.16} parent=27 // pred_check
        %p759 = pneg %p101
      $region38: #{ema_up_decoder_forward.16} parent=27 // pred_check_branch
        %761 = sbr.rel (%p759) target = $region40
      $region39: #{ema_up_decoder_forward.16} parent=27 // pred_region
        _
      $region40: #{ema_up_decoder_forward.16} parent=27 // pred_fallthru
        _
      // Predicated region
      $region41: #{ema_up_decoder_forward.16} parent=27 // pred_check
        %p762 = pneg %p101
      $region42: #{ema_up_decoder_forward.16} parent=27 // pred_check_branch
        %764 = sbr.rel (%p762) target = $region44
      $region43: #{ema_up_decoder_forward.16} parent=27 // pred_region
        _
      $region44: #{ema_up_decoder_forward.16} parent=27 // pred_fallthru
        _
    $region28: #{ema_up_decoder_forward.16} parent=5 // pred_fallthru
      _
    %p765 = scmp.le.s32.totalorder 2, %s10
    // Predicated region
    $region45: #{ema_up_decoder_forward.16} parent=5 // pred_check
      %p766 = pneg %p765
    $region46: #{ema_up_decoder_forward.16} parent=5 // pred_check_branch
      %768 = sbr.rel (%p766) target = $region48
    $region47: #{ema_up_decoder_forward.16} parent=5 // pred_region
      %s769 = ssub.s32 %s10, 2
      // Predicated region
      $region49: #{ema_up_decoder_forward.16} parent=47 // pred_check
        %p770 = pneg %p86
      $region50: #{ema_up_decoder_forward.16} parent=47 // pred_check_branch
        %772 = sbr.rel (%p770) target = $region52
      $region51: #{ema_up_decoder_forward.16} parent=47 // pred_region
        %s773 = smul.u32 32, %s16
        %p774 = scmp.lt.s32.totalorder %s773, 63
        %s775 = scalar_select %p774, %s773, 63
        %s776 = smul.addr %s775, 8
        %s777 = scalar_lea.vmem %s2, %s776
      $region52: #{ema_up_decoder_forward.16} parent=47 // pred_fallthru
        _
    $region48: #{ema_up_decoder_forward.16} parent=5 // pred_fallthru
      _
  $region6: #{ema_up_decoder_forward.16} parent=0 // loop_footer
    %s14 = sadd.s32 1, %s10
  $region7: #{ema_up_decoder_forward.16} parent=0 // loop_footer_branch
    %9 = sbr.rel target = $region3
  $region8: #{ema_up_decoder_forward.16} parent=0 // loop_exit
    _

// kernel: ema_up_decoder_forward.17
$region0: #{ema_up_decoder_forward.17}
  #allocation0 [shape = 'u32[]', space=smem, size = 0x4, offset = 0x4, fixed_abs, tag = 'smem constant byte address 0x4 - core index']
  #allocation1 [shape = 'u32[144,128]{1,0:T(1,128)}', space=vmem, size = 0x12000, scoped, tag = 'internal scratch']
  %s0 = inlined_call_operand.vmem [shape: f32[512,8], index: 0, kind: input, shape index: {}]
  %s1 = inlined_call_operand.vmem [shape: f32[2,8], index: 1, kind: input, shape index: {}]
  %s2 = inlined_call_operand.vmem [shape: f32[512,8], index: 2, kind: input, shape index: {}]
  %s3 = inlined_call_operand.vmem [shape: f32[2,8], index: 3, kind: input, shape index: {}]
  %s4 = inlined_call_operand.vmem [shape: f32[512,8], index: 4, kind: output, shape index: {}]
  %s5 = sld [smem:[#allocation0]]
  $region26: #{ema_up_decoder_forward.17} parent=0
    _
  %s7 = ssub.s32 1, %s5
  %s8 = scalar_select 0, %s7, %s5
  // Predicated region
  $region2: #{ema_up_decoder_forward.17} parent=0 // pred_check
    _
  $region3: #{ema_up_decoder_forward.17} parent=0 // pred_check_branch
    %10 = sbr.rel (0) target = $region5
  $region4: #{ema_up_decoder_forward.17} parent=0 // pred_region
    _
  $region5: #{ema_up_decoder_forward.17} parent=0 // pred_fallthru
    _
  // Predicated region
  $region6: #{ema_up_decoder_forward.17} parent=0 // pred_check
    _
  $region7: #{ema_up_decoder_forward.17} parent=0 // pred_check_branch
    %12 = sbr.rel (0) target = $region9
  $region8: #{ema_up_decoder_forward.17} parent=0 // pred_region
    _
  $region9: #{ema_up_decoder_forward.17} parent=0 // pred_fallthru
    _
  // Predicated region
  $region10: #{ema_up_decoder_forward.17} parent=0 // pred_check
    _
  $region11: #{ema_up_decoder_forward.17} parent=0 // pred_check_branch
    %14 = sbr.rel (0) target = $region13
  $region12: #{ema_up_decoder_forward.17} parent=0 // pred_region
    _
  $region13: #{ema_up_decoder_forward.17} parent=0 // pred_fallthru
    _
  // Predicated region
  $region14: #{ema_up_decoder_forward.17} parent=0 // pred_check
    _
  $region15: #{ema_up_decoder_forward.17} parent=0 // pred_check_branch
    %16 = sbr.rel (0) target = $region17
  $region16: #{ema_up_decoder_forward.17} parent=0 // pred_region
    _
  $region17: #{ema_up_decoder_forward.17} parent=0 // pred_fallthru
    _
  %v17 = vld [vmem:[%s1] sm:$0x3]
  %v18 = vmul.f32 %v17, 0.001953125
  %v19 = vmul.f32 %v18, %v18
  %v21 = vrot.slane %v19, 7
  %v23 = vsub.f32 %v18, %v21
  %v24 = vadd.f32 %v23, 1e-05
  %v25 = vrsqrt.pop %v24
  %v26 = vld [vmem:[%s3] sm:$0x3]
  %v27 = vmul.f32 %v26, 0.001953125
  %v28 = vmul.f32 %v27, %v27
  %v30 = vrot.slane %v28, 7
  %v32 = vsub.f32 %v27, %v30
  %v33 = vadd.f32 %v32, 1e-05
  %v34 = vrsqrt.pop %v33
  %v35 = vld [vmem:[%s0] sm:$0xff]
  %v36 = vld [vmem:[%s0 + $0x8] sm:$0xff]
  %v37 = vld [vmem:[%s0 + $0x10] sm:$0xff]
  %v38 = vld [vmem:[%s0 + $0x18] sm:$0xff]
  %v39 = vld [vmem:[%s0 + $0x20] sm:$0xff]
  %v40 = vld [vmem:[%s0 + $0x28] sm:$0xff]
  %v41 = vld [vmem:[%s0 + $0x30] sm:$0xff]
  %v42 = vld [vmem:[%s0 + $0x38] sm:$0xff]
  %v43 = vld [vmem:[%s0 + $0x40] sm:$0xff]
  %v44 = vld [vmem:[%s0 + $0x48] sm:$0xff]
  %v45 = vld [vmem:[%s0 + $0x50] sm:$0xff]
  %v46 = vld [vmem:[%s0 + $0x58] sm:$0xff]
  %v47 = vld [vmem:[%s0 + $0x60] sm:$0xff]
  %v48 = vld [vmem:[%s0 + $0x68] sm:$0xff]
  %v49 = vld [vmem:[%s0 + $0x70] sm:$0xff]
  %v50 = vld [vmem:[%s0 + $0x78] sm:$0xff]
  %v51 = vld [vmem:[%s0 + $0x80] sm:$0xff]
  %v52 = vld [vmem:[%s0 + $0x88] sm:$0xff]
  %v53 = vld [vmem:[%s0 + $0x90] sm:$0xff]
  %v54 = vld [vmem:[%s0 + $0x98] sm:$0xff]
  %v55 = vld [vmem:[%s0 + $0xa0] sm:$0xff]
  %v56 = vld [vmem:[%s0 + $0xa8] sm:$0xff]
  %v57 = vld [vmem:[%s0 + $0xb0] sm:$0xff]
  %v58 = vld [vmem:[%s0 + $0xb8] sm:$0xff]
  %v59 = vld [vmem:[%s0 + $0xc0] sm:$0xff]
  %v60 = vld [vmem:[%s0 + $0xc8] sm:$0xff]
  %v61 = vld [vmem:[%s0 + $0xd0] sm:$0xff]
  %v62 = vld [vmem:[%s0 + $0xd8] sm:$0xff]
  %v63 = vld [vmem:[%s0 + $0xe0] sm:$0xff]
  %v64 = vld [vmem:[%s0 + $0xe8] sm:$0xff]
  %v65 = vld [vmem:[%s0 + $0xf0] sm:$0xff]
  %v66 = vld [vmem:[%s0 + $0xf8] sm:$0xff]
  %v67 = vld [vmem:[%s0 + $0x100] sm:$0xff]
  %v68 = vld [vmem:[%s0 + $0x108] sm:$0xff]
  %v69 = vld [vmem:[%s0 + $0x110] sm:$0xff]
  %v70 = vld [vmem:[%s0 + $0x118] sm:$0xff]
  %v71 = vld [vmem:[%s0 + $0x120] sm:$0xff]
  %v72 = vld [vmem:[%s0 + $0x128] sm:$0xff]
  %v73 = vld [vmem:[%s0 + $0x130] sm:$0xff]
  %v74 = vld [vmem:[%s0 + $0x138] sm:$0xff]
  %v75 = vld [vmem:[%s0 + $0x140] sm:$0xff]
  %v76 = vld [vmem:[%s0 + $0x148] sm:$0xff]
  %v77 = vld [vmem:[%s0 + $0x150] sm:$0xff]
  %v78 = vld [vmem:[%s0 + $0x158] sm:$0xff]
  %v79 = vld [vmem:[%s0 + $0x160] sm:$0xff]
  %v80 = vld [vmem:[%s0 + $0x168] sm:$0xff]
  %v81 = vld [vmem:[%s0 + $0x170] sm:$0xff]
  %v82 = vld [vmem:[%s0 + $0x178] sm:$0xff]
  %v83 = vld [vmem:[%s0 + $0x180] sm:$0xff]
  %v84 = vld [vmem:[%s0 + $0x188] sm:$0xff]
  %v85 = vld [vmem:[%s0 + $0x190] sm:$0xff]
  %v86 = vld [vmem:[%s0 + $0x198] sm:$0xff]
  %v87 = vld [vmem:[%s0 + $0x1a0] sm:$0xff]
  %v88 = vld [vmem:[%s0 + $0x1a8] sm:$0xff]
  %v89 = vld [vmem:[%s0 + $0x1b0] sm:$0xff]
  %v90 = vld [vmem:[%s0 + $0x1b8] sm:$0xff]
  %v91 = vld [vmem:[%s0 + $0x1c0] sm:$0xff]
  %v92 = vld [vmem:[%s0 + $0x1c8] sm:$0xff]
  %v93 = vld [vmem:[%s0 + $0x1d0] sm:$0xff]
  %v94 = vld [vmem:[%s0 + $0x1d8] sm:$0xff]
  %v95 = vld [vmem:[%s0 + $0x1e0] sm:$0xff]
  %v96 = vld [vmem:[%s0 + $0x1e8] sm:$0xff]
  %v97 = vld [vmem:[%s0 + $0x1f0] sm:$0xff]
  %v98 = vld [vmem:[%s0 + $0x1f8] sm:$0xff]
  %v99 = vlaneseq
  %v100 = vshrl.u32 %v99, 7
  %v101 = vsub.s32 0, %v100
  %v102 = vrot.slane %v18, %v101
  %v103 = vsub.f32 %v35, %v102
  %v104 = vsub.f32 %v36, %v102
  %v105 = vsub.f32 %v37, %v102
  %v106 = vsub.f32 %v38, %v102
  %v107 = vsub.f32 %v39, %v102
  %v108 = vsub.f32 %v40, %v102
  %v109 = vsub.f32 %v41, %v102
  %v110 = vsub.f32 %v42, %v102
  %v111 = vsub.f32 %v43, %v102
  %v112 = vsub.f32 %v44, %v102
  %v113 = vsub.f32 %v45, %v102
  %v114 = vsub.f32 %v46, %v102
  %v115 = vsub.f32 %v47, %v102
  %v116 = vsub.f32 %v48, %v102
  %v117 = vsub.f32 %v49, %v102
  %v118 = vsub.f32 %v50, %v102
  %v119 = vsub.f32 %v51, %v102
  %v120 = vsub.f32 %v52, %v102
  %v121 = vsub.f32 %v53, %v102
  %v122 = vsub.f32 %v54, %v102
  %v123 = vsub.f32 %v55, %v102
  %v124 = vsub.f32 %v56, %v102
  %v125 = vsub.f32 %v57, %v102
  %v126 = vsub.f32 %v58, %v102
  %v127 = vsub.f32 %v59, %v102
  %v128 = vsub.f32 %v60, %v102
  %v129 = vsub.f32 %v61, %v102
  %v130 = vsub.f32 %v62, %v102
  %v131 = vsub.f32 %v63, %v102
  %v132 = vsub.f32 %v64, %v102
  %v133 = vsub.f32 %v65, %v102
  %v134 = vsub.f32 %v66, %v102
  %v135 = vsub.f32 %v67, %v102
  %v136 = vsub.f32 %v68, %v102
  %v137 = vsub.f32 %v69, %v102
  %v138 = vsub.f32 %v70, %v102
  %v139 = vsub.f32 %v71, %v102
  %v140 = vsub.f32 %v72, %v102
  %v141 = vsub.f32 %v73, %v102
  %v142 = vsub.f32 %v74, %v102
  %v143 = vsub.f32 %v75, %v102
  %v144 = vsub.f32 %v76, %v102
  %v145 = vsub.f32 %v77, %v102
  %v146 = vsub.f32 %v78, %v102
  %v147 = vsub.f32 %v79, %v102
  %v148 = vsub.f32 %v80, %v102
  %v149 = vsub.f32 %v81, %v102
  %v150 = vsub.f32 %v82, %v102
  %v151 = vsub.f32 %v83, %v102
  %v152 = vsub.f32 %v84, %v102
  %v153 = vsub.f32 %v85, %v102
  %v154 = vsub.f32 %v86, %v102
  %v155 = vsub.f32 %v87, %v102
  %v156 = vsub.f32 %v88, %v102
  %v157 = vsub.f32 %v89, %v102
  %v158 = vsub.f32 %v90, %v102
  %v159 = vsub.f32 %v91, %v102
  %v160 = vsub.f32 %v92, %v102
  %v161 = vsub.f32 %v93, %v102
  %v162 = vsub.f32 %v94, %v102
  %v163 = vsub.f32 %v95, %v102
  %v164 = vsub.f32 %v96, %v102
  %v165 = vsub.f32 %v97, %v102
  %v166 = vsub.f32 %v98, %v102
  %v167 = vlaneseq
  %v168 = vshrl.u32 %v167, 7
  %v169 = vsub.s32 1, %v168
  %v170 = vrot.slane %v25, %v169
  %v171 = vmul.f32 %v103, %v170
  %v172 = vmul.f32 %v104, %v170
  %v173 = vmul.f32 %v105, %v170
  %v174 = vmul.f32 %v106, %v170
  %v175 = vmul.f32 %v107, %v170
  %v176 = vmul.f32 %v108, %v170
  %v177 = vmul.f32 %v109, %v170
  %v178 = vmul.f32 %v110, %v170
  %v179 = vmul.f32 %v111, %v170
  %v180 = vmul.f32 %v112, %v170
  %v181 = vmul.f32 %v113, %v170
  %v182 = vmul.f32 %v114, %v170
  %v183 = vmul.f32 %v115, %v170
  %v184 = vmul.f32 %v116, %v170
  %v185 = vmul.f32 %v117, %v170
  %v186 = vmul.f32 %v118, %v170
  %v187 = vmul.f32 %v119, %v170
  %v188 = vmul.f32 %v120, %v170
  %v189 = vmul.f32 %v121, %v170
  %v190 = vmul.f32 %v122, %v170
  %v191 = vmul.f32 %v123, %v170
  %v192 = vmul.f32 %v124, %v170
  %v193 = vmul.f32 %v125, %v170
  %v194 = vmul.f32 %v126, %v170
  %v195 = vmul.f32 %v127, %v170
  %v196 = vmul.f32 %v128, %v170
  %v197 = vmul.f32 %v129, %v170
  %v198 = vmul.f32 %v130, %v170
  %v199 = vmul.f32 %v131, %v170
  %v200 = vmul.f32 %v132, %v170
  %v201 = vmul.f32 %v133, %v170
  %v202 = vmul.f32 %v134, %v170
  %v203 = vmul.f32 %v135, %v170
  %v204 = vmul.f32 %v136, %v170
  %v205 = vmul.f32 %v137, %v170
  %v206 = vmul.f32 %v138, %v170
  %v207 = vmul.f32 %v139, %v170
  %v208 = vmul.f32 %v140, %v170
  %v209 = vmul.f32 %v141, %v170
  %v210 = vmul.f32 %v142, %v170
  %v211 = vmul.f32 %v143, %v170
  %v212 = vmul.f32 %v144, %v170
  %v213 = vmul.f32 %v145, %v170
  %v214 = vmul.f32 %v146, %v170
  %v215 = vmul.f32 %v147, %v170
  %v216 = vmul.f32 %v148, %v170
  %v217 = vmul.f32 %v149, %v170
  %v218 = vmul.f32 %v150, %v170
  %v219 = vmul.f32 %v151, %v170
  %v220 = vmul.f32 %v152, %v170
  %v221 = vmul.f32 %v153, %v170
  %v222 = vmul.f32 %v154, %v170
  %v223 = vmul.f32 %v155, %v170
  %v224 = vmul.f32 %v156, %v170
  %v225 = vmul.f32 %v157, %v170
  %v226 = vmul.f32 %v158, %v170
  %v227 = vmul.f32 %v159, %v170
  %v228 = vmul.f32 %v160, %v170
  %v229 = vmul.f32 %v161, %v170
  %v230 = vmul.f32 %v162, %v170
  %v231 = vmul.f32 %v163, %v170
  %v232 = vmul.f32 %v164, %v170
  %v233 = vmul.f32 %v165, %v170
  %v234 = vmul.f32 %v166, %v170
  %v235 = vld [vmem:[%s2] sm:$0xff]
  %v236 = vld [vmem:[%s2 + $0x8] sm:$0xff]
  %v237 = vld [vmem:[%s2 + $0x10] sm:$0xff]
  %v238 = vld [vmem:[%s2 + $0x18] sm:$0xff]
  %v239 = vld [vmem:[%s2 + $0x20] sm:$0xff]
  %v240 = vld [vmem:[%s2 + $0x28] sm:$0xff]
  %v241 = vld [vmem:[%s2 + $0x30] sm:$0xff]
  %v242 = vld [vmem:[%s2 + $0x38] sm:$0xff]
  %v243 = vld [vmem:[%s2 + $0x40] sm:$0xff]
  %v244 = vld [vmem:[%s2 + $0x48] sm:$0xff]
  %v245 = vld [vmem:[%s2 + $0x50] sm:$0xff]
  %v246 = vld [vmem:[%s2 + $0x58] sm:$0xff]
  %v247 = vld [vmem:[%s2 + $0x60] sm:$0xff]
  %v248 = vld [vmem:[%s2 + $0x68] sm:$0xff]
  %v249 = vld [vmem:[%s2 + $0x70] sm:$0xff]
  %v250 = vld [vmem:[%s2 + $0x78] sm:$0xff]
  %v251 = vld [vmem:[%s2 + $0x80] sm:$0xff]
  %v252 = vld [vmem:[%s2 + $0x88] sm:$0xff]
  %v253 = vld [vmem:[%s2 + $0x90] sm:$0xff]
  %v254 = vld [vmem:[%s2 + $0x98] sm:$0xff]
  %v255 = vld [vmem:[%s2 + $0xa0] sm:$0xff]
  %v256 = vld [vmem:[%s2 + $0xa8] sm:$0xff]
  %v257 = vld [vmem:[%s2 + $0xb0] sm:$0xff]
  %v258 = vld [vmem:[%s2 + $0xb8] sm:$0xff]
  %v259 = vld [vmem:[%s2 + $0xc0] sm:$0xff]
  %v260 = vld [vmem:[%s2 + $0xc8] sm:$0xff]
  %v261 = vld [vmem:[%s2 + $0xd0] sm:$0xff]
  %v262 = vld [vmem:[%s2 + $0xd8] sm:$0xff]
  %v263 = vld [vmem:[%s2 + $0xe0] sm:$0xff]
  %v264 = vld [vmem:[%s2 + $0xe8] sm:$0xff]
  %v265 = vld [vmem:[%s2 + $0xf0] sm:$0xff]
  %v266 = vld [vmem:[%s2 + $0xf8] sm:$0xff]
  %v267 = vld [vmem:[%s2 + $0x100] sm:$0xff]
  %v268 = vld [vmem:[%s2 + $0x108] sm:$0xff]
  %v269 = vld [vmem:[%s2 + $0x110] sm:$0xff]
  %v270 = vld [vmem:[%s2 + $0x118] sm:$0xff]
  %v271 = vld [vmem:[%s2 + $0x120] sm:$0xff]
  %v272 = vld [vmem:[%s2 + $0x128] sm:$0xff]
  %v273 = vld [vmem:[%s2 + $0x130] sm:$0xff]
  %v274 = vld [vmem:[%s2 + $0x138] sm:$0xff]
  %v275 = vld [vmem:[%s2 + $0x140] sm:$0xff]
  %v276 = vld [vmem:[%s2 + $0x148] sm:$0xff]
  %v277 = vld [vmem:[%s2 + $0x150] sm:$0xff]
  %v278 = vld [vmem:[%s2 + $0x158] sm:$0xff]
  %v279 = vld [vmem:[%s2 + $0x160] sm:$0xff]
  %v280 = vld [vmem:[%s2 + $0x168] sm:$0xff]
  %v281 = vld [vmem:[%s2 + $0x170] sm:$0xff]
  %v282 = vld [vmem:[%s2 + $0x178] sm:$0xff]
  %v283 = vld [vmem:[%s2 + $0x180] sm:$0xff]
  %v284 = vld [vmem:[%s2 + $0x188] sm:$0xff]
  %v285 = vld [vmem:[%s2 + $0x190] sm:$0xff]
  %v286 = vld [vmem:[%s2 + $0x198] sm:$0xff]
  %v287 = vld [vmem:[%s2 + $0x1a0] sm:$0xff]
  %v288 = vld [vmem:[%s2 + $0x1a8] sm:$0xff]
  %v289 = vld [vmem:[%s2 + $0x1b0] sm:$0xff]
  %v290 = vld [vmem:[%s2 + $0x1b8] sm:$0xff]
  %v291 = vld [vmem:[%s2 + $0x1c0] sm:$0xff]
  %v292 = vld [vmem:[%s2 + $0x1c8] sm:$0xff]
  %v293 = vld [vmem:[%s2 + $0x1d0] sm:$0xff]
  %v294 = vld [vmem:[%s2 + $0x1d8] sm:$0xff]
  %v295 = vld [vmem:[%s2 + $0x1e0] sm:$0xff]
  %v296 = vld [vmem:[%s2 + $0x1e8] sm:$0xff]
  %v297 = vld [vmem:[%s2 + $0x1f0] sm:$0xff]
  %v298 = vld [vmem:[%s2 + $0x1f8] sm:$0xff]
  %v299 = vlaneseq
  %v300 = vshrl.u32 %v299, 7
  %v301 = vsub.s32 0, %v300
  %v302 = vrot.slane %v27, %v301
  %v303 = vsub.f32 %v235, %v302
  %v304 = vsub.f32 %v236, %v302
  %v305 = vsub.f32 %v237, %v302
  %v306 = vsub.f32 %v238, %v302
  %v307 = vsub.f32 %v239, %v302
  %v308 = vsub.f32 %v240, %v302
  %v309 = vsub.f32 %v241, %v302
  %v310 = vsub.f32 %v242, %v302
  %v311 = vsub.f32 %v243, %v302
  %v312 = vsub.f32 %v244, %v302
  %v313 = vsub.f32 %v245, %v302
  %v314 = vsub.f32 %v246, %v302
  %v315 = vsub.f32 %v247, %v302
  %v316 = vsub.f32 %v248, %v302
  %v317 = vsub.f32 %v249, %v302
  %v318 = vsub.f32 %v250, %v302
  %v319 = vsub.f32 %v251, %v302
  %v320 = vsub.f32 %v252, %v302
  %v321 = vsub.f32 %v253, %v302
  %v322 = vsub.f32 %v254, %v302
  %v323 = vsub.f32 %v255, %v302
  %v324 = vsub.f32 %v256, %v302
  %v325 = vsub.f32 %v257, %v302
  %v326 = vsub.f32 %v258, %v302
  %v327 = vsub.f32 %v259, %v302
  %v328 = vsub.f32 %v260, %v302
  %v329 = vsub.f32 %v261, %v302
  %v330 = vsub.f32 %v262, %v302
  %v331 = vsub.f32 %v263, %v302
  %v332 = vsub.f32 %v264, %v302
  %v333 = vsub.f32 %v265, %v302
  %v334 = vsub.f32 %v266, %v302
  %v335 = vsub.f32 %v267, %v302
  %v336 = vsub.f32 %v268, %v302
  %v337 = vsub.f32 %v269, %v302
  %v338 = vsub.f32 %v270, %v302
  %v339 = vsub.f32 %v271, %v302
  %v340 = vsub.f32 %v272, %v302
  %v341 = vsub.f32 %v273, %v302
  %v342 = vsub.f32 %v274, %v302
  %v343 = vsub.f32 %v275, %v302
  %v344 = vsub.f32 %v276, %v302
  %v345 = vsub.f32 %v277, %v302
  %v346 = vsub.f32 %v278, %v302
  %v347 = vsub.f32 %v279, %v302
  %v348 = vsub.f32 %v280, %v302
  %v349 = vsub.f32 %v281, %v302
  %v350 = vsub.f32 %v282, %v302
  %v351 = vsub.f32 %v283, %v302
  %v352 = vsub.f32 %v284, %v302
  %v353 = vsub.f32 %v285, %v302
  %v354 = vsub.f32 %v286, %v302
  %v355 = vsub.f32 %v287, %v302
  %v356 = vsub.f32 %v288, %v302
  %v357 = vsub.f32 %v289, %v302
  %v358 = vsub.f32 %v290, %v302
  %v359 = vsub.f32 %v291, %v302
  %v360 = vsub.f32 %v292, %v302
  %v361 = vsub.f32 %v293, %v302
  %v362 = vsub.f32 %v294, %v302
  %v363 = vsub.f32 %v295, %v302
  %v364 = vsub.f32 %v296, %v302
  %v365 = vsub.f32 %v297, %v302
  %v366 = vsub.f32 %v298, %v302
  %v367 = vlaneseq
  %v368 = vshrl.u32 %v367, 7
  %v369 = vsub.s32 1, %v368
  %v370 = vrot.slane %v34, %v369
  %v371 = vmul.f32 %v303, %v370
  %v372 = vmul.f32 %v304, %v370
  %v373 = vmul.f32 %v305, %v370
  %v374 = vmul.f32 %v306, %v370
  %v375 = vmul.f32 %v307, %v370
  %v376 = vmul.f32 %v308, %v370
  %v377 = vmul.f32 %v309, %v370
  %v378 = vmul.f32 %v310, %v370
  %v379 = vmul.f32 %v311, %v370
  %v380 = vmul.f32 %v312, %v370
  %v381 = vmul.f32 %v313, %v370
  %v382 = vmul.f32 %v314, %v370
  %v383 = vmul.f32 %v315, %v370
  %v384 = vmul.f32 %v316, %v370
  %v385 = vmul.f32 %v317, %v370
  %v386 = vmul.f32 %v318, %v370
  %v387 = vmul.f32 %v319, %v370
  %v388 = vmul.f32 %v320, %v370
  %v389 = vmul.f32 %v321, %v370
  %v390 = vmul.f32 %v322, %v370
  %v391 = vmul.f32 %v323, %v370
  %v392 = vmul.f32 %v324, %v370
  %v393 = vmul.f32 %v325, %v370
  %v394 = vmul.f32 %v326, %v370
  %v395 = vmul.f32 %v327, %v370
  %v396 = vmul.f32 %v328, %v370
  %v397 = vmul.f32 %v329, %v370
  %v398 = vmul.f32 %v330, %v370
  %v399 = vmul.f32 %v331, %v370
  %v400 = vmul.f32 %v332, %v370
  %v401 = vmul.f32 %v333, %v370
  %v402 = vmul.f32 %v334, %v370
  %v403 = vmul.f32 %v335, %v370
  %v404 = vmul.f32 %v336, %v370
  %v405 = vmul.f32 %v337, %v370
  %v406 = vmul.f32 %v338, %v370
  %v407 = vmul.f32 %v339, %v370
  %v408 = vmul.f32 %v340, %v370
  %v409 = vmul.f32 %v341, %v370
  %v410 = vmul.f32 %v342, %v370
  %v411 = vmul.f32 %v343, %v370
  %v412 = vmul.f32 %v344, %v370
  %v413 = vmul.f32 %v345, %v370
  %v414 = vmul.f32 %v346, %v370
  %v415 = vmul.f32 %v347, %v370
  %v416 = vmul.f32 %v348, %v370
  %v417 = vmul.f32 %v349, %v370
  %v418 = vmul.f32 %v350, %v370
  %v419 = vmul.f32 %v351, %v370
  %v420 = vmul.f32 %v352, %v370
  %v421 = vmul.f32 %v353, %v370
  %v422 = vmul.f32 %v354, %v370
  %v423 = vmul.f32 %v355, %v370
  %v424 = vmul.f32 %v356, %v370
  %v425 = vmul.f32 %v357, %v370
  %v426 = vmul.f32 %v358, %v370
  %v427 = vmul.f32 %v359, %v370
  %v428 = vmul.f32 %v360, %v370
  %v429 = vmul.f32 %v361, %v370
  %v430 = vmul.f32 %v362, %v370
  %v431 = vmul.f32 %v363, %v370
  %v432 = vmul.f32 %v364, %v370
  %v433 = vmul.f32 %v365, %v370
  %v434 = vmul.f32 %v366, %v370
  %v435 = vadd.f32 %v171, %v371
  %v436 = vadd.f32 %v172, %v372
  %v437 = vadd.f32 %v173, %v373
  %v438 = vadd.f32 %v174, %v374
  %v439 = vadd.f32 %v175, %v375
  %v440 = vadd.f32 %v176, %v376
  %v441 = vadd.f32 %v177, %v377
  %v442 = vadd.f32 %v178, %v378
  %v443 = vadd.f32 %v179, %v379
  %v444 = vadd.f32 %v180, %v380
  %v445 = vadd.f32 %v181, %v381
  %v446 = vadd.f32 %v182, %v382
  %v447 = vadd.f32 %v183, %v383
  %v448 = vadd.f32 %v184, %v384
  %v449 = vadd.f32 %v185, %v385
  %v450 = vadd.f32 %v186, %v386
  %v451 = vadd.f32 %v187, %v387
  %v452 = vadd.f32 %v188, %v388
  %v453 = vadd.f32 %v189, %v389
  %v454 = vadd.f32 %v190, %v390
  %v455 = vadd.f32 %v191, %v391
  %v456 = vadd.f32 %v192, %v392
  %v457 = vadd.f32 %v193, %v393
  %v458 = vadd.f32 %v194, %v394
  %v459 = vadd.f32 %v195, %v395
  %v460 = vadd.f32 %v196, %v396
  %v461 = vadd.f32 %v197, %v397
  %v462 = vadd.f32 %v198, %v398
  %v463 = vadd.f32 %v199, %v399
  %v464 = vadd.f32 %v200, %v400
  %v465 = vadd.f32 %v201, %v401
  %v466 = vadd.f32 %v202, %v402
  %v467 = vadd.f32 %v203, %v403
  %v468 = vadd.f32 %v204, %v404
  %v469 = vadd.f32 %v205, %v405
  %v470 = vadd.f32 %v206, %v406
  %v471 = vadd.f32 %v207, %v407
  %v472 = vadd.f32 %v208, %v408
  %v473 = vadd.f32 %v209, %v409
  %v474 = vadd.f32 %v210, %v410
  %v475 = vadd.f32 %v211, %v411
  %v476 = vadd.f32 %v212, %v412
  %v477 = vadd.f32 %v213, %v413
  %v478 = vadd.f32 %v214, %v414
  %v479 = vadd.f32 %v215, %v415
  %v480 = vadd.f32 %v216, %v416
  %v481 = vadd.f32 %v217, %v417
  %v482 = vadd.f32 %v218, %v418
  %v483 = vadd.f32 %v219, %v419
  %v484 = vadd.f32 %v220, %v420
  %v485 = vadd.f32 %v221, %v421
  %v486 = vadd.f32 %v222, %v422
  %v487 = vadd.f32 %v223, %v423
  %v488 = vadd.f32 %v224, %v424
  %v489 = vadd.f32 %v225, %v425
  %v490 = vadd.f32 %v226, %v426
  %v491 = vadd.f32 %v227, %v427
  %v492 = vadd.f32 %v228, %v428
  %v493 = vadd.f32 %v229, %v429
  %v494 = vadd.f32 %v230, %v430
  %v495 = vadd.f32 %v231, %v431
  %v496 = vadd.f32 %v232, %v432
  %v497 = vadd.f32 %v233, %v433
  %v498 = vadd.f32 %v234, %v434
  %v499 = vmax.f32 %v435, 0.0
  %v500 = vmax.f32 %v436, 0.0
  %v501 = vmax.f32 %v437, 0.0
  %v502 = vmax.f32 %v438, 0.0
  %v503 = vmax.f32 %v439, 0.0
  %v504 = vmax.f32 %v440, 0.0
  %v505 = vmax.f32 %v441, 0.0
  %v506 = vmax.f32 %v442, 0.0
  %v507 = vmax.f32 %v443, 0.0
  %v508 = vmax.f32 %v444, 0.0
  %v509 = vmax.f32 %v445, 0.0
  %v510 = vmax.f32 %v446, 0.0
  %v511 = vmax.f32 %v447, 0.0
  %v512 = vmax.f32 %v448, 0.0
  %v513 = vmax.f32 %v449, 0.0
  %v514 = vmax.f32 %v450, 0.0
  %v515 = vmax.f32 %v451, 0.0
  %v516 = vmax.f32 %v452, 0.0
  %v517 = vmax.f32 %v453, 0.0
  %v518 = vmax.f32 %v454, 0.0
  %v519 = vmax.f32 %v455, 0.0
  %v520 = vmax.f32 %v456, 0.0
  %v521 = vmax.f32 %v457, 0.0
  %v522 = vmax.f32 %v458, 0.0
  %v523 = vmax.f32 %v459, 0.0
  %v524 = vmax.f32 %v460, 0.0
  %v525 = vmax.f32 %v461, 0.0
  %v526 = vmax.f32 %v462, 0.0
  %v527 = vmax.f32 %v463, 0.0
  %v528 = vmax.f32 %v464, 0.0
  %v529 = vmax.f32 %v465, 0.0
  %v530 = vmax.f32 %v466, 0.0
  %v531 = vmax.f32 %v467, 0.0
  %v532 = vmax.f32 %v468, 0.0
  %v533 = vmax.f32 %v469, 0.0
  %v534 = vmax.f32 %v470, 0.0
  %v535 = vmax.f32 %v471, 0.0
  %v536 = vmax.f32 %v472, 0.0
  %v537 = vmax.f32 %v473, 0.0
  %v538 = vmax.f32 %v474, 0.0
  %v539 = vmax.f32 %v475, 0.0
  %v540 = vmax.f32 %v476, 0.0
  %v541 = vmax.f32 %v477, 0.0
  %v542 = vmax.f32 %v478, 0.0
  %v543 = vmax.f32 %v479, 0.0
  %v544 = vmax.f32 %v480, 0.0
  %v545 = vmax.f32 %v481, 0.0
  %v546 = vmax.f32 %v482, 0.0
  %v547 = vmax.f32 %v483, 0.0
  %v548 = vmax.f32 %v484, 0.0
  %v549 = vmax.f32 %v485, 0.0
  %v550 = vmax.f32 %v486, 0.0
  %v551 = vmax.f32 %v487, 0.0
  %v552 = vmax.f32 %v488, 0.0
  %v553 = vmax.f32 %v489, 0.0
  %v554 = vmax.f32 %v490, 0.0
  %v555 = vmax.f32 %v491, 0.0
  %v556 = vmax.f32 %v492, 0.0
  %v557 = vmax.f32 %v493, 0.0
  %v558 = vmax.f32 %v494, 0.0
  %v559 = vmax.f32 %v495, 0.0
  %v560 = vmax.f32 %v496, 0.0
  %v561 = vmax.f32 %v497, 0.0
  %v562 = vmax.f32 %v498, 0.0
  %vm563 = vcmask 64512
  %564 = vst.msk [vmem:[%s4] sm:$0xff] %vm563, %v499
  %565 = vst.msk [vmem:[%s4 + $0x8] sm:$0xff] %vm563, %v500
  %566 = vst.msk [vmem:[%s4 + $0x10] sm:$0xff] %vm563, %v501
  %567 = vst.msk [vmem:[%s4 + $0x18] sm:$0xff] %vm563, %v502
  %568 = vst.msk [vmem:[%s4 + $0x20] sm:$0xff] %vm563, %v503
  %569 = vst.msk [vmem:[%s4 + $0x28] sm:$0xff] %vm563, %v504
  %570 = vst.msk [vmem:[%s4 + $0x30] sm:$0xff] %vm563, %v505
  %571 = vst.msk [vmem:[%s4 + $0x38] sm:$0xff] %vm563, %v506
  %572 = vst.msk [vmem:[%s4 + $0x40] sm:$0xff] %vm563, %v507
  %573 = vst.msk [vmem:[%s4 + $0x48] sm:$0xff] %vm563, %v508
  %574 = vst.msk [vmem:[%s4 + $0x50] sm:$0xff] %vm563, %v509
  %575 = vst.msk [vmem:[%s4 + $0x58] sm:$0xff] %vm563, %v510
  %576 = vst.msk [vmem:[%s4 + $0x60] sm:$0xff] %vm563, %v511
  %577 = vst.msk [vmem:[%s4 + $0x68] sm:$0xff] %vm563, %v512
  %578 = vst.msk [vmem:[%s4 + $0x70] sm:$0xff] %vm563, %v513
  %579 = vst.msk [vmem:[%s4 + $0x78] sm:$0xff] %vm563, %v514
  %580 = vst.msk [vmem:[%s4 + $0x80] sm:$0xff] %vm563, %v515
  %581 = vst.msk [vmem:[%s4 + $0x88] sm:$0xff] %vm563, %v516
  %582 = vst.msk [vmem:[%s4 + $0x90] sm:$0xff] %vm563, %v517
  %583 = vst.msk [vmem:[%s4 + $0x98] sm:$0xff] %vm563, %v518
  %584 = vst.msk [vmem:[%s4 + $0xa0] sm:$0xff] %vm563, %v519
  %585 = vst.msk [vmem:[%s4 + $0xa8] sm:$0xff] %vm563, %v520
  %586 = vst.msk [vmem:[%s4 + $0xb0] sm:$0xff] %vm563, %v521
  %587 = vst.msk [vmem:[%s4 + $0xb8] sm:$0xff] %vm563, %v522
  %588 = vst.msk [vmem:[%s4 + $0xc0] sm:$0xff] %vm563, %v523
  %589 = vst.msk [vmem:[%s4 + $0xc8] sm:$0xff] %vm563, %v524
  %590 = vst.msk [vmem:[%s4 + $0xd0] sm:$0xff] %vm563, %v525
  %591 = vst.msk [vmem:[%s4 + $0xd8] sm:$0xff] %vm563, %v526
  %592 = vst.msk [vmem:[%s4 + $0xe0] sm:$0xff] %vm563, %v527
  %593 = vst.msk [vmem:[%s4 + $0xe8] sm:$0xff] %vm563, %v528
  %594 = vst.msk [vmem:[%s4 + $0xf0] sm:$0xff] %vm563, %v529
  %595 = vst.msk [vmem:[%s4 + $0xf8] sm:$0xff] %vm563, %v530
  %596 = vst.msk [vmem:[%s4 + $0x100] sm:$0xff] %vm563, %v531
  %597 = vst.msk [vmem:[%s4 + $0x108] sm:$0xff] %vm563, %v532
  %598 = vst.msk [vmem:[%s4 + $0x110] sm:$0xff] %vm563, %v533
  %599 = vst.msk [vmem:[%s4 + $0x118] sm:$0xff] %vm563, %v534
  %600 = vst.msk [vmem:[%s4 + $0x120] sm:$0xff] %vm563, %v535
  %601 = vst.msk [vmem:[%s4 + $0x128] sm:$0xff] %vm563, %v536
  %602 = vst.msk [vmem:[%s4 + $0x130] sm:$0xff] %vm563, %v537
  %603 = vst.msk [vmem:[%s4 + $0x138] sm:$0xff] %vm563, %v538
  %604 = vst.msk [vmem:[%s4 + $0x140] sm:$0xff] %vm563, %v539
  %605 = vst.msk [vmem:[%s4 + $0x148] sm:$0xff] %vm563, %v540
  %606 = vst.msk [vmem:[%s4 + $0x150] sm:$0xff] %vm563, %v541
  %607 = vst.msk [vmem:[%s4 + $0x158] sm:$0xff] %vm563, %v542
  %608 = vst.msk [vmem:[%s4 + $0x160] sm:$0xff] %vm563, %v543
  %609 = vst.msk [vmem:[%s4 + $0x168] sm:$0xff] %vm563, %v544
  %610 = vst.msk [vmem:[%s4 + $0x170] sm:$0xff] %vm563, %v545
  %611 = vst.msk [vmem:[%s4 + $0x178] sm:$0xff] %vm563, %v546
  %612 = vst.msk [vmem:[%s4 + $0x180] sm:$0xff] %vm563, %v547
  %613 = vst.msk [vmem:[%s4 + $0x188] sm:$0xff] %vm563, %v548
  %614 = vst.msk [vmem:[%s4 + $0x190] sm:$0xff] %vm563, %v549
  %615 = vst.msk [vmem:[%s4 + $0x198] sm:$0xff] %vm563, %v550
  %616 = vst.msk [vmem:[%s4 + $0x1a0] sm:$0xff] %vm563, %v551
  %617 = vst.msk [vmem:[%s4 + $0x1a8] sm:$0xff] %vm563, %v552
  %618 = vst.msk [vmem:[%s4 + $0x1b0] sm:$0xff] %vm563, %v553
  %619 = vst.msk [vmem:[%s4 + $0x1b8] sm:$0xff] %vm563, %v554
  %620 = vst.msk [vmem:[%s4 + $0x1c0] sm:$0xff] %vm563, %v555
  %621 = vst.msk [vmem:[%s4 + $0x1c8] sm:$0xff] %vm563, %v556
  %622 = vst.msk [vmem:[%s4 + $0x1d0] sm:$0xff] %vm563, %v557
  %623 = vst.msk [vmem:[%s4 + $0x1d8] sm:$0xff] %vm563, %v558
  %624 = vst.msk [vmem:[%s4 + $0x1e0] sm:$0xff] %vm563, %v559
  %625 = vst.msk [vmem:[%s4 + $0x1e8] sm:$0xff] %vm563, %v560
  %626 = vst.msk [vmem:[%s4 + $0x1f0] sm:$0xff] %vm563, %v561
  %627 = vst.msk [vmem:[%s4 + $0x1f8] sm:$0xff] %vm563, %v562
  // Predicated region
  $region18: #{ema_up_decoder_forward.17} parent=0 // pred_check
    _
  $region19: #{ema_up_decoder_forward.17} parent=0 // pred_check_branch
    %629 = sbr.rel (0) target = $region21
  $region20: #{ema_up_decoder_forward.17} parent=0 // pred_region
    _
  $region21: #{ema_up_decoder_forward.17} parent=0 // pred_fallthru
    _
  // Predicated region
  $region22: #{ema_up_decoder_forward.17} parent=0 // pred_check
    _
  $region23: #{ema_up_decoder_forward.17} parent=0 // pred_check_branch
    %631 = sbr.rel (0) target = $region25
  $region24: #{ema_up_decoder_forward.17} parent=0 // pred_region
    _
  $region25: #{ema_up_decoder_forward.17} parent=0 // pred_fallthru
    _

// kernel: ema_up_decoder_forward.19
$region0: #{ema_up_decoder_forward.19}
  #allocation0 [shape = 'u32[]', space=smem, size = 0x4, offset = 0x4, fixed_abs, tag = 'smem constant byte address 0x4 - core index']
  #allocation1 [shape = 'u32[144,128]{1,0:T(1,128)}', space=vmem, size = 0x12000, scoped, tag = 'internal scratch']
  %s0 = inlined_call_operand.vmem [shape: f32[512,8], index: 0, kind: input, shape index: {}]
  %s1 = inlined_call_operand.vmem [shape: f32[2,8], index: 1, kind: input, shape index: {}]
  %s2 = inlined_call_operand.vmem [shape: f32[8,128], index: 2, kind: input, shape index: {}]
  %s3 = inlined_call_operand.vmem [shape: f32[1,128], index: 3, kind: input, shape index: {}]
  %s4 = inlined_call_operand.vmem [shape: f32[512,128], index: 4, kind: output, shape index: {}]
  %s5 = sld [smem:[#allocation0]]
  $region26: #{ema_up_decoder_forward.19} parent=0
    _
  %s7 = ssub.s32 1, %s5
  %s8 = scalar_select 0, %s7, %s5
  // Predicated region
  $region2: #{ema_up_decoder_forward.19} parent=0 // pred_check
    _
  $region3: #{ema_up_decoder_forward.19} parent=0 // pred_check_branch
    %10 = sbr.rel (0) target = $region5
  $region4: #{ema_up_decoder_forward.19} parent=0 // pred_region
    _
  $region5: #{ema_up_decoder_forward.19} parent=0 // pred_fallthru
    _
  // Predicated region
  $region6: #{ema_up_decoder_forward.19} parent=0 // pred_check
    _
  $region7: #{ema_up_decoder_forward.19} parent=0 // pred_check_branch
    %12 = sbr.rel (0) target = $region9
  $region8: #{ema_up_decoder_forward.19} parent=0 // pred_region
    _
  $region9: #{ema_up_decoder_forward.19} parent=0 // pred_fallthru
    _
  // Predicated region
  $region10: #{ema_up_decoder_forward.19} parent=0 // pred_check
    _
  $region11: #{ema_up_decoder_forward.19} parent=0 // pred_check_branch
    %14 = sbr.rel (0) target = $region13
  $region12: #{ema_up_decoder_forward.19} parent=0 // pred_region
    _
  $region13: #{ema_up_decoder_forward.19} parent=0 // pred_fallthru
    _
  // Predicated region
  $region14: #{ema_up_decoder_forward.19} parent=0 // pred_check
    _
  $region15: #{ema_up_decoder_forward.19} parent=0 // pred_check_branch
    %16 = sbr.rel (0) target = $region17
  $region16: #{ema_up_decoder_forward.19} parent=0 // pred_region
    _
  $region17: #{ema_up_decoder_forward.19} parent=0 // pred_fallthru
    _
  %v17 = vld [vmem:[%s1] sm:$0x3]
  %v18 = vmul.f32 %v17, 0.001953125
  %v19 = vmul.f32 %v18, %v18
  %v21 = vrot.slane %v19, 7
  %v23 = vsub.f32 %v18, %v21
  %v24 = vadd.f32 %v23, 1e-05
  %v25 = vrsqrt.pop %v24
  %v26 = vld [vmem:[%s0] sm:$0xff]
  %v27 = vld [vmem:[%s0 + $0x8] sm:$0xff]
  %v28 = vld [vmem:[%s0 + $0x10] sm:$0xff]
  %v29 = vld [vmem:[%s0 + $0x18] sm:$0xff]
  %v30 = vld [vmem:[%s0 + $0x20] sm:$0xff]
  %v31 = vld [vmem:[%s0 + $0x28] sm:$0xff]
  %v32 = vld [vmem:[%s0 + $0x30] sm:$0xff]
  %v33 = vld [vmem:[%s0 + $0x38] sm:$0xff]
  %v34 = vld [vmem:[%s0 + $0x40] sm:$0xff]
  %v35 = vld [vmem:[%s0 + $0x48] sm:$0xff]
  %v36 = vld [vmem:[%s0 + $0x50] sm:$0xff]
  %v37 = vld [vmem:[%s0 + $0x58] sm:$0xff]
  %v38 = vld [vmem:[%s0 + $0x60] sm:$0xff]
  %v39 = vld [vmem:[%s0 + $0x68] sm:$0xff]
  %v40 = vld [vmem:[%s0 + $0x70] sm:$0xff]
  %v41 = vld [vmem:[%s0 + $0x78] sm:$0xff]
  %v42 = vld [vmem:[%s0 + $0x80] sm:$0xff]
  %v43 = vld [vmem:[%s0 + $0x88] sm:$0xff]
  %v44 = vld [vmem:[%s0 + $0x90] sm:$0xff]
  %v45 = vld [vmem:[%s0 + $0x98] sm:$0xff]
  %v46 = vld [vmem:[%s0 + $0xa0] sm:$0xff]
  %v47 = vld [vmem:[%s0 + $0xa8] sm:$0xff]
  %v48 = vld [vmem:[%s0 + $0xb0] sm:$0xff]
  %v49 = vld [vmem:[%s0 + $0xb8] sm:$0xff]
  %v50 = vld [vmem:[%s0 + $0xc0] sm:$0xff]
  %v51 = vld [vmem:[%s0 + $0xc8] sm:$0xff]
  %v52 = vld [vmem:[%s0 + $0xd0] sm:$0xff]
  %v53 = vld [vmem:[%s0 + $0xd8] sm:$0xff]
  %v54 = vld [vmem:[%s0 + $0xe0] sm:$0xff]
  %v55 = vld [vmem:[%s0 + $0xe8] sm:$0xff]
  %v56 = vld [vmem:[%s0 + $0xf0] sm:$0xff]
  %v57 = vld [vmem:[%s0 + $0xf8] sm:$0xff]
  %v58 = vld [vmem:[%s0 + $0x100] sm:$0xff]
  %v59 = vld [vmem:[%s0 + $0x108] sm:$0xff]
  %v60 = vld [vmem:[%s0 + $0x110] sm:$0xff]
  %v61 = vld [vmem:[%s0 + $0x118] sm:$0xff]
  %v62 = vld [vmem:[%s0 + $0x120] sm:$0xff]
  %v63 = vld [vmem:[%s0 + $0x128] sm:$0xff]
  %v64 = vld [vmem:[%s0 + $0x130] sm:$0xff]
  %v65 = vld [vmem:[%s0 + $0x138] sm:$0xff]
  %v66 = vld [vmem:[%s0 + $0x140] sm:$0xff]
  %v67 = vld [vmem:[%s0 + $0x148] sm:$0xff]
  %v68 = vld [vmem:[%s0 + $0x150] sm:$0xff]
  %v69 = vld [vmem:[%s0 + $0x158] sm:$0xff]
  %v70 = vld [vmem:[%s0 + $0x160] sm:$0xff]
  %v71 = vld [vmem:[%s0 + $0x168] sm:$0xff]
  %v72 = vld [vmem:[%s0 + $0x170] sm:$0xff]
  %v73 = vld [vmem:[%s0 + $0x178] sm:$0xff]
  %v74 = vld [vmem:[%s0 + $0x180] sm:$0xff]
  %v75 = vld [vmem:[%s0 + $0x188] sm:$0xff]
  %v76 = vld [vmem:[%s0 + $0x190] sm:$0xff]
  %v77 = vld [vmem:[%s0 + $0x198] sm:$0xff]
  %v78 = vld [vmem:[%s0 + $0x1a0] sm:$0xff]
  %v79 = vld [vmem:[%s0 + $0x1a8] sm:$0xff]
  %v80 = vld [vmem:[%s0 + $0x1b0] sm:$0xff]
  %v81 = vld [vmem:[%s0 + $0x1b8] sm:$0xff]
  %v82 = vld [vmem:[%s0 + $0x1c0] sm:$0xff]
  %v83 = vld [vmem:[%s0 + $0x1c8] sm:$0xff]
  %v84 = vld [vmem:[%s0 + $0x1d0] sm:$0xff]
  %v85 = vld [vmem:[%s0 + $0x1d8] sm:$0xff]
  %v86 = vld [vmem:[%s0 + $0x1e0] sm:$0xff]
  %v87 = vld [vmem:[%s0 + $0x1e8] sm:$0xff]
  %v88 = vld [vmem:[%s0 + $0x1f0] sm:$0xff]
  %v89 = vld [vmem:[%s0 + $0x1f8] sm:$0xff]
  %v90 = vlaneseq
  %v91 = vshrl.u32 %v90, 7
  %v92 = vsub.s32 0, %v91
  %v93 = vrot.slane %v18, %v92
  %v94 = vsub.f32 %v26, %v93
  %v95 = vsub.f32 %v27, %v93
  %v96 = vsub.f32 %v28, %v93
  %v97 = vsub.f32 %v29, %v93
  %v98 = vsub.f32 %v30, %v93
  %v99 = vsub.f32 %v31, %v93
  %v100 = vsub.f32 %v32, %v93
  %v101 = vsub.f32 %v33, %v93
  %v102 = vsub.f32 %v34, %v93
  %v103 = vsub.f32 %v35, %v93
  %v104 = vsub.f32 %v36, %v93
  %v105 = vsub.f32 %v37, %v93
  %v106 = vsub.f32 %v38, %v93
  %v107 = vsub.f32 %v39, %v93
  %v108 = vsub.f32 %v40, %v93
  %v109 = vsub.f32 %v41, %v93
  %v110 = vsub.f32 %v42, %v93
  %v111 = vsub.f32 %v43, %v93
  %v112 = vsub.f32 %v44, %v93
  %v113 = vsub.f32 %v45, %v93
  %v114 = vsub.f32 %v46, %v93
  %v115 = vsub.f32 %v47, %v93
  %v116 = vsub.f32 %v48, %v93
  %v117 = vsub.f32 %v49, %v93
  %v118 = vsub.f32 %v50, %v93
  %v119 = vsub.f32 %v51, %v93
  %v120 = vsub.f32 %v52, %v93
  %v121 = vsub.f32 %v53, %v93
  %v122 = vsub.f32 %v54, %v93
  %v123 = vsub.f32 %v55, %v93
  %v124 = vsub.f32 %v56, %v93
  %v125 = vsub.f32 %v57, %v93
  %v126 = vsub.f32 %v58, %v93
  %v127 = vsub.f32 %v59, %v93
  %v128 = vsub.f32 %v60, %v93
  %v129 = vsub.f32 %v61, %v93
  %v130 = vsub.f32 %v62, %v93
  %v131 = vsub.f32 %v63, %v93
  %v132 = vsub.f32 %v64, %v93
  %v133 = vsub.f32 %v65, %v93
  %v134 = vsub.f32 %v66, %v93
  %v135 = vsub.f32 %v67, %v93
  %v136 = vsub.f32 %v68, %v93
  %v137 = vsub.f32 %v69, %v93
  %v138 = vsub.f32 %v70, %v93
  %v139 = vsub.f32 %v71, %v93
  %v140 = vsub.f32 %v72, %v93
  %v141 = vsub.f32 %v73, %v93
  %v142 = vsub.f32 %v74, %v93
  %v143 = vsub.f32 %v75, %v93
  %v144 = vsub.f32 %v76, %v93
  %v145 = vsub.f32 %v77, %v93
  %v146 = vsub.f32 %v78, %v93
  %v147 = vsub.f32 %v79, %v93
  %v148 = vsub.f32 %v80, %v93
  %v149 = vsub.f32 %v81, %v93
  %v150 = vsub.f32 %v82, %v93
  %v151 = vsub.f32 %v83, %v93
  %v152 = vsub.f32 %v84, %v93
  %v153 = vsub.f32 %v85, %v93
  %v154 = vsub.f32 %v86, %v93
  %v155 = vsub.f32 %v87, %v93
  %v156 = vsub.f32 %v88, %v93
  %v157 = vsub.f32 %v89, %v93
  %v158 = vlaneseq
  %v159 = vshrl.u32 %v158, 7
  %v160 = vsub.s32 1, %v159
  %v161 = vrot.slane %v25, %v160
  %v162 = vmul.f32 %v94, %v161
  %v163 = vmul.f32 %v95, %v161
  %v164 = vmul.f32 %v96, %v161
  %v165 = vmul.f32 %v97, %v161
  %v166 = vmul.f32 %v98, %v161
  %v167 = vmul.f32 %v99, %v161
  %v168 = vmul.f32 %v100, %v161
  %v169 = vmul.f32 %v101, %v161
  %v170 = vmul.f32 %v102, %v161
  %v171 = vmul.f32 %v103, %v161
  %v172 = vmul.f32 %v104, %v161
  %v173 = vmul.f32 %v105, %v161
  %v174 = vmul.f32 %v106, %v161
  %v175 = vmul.f32 %v107, %v161
  %v176 = vmul.f32 %v108, %v161
  %v177 = vmul.f32 %v109, %v161
  %v178 = vmul.f32 %v110, %v161
  %v179 = vmul.f32 %v111, %v161
  %v180 = vmul.f32 %v112, %v161
  %v181 = vmul.f32 %v113, %v161
  %v182 = vmul.f32 %v114, %v161
  %v183 = vmul.f32 %v115, %v161
  %v184 = vmul.f32 %v116, %v161
  %v185 = vmul.f32 %v117, %v161
  %v186 = vmul.f32 %v118, %v161
  %v187 = vmul.f32 %v119, %v161
  %v188 = vmul.f32 %v120, %v161
  %v189 = vmul.f32 %v121, %v161
  %v190 = vmul.f32 %v122, %v161
  %v191 = vmul.f32 %v123, %v161
  %v192 = vmul.f32 %v124, %v161
  %v193 = vmul.f32 %v125, %v161
  %v194 = vmul.f32 %v126, %v161
  %v195 = vmul.f32 %v127, %v161
  %v196 = vmul.f32 %v128, %v161
  %v197 = vmul.f32 %v129, %v161
  %v198 = vmul.f32 %v130, %v161
  %v199 = vmul.f32 %v131, %v161
  %v200 = vmul.f32 %v132, %v161
  %v201 = vmul.f32 %v133, %v161
  %v202 = vmul.f32 %v134, %v161
  %v203 = vmul.f32 %v135, %v161
  %v204 = vmul.f32 %v136, %v161
  %v205 = vmul.f32 %v137, %v161
  %v206 = vmul.f32 %v138, %v161
  %v207 = vmul.f32 %v139, %v161
  %v208 = vmul.f32 %v140, %v161
  %v209 = vmul.f32 %v141, %v161
  %v210 = vmul.f32 %v142, %v161
  %v211 = vmul.f32 %v143, %v161
  %v212 = vmul.f32 %v144, %v161
  %v213 = vmul.f32 %v145, %v161
  %v214 = vmul.f32 %v146, %v161
  %v215 = vmul.f32 %v147, %v161
  %v216 = vmul.f32 %v148, %v161
  %v217 = vmul.f32 %v149, %v161
  %v218 = vmul.f32 %v150, %v161
  %v219 = vmul.f32 %v151, %v161
  %v220 = vmul.f32 %v152, %v161
  %v221 = vmul.f32 %v153, %v161
  %v222 = vmul.f32 %v154, %v161
  %v223 = vmul.f32 %v155, %v161
  %v224 = vmul.f32 %v156, %v161
  %v225 = vmul.f32 %v157, %v161
  %v226 = vmax.f32 %v162, 0.0
  %v227 = vmax.f32 %v163, 0.0
  %v228 = vmax.f32 %v164, 0.0
  %v229 = vmax.f32 %v165, 0.0
  %v230 = vmax.f32 %v166, 0.0
  %v231 = vmax.f32 %v167, 0.0
  %v232 = vmax.f32 %v168, 0.0
  %v233 = vmax.f32 %v169, 0.0
  %v234 = vmax.f32 %v170, 0.0
  %v235 = vmax.f32 %v171, 0.0
  %v236 = vmax.f32 %v172, 0.0
  %v237 = vmax.f32 %v173, 0.0
  %v238 = vmax.f32 %v174, 0.0
  %v239 = vmax.f32 %v175, 0.0
  %v240 = vmax.f32 %v176, 0.0
  %v241 = vmax.f32 %v177, 0.0
  %v242 = vmax.f32 %v178, 0.0
  %v243 = vmax.f32 %v179, 0.0
  %v244 = vmax.f32 %v180, 0.0
  %v245 = vmax.f32 %v181, 0.0
  %v246 = vmax.f32 %v182, 0.0
  %v247 = vmax.f32 %v183, 0.0
  %v248 = vmax.f32 %v184, 0.0
  %v249 = vmax.f32 %v185, 0.0
  %v250 = vmax.f32 %v186, 0.0
  %v251 = vmax.f32 %v187, 0.0
  %v252 = vmax.f32 %v188, 0.0
  %v253 = vmax.f32 %v189, 0.0
  %v254 = vmax.f32 %v190, 0.0
  %v255 = vmax.f32 %v191, 0.0
  %v256 = vmax.f32 %v192, 0.0
  %v257 = vmax.f32 %v193, 0.0
  %v258 = vmax.f32 %v194, 0.0
  %v259 = vmax.f32 %v195, 0.0
  %v260 = vmax.f32 %v196, 0.0
  %v261 = vmax.f32 %v197, 0.0
  %v262 = vmax.f32 %v198, 0.0
  %v263 = vmax.f32 %v199, 0.0
  %v264 = vmax.f32 %v200, 0.0
  %v265 = vmax.f32 %v201, 0.0
  %v266 = vmax.f32 %v202, 0.0
  %v267 = vmax.f32 %v203, 0.0
  %v268 = vmax.f32 %v204, 0.0
  %v269 = vmax.f32 %v205, 0.0
  %v270 = vmax.f32 %v206, 0.0
  %v271 = vmax.f32 %v207, 0.0
  %v272 = vmax.f32 %v208, 0.0
  %v273 = vmax.f32 %v209, 0.0
  %v274 = vmax.f32 %v210, 0.0
  %v275 = vmax.f32 %v211, 0.0
  %v276 = vmax.f32 %v212, 0.0
  %v277 = vmax.f32 %v213, 0.0
  %v278 = vmax.f32 %v214, 0.0
  %v279 = vmax.f32 %v215, 0.0
  %v280 = vmax.f32 %v216, 0.0
  %v281 = vmax.f32 %v217, 0.0
  %v282 = vmax.f32 %v218, 0.0
  %v283 = vmax.f32 %v219, 0.0
  %v284 = vmax.f32 %v220, 0.0
  %v285 = vmax.f32 %v221, 0.0
  %v286 = vmax.f32 %v222, 0.0
  %v287 = vmax.f32 %v223, 0.0
  %v288 = vmax.f32 %v224, 0.0
  %v289 = vmax.f32 %v225, 0.0
  %v290 = vld [vmem:[%s2] sm:$0xff]
  %v291 = vld [vmem:[%s3] sm:$0x1]
  %v293 = vlaneseq
  %v294 = vshrl.u32 %v293, 7
  %v295 = vsub.s32 0, %v294
  %v296 = vrot.slane %v291, %v295
  %vm298 = vcmask 64512
  %v300 = vsel %vm298, %v226, 0
  %v303 = vsel %vm298, %v227, 0
  %v306 = vsel %vm298, %v228, 0
  %v309 = vsel %vm298, %v229, 0
  %v312 = vsel %vm298, %v230, 0
  %v315 = vsel %vm298, %v231, 0
  %v318 = vsel %vm298, %v232, 0
  %v321 = vsel %vm298, %v233, 0
  %v324 = vsel %vm298, %v234, 0
  %v327 = vsel %vm298, %v235, 0
  %v330 = vsel %vm298, %v236, 0
  %v333 = vsel %vm298, %v237, 0
  %v336 = vsel %vm298, %v238, 0
  %v339 = vsel %vm298, %v239, 0
  %v342 = vsel %vm298, %v240, 0
  %v345 = vsel %vm298, %v241, 0
  %v348 = vsel %vm298, %v242, 0
  %v351 = vsel %vm298, %v243, 0
  %v354 = vsel %vm298, %v244, 0
  %v357 = vsel %vm298, %v245, 0
  %v360 = vsel %vm298, %v246, 0
  %v363 = vsel %vm298, %v247, 0
  %v366 = vsel %vm298, %v248, 0
  %v369 = vsel %vm298, %v249, 0
  %v372 = vsel %vm298, %v250, 0
  %v375 = vsel %vm298, %v251, 0
  %v378 = vsel %vm298, %v252, 0
  %v381 = vsel %vm298, %v253, 0
  %v384 = vsel %vm298, %v254, 0
  %v387 = vsel %vm298, %v255, 0
  %v390 = vsel %vm298, %v256, 0
  %v393 = vsel %vm298, %v257, 0
  %v396 = vsel %vm298, %v258, 0
  %v399 = vsel %vm298, %v259, 0
  %v402 = vsel %vm298, %v260, 0
  %v405 = vsel %vm298, %v261, 0
  %v408 = vsel %vm298, %v262, 0
  %v411 = vsel %vm298, %v263, 0
  %v414 = vsel %vm298, %v264, 0
  %v417 = vsel %vm298, %v265, 0
  %v420 = vsel %vm298, %v266, 0
  %v423 = vsel %vm298, %v267, 0
  %v426 = vsel %vm298, %v268, 0
  %v429 = vsel %vm298, %v269, 0
  %v432 = vsel %vm298, %v270, 0
  %v435 = vsel %vm298, %v271, 0
  %v438 = vsel %vm298, %v272, 0
  %v441 = vsel %vm298, %v273, 0
  %v444 = vsel %vm298, %v274, 0
  %v447 = vsel %vm298, %v275, 0
  %v450 = vsel %vm298, %v276, 0
  %v453 = vsel %vm298, %v277, 0
  %v456 = vsel %vm298, %v278, 0
  %v459 = vsel %vm298, %v279, 0
  %v462 = vsel %vm298, %v280, 0
  %v465 = vsel %vm298, %v281, 0
  %v468 = vsel %vm298, %v282, 0
  %v471 = vsel %vm298, %v283, 0
  %v474 = vsel %vm298, %v284, 0
  %v477 = vsel %vm298, %v285, 0
  %v480 = vsel %vm298, %v286, 0
  %v483 = vsel %vm298, %v287, 0
  %v486 = vsel %vm298, %v288, 0
  %v489 = vsel %vm298, %v289, 0
  %491 = vmatprep.subr.mxu0 0.0
  %492 = vmatpush1.msra.mxu0 0.0
  %493 = vmatprep.subr.mxu0 0.0
  %494 = vmatpush1.msra.mxu0 0.0
  %495 = vmatprep.subr.mxu0 0.0
  %496 = vmatpush1.msra.mxu0 0.0
  %497 = vmatprep.subr.mxu0 0.0
  %498 = vmatpush1.msra.mxu0 0.0
  %499 = vmatprep.subr.mxu0 0.0
  %500 = vmatpush1.msra.mxu0 0.0
  %501 = vmatprep.subr.mxu0 0.0
  %502 = vmatpush1.msra.mxu0 0.0
  %503 = vmatprep.subr.mxu0 0.0
  %504 = vmatpush1.msra.mxu0 0.0
  %505 = vmatprep.subr.mxu0 0.0
  %506 = vmatpush1.msra.mxu0 0.0
  %507 = vmatprep.subr.mxu0 0.0
  %508 = vmatpush1.msra.mxu0 0.0
  %509 = vmatprep.subr.mxu0 0.0
  %510 = vmatpush1.msra.mxu0 0.0
  %511 = vmatprep.subr.mxu0 0.0
  %512 = vmatpush1.msra.mxu0 0.0
  %513 = vmatprep.subr.mxu0 0.0
  %514 = vmatpush1.msra.mxu0 0.0
  %515 = vmatprep.subr.mxu0 0.0
  %516 = vmatpush1.msra.mxu0 0.0
  %517 = vmatprep.subr.mxu0 0.0
  %518 = vmatpush1.msra.mxu0 0.0
  %519 = vmatprep.subr.mxu0 0.0
  %520 = vmatpush1.msra.mxu0 0.0
  %521 = vmatprep.subr.mxu0 0.0
  %522 = vmatpush1.msra.mxu0 %v290
  %523 = vmatprep.subr.mxu0 0.0
  %524 = vmatpush2.msra.mxu0 0.0
  %525 = vmatprep.subr.mxu0 0.0
  %526 = vmatpush2.msra.mxu0 0.0
  %527 = vmatprep.subr.mxu0 0.0
  %528 = vmatpush2.msra.mxu0 0.0
  %529 = vmatprep.subr.mxu0 0.0
  %530 = vmatpush2.msra.mxu0 0.0
  %531 = vmatprep.subr.mxu0 0.0
  %532 = vmatpush2.msra.mxu0 0.0
  %533 = vmatprep.subr.mxu0 0.0
  %534 = vmatpush2.msra.mxu0 0.0
  %535 = vmatprep.subr.mxu0 0.0
  %536 = vmatpush2.msra.mxu0 0.0
  %537 = vmatprep.subr.mxu0 0.0
  %538 = vmatpush2.msra.mxu0 0.0
  %539 = vmatprep.subr.mxu0 0.0
  %540 = vmatpush2.msra.mxu0 0.0
  %541 = vmatprep.subr.mxu0 0.0
  %542 = vmatpush2.msra.mxu0 0.0
  %543 = vmatprep.subr.mxu0 0.0
  %544 = vmatpush2.msra.mxu0 0.0
  %545 = vmatprep.subr.mxu0 0.0
  %546 = vmatpush2.msra.mxu0 0.0
  %547 = vmatprep.subr.mxu0 0.0
  %548 = vmatpush2.msra.mxu0 0.0
  %549 = vmatprep.subr.mxu0 0.0
  %550 = vmatpush2.msra.mxu0 0.0
  %551 = vmatprep.subr.mxu0 0.0
  %552 = vmatpush2.msra.mxu0 0.0
  %553 = vmatprep.subr.mxu0 0.0
  %554 = vmatpush2.msra.mxu0 0.0
  %555 = vmatprep.mubr.f32.mxu0 0.0
  %556 = vmatmul.mubr.f32.gmra.mxu0 %v300
  %v557 = vpop.f32.mrf.mxu0
  %v558 = vadd.f32 %v296, %v557
  %v559 = vpop.f32.mrf.mxu0
  %560 = vmatprep.mubr.f32.mxu0 0.0
  %561 = vmatmul.mubr.f32.gmra.mxu0 %v303
  %v562 = vpop.f32.mrf.mxu0
  %v563 = vadd.f32 %v296, %v562
  %v564 = vpop.f32.mrf.mxu0
  %565 = vmatprep.mubr.f32.mxu0 0.0
  %566 = vmatmul.mubr.f32.gmra.mxu0 %v306
  %v567 = vpop.f32.mrf.mxu0
  %v568 = vadd.f32 %v296, %v567
  %v569 = vpop.f32.mrf.mxu0
  %570 = vmatprep.mubr.f32.mxu0 0.0
  %571 = vmatmul.mubr.f32.gmra.mxu0 %v309
  %v572 = vpop.f32.mrf.mxu0
  %v573 = vadd.f32 %v296, %v572
  %v574 = vpop.f32.mrf.mxu0
  %575 = vmatprep.mubr.f32.mxu0 0.0
  %576 = vmatmul.mubr.f32.gmra.mxu0 %v312
  %v577 = vpop.f32.mrf.mxu0
  %v578 = vadd.f32 %v296, %v577
  %v579 = vpop.f32.mrf.mxu0
  %580 = vmatprep.mubr.f32.mxu0 0.0
  %581 = vmatmul.mubr.f32.gmra.mxu0 %v315
  %v582 = vpop.f32.mrf.mxu0
  %v583 = vadd.f32 %v296, %v582
  %v584 = vpop.f32.mrf.mxu0
  %585 = vmatprep.mubr.f32.mxu0 0.0
  %586 = vmatmul.mubr.f32.gmra.mxu0 %v318
  %v587 = vpop.f32.mrf.mxu0
  %v588 = vadd.f32 %v296, %v587
  %v589 = vpop.f32.mrf.mxu0
  %590 = vmatprep.mubr.f32.mxu0 0.0
  %591 = vmatmul.mubr.f32.gmra.mxu0 %v321
  %v592 = vpop.f32.mrf.mxu0
  %v593 = vadd.f32 %v296, %v592
  %v594 = vpop.f32.mrf.mxu0
  %595 = vmatprep.mubr.f32.mxu0 0.0
  %596 = vmatmul.mubr.f32.gmra.mxu0 %v324
  %v597 = vpop.f32.mrf.mxu0
  %v598 = vadd.f32 %v296, %v597
  %v599 = vpop.f32.mrf.mxu0
  %600 = vmatprep.mubr.f32.mxu0 0.0
  %601 = vmatmul.mubr.f32.gmra.mxu0 %v327
  %v602 = vpop.f32.mrf.mxu0
  %v603 = vadd.f32 %v296, %v602
  %v604 = vpop.f32.mrf.mxu0
  %605 = vmatprep.mubr.f32.mxu0 0.0
  %606 = vmatmul.mubr.f32.gmra.mxu0 %v330
  %v607 = vpop.f32.mrf.mxu0
  %v608 = vadd.f32 %v296, %v607
  %v609 = vpop.f32.mrf.mxu0
  %610 = vmatprep.mubr.f32.mxu0 0.0
  %611 = vmatmul.mubr.f32.gmra.mxu0 %v333
  %v612 = vpop.f32.mrf.mxu0
  %v613 = vadd.f32 %v296, %v612
  %v614 = vpop.f32.mrf.mxu0
  %615 = vmatprep.mubr.f32.mxu0 0.0
  %616 = vmatmul.mubr.f32.gmra.mxu0 %v336
  %v617 = vpop.f32.mrf.mxu0
  %v618 = vadd.f32 %v296, %v617
  %v619 = vpop.f32.mrf.mxu0
  %620 = vmatprep.mubr.f32.mxu0 0.0
  %621 = vmatmul.mubr.f32.gmra.mxu0 %v339
  %v622 = vpop.f32.mrf.mxu0
  %v623 = vadd.f32 %v296, %v622
  %v624 = vpop.f32.mrf.mxu0
  %625 = vmatprep.mubr.f32.mxu0 0.0
  %626 = vmatmul.mubr.f32.gmra.mxu0 %v342
  %v627 = vpop.f32.mrf.mxu0
  %v628 = vadd.f32 %v296, %v627
  %v629 = vpop.f32.mrf.mxu0
  %630 = vmatprep.mubr.f32.mxu0 0.0
  %631 = vmatmul.mubr.f32.gmra.mxu0 %v345
  %v632 = vpop.f32.mrf.mxu0
  %v633 = vadd.f32 %v296, %v632
  %v634 = vpop.f32.mrf.mxu0
  %635 = vmatprep.mubr.f32.mxu0 0.0
  %636 = vmatmul.mubr.f32.gmra.mxu0 %v348
  %v637 = vpop.f32.mrf.mxu0
  %v638 = vadd.f32 %v296, %v637
  %v639 = vpop.f32.mrf.mxu0
  %640 = vmatprep.mubr.f32.mxu0 0.0
  %641 = vmatmul.mubr.f32.gmra.mxu0 %v351
  %v642 = vpop.f32.mrf.mxu0
  %v643 = vadd.f32 %v296, %v642
  %v644 = vpop.f32.mrf.mxu0
  %645 = vmatprep.mubr.f32.mxu0 0.0
  %646 = vmatmul.mubr.f32.gmra.mxu0 %v354
  %v647 = vpop.f32.mrf.mxu0
  %v648 = vadd.f32 %v296, %v647
  %v649 = vpop.f32.mrf.mxu0
  %650 = vmatprep.mubr.f32.mxu0 0.0
  %651 = vmatmul.mubr.f32.gmra.mxu0 %v357
  %v652 = vpop.f32.mrf.mxu0
  %v653 = vadd.f32 %v296, %v652
  %v654 = vpop.f32.mrf.mxu0
  %655 = vmatprep.mubr.f32.mxu0 0.0
  %656 = vmatmul.mubr.f32.gmra.mxu0 %v360
  %v657 = vpop.f32.mrf.mxu0
  %v658 = vadd.f32 %v296, %v657
  %v659 = vpop.f32.mrf.mxu0
  %660 = vmatprep.mubr.f32.mxu0 0.0
  %661 = vmatmul.mubr.f32.gmra.mxu0 %v363
  %v662 = vpop.f32.mrf.mxu0
  %v663 = vadd.f32 %v296, %v662
  %v664 = vpop.f32.mrf.mxu0
  %665 = vmatprep.mubr.f32.mxu0 0.0
  %666 = vmatmul.mubr.f32.gmra.mxu0 %v366
  %v667 = vpop.f32.mrf.mxu0
  %v668 = vadd.f32 %v296, %v667
  %v669 = vpop.f32.mrf.mxu0
  %670 = vmatprep.mubr.f32.mxu0 0.0
  %671 = vmatmul.mubr.f32.gmra.mxu0 %v369
  %v672 = vpop.f32.mrf.mxu0
  %v673 = vadd.f32 %v296, %v672
  %v674 = vpop.f32.mrf.mxu0
  %675 = vmatprep.mubr.f32.mxu0 0.0
  %676 = vmatmul.mubr.f32.gmra.mxu0 %v372
  %v677 = vpop.f32.mrf.mxu0
  %v678 = vadd.f32 %v296, %v677
  %v679 = vpop.f32.mrf.mxu0
  %680 = vmatprep.mubr.f32.mxu0 0.0
  %681 = vmatmul.mubr.f32.gmra.mxu0 %v375
  %v682 = vpop.f32.mrf.mxu0
  %v683 = vadd.f32 %v296, %v682
  %v684 = vpop.f32.mrf.mxu0
  %685 = vmatprep.mubr.f32.mxu0 0.0
  %686 = vmatmul.mubr.f32.gmra.mxu0 %v378
  %v687 = vpop.f32.mrf.mxu0
  %v688 = vadd.f32 %v296, %v687
  %v689 = vpop.f32.mrf.mxu0
  %690 = vmatprep.mubr.f32.mxu0 0.0
  %691 = vmatmul.mubr.f32.gmra.mxu0 %v381
  %v692 = vpop.f32.mrf.mxu0
  %v693 = vadd.f32 %v296, %v692
  %v694 = vpop.f32.mrf.mxu0
  %695 = vmatprep.mubr.f32.mxu0 0.0
  %696 = vmatmul.mubr.f32.gmra.mxu0 %v384
  %v697 = vpop.f32.mrf.mxu0
  %v698 = vadd.f32 %v296, %v697
  %v699 = vpop.f32.mrf.mxu0
  %700 = vmatprep.mubr.f32.mxu0 0.0
  %701 = vmatmul.mubr.f32.gmra.mxu0 %v387
  %v702 = vpop.f32.mrf.mxu0
  %v703 = vadd.f32 %v296, %v702
  %v704 = vpop.f32.mrf.mxu0
  %705 = vmatprep.mubr.f32.mxu0 0.0
  %706 = vmatmul.mubr.f32.gmra.mxu0 %v390
  %v707 = vpop.f32.mrf.mxu0
  %v708 = vadd.f32 %v296, %v707
  %v709 = vpop.f32.mrf.mxu0
  %710 = vmatprep.mubr.f32.mxu0 0.0
  %711 = vmatmul.mubr.f32.gmra.mxu0 %v393
  %v712 = vpop.f32.mrf.mxu0
  %v713 = vadd.f32 %v296, %v712
  %v714 = vpop.f32.mrf.mxu0
  %715 = vmatprep.mubr.f32.mxu0 0.0
  %716 = vmatmul.mubr.f32.gmra.mxu0 %v396
  %v717 = vpop.f32.mrf.mxu0
  %v718 = vadd.f32 %v296, %v717
  %v719 = vpop.f32.mrf.mxu0
  %720 = vmatprep.mubr.f32.mxu0 0.0
  %721 = vmatmul.mubr.f32.gmra.mxu0 %v399
  %v722 = vpop.f32.mrf.mxu0
  %v723 = vadd.f32 %v296, %v722
  %v724 = vpop.f32.mrf.mxu0
  %725 = vmatprep.mubr.f32.mxu0 0.0
  %726 = vmatmul.mubr.f32.gmra.mxu0 %v402
  %v727 = vpop.f32.mrf.mxu0
  %v728 = vadd.f32 %v296, %v727
  %v729 = vpop.f32.mrf.mxu0
  %730 = vmatprep.mubr.f32.mxu0 0.0
  %731 = vmatmul.mubr.f32.gmra.mxu0 %v405
  %v732 = vpop.f32.mrf.mxu0
  %v733 = vadd.f32 %v296, %v732
  %v734 = vpop.f32.mrf.mxu0
  %735 = vmatprep.mubr.f32.mxu0 0.0
  %736 = vmatmul.mubr.f32.gmra.mxu0 %v408
  %v737 = vpop.f32.mrf.mxu0
  %v738 = vadd.f32 %v296, %v737
  %v739 = vpop.f32.mrf.mxu0
  %740 = vmatprep.mubr.f32.mxu0 0.0
  %741 = vmatmul.mubr.f32.gmra.mxu0 %v411
  %v742 = vpop.f32.mrf.mxu0
  %v743 = vadd.f32 %v296, %v742
  %v744 = vpop.f32.mrf.mxu0
  %745 = vmatprep.mubr.f32.mxu0 0.0
  %746 = vmatmul.mubr.f32.gmra.mxu0 %v414
  %v747 = vpop.f32.mrf.mxu0
  %v748 = vadd.f32 %v296, %v747
  %v749 = vpop.f32.mrf.mxu0
  %750 = vmatprep.mubr.f32.mxu0 0.0
  %751 = vmatmul.mubr.f32.gmra.mxu0 %v417
  %v752 = vpop.f32.mrf.mxu0
  %v753 = vadd.f32 %v296, %v752
  %v754 = vpop.f32.mrf.mxu0
  %755 = vmatprep.mubr.f32.mxu0 0.0
  %756 = vmatmul.mubr.f32.gmra.mxu0 %v420
  %v757 = vpop.f32.mrf.mxu0
  %v758 = vadd.f32 %v296, %v757
  %v759 = vpop.f32.mrf.mxu0
  %760 = vmatprep.mubr.f32.mxu0 0.0
  %761 = vmatmul.mubr.f32.gmra.mxu0 %v423
  %v762 = vpop.f32.mrf.mxu0
  %v763 = vadd.f32 %v296, %v762
  %v764 = vpop.f32.mrf.mxu0
  %765 = vmatprep.mubr.f32.mxu0 0.0
  %766 = vmatmul.mubr.f32.gmra.mxu0 %v426
  %v767 = vpop.f32.mrf.mxu0
  %v768 = vadd.f32 %v296, %v767
  %v769 = vpop.f32.mrf.mxu0
  %770 = vmatprep.mubr.f32.mxu0 0.0
  %771 = vmatmul.mubr.f32.gmra.mxu0 %v429
  %v772 = vpop.f32.mrf.mxu0
  %v773 = vadd.f32 %v296, %v772
  %v774 = vpop.f32.mrf.mxu0
  %775 = vmatprep.mubr.f32.mxu0 0.0
  %776 = vmatmul.mubr.f32.gmra.mxu0 %v432
  %v777 = vpop.f32.mrf.mxu0
  %v778 = vadd.f32 %v296, %v777
  %v779 = vpop.f32.mrf.mxu0
  %780 = vmatprep.mubr.f32.mxu0 0.0
  %781 = vmatmul.mubr.f32.gmra.mxu0 %v435
  %v782 = vpop.f32.mrf.mxu0
  %v783 = vadd.f32 %v296, %v782
  %v784 = vpop.f32.mrf.mxu0
  %785 = vmatprep.mubr.f32.mxu0 0.0
  %786 = vmatmul.mubr.f32.gmra.mxu0 %v438
  %v787 = vpop.f32.mrf.mxu0
  %v788 = vadd.f32 %v296, %v787
  %v789 = vpop.f32.mrf.mxu0
  %790 = vmatprep.mubr.f32.mxu0 0.0
  %791 = vmatmul.mubr.f32.gmra.mxu0 %v441
  %v792 = vpop.f32.mrf.mxu0
  %v793 = vadd.f32 %v296, %v792
  %v794 = vpop.f32.mrf.mxu0
  %795 = vmatprep.mubr.f32.mxu0 0.0
  %796 = vmatmul.mubr.f32.gmra.mxu0 %v444
  %v797 = vpop.f32.mrf.mxu0
  %v798 = vadd.f32 %v296, %v797
  %v799 = vpop.f32.mrf.mxu0
  %800 = vmatprep.mubr.f32.mxu0 0.0
  %801 = vmatmul.mubr.f32.gmra.mxu0 %v447
  %v802 = vpop.f32.mrf.mxu0
  %v803 = vadd.f32 %v296, %v802
  %v804 = vpop.f32.mrf.mxu0
  %805 = vmatprep.mubr.f32.mxu0 0.0
  %806 = vmatmul.mubr.f32.gmra.mxu0 %v450
  %v807 = vpop.f32.mrf.mxu0
  %v808 = vadd.f32 %v296, %v807
  %v809 = vpop.f32.mrf.mxu0
  %810 = vmatprep.mubr.f32.mxu0 0.0
  %811 = vmatmul.mubr.f32.gmra.mxu0 %v453
  %v812 = vpop.f32.mrf.mxu0
  %v813 = vadd.f32 %v296, %v812
  %v814 = vpop.f32.mrf.mxu0
  %815 = vmatprep.mubr.f32.mxu0 0.0
  %816 = vmatmul.mubr.f32.gmra.mxu0 %v456
  %v817 = vpop.f32.mrf.mxu0
  %v818 = vadd.f32 %v296, %v817
  %v819 = vpop.f32.mrf.mxu0
  %820 = vmatprep.mubr.f32.mxu0 0.0
  %821 = vmatmul.mubr.f32.gmra.mxu0 %v459
  %v822 = vpop.f32.mrf.mxu0
  %v823 = vadd.f32 %v296, %v822
  %v824 = vpop.f32.mrf.mxu0
  %825 = vmatprep.mubr.f32.mxu0 0.0
  %826 = vmatmul.mubr.f32.gmra.mxu0 %v462
  %v827 = vpop.f32.mrf.mxu0
  %v828 = vadd.f32 %v296, %v827
  %v829 = vpop.f32.mrf.mxu0
  %830 = vmatprep.mubr.f32.mxu0 0.0
  %831 = vmatmul.mubr.f32.gmra.mxu0 %v465
  %v832 = vpop.f32.mrf.mxu0
  %v833 = vadd.f32 %v296, %v832
  %v834 = vpop.f32.mrf.mxu0
  %835 = vmatprep.mubr.f32.mxu0 0.0
  %836 = vmatmul.mubr.f32.gmra.mxu0 %v468
  %v837 = vpop.f32.mrf.mxu0
  %v838 = vadd.f32 %v296, %v837
  %v839 = vpop.f32.mrf.mxu0
  %840 = vmatprep.mubr.f32.mxu0 0.0
  %841 = vmatmul.mubr.f32.gmra.mxu0 %v471
  %v842 = vpop.f32.mrf.mxu0
  %v843 = vadd.f32 %v296, %v842
  %v844 = vpop.f32.mrf.mxu0
  %845 = vmatprep.mubr.f32.mxu0 0.0
  %846 = vmatmul.mubr.f32.gmra.mxu0 %v474
  %v847 = vpop.f32.mrf.mxu0
  %v848 = vadd.f32 %v296, %v847
  %v849 = vpop.f32.mrf.mxu0
  %850 = vmatprep.mubr.f32.mxu0 0.0
  %851 = vmatmul.mubr.f32.gmra.mxu0 %v477
  %v852 = vpop.f32.mrf.mxu0
  %v853 = vadd.f32 %v296, %v852
  %v854 = vpop.f32.mrf.mxu0
  %855 = vmatprep.mubr.f32.mxu0 0.0
  %856 = vmatmul.mubr.f32.gmra.mxu0 %v480
  %v857 = vpop.f32.mrf.mxu0
  %v858 = vadd.f32 %v296, %v857
  %v859 = vpop.f32.mrf.mxu0
  %860 = vmatprep.mubr.f32.mxu0 0.0
  %861 = vmatmul.mubr.f32.gmra.mxu0 %v483
  %v862 = vpop.f32.mrf.mxu0
  %v863 = vadd.f32 %v296, %v862
  %v864 = vpop.f32.mrf.mxu0
  %865 = vmatprep.mubr.f32.mxu0 0.0
  %866 = vmatmul.mubr.f32.gmra.mxu0 %v486
  %v867 = vpop.f32.mrf.mxu0
  %v868 = vadd.f32 %v296, %v867
  %v869 = vpop.f32.mrf.mxu0
  %870 = vmatprep.mubr.f32.mxu0 0.0
  %871 = vmatmul.mubr.f32.gmra.mxu0 %v489
  %v872 = vpop.f32.mrf.mxu0
  %v873 = vadd.f32 %v296, %v872
  %v874 = vpop.f32.mrf.mxu0
  %875 = vdwg.mxu0
  %876 = vst [vmem:[%s4] sm:$0xff] %v558
  %877 = vst [vmem:[%s4 + $0x8] sm:$0xff] %v563
  %878 = vst [vmem:[%s4 + $0x10] sm:$0xff] %v568
  %879 = vst [vmem:[%s4 + $0x18] sm:$0xff] %v573
  %880 = vst [vmem:[%s4 + $0x20] sm:$0xff] %v578
  %881 = vst [vmem:[%s4 + $0x28] sm:$0xff] %v583
  %882 = vst [vmem:[%s4 + $0x30] sm:$0xff] %v588
  %883 = vst [vmem:[%s4 + $0x38] sm:$0xff] %v593
  %884 = vst [vmem:[%s4 + $0x40] sm:$0xff] %v598
  %885 = vst [vmem:[%s4 + $0x48] sm:$0xff] %v603
  %886 = vst [vmem:[%s4 + $0x50] sm:$0xff] %v608
  %887 = vst [vmem:[%s4 + $0x58] sm:$0xff] %v613
  %888 = vst [vmem:[%s4 + $0x60] sm:$0xff] %v618
  %889 = vst [vmem:[%s4 + $0x68] sm:$0xff] %v623
  %890 = vst [vmem:[%s4 + $0x70] sm:$0xff] %v628
  %891 = vst [vmem:[%s4 + $0x78] sm:$0xff] %v633
  %892 = vst [vmem:[%s4 + $0x80] sm:$0xff] %v638
  %893 = vst [vmem:[%s4 + $0x88] sm:$0xff] %v643
  %894 = vst [vmem:[%s4 + $0x90] sm:$0xff] %v648
  %895 = vst [vmem:[%s4 + $0x98] sm:$0xff] %v653
  %896 = vst [vmem:[%s4 + $0xa0] sm:$0xff] %v658
  %897 = vst [vmem:[%s4 + $0xa8] sm:$0xff] %v663
  %898 = vst [vmem:[%s4 + $0xb0] sm:$0xff] %v668
  %899 = vst [vmem:[%s4 + $0xb8] sm:$0xff] %v673
  %900 = vst [vmem:[%s4 + $0xc0] sm:$0xff] %v678
  %901 = vst [vmem:[%s4 + $0xc8] sm:$0xff] %v683
  %902 = vst [vmem:[%s4 + $0xd0] sm:$0xff] %v688
  %903 = vst [vmem:[%s4 + $0xd8] sm:$0xff] %v693
  %904 = vst [vmem:[%s4 + $0xe0] sm:$0xff] %v698
  %905 = vst [vmem:[%s4 + $0xe8] sm:$0xff] %v703
  %906 = vst [vmem:[%s4 + $0xf0] sm:$0xff] %v708
  %907 = vst [vmem:[%s4 + $0xf8] sm:$0xff] %v713
  %908 = vst [vmem:[%s4 + $0x100] sm:$0xff] %v718
  %909 = vst [vmem:[%s4 + $0x108] sm:$0xff] %v723
  %910 = vst [vmem:[%s4 + $0x110] sm:$0xff] %v728
  %911 = vst [vmem:[%s4 + $0x118] sm:$0xff] %v733
  %912 = vst [vmem:[%s4 + $0x120] sm:$0xff] %v738
  %913 = vst [vmem:[%s4 + $0x128] sm:$0xff] %v743
  %914 = vst [vmem:[%s4 + $0x130] sm:$0xff] %v748
  %915 = vst [vmem:[%s4 + $0x138] sm:$0xff] %v753
  %916 = vst [vmem:[%s4 + $0x140] sm:$0xff] %v758
  %917 = vst [vmem:[%s4 + $0x148] sm:$0xff] %v763
  %918 = vst [vmem:[%s4 + $0x150] sm:$0xff] %v768
  %919 = vst [vmem:[%s4 + $0x158] sm:$0xff] %v773
  %920 = vst [vmem:[%s4 + $0x160] sm:$0xff] %v778
  %921 = vst [vmem:[%s4 + $0x168] sm:$0xff] %v783
  %922 = vst [vmem:[%s4 + $0x170] sm:$0xff] %v788
  %923 = vst [vmem:[%s4 + $0x178] sm:$0xff] %v793
  %924 = vst [vmem:[%s4 + $0x180] sm:$0xff] %v798
  %925 = vst [vmem:[%s4 + $0x188] sm:$0xff] %v803
  %926 = vst [vmem:[%s4 + $0x190] sm:$0xff] %v808
  %927 = vst [vmem:[%s4 + $0x198] sm:$0xff] %v813
  %928 = vst [vmem:[%s4 + $0x1a0] sm:$0xff] %v818
  %929 = vst [vmem:[%s4 + $0x1a8] sm:$0xff] %v823
  %930 = vst [vmem:[%s4 + $0x1b0] sm:$0xff] %v828
  %931 = vst [vmem:[%s4 + $0x1b8] sm:$0xff] %v833
  %932 = vst [vmem:[%s4 + $0x1c0] sm:$0xff] %v838
  %933 = vst [vmem:[%s4 + $0x1c8] sm:$0xff] %v843
  %934 = vst [vmem:[%s4 + $0x1d0] sm:$0xff] %v848
  %935 = vst [vmem:[%s4 + $0x1d8] sm:$0xff] %v853
  %936 = vst [vmem:[%s4 + $0x1e0] sm:$0xff] %v858
  %937 = vst [vmem:[%s4 + $0x1e8] sm:$0xff] %v863
  %938 = vst [vmem:[%s4 + $0x1f0] sm:$0xff] %v868
  %939 = vst [vmem:[%s4 + $0x1f8] sm:$0xff] %v873
  // Predicated region
  $region18: #{ema_up_decoder_forward.19} parent=0 // pred_check
    _
  $region19: #{ema_up_decoder_forward.19} parent=0 // pred_check_branch
    %941 = sbr.rel (0) target = $region21
  $region20: #{ema_up_decoder_forward.19} parent=0 // pred_region
    _
  $region21: #{ema_up_decoder_forward.19} parent=0 // pred_fallthru
    _
  // Predicated region
  $region22: #{ema_up_decoder_forward.19} parent=0 // pred_check
    _
  $region23: #{ema_up_decoder_forward.19} parent=0 // pred_check_branch
    %943 = sbr.rel (0) target = $region25
  $region24: #{ema_up_decoder_forward.19} parent=0 // pred_region
    _
  $region25: #{ema_up_decoder_forward.19} parent=0 // pred_fallthru
    _

</llo_original>
